<compile_context>
chip_gen: v7x
topology: tpu7x:2x2x1
jax: 0.10.0
libtpu: 0.0.40
codegen_flags: <defaults>
</compile_context>

<pallas_src>
import functools

import jax
import jax.numpy as jnp
import numpy as np
from jax.experimental import pallas as pl
from jax.experimental.pallas import tpu as pltpu

K_SIZE = 5
PAD = 2
BN_EPS = 1e-5
_VMEM_LIMIT = 32 * 1024 * 1024   # explicit scoped-VMEM cap (actual usage is ~2 MB)


# ----------------------------- Pallas kernel ------------------------------

def _layer_kernel(x_ref, w_ref, q_ref, g_ref, b_ref, o_ref, xcols_ref, y_ref,
                  *, height, width, cin, cs, n_img):
    """Fused Conv5x5('same') + BatchNorm(train stats) + ReLU + AvgPool2x2 for one layer.

    x_ref:     (N, Cin, (H+6)*W) f32   -- per-image vertically zero-padded input (flat rows).
    w_ref:     (Cout, 25*Cs)     bf16  -- (dy, dx, ci)-flattened weights, Cin padded to Cs.
    q_ref:     (H*W, H*W//4)     bf16  -- constant 2x2 average-pooling matrix.
    g_ref:     (Cout, 1)         f32   -- BN gamma.
    b_ref:     (Cout, 1)         f32   -- BN beta.
    o_ref:     (Cout, N*H*W//4)  f32   -- pooled output (lane-dense overall).
    xcols_ref: (25*Cs, H*W)      f32   -- im2col staging scratch (VMEM).
    y_ref:     (Cout, N*H*W)     f32   -- conv output scratch, kept on-chip (VMEM).
    """
    tm = height * width
    mo = tm // 4
    m_total = n_img * tm

    wmat = w_ref[...]                       # (Cout, 25*Cs) bf16, loaded once
    qmat = q_ref[...]                       # (TM, TM//4)   bf16, loaded once

    # Hoisted horizontal-border masks (dx offsets -2,-1,1,2) as 0/1 f32 multipliers.
    wcol = jax.lax.broadcasted_iota(jnp.int32, (1, tm), 1) % width
    masks = {}
    for off in (-PAD, -1, 1, PAD):
        if off < 0:
            masks[off] = (wcol >= -off).astype(jnp.float32)
        else:
            masks[off] = (wcol < width - off).astype(jnp.float32)

    # Dead channel rows (cin..cs of each tap slot) must be defined; the matching weight
    # columns are zero, so zero-init once and never touch them again.
    if cin != cs:
        xcols_ref[...] = jnp.zeros((K_SIZE * K_SIZE * cs, tm), jnp.float32)

    for n in range(n_img):
        # im2col: 25 shifted + masked copies of this image into the staging scratch.
        for dy in range(K_SIZE):
            base = (dy + 1) * width          # +1 guard row keeps every slice in-bounds
            for dx in range(K_SIZE):
                off = dx - PAD
                start = base + off
                xwin = x_ref[n, :, start:start + tm]            # (Cin, TM) f32
                if off != 0:
                    xwin = xwin * masks[off]                    # zero wrapped border lanes
                r = (dy * K_SIZE + dx) * cs
                xcols_ref[r:r + cin, :] = xwin
        # One K = 25*Cs matmul per image (bf16 MXU feed, f32 accumulation).
        y_ref[:, n * tm:(n + 1) * tm] = jnp.dot(
            wmat, xcols_ref[...].astype(jnp.bfloat16),
            preferred_element_type=jnp.float32)

    # Training-mode BatchNorm statistics, reduced entirely on-chip.
    yall = y_ref[...]                                           # (Cout, N*TM) f32
    inv_m = 1.0 / float(m_total)
    mean = jnp.sum(yall, axis=1, keepdims=True) * inv_m
    ssq = jnp.sum(yall * yall, axis=1, keepdims=True) * inv_m
    var = jnp.maximum(ssq - mean * mean, 0.0)
    scale = g_ref[...] * jax.lax.rsqrt(var + BN_EPS)            # rsqrt -> EUP slot
    shift = b_ref[...] - mean * scale

    # BN affine + ReLU, then 2x2 average pooling as one constant bf16 matmul per image.
    t = jnp.maximum(yall * scale + shift, 0.0)
    for n in range(n_img):
        pooled = jnp.dot(t[:, n * tm:(n + 1) * tm].astype(jnp.bfloat16), qmat,
                         preferred_element_type=jnp.float32)
        o_ref[:, n * mo:(n + 1) * mo] = pooled


# ------------------------------ host-side glue ------------------------------

def _pool_matrix(tm, width):
    """(TM, TM//4) constant doing 2x2 average pooling over the flat row-major layout."""
    wo = width // 2
    q = np.zeros((tm, tm // 4), np.float32)
    for m in range(tm):
        r, c = divmod(m, width)
        q[m, (r // 2) * wo + (c // 2)] = 0.25
    return q


def _layer_call(xflat, w2d, q, gamma, beta, *, n_img, cin, cs, cout, h, w):
    tm = h * w
    mo = tm // 4
    kk = K_SIZE * K_SIZE * cs
    hp_w = xflat.shape[2]
    kernel = functools.partial(_layer_kernel, height=h, width=w,
                               cin=cin, cs=cs, n_img=n_img)
    return pl.pallas_call(
        kernel,
        out_shape=jax.ShapeDtypeStruct((cout, n_img * mo), jnp.float32),
        grid_spec=pltpu.PrefetchScalarGridSpec(
            num_scalar_prefetch=0,
            grid=(1,),
            in_specs=[
                pl.BlockSpec((n_img, cin, hp_w), lambda i: (0, 0, 0)),
                pl.BlockSpec((cout, kk), lambda i: (0, 0)),
                pl.BlockSpec((tm, mo), lambda i: (0, 0)),
                pl.BlockSpec((cout, 1), lambda i: (0, 0)),
                pl.BlockSpec((cout, 1), lambda i: (0, 0)),
            ],
            out_specs=pl.BlockSpec((cout, n_img * mo), lambda i: (0, 0)),
            scratch_shapes=[
                pltpu.VMEM((kk, tm), jnp.float32),             # im2col staging
                pltpu.VMEM((cout, n_img * tm), jnp.float32),   # on-chip conv output
            ],
        ),
        compiler_params=pltpu.CompilerParams(
            dimension_semantics=("arbitrary",),
            vmem_limit_bytes=_VMEM_LIMIT),
    )(xflat, w2d, q, gamma, beta)


def prepare_layers(params):
    """One-time parameter preprocessing (hoisted out of the jitted forward)."""
    layers = []
    for (w, b, gamma, beta) in params:
        cout, cin, kh, kw = w.shape
        cs = ((cin + 7) // 8) * 8                              # pad channels to 8 sublanes
        wt = jnp.transpose(w, (0, 2, 3, 1))                    # (Cout, kh, kw, Cin)
        wt = jnp.pad(wt, ((0, 0), (0, 0), (0, 0), (0, cs - cin)))
        w2d = wt.reshape(cout, kh * kw * cs).astype(jnp.bfloat16)
        # Conv bias `b` is dropped on purpose: training-mode BatchNorm subtracts the batch
        # mean, which cancels a per-channel constant exactly.
        del b
        layers.append((w2d,
                       gamma.reshape(cout, 1).astype(jnp.float32),
                       beta.reshape(cout, 1).astype(jnp.float32)))
    return tuple(layers)


@jax.jit
def funnel_forward(x_nchw, layers):
    """Matches funnel(*ch).forward(x) for a freshly initialized module (training mode)."""
    act = x_nchw.astype(jnp.float32)                           # (N, C, H, W)
    for (w2d, gamma, beta) in layers:
        n, cin, h, w = act.shape
        cout = w2d.shape[0]
        cs = w2d.shape[1] // (K_SIZE * K_SIZE)
        # Vertical zero padding only (PAD + 1 guard rows each side); horizontal padding is
        # handled by in-kernel lane masks, so there is no duplicated-halo restaging in HBM.
        xp = jnp.pad(act, ((0, 0), (0, 0), (PAD + 1, PAD + 1), (0, 0)))
        xflat = xp.reshape(n, cin, (h + 2 * (PAD + 1)) * w)
        q = jnp.asarray(_pool_matrix(h * w, w), dtype=jnp.bfloat16)
        pooled = _layer_call(xflat, w2d, q, gamma, beta,
                             n_img=n, cin=cin, cs=cs, cout=cout, h=h, w=w)
        # (Cout, N*Ho*Wo) -> (N, Cout, Ho, Wo) for the next layer / final output.
        act = pooled.reshape(cout, n, h // 2, w // 2).transpose(1, 0, 2, 3)
    return act


# ------------------------------ pure-JAX reference ------------------------------

def _reference_forward(x_nchw, params):
    y = x_nchw
    for (w, b, gamma, beta) in params:
        y = jax.lax.conv_general_dilated(
            y, w, window_strides=(1, 1), padding=((PAD, PAD), (PAD, PAD)),
            dimension_numbers=("NCHW", "OIHW", "NCHW"),
            precision=jax.lax.Precision.HIGHEST)
        y = y + b.reshape(1, -1, 1, 1)
        mean = jnp.mean(y, axis=(0, 2, 3), keepdims=True)
        var = jnp.mean((y - mean) ** 2, axis=(0, 2, 3), keepdims=True)
        y = gamma.reshape(1, -1, 1, 1) * (y - mean) / jnp.sqrt(var + BN_EPS) \
            + beta.reshape(1, -1, 1, 1)
        y = jnp.maximum(y, 0.0)
        nb, c, hh, ww = y.shape
        y = y.reshape(nb, c, hh // 2, 2, ww // 2, 2).mean(axis=(3, 5))
    return y


# ----------------------------------- main -----------------------------------

if __name__ == "__main__":
    key = jax.random.PRNGKey(0)

    # funnel(4, 8, 8): two [conv5x5 -> bn -> relu -> avgpool2x2] blocks.
    ch = (4, 8, 8)
    N, H, W = 2, 32, 32

    params = []
    for i in range(len(ch) - 1):
        key, k1, k2, k3, k4 = jax.random.split(key, 5)
        cin, cout = ch[i], ch[i + 1]
        fan_in = cin * K_SIZE * K_SIZE
        w = jax.random.normal(k1, (cout, cin, K_SIZE, K_SIZE), jnp.float32) / np.sqrt(fan_in)
        b = 0.1 * jax.random.normal(k2, (cout,), jnp.float32)
        gamma = 1.0 + 0.1 * jax.random.normal(k3, (cout,), jnp.float32)
        beta = 0.1 * jax.random.normal(k4, (cout,), jnp.float32)
        params.append((w, b, gamma, beta))

    key, kx = jax.random.split(key)
    x = jax.random.normal(kx, (N, ch[0], H, W), jnp.float32)

    layers = prepare_layers(params)
    y = funnel_forward(x, layers)
    y = jax.block_until_ready(y)

    y_ref = _reference_forward(x, params)
    # Tolerance accounts for the bf16 MXU feeds (f32 accumulation throughout).
    np.testing.assert_allclose(np.asarray(y), np.asarray(y_ref), rtol=2e-2, atol=2e-2)

    print("KERNEL_OK")
</pallas_src>

<mosaic_0001>
module attributes {stable_mosaic.version = 11 : i64} {
  func.func @_layer_kernel(%arg0: i32, %arg1: memref<2x8x352xf32, #tpu.memory_space<vmem>>, %arg2: memref<8x200xbf16, #tpu.memory_space<vmem>>, %arg3: memref<256x64xbf16, #tpu.memory_space<vmem>>, %arg4: memref<8x1xf32, #tpu.memory_space<vmem>>, %arg5: memref<8x1xf32, #tpu.memory_space<vmem>>, %arg6: memref<8x128xf32, #tpu.memory_space<vmem>>, %arg7: memref<200x256xf32, #tpu.memory_space<vmem>>, %arg8: memref<8x512xf32, #tpu.memory_space<vmem>>) attributes {dimension_semantics = [#tpu.dimension_semantics<arbitrary>], iteration_bounds = array<i64: 1>, scalar_prefetch = 0 : i64, scratch_operands = 2 : i64, tpu.core_type = #tpu.core_type<tc>, window_params = [{pipeline_mode = #tpu.pipeline_mode<synchronous>, transform_indices = @transform_0, window_bounds = array<i64: 2, 8, 352>}, {pipeline_mode = #tpu.pipeline_mode<synchronous>, transform_indices = @transform_1, window_bounds = array<i64: 8, 200>}, {pipeline_mode = #tpu.pipeline_mode<synchronous>, transform_indices = @transform_2, window_bounds = array<i64: 256, 64>}, {pipeline_mode = #tpu.pipeline_mode<synchronous>, transform_indices = @transform_3, window_bounds = array<i64: 8, 1>}, {pipeline_mode = #tpu.pipeline_mode<synchronous>, transform_indices = @transform_4, window_bounds = array<i64: 8, 1>}, {pipeline_mode = #tpu.pipeline_mode<synchronous>, transform_indices = @transform_5, window_bounds = array<i64: 8, 128>}]} {
    %c0 = arith.constant 0 : index
    %c0_0 = arith.constant 0 : index
    %0 = vector.load %arg2[%c0, %c0_0] : memref<8x200xbf16, #tpu.memory_space<vmem>>, vector<8x200xbf16>
    %c0_1 = arith.constant 0 : index
    %c0_2 = arith.constant 0 : index
    %1 = vector.load %arg3[%c0_1, %c0_2] : memref<256x64xbf16, #tpu.memory_space<vmem>>, vector<256x64xbf16>
    %2 = tpu.iota {dimensions = array<i32: 1>} : vector<1x256xi32>
    %c16_i32 = arith.constant 16 : i32
    %c0_i32 = arith.constant 0 : i32
    %3 = arith.cmpi eq, %c16_i32, %c0_i32 : i32
    %c1_i32 = arith.constant 1 : i32
    %4 = arith.select %3, %c1_i32, %c16_i32 : i32
    %5 = vector.broadcast %4 : i32 to vector<1x256xi32>
    %6 = arith.remsi %2, %5 : vector<1x256xi32>
    %c0_i32_3 = arith.constant 0 : i32
    %7 = vector.broadcast %c0_i32_3 : i32 to vector<1x256xi32>
    %8 = arith.cmpi ne, %6, %7 : vector<1x256xi32>
    %c0_i32_4 = arith.constant 0 : i32
    %9 = vector.broadcast %c0_i32_4 : i32 to vector<1x256xi32>
    %10 = arith.cmpi slt, %6, %9 : vector<1x256xi32>
    %c0_i32_5 = arith.constant 0 : i32
    %11 = arith.cmpi slt, %4, %c0_i32_5 : i32
    %12 = vector.broadcast %11 : i1 to vector<1x256xi1>
    %13 = vector.broadcast %12 : vector<1x256xi1> to vector<1x256xi1>
    %14 = arith.xori %10, %13 : vector<1x256xi1>
    %15 = arith.andi %14, %8 : vector<1x256xi1>
    %16 = vector.broadcast %4 : i32 to vector<1x256xi32>
    %17 = arith.addi %6, %16 : vector<1x256xi32>
    %18 = arith.select %15, %17, %6 : vector<1x256xi1>, vector<1x256xi32>
    %c2_i32 = arith.constant 2 : i32
    %19 = vector.broadcast %c2_i32 : i32 to vector<1x256xi32>
    %20 = arith.cmpi sge, %18, %19 : vector<1x256xi32>
    %21 = arith.extui %20 : vector<1x256xi1> to vector<1x256xi32>
    %22 = arith.sitofp %21 : vector<1x256xi32> to vector<1x256xf32>
    %c1_i32_6 = arith.constant 1 : i32
    %23 = vector.broadcast %c1_i32_6 : i32 to vector<1x256xi32>
    %24 = arith.cmpi sge, %18, %23 : vector<1x256xi32>
    %25 = arith.extui %24 : vector<1x256xi1> to vector<1x256xi32>
    %26 = arith.sitofp %25 : vector<1x256xi32> to vector<1x256xf32>
    %c15_i32 = arith.constant 15 : i32
    %27 = vector.broadcast %c15_i32 : i32 to vector<1x256xi32>
    %28 = arith.cmpi slt, %18, %27 : vector<1x256xi32>
    %29 = arith.extui %28 : vector<1x256xi1> to vector<1x256xi32>
    %30 = arith.sitofp %29 : vector<1x256xi32> to vector<1x256xf32>
    %c14_i32 = arith.constant 14 : i32
    %31 = vector.broadcast %c14_i32 : i32 to vector<1x256xi32>
    %32 = arith.cmpi slt, %18, %31 : vector<1x256xi32>
    %33 = arith.extui %32 : vector<1x256xi1> to vector<1x256xi32>
    %34 = arith.sitofp %33 : vector<1x256xi32> to vector<1x256xf32>
    %c0_7 = arith.constant 0 : index
    %c0_8 = arith.constant 0 : index
    %c14 = arith.constant 14 : index
    %35 = vector.load %arg1[%c0_7, %c0_8, %c14] : memref<2x8x352xf32, #tpu.memory_space<vmem>>, vector<1x8x256xf32>
    %36 = vector.shape_cast %35 : vector<1x8x256xf32> to vector<8x256xf32>
    %37 = vector.broadcast %22 : vector<1x256xf32> to vector<8x256xf32>
    %38 = arith.mulf %36, %37 : vector<8x256xf32>
    %c0_9 = arith.constant 0 : index
    %c0_10 = arith.constant 0 : index
    %39 = vector.load %arg7[%c0_9, %c0_10] : memref<200x256xf32, #tpu.memory_space<vmem>>, vector<8x256xf32>
    tpu.vector_store %arg7[%c0_9, %c0_10], %38 {strides = array<i32>} : memref<200x256xf32, #tpu.memory_space<vmem>>, vector<8x256xf32>,
    %c0_11 = arith.constant 0 : index
    %c0_12 = arith.constant 0 : index
    %c15 = arith.constant 15 : index
    %40 = vector.load %arg1[%c0_11, %c0_12, %c15] : memref<2x8x352xf32, #tpu.memory_space<vmem>>, vector<1x8x256xf32>
    %41 = vector.shape_cast %40 : vector<1x8x256xf32> to vector<8x256xf32>
    %42 = vector.broadcast %26 : vector<1x256xf32> to vector<8x256xf32>
    %43 = arith.mulf %41, %42 : vector<8x256xf32>
    %c8 = arith.constant 8 : index
    %c0_13 = arith.constant 0 : index
    %44 = vector.load %arg7[%c8, %c0_13] : memref<200x256xf32, #tpu.memory_space<vmem>>, vector<8x256xf32>
    tpu.vector_store %arg7[%c8, %c0_13], %43 {strides = array<i32>} : memref<200x256xf32, #tpu.memory_space<vmem>>, vector<8x256xf32>,
    %c0_14 = arith.constant 0 : index
    %c0_15 = arith.constant 0 : index
    %c16 = arith.constant 16 : index
    %45 = vector.load %arg1[%c0_14, %c0_15, %c16] : memref<2x8x352xf32, #tpu.memory_space<vmem>>, vector<1x8x256xf32>
    %46 = vector.shape_cast %45 : vector<1x8x256xf32> to vector<8x256xf32>
    %c16_16 = arith.constant 16 : index
    %c0_17 = arith.constant 0 : index
    %47 = vector.load %arg7[%c16_16, %c0_17] : memref<200x256xf32, #tpu.memory_space<vmem>>, vector<8x256xf32>
    tpu.vector_store %arg7[%c16_16, %c0_17], %46 {strides = array<i32>} : memref<200x256xf32, #tpu.memory_space<vmem>>, vector<8x256xf32>,
    %c0_18 = arith.constant 0 : index
    %c0_19 = arith.constant 0 : index
    %c17 = arith.constant 17 : index
    %48 = vector.load %arg1[%c0_18, %c0_19, %c17] : memref<2x8x352xf32, #tpu.memory_space<vmem>>, vector<1x8x256xf32>
    %49 = vector.shape_cast %48 : vector<1x8x256xf32> to vector<8x256xf32>
    %50 = vector.broadcast %30 : vector<1x256xf32> to vector<8x256xf32>
    %51 = arith.mulf %49, %50 : vector<8x256xf32>
    %c24 = arith.constant 24 : index
    %c0_20 = arith.constant 0 : index
    %52 = vector.load %arg7[%c24, %c0_20] : memref<200x256xf32, #tpu.memory_space<vmem>>, vector<8x256xf32>
    tpu.vector_store %arg7[%c24, %c0_20], %51 {strides = array<i32>} : memref<200x256xf32, #tpu.memory_space<vmem>>, vector<8x256xf32>,
    %c0_21 = arith.constant 0 : index
    %c0_22 = arith.constant 0 : index
    %c18 = arith.constant 18 : index
    %53 = vector.load %arg1[%c0_21, %c0_22, %c18] : memref<2x8x352xf32, #tpu.memory_space<vmem>>, vector<1x8x256xf32>
    %54 = vector.shape_cast %53 : vector<1x8x256xf32> to vector<8x256xf32>
    %55 = vector.broadcast %34 : vector<1x256xf32> to vector<8x256xf32>
    %56 = arith.mulf %54, %55 : vector<8x256xf32>
    %c32 = arith.constant 32 : index
    %c0_23 = arith.constant 0 : index
    %57 = vector.load %arg7[%c32, %c0_23] : memref<200x256xf32, #tpu.memory_space<vmem>>, vector<8x256xf32>
    tpu.vector_store %arg7[%c32, %c0_23], %56 {strides = array<i32>} : memref<200x256xf32, #tpu.memory_space<vmem>>, vector<8x256xf32>,
    %c0_24 = arith.constant 0 : index
    %c0_25 = arith.constant 0 : index
    %c30 = arith.constant 30 : index
    %58 = vector.load %arg1[%c0_24, %c0_25, %c30] : memref<2x8x352xf32, #tpu.memory_space<vmem>>, vector<1x8x256xf32>
    %59 = vector.shape_cast %58 : vector<1x8x256xf32> to vector<8x256xf32>
    %60 = vector.broadcast %22 : vector<1x256xf32> to vector<8x256xf32>
    %61 = arith.mulf %59, %60 : vector<8x256xf32>
    %c40 = arith.constant 40 : index
    %c0_26 = arith.constant 0 : index
    %62 = vector.load %arg7[%c40, %c0_26] : memref<200x256xf32, #tpu.memory_space<vmem>>, vector<8x256xf32>
    tpu.vector_store %arg7[%c40, %c0_26], %61 {strides = array<i32>} : memref<200x256xf32, #tpu.memory_space<vmem>>, vector<8x256xf32>,
    %c0_27 = arith.constant 0 : index
    %c0_28 = arith.constant 0 : index
    %c31 = arith.constant 31 : index
    %63 = vector.load %arg1[%c0_27, %c0_28, %c31] : memref<2x8x352xf32, #tpu.memory_space<vmem>>, vector<1x8x256xf32>
    %64 = vector.shape_cast %63 : vector<1x8x256xf32> to vector<8x256xf32>
    %65 = vector.broadcast %26 : vector<1x256xf32> to vector<8x256xf32>
    %66 = arith.mulf %64, %65 : vector<8x256xf32>
    %c48 = arith.constant 48 : index
    %c0_29 = arith.constant 0 : index
    %67 = vector.load %arg7[%c48, %c0_29] : memref<200x256xf32, #tpu.memory_space<vmem>>, vector<8x256xf32>
    tpu.vector_store %arg7[%c48, %c0_29], %66 {strides = array<i32>} : memref<200x256xf32, #tpu.memory_space<vmem>>, vector<8x256xf32>,
    %c0_30 = arith.constant 0 : index
    %c0_31 = arith.constant 0 : index
    %c32_32 = arith.constant 32 : index
    %68 = vector.load %arg1[%c0_30, %c0_31, %c32_32] : memref<2x8x352xf32, #tpu.memory_space<vmem>>, vector<1x8x256xf32>
    %69 = vector.shape_cast %68 : vector<1x8x256xf32> to vector<8x256xf32>
    %c56 = arith.constant 56 : index
    %c0_33 = arith.constant 0 : index
    %70 = vector.load %arg7[%c56, %c0_33] : memref<200x256xf32, #tpu.memory_space<vmem>>, vector<8x256xf32>
    tpu.vector_store %arg7[%c56, %c0_33], %69 {strides = array<i32>} : memref<200x256xf32, #tpu.memory_space<vmem>>, vector<8x256xf32>,
    %c0_34 = arith.constant 0 : index
    %c0_35 = arith.constant 0 : index
    %c33 = arith.constant 33 : index
    %71 = vector.load %arg1[%c0_34, %c0_35, %c33] : memref<2x8x352xf32, #tpu.memory_space<vmem>>, vector<1x8x256xf32>
    %72 = vector.shape_cast %71 : vector<1x8x256xf32> to vector<8x256xf32>
    %73 = vector.broadcast %30 : vector<1x256xf32> to vector<8x256xf32>
    %74 = arith.mulf %72, %73 : vector<8x256xf32>
    %c64 = arith.constant 64 : index
    %c0_36 = arith.constant 0 : index
    %75 = vector.load %arg7[%c64, %c0_36] : memref<200x256xf32, #tpu.memory_space<vmem>>, vector<8x256xf32>
    tpu.vector_store %arg7[%c64, %c0_36], %74 {strides = array<i32>} : memref<200x256xf32, #tpu.memory_space<vmem>>, vector<8x256xf32>,
    %c0_37 = arith.constant 0 : index
    %c0_38 = arith.constant 0 : index
    %c34 = arith.constant 34 : index
    %76 = vector.load %arg1[%c0_37, %c0_38, %c34] : memref<2x8x352xf32, #tpu.memory_space<vmem>>, vector<1x8x256xf32>
    %77 = vector.shape_cast %76 : vector<1x8x256xf32> to vector<8x256xf32>
    %78 = vector.broadcast %34 : vector<1x256xf32> to vector<8x256xf32>
    %79 = arith.mulf %77, %78 : vector<8x256xf32>
    %c72 = arith.constant 72 : index
    %c0_39 = arith.constant 0 : index
    %80 = vector.load %arg7[%c72, %c0_39] : memref<200x256xf32, #tpu.memory_space<vmem>>, vector<8x256xf32>
    tpu.vector_store %arg7[%c72, %c0_39], %79 {strides = array<i32>} : memref<200x256xf32, #tpu.memory_space<vmem>>, vector<8x256xf32>,
    %c0_40 = arith.constant 0 : index
    %c0_41 = arith.constant 0 : index
    %c46 = arith.constant 46 : index
    %81 = vector.load %arg1[%c0_40, %c0_41, %c46] : memref<2x8x352xf32, #tpu.memory_space<vmem>>, vector<1x8x256xf32>
    %82 = vector.shape_cast %81 : vector<1x8x256xf32> to vector<8x256xf32>
    %83 = vector.broadcast %22 : vector<1x256xf32> to vector<8x256xf32>
    %84 = arith.mulf %82, %83 : vector<8x256xf32>
    %c80 = arith.constant 80 : index
    %c0_42 = arith.constant 0 : index
    %85 = vector.load %arg7[%c80, %c0_42] : memref<200x256xf32, #tpu.memory_space<vmem>>, vector<8x256xf32>
    tpu.vector_store %arg7[%c80, %c0_42], %84 {strides = array<i32>} : memref<200x256xf32, #tpu.memory_space<vmem>>, vector<8x256xf32>,
    %c0_43 = arith.constant 0 : index
    %c0_44 = arith.constant 0 : index
    %c47 = arith.constant 47 : index
    %86 = vector.load %arg1[%c0_43, %c0_44, %c47] : memref<2x8x352xf32, #tpu.memory_space<vmem>>, vector<1x8x256xf32>
    %87 = vector.shape_cast %86 : vector<1x8x256xf32> to vector<8x256xf32>
    %88 = vector.broadcast %26 : vector<1x256xf32> to vector<8x256xf32>
    %89 = arith.mulf %87, %88 : vector<8x256xf32>
    %c88 = arith.constant 88 : index
    %c0_45 = arith.constant 0 : index
    %90 = vector.load %arg7[%c88, %c0_45] : memref<200x256xf32, #tpu.memory_space<vmem>>, vector<8x256xf32>
    tpu.vector_store %arg7[%c88, %c0_45], %89 {strides = array<i32>} : memref<200x256xf32, #tpu.memory_space<vmem>>, vector<8x256xf32>,
    %c0_46 = arith.constant 0 : index
    %c0_47 = arith.constant 0 : index
    %c48_48 = arith.constant 48 : index
    %91 = vector.load %arg1[%c0_46, %c0_47, %c48_48] : memref<2x8x352xf32, #tpu.memory_space<vmem>>, vector<1x8x256xf32>
    %92 = vector.shape_cast %91 : vector<1x8x256xf32> to vector<8x256xf32>
    %c96 = arith.constant 96 : index
    %c0_49 = arith.constant 0 : index
    %93 = vector.load %arg7[%c96, %c0_49] : memref<200x256xf32, #tpu.memory_space<vmem>>, vector<8x256xf32>
    tpu.vector_store %arg7[%c96, %c0_49], %92 {strides = array<i32>} : memref<200x256xf32, #tpu.memory_space<vmem>>, vector<8x256xf32>,
    %c0_50 = arith.constant 0 : index
    %c0_51 = arith.constant 0 : index
    %c49 = arith.constant 49 : index
    %94 = vector.load %arg1[%c0_50, %c0_51, %c49] : memref<2x8x352xf32, #tpu.memory_space<vmem>>, vector<1x8x256xf32>
    %95 = vector.shape_cast %94 : vector<1x8x256xf32> to vector<8x256xf32>
    %96 = vector.broadcast %30 : vector<1x256xf32> to vector<8x256xf32>
    %97 = arith.mulf %95, %96 : vector<8x256xf32>
    %c104 = arith.constant 104 : index
    %c0_52 = arith.constant 0 : index
    %98 = vector.load %arg7[%c104, %c0_52] : memref<200x256xf32, #tpu.memory_space<vmem>>, vector<8x256xf32>
    tpu.vector_store %arg7[%c104, %c0_52], %97 {strides = array<i32>} : memref<200x256xf32, #tpu.memory_space<vmem>>, vector<8x256xf32>,
    %c0_53 = arith.constant 0 : index
    %c0_54 = arith.constant 0 : index
    %c50 = arith.constant 50 : index
    %99 = vector.load %arg1[%c0_53, %c0_54, %c50] : memref<2x8x352xf32, #tpu.memory_space<vmem>>, vector<1x8x256xf32>
    %100 = vector.shape_cast %99 : vector<1x8x256xf32> to vector<8x256xf32>
    %101 = vector.broadcast %34 : vector<1x256xf32> to vector<8x256xf32>
    %102 = arith.mulf %100, %101 : vector<8x256xf32>
    %c112 = arith.constant 112 : index
    %c0_55 = arith.constant 0 : index
    %103 = vector.load %arg7[%c112, %c0_55] : memref<200x256xf32, #tpu.memory_space<vmem>>, vector<8x256xf32>
    tpu.vector_store %arg7[%c112, %c0_55], %102 {strides = array<i32>} : memref<200x256xf32, #tpu.memory_space<vmem>>, vector<8x256xf32>,
    %c0_56 = arith.constant 0 : index
    %c0_57 = arith.constant 0 : index
    %c62 = arith.constant 62 : index
    %104 = vector.load %arg1[%c0_56, %c0_57, %c62] : memref<2x8x352xf32, #tpu.memory_space<vmem>>, vector<1x8x256xf32>
    %105 = vector.shape_cast %104 : vector<1x8x256xf32> to vector<8x256xf32>
    %106 = vector.broadcast %22 : vector<1x256xf32> to vector<8x256xf32>
    %107 = arith.mulf %105, %106 : vector<8x256xf32>
    %c120 = arith.constant 120 : index
    %c0_58 = arith.constant 0 : index
    %108 = vector.load %arg7[%c120, %c0_58] : memref<200x256xf32, #tpu.memory_space<vmem>>, vector<8x256xf32>
    tpu.vector_store %arg7[%c120, %c0_58], %107 {strides = array<i32>} : memref<200x256xf32, #tpu.memory_space<vmem>>, vector<8x256xf32>,
    %c0_59 = arith.constant 0 : index
    %c0_60 = arith.constant 0 : index
    %c63 = arith.constant 63 : index
    %109 = vector.load %arg1[%c0_59, %c0_60, %c63] : memref<2x8x352xf32, #tpu.memory_space<vmem>>, vector<1x8x256xf32>
    %110 = vector.shape_cast %109 : vector<1x8x256xf32> to vector<8x256xf32>
    %111 = vector.broadcast %26 : vector<1x256xf32> to vector<8x256xf32>
    %112 = arith.mulf %110, %111 : vector<8x256xf32>
    %c128 = arith.constant 128 : index
    %c0_61 = arith.constant 0 : index
    %113 = vector.load %arg7[%c128, %c0_61] : memref<200x256xf32, #tpu.memory_space<vmem>>, vector<8x256xf32>
    tpu.vector_store %arg7[%c128, %c0_61], %112 {strides = array<i32>} : memref<200x256xf32, #tpu.memory_space<vmem>>, vector<8x256xf32>,
    %c0_62 = arith.constant 0 : index
    %c0_63 = arith.constant 0 : index
    %c64_64 = arith.constant 64 : index
    %114 = vector.load %arg1[%c0_62, %c0_63, %c64_64] : memref<2x8x352xf32, #tpu.memory_space<vmem>>, vector<1x8x256xf32>
    %115 = vector.shape_cast %114 : vector<1x8x256xf32> to vector<8x256xf32>
    %c136 = arith.constant 136 : index
    %c0_65 = arith.constant 0 : index
    %116 = vector.load %arg7[%c136, %c0_65] : memref<200x256xf32, #tpu.memory_space<vmem>>, vector<8x256xf32>
    tpu.vector_store %arg7[%c136, %c0_65], %115 {strides = array<i32>} : memref<200x256xf32, #tpu.memory_space<vmem>>, vector<8x256xf32>,
    %c0_66 = arith.constant 0 : index
    %c0_67 = arith.constant 0 : index
    %c65 = arith.constant 65 : index
    %117 = vector.load %arg1[%c0_66, %c0_67, %c65] : memref<2x8x352xf32, #tpu.memory_space<vmem>>, vector<1x8x256xf32>
    %118 = vector.shape_cast %117 : vector<1x8x256xf32> to vector<8x256xf32>
    %119 = vector.broadcast %30 : vector<1x256xf32> to vector<8x256xf32>
    %120 = arith.mulf %118, %119 : vector<8x256xf32>
    %c144 = arith.constant 144 : index
    %c0_68 = arith.constant 0 : index
    %121 = vector.load %arg7[%c144, %c0_68] : memref<200x256xf32, #tpu.memory_space<vmem>>, vector<8x256xf32>
    tpu.vector_store %arg7[%c144, %c0_68], %120 {strides = array<i32>} : memref<200x256xf32, #tpu.memory_space<vmem>>, vector<8x256xf32>,
    %c0_69 = arith.constant 0 : index
    %c0_70 = arith.constant 0 : index
    %c66 = arith.constant 66 : index
    %122 = vector.load %arg1[%c0_69, %c0_70, %c66] : memref<2x8x352xf32, #tpu.memory_space<vmem>>, vector<1x8x256xf32>
    %123 = vector.shape_cast %122 : vector<1x8x256xf32> to vector<8x256xf32>
    %124 = vector.broadcast %34 : vector<1x256xf32> to vector<8x256xf32>
    %125 = arith.mulf %123, %124 : vector<8x256xf32>
    %c152 = arith.constant 152 : index
    %c0_71 = arith.constant 0 : index
    %126 = vector.load %arg7[%c152, %c0_71] : memref<200x256xf32, #tpu.memory_space<vmem>>, vector<8x256xf32>
    tpu.vector_store %arg7[%c152, %c0_71], %125 {strides = array<i32>} : memref<200x256xf32, #tpu.memory_space<vmem>>, vector<8x256xf32>,
    %c0_72 = arith.constant 0 : index
    %c0_73 = arith.constant 0 : index
    %c78 = arith.constant 78 : index
    %127 = vector.load %arg1[%c0_72, %c0_73, %c78] : memref<2x8x352xf32, #tpu.memory_space<vmem>>, vector<1x8x256xf32>
    %128 = vector.shape_cast %127 : vector<1x8x256xf32> to vector<8x256xf32>
    %129 = vector.broadcast %22 : vector<1x256xf32> to vector<8x256xf32>
    %130 = arith.mulf %128, %129 : vector<8x256xf32>
    %c160 = arith.constant 160 : index
    %c0_74 = arith.constant 0 : index
    %131 = vector.load %arg7[%c160, %c0_74] : memref<200x256xf32, #tpu.memory_space<vmem>>, vector<8x256xf32>
    tpu.vector_store %arg7[%c160, %c0_74], %130 {strides = array<i32>} : memref<200x256xf32, #tpu.memory_space<vmem>>, vector<8x256xf32>,
    %c0_75 = arith.constant 0 : index
    %c0_76 = arith.constant 0 : index
    %c79 = arith.constant 79 : index
    %132 = vector.load %arg1[%c0_75, %c0_76, %c79] : memref<2x8x352xf32, #tpu.memory_space<vmem>>, vector<1x8x256xf32>
    %133 = vector.shape_cast %132 : vector<1x8x256xf32> to vector<8x256xf32>
    %134 = vector.broadcast %26 : vector<1x256xf32> to vector<8x256xf32>
    %135 = arith.mulf %133, %134 : vector<8x256xf32>
    %c168 = arith.constant 168 : index
    %c0_77 = arith.constant 0 : index
    %136 = vector.load %arg7[%c168, %c0_77] : memref<200x256xf32, #tpu.memory_space<vmem>>, vector<8x256xf32>
    tpu.vector_store %arg7[%c168, %c0_77], %135 {strides = array<i32>} : memref<200x256xf32, #tpu.memory_space<vmem>>, vector<8x256xf32>,
    %c0_78 = arith.constant 0 : index
    %c0_79 = arith.constant 0 : index
    %c80_80 = arith.constant 80 : index
    %137 = vector.load %arg1[%c0_78, %c0_79, %c80_80] : memref<2x8x352xf32, #tpu.memory_space<vmem>>, vector<1x8x256xf32>
    %138 = vector.shape_cast %137 : vector<1x8x256xf32> to vector<8x256xf32>
    %c176 = arith.constant 176 : index
    %c0_81 = arith.constant 0 : index
    %139 = vector.load %arg7[%c176, %c0_81] : memref<200x256xf32, #tpu.memory_space<vmem>>, vector<8x256xf32>
    tpu.vector_store %arg7[%c176, %c0_81], %138 {strides = array<i32>} : memref<200x256xf32, #tpu.memory_space<vmem>>, vector<8x256xf32>,
    %c0_82 = arith.constant 0 : index
    %c0_83 = arith.constant 0 : index
    %c81 = arith.constant 81 : index
    %140 = vector.load %arg1[%c0_82, %c0_83, %c81] : memref<2x8x352xf32, #tpu.memory_space<vmem>>, vector<1x8x256xf32>
    %141 = vector.shape_cast %140 : vector<1x8x256xf32> to vector<8x256xf32>
    %142 = vector.broadcast %30 : vector<1x256xf32> to vector<8x256xf32>
    %143 = arith.mulf %141, %142 : vector<8x256xf32>
    %c184 = arith.constant 184 : index
    %c0_84 = arith.constant 0 : index
    %144 = vector.load %arg7[%c184, %c0_84] : memref<200x256xf32, #tpu.memory_space<vmem>>, vector<8x256xf32>
    tpu.vector_store %arg7[%c184, %c0_84], %143 {strides = array<i32>} : memref<200x256xf32, #tpu.memory_space<vmem>>, vector<8x256xf32>,
    %c0_85 = arith.constant 0 : index
    %c0_86 = arith.constant 0 : index
    %c82 = arith.constant 82 : index
    %145 = vector.load %arg1[%c0_85, %c0_86, %c82] : memref<2x8x352xf32, #tpu.memory_space<vmem>>, vector<1x8x256xf32>
    %146 = vector.shape_cast %145 : vector<1x8x256xf32> to vector<8x256xf32>
    %147 = vector.broadcast %34 : vector<1x256xf32> to vector<8x256xf32>
    %148 = arith.mulf %146, %147 : vector<8x256xf32>
    %c192 = arith.constant 192 : index
    %c0_87 = arith.constant 0 : index
    %149 = vector.load %arg7[%c192, %c0_87] : memref<200x256xf32, #tpu.memory_space<vmem>>, vector<8x256xf32>
    tpu.vector_store %arg7[%c192, %c0_87], %148 {strides = array<i32>} : memref<200x256xf32, #tpu.memory_space<vmem>>, vector<8x256xf32>,
    %c0_88 = arith.constant 0 : index
    %c0_89 = arith.constant 0 : index
    %150 = vector.load %arg7[%c0_88, %c0_89] : memref<200x256xf32, #tpu.memory_space<vmem>>, vector<200x256xf32>
    %151 = arith.truncf %150 : vector<200x256xf32> to vector<200x256xbf16>
    %cst = arith.constant dense<0.000000e+00> : vector<8x256xf32>
    %152 = tpu.matmul %0, %151, %cst {dimension_numbers = #tpu.dot_dimension_numbers<[1], [0], [0], [1], [0, 0, 1, 1], [], []>} : vector<8x200xbf16>, vector<200x256xbf16>, vector<8x256xf32> -> vector<8x256xf32>
    %c0_90 = arith.constant 0 : index
    %c0_91 = arith.constant 0 : index
    %153 = vector.load %arg8[%c0_90, %c0_91] : memref<8x512xf32, #tpu.memory_space<vmem>>, vector<8x256xf32>
    tpu.vector_store %arg8[%c0_90, %c0_91], %152 {strides = array<i32>} : memref<8x512xf32, #tpu.memory_space<vmem>>, vector<8x256xf32>,
    %c1 = arith.constant 1 : index
    %c0_92 = arith.constant 0 : index
    %c14_93 = arith.constant 14 : index
    %154 = vector.load %arg1[%c1, %c0_92, %c14_93] : memref<2x8x352xf32, #tpu.memory_space<vmem>>, vector<1x8x256xf32>
    %155 = vector.shape_cast %154 : vector<1x8x256xf32> to vector<8x256xf32>
    %156 = vector.broadcast %22 : vector<1x256xf32> to vector<8x256xf32>
    %157 = arith.mulf %155, %156 : vector<8x256xf32>
    %c0_94 = arith.constant 0 : index
    %c0_95 = arith.constant 0 : index
    %158 = vector.load %arg7[%c0_94, %c0_95] : memref<200x256xf32, #tpu.memory_space<vmem>>, vector<8x256xf32>
    tpu.vector_store %arg7[%c0_94, %c0_95], %157 {strides = array<i32>} : memref<200x256xf32, #tpu.memory_space<vmem>>, vector<8x256xf32>,
    %c1_96 = arith.constant 1 : index
    %c0_97 = arith.constant 0 : index
    %c15_98 = arith.constant 15 : index
    %159 = vector.load %arg1[%c1_96, %c0_97, %c15_98] : memref<2x8x352xf32, #tpu.memory_space<vmem>>, vector<1x8x256xf32>
    %160 = vector.shape_cast %159 : vector<1x8x256xf32> to vector<8x256xf32>
    %161 = vector.broadcast %26 : vector<1x256xf32> to vector<8x256xf32>
    %162 = arith.mulf %160, %161 : vector<8x256xf32>
    %c8_99 = arith.constant 8 : index
    %c0_100 = arith.constant 0 : index
    %163 = vector.load %arg7[%c8_99, %c0_100] : memref<200x256xf32, #tpu.memory_space<vmem>>, vector<8x256xf32>
    tpu.vector_store %arg7[%c8_99, %c0_100], %162 {strides = array<i32>} : memref<200x256xf32, #tpu.memory_space<vmem>>, vector<8x256xf32>,
    %c1_101 = arith.constant 1 : index
    %c0_102 = arith.constant 0 : index
    %c16_103 = arith.constant 16 : index
    %164 = vector.load %arg1[%c1_101, %c0_102, %c16_103] : memref<2x8x352xf32, #tpu.memory_space<vmem>>, vector<1x8x256xf32>
    %165 = vector.shape_cast %164 : vector<1x8x256xf32> to vector<8x256xf32>
    %c16_104 = arith.constant 16 : index
    %c0_105 = arith.constant 0 : index
    %166 = vector.load %arg7[%c16_104, %c0_105] : memref<200x256xf32, #tpu.memory_space<vmem>>, vector<8x256xf32>
    tpu.vector_store %arg7[%c16_104, %c0_105], %165 {strides = array<i32>} : memref<200x256xf32, #tpu.memory_space<vmem>>, vector<8x256xf32>,
    %c1_106 = arith.constant 1 : index
    %c0_107 = arith.constant 0 : index
    %c17_108 = arith.constant 17 : index
    %167 = vector.load %arg1[%c1_106, %c0_107, %c17_108] : memref<2x8x352xf32, #tpu.memory_space<vmem>>, vector<1x8x256xf32>
    %168 = vector.shape_cast %167 : vector<1x8x256xf32> to vector<8x256xf32>
    %169 = vector.broadcast %30 : vector<1x256xf32> to vector<8x256xf32>
    %170 = arith.mulf %168, %169 : vector<8x256xf32>
    %c24_109 = arith.constant 24 : index
    %c0_110 = arith.constant 0 : index
    %171 = vector.load %arg7[%c24_109, %c0_110] : memref<200x256xf32, #tpu.memory_space<vmem>>, vector<8x256xf32>
    tpu.vector_store %arg7[%c24_109, %c0_110], %170 {strides = array<i32>} : memref<200x256xf32, #tpu.memory_space<vmem>>, vector<8x256xf32>,
    %c1_111 = arith.constant 1 : index
    %c0_112 = arith.constant 0 : index
    %c18_113 = arith.constant 18 : index
    %172 = vector.load %arg1[%c1_111, %c0_112, %c18_113] : memref<2x8x352xf32, #tpu.memory_space<vmem>>, vector<1x8x256xf32>
    %173 = vector.shape_cast %172 : vector<1x8x256xf32> to vector<8x256xf32>
    %174 = vector.broadcast %34 : vector<1x256xf32> to vector<8x256xf32>
    %175 = arith.mulf %173, %174 : vector<8x256xf32>
    %c32_114 = arith.constant 32 : index
    %c0_115 = arith.constant 0 : index
    %176 = vector.load %arg7[%c32_114, %c0_115] : memref<200x256xf32, #tpu.memory_space<vmem>>, vector<8x256xf32>
    tpu.vector_store %arg7[%c32_114, %c0_115], %175 {strides = array<i32>} : memref<200x256xf32, #tpu.memory_space<vmem>>, vector<8x256xf32>,
    %c1_116 = arith.constant 1 : index
    %c0_117 = arith.constant 0 : index
    %c30_118 = arith.constant 30 : index
    %177 = vector.load %arg1[%c1_116, %c0_117, %c30_118] : memref<2x8x352xf32, #tpu.memory_space<vmem>>, vector<1x8x256xf32>
    %178 = vector.shape_cast %177 : vector<1x8x256xf32> to vector<8x256xf32>
    %179 = vector.broadcast %22 : vector<1x256xf32> to vector<8x256xf32>
    %180 = arith.mulf %178, %179 : vector<8x256xf32>
    %c40_119 = arith.constant 40 : index
    %c0_120 = arith.constant 0 : index
    %181 = vector.load %arg7[%c40_119, %c0_120] : memref<200x256xf32, #tpu.memory_space<vmem>>, vector<8x256xf32>
    tpu.vector_store %arg7[%c40_119, %c0_120], %180 {strides = array<i32>} : memref<200x256xf32, #tpu.memory_space<vmem>>, vector<8x256xf32>,
    %c1_121 = arith.constant 1 : index
    %c0_122 = arith.constant 0 : index
    %c31_123 = arith.constant 31 : index
    %182 = vector.load %arg1[%c1_121, %c0_122, %c31_123] : memref<2x8x352xf32, #tpu.memory_space<vmem>>, vector<1x8x256xf32>
    %183 = vector.shape_cast %182 : vector<1x8x256xf32> to vector<8x256xf32>
    %184 = vector.broadcast %26 : vector<1x256xf32> to vector<8x256xf32>
    %185 = arith.mulf %183, %184 : vector<8x256xf32>
    %c48_124 = arith.constant 48 : index
    %c0_125 = arith.constant 0 : index
    %186 = vector.load %arg7[%c48_124, %c0_125] : memref<200x256xf32, #tpu.memory_space<vmem>>, vector<8x256xf32>
    tpu.vector_store %arg7[%c48_124, %c0_125], %185 {strides = array<i32>} : memref<200x256xf32, #tpu.memory_space<vmem>>, vector<8x256xf32>,
    %c1_126 = arith.constant 1 : index
    %c0_127 = arith.constant 0 : index
    %c32_128 = arith.constant 32 : index
    %187 = vector.load %arg1[%c1_126, %c0_127, %c32_128] : memref<2x8x352xf32, #tpu.memory_space<vmem>>, vector<1x8x256xf32>
    %188 = vector.shape_cast %187 : vector<1x8x256xf32> to vector<8x256xf32>
    %c56_129 = arith.constant 56 : index
    %c0_130 = arith.constant 0 : index
    %189 = vector.load %arg7[%c56_129, %c0_130] : memref<200x256xf32, #tpu.memory_space<vmem>>, vector<8x256xf32>
    tpu.vector_store %arg7[%c56_129, %c0_130], %188 {strides = array<i32>} : memref<200x256xf32, #tpu.memory_space<vmem>>, vector<8x256xf32>,
    %c1_131 = arith.constant 1 : index
    %c0_132 = arith.constant 0 : index
    %c33_133 = arith.constant 33 : index
    %190 = vector.load %arg1[%c1_131, %c0_132, %c33_133] : memref<2x8x352xf32, #tpu.memory_space<vmem>>, vector<1x8x256xf32>
    %191 = vector.shape_cast %190 : vector<1x8x256xf32> to vector<8x256xf32>
    %192 = vector.broadcast %30 : vector<1x256xf32> to vector<8x256xf32>
    %193 = arith.mulf %191, %192 : vector<8x256xf32>
    %c64_134 = arith.constant 64 : index
    %c0_135 = arith.constant 0 : index
    %194 = vector.load %arg7[%c64_134, %c0_135] : memref<200x256xf32, #tpu.memory_space<vmem>>, vector<8x256xf32>
    tpu.vector_store %arg7[%c64_134, %c0_135], %193 {strides = array<i32>} : memref<200x256xf32, #tpu.memory_space<vmem>>, vector<8x256xf32>,
    %c1_136 = arith.constant 1 : index
    %c0_137 = arith.constant 0 : index
    %c34_138 = arith.constant 34 : index
    %195 = vector.load %arg1[%c1_136, %c0_137, %c34_138] : memref<2x8x352xf32, #tpu.memory_space<vmem>>, vector<1x8x256xf32>
    %196 = vector.shape_cast %195 : vector<1x8x256xf32> to vector<8x256xf32>
    %197 = vector.broadcast %34 : vector<1x256xf32> to vector<8x256xf32>
    %198 = arith.mulf %196, %197 : vector<8x256xf32>
    %c72_139 = arith.constant 72 : index
    %c0_140 = arith.constant 0 : index
    %199 = vector.load %arg7[%c72_139, %c0_140] : memref<200x256xf32, #tpu.memory_space<vmem>>, vector<8x256xf32>
    tpu.vector_store %arg7[%c72_139, %c0_140], %198 {strides = array<i32>} : memref<200x256xf32, #tpu.memory_space<vmem>>, vector<8x256xf32>,
    %c1_141 = arith.constant 1 : index
    %c0_142 = arith.constant 0 : index
    %c46_143 = arith.constant 46 : index
    %200 = vector.load %arg1[%c1_141, %c0_142, %c46_143] : memref<2x8x352xf32, #tpu.memory_space<vmem>>, vector<1x8x256xf32>
    %201 = vector.shape_cast %200 : vector<1x8x256xf32> to vector<8x256xf32>
    %202 = vector.broadcast %22 : vector<1x256xf32> to vector<8x256xf32>
    %203 = arith.mulf %201, %202 : vector<8x256xf32>
    %c80_144 = arith.constant 80 : index
    %c0_145 = arith.constant 0 : index
    %204 = vector.load %arg7[%c80_144, %c0_145] : memref<200x256xf32, #tpu.memory_space<vmem>>, vector<8x256xf32>
    tpu.vector_store %arg7[%c80_144, %c0_145], %203 {strides = array<i32>} : memref<200x256xf32, #tpu.memory_space<vmem>>, vector<8x256xf32>,
    %c1_146 = arith.constant 1 : index
    %c0_147 = arith.constant 0 : index
    %c47_148 = arith.constant 47 : index
    %205 = vector.load %arg1[%c1_146, %c0_147, %c47_148] : memref<2x8x352xf32, #tpu.memory_space<vmem>>, vector<1x8x256xf32>
    %206 = vector.shape_cast %205 : vector<1x8x256xf32> to vector<8x256xf32>
    %207 = vector.broadcast %26 : vector<1x256xf32> to vector<8x256xf32>
    %208 = arith.mulf %206, %207 : vector<8x256xf32>
    %c88_149 = arith.constant 88 : index
    %c0_150 = arith.constant 0 : index
    %209 = vector.load %arg7[%c88_149, %c0_150] : memref<200x256xf32, #tpu.memory_space<vmem>>, vector<8x256xf32>
    tpu.vector_store %arg7[%c88_149, %c0_150], %208 {strides = array<i32>} : memref<200x256xf32, #tpu.memory_space<vmem>>, vector<8x256xf32>,
    %c1_151 = arith.constant 1 : index
    %c0_152 = arith.constant 0 : index
    %c48_153 = arith.constant 48 : index
    %210 = vector.load %arg1[%c1_151, %c0_152, %c48_153] : memref<2x8x352xf32, #tpu.memory_space<vmem>>, vector<1x8x256xf32>
    %211 = vector.shape_cast %210 : vector<1x8x256xf32> to vector<8x256xf32>
    %c96_154 = arith.constant 96 : index
    %c0_155 = arith.constant 0 : index
    %212 = vector.load %arg7[%c96_154, %c0_155] : memref<200x256xf32, #tpu.memory_space<vmem>>, vector<8x256xf32>
    tpu.vector_store %arg7[%c96_154, %c0_155], %211 {strides = array<i32>} : memref<200x256xf32, #tpu.memory_space<vmem>>, vector<8x256xf32>,
    %c1_156 = arith.constant 1 : index
    %c0_157 = arith.constant 0 : index
    %c49_158 = arith.constant 49 : index
    %213 = vector.load %arg1[%c1_156, %c0_157, %c49_158] : memref<2x8x352xf32, #tpu.memory_space<vmem>>, vector<1x8x256xf32>
    %214 = vector.shape_cast %213 : vector<1x8x256xf32> to vector<8x256xf32>
    %215 = vector.broadcast %30 : vector<1x256xf32> to vector<8x256xf32>
    %216 = arith.mulf %214, %215 : vector<8x256xf32>
    %c104_159 = arith.constant 104 : index
    %c0_160 = arith.constant 0 : index
    %217 = vector.load %arg7[%c104_159, %c0_160] : memref<200x256xf32, #tpu.memory_space<vmem>>, vector<8x256xf32>
    tpu.vector_store %arg7[%c104_159, %c0_160], %216 {strides = array<i32>} : memref<200x256xf32, #tpu.memory_space<vmem>>, vector<8x256xf32>,
    %c1_161 = arith.constant 1 : index
    %c0_162 = arith.constant 0 : index
    %c50_163 = arith.constant 50 : index
    %218 = vector.load %arg1[%c1_161, %c0_162, %c50_163] : memref<2x8x352xf32, #tpu.memory_space<vmem>>, vector<1x8x256xf32>
    %219 = vector.shape_cast %218 : vector<1x8x256xf32> to vector<8x256xf32>
    %220 = vector.broadcast %34 : vector<1x256xf32> to vector<8x256xf32>
    %221 = arith.mulf %219, %220 : vector<8x256xf32>
    %c112_164 = arith.constant 112 : index
    %c0_165 = arith.constant 0 : index
    %222 = vector.load %arg7[%c112_164, %c0_165] : memref<200x256xf32, #tpu.memory_space<vmem>>, vector<8x256xf32>
    tpu.vector_store %arg7[%c112_164, %c0_165], %221 {strides = array<i32>} : memref<200x256xf32, #tpu.memory_space<vmem>>, vector<8x256xf32>,
    %c1_166 = arith.constant 1 : index
    %c0_167 = arith.constant 0 : index
    %c62_168 = arith.constant 62 : index
    %223 = vector.load %arg1[%c1_166, %c0_167, %c62_168] : memref<2x8x352xf32, #tpu.memory_space<vmem>>, vector<1x8x256xf32>
    %224 = vector.shape_cast %223 : vector<1x8x256xf32> to vector<8x256xf32>
    %225 = vector.broadcast %22 : vector<1x256xf32> to vector<8x256xf32>
    %226 = arith.mulf %224, %225 : vector<8x256xf32>
    %c120_169 = arith.constant 120 : index
    %c0_170 = arith.constant 0 : index
    %227 = vector.load %arg7[%c120_169, %c0_170] : memref<200x256xf32, #tpu.memory_space<vmem>>, vector<8x256xf32>
    tpu.vector_store %arg7[%c120_169, %c0_170], %226 {strides = array<i32>} : memref<200x256xf32, #tpu.memory_space<vmem>>, vector<8x256xf32>,
    %c1_171 = arith.constant 1 : index
    %c0_172 = arith.constant 0 : index
    %c63_173 = arith.constant 63 : index
    %228 = vector.load %arg1[%c1_171, %c0_172, %c63_173] : memref<2x8x352xf32, #tpu.memory_space<vmem>>, vector<1x8x256xf32>
    %229 = vector.shape_cast %228 : vector<1x8x256xf32> to vector<8x256xf32>
    %230 = vector.broadcast %26 : vector<1x256xf32> to vector<8x256xf32>
    %231 = arith.mulf %229, %230 : vector<8x256xf32>
    %c128_174 = arith.constant 128 : index
    %c0_175 = arith.constant 0 : index
    %232 = vector.load %arg7[%c128_174, %c0_175] : memref<200x256xf32, #tpu.memory_space<vmem>>, vector<8x256xf32>
    tpu.vector_store %arg7[%c128_174, %c0_175], %231 {strides = array<i32>} : memref<200x256xf32, #tpu.memory_space<vmem>>, vector<8x256xf32>,
    %c1_176 = arith.constant 1 : index
    %c0_177 = arith.constant 0 : index
    %c64_178 = arith.constant 64 : index
    %233 = vector.load %arg1[%c1_176, %c0_177, %c64_178] : memref<2x8x352xf32, #tpu.memory_space<vmem>>, vector<1x8x256xf32>
    %234 = vector.shape_cast %233 : vector<1x8x256xf32> to vector<8x256xf32>
    %c136_179 = arith.constant 136 : index
    %c0_180 = arith.constant 0 : index
    %235 = vector.load %arg7[%c136_179, %c0_180] : memref<200x256xf32, #tpu.memory_space<vmem>>, vector<8x256xf32>
    tpu.vector_store %arg7[%c136_179, %c0_180], %234 {strides = array<i32>} : memref<200x256xf32, #tpu.memory_space<vmem>>, vector<8x256xf32>,
    %c1_181 = arith.constant 1 : index
    %c0_182 = arith.constant 0 : index
    %c65_183 = arith.constant 65 : index
    %236 = vector.load %arg1[%c1_181, %c0_182, %c65_183] : memref<2x8x352xf32, #tpu.memory_space<vmem>>, vector<1x8x256xf32>
    %237 = vector.shape_cast %236 : vector<1x8x256xf32> to vector<8x256xf32>
    %238 = vector.broadcast %30 : vector<1x256xf32> to vector<8x256xf32>
    %239 = arith.mulf %237, %238 : vector<8x256xf32>
    %c144_184 = arith.constant 144 : index
    %c0_185 = arith.constant 0 : index
    %240 = vector.load %arg7[%c144_184, %c0_185] : memref<200x256xf32, #tpu.memory_space<vmem>>, vector<8x256xf32>
    tpu.vector_store %arg7[%c144_184, %c0_185], %239 {strides = array<i32>} : memref<200x256xf32, #tpu.memory_space<vmem>>, vector<8x256xf32>,
    %c1_186 = arith.constant 1 : index
    %c0_187 = arith.constant 0 : index
    %c66_188 = arith.constant 66 : index
    %241 = vector.load %arg1[%c1_186, %c0_187, %c66_188] : memref<2x8x352xf32, #tpu.memory_space<vmem>>, vector<1x8x256xf32>
    %242 = vector.shape_cast %241 : vector<1x8x256xf32> to vector<8x256xf32>
    %243 = vector.broadcast %34 : vector<1x256xf32> to vector<8x256xf32>
    %244 = arith.mulf %242, %243 : vector<8x256xf32>
    %c152_189 = arith.constant 152 : index
    %c0_190 = arith.constant 0 : index
    %245 = vector.load %arg7[%c152_189, %c0_190] : memref<200x256xf32, #tpu.memory_space<vmem>>, vector<8x256xf32>
    tpu.vector_store %arg7[%c152_189, %c0_190], %244 {strides = array<i32>} : memref<200x256xf32, #tpu.memory_space<vmem>>, vector<8x256xf32>,
    %c1_191 = arith.constant 1 : index
    %c0_192 = arith.constant 0 : index
    %c78_193 = arith.constant 78 : index
    %246 = vector.load %arg1[%c1_191, %c0_192, %c78_193] : memref<2x8x352xf32, #tpu.memory_space<vmem>>, vector<1x8x256xf32>
    %247 = vector.shape_cast %246 : vector<1x8x256xf32> to vector<8x256xf32>
    %248 = vector.broadcast %22 : vector<1x256xf32> to vector<8x256xf32>
    %249 = arith.mulf %247, %248 : vector<8x256xf32>
    %c160_194 = arith.constant 160 : index
    %c0_195 = arith.constant 0 : index
    %250 = vector.load %arg7[%c160_194, %c0_195] : memref<200x256xf32, #tpu.memory_space<vmem>>, vector<8x256xf32>
    tpu.vector_store %arg7[%c160_194, %c0_195], %249 {strides = array<i32>} : memref<200x256xf32, #tpu.memory_space<vmem>>, vector<8x256xf32>,
    %c1_196 = arith.constant 1 : index
    %c0_197 = arith.constant 0 : index
    %c79_198 = arith.constant 79 : index
    %251 = vector.load %arg1[%c1_196, %c0_197, %c79_198] : memref<2x8x352xf32, #tpu.memory_space<vmem>>, vector<1x8x256xf32>
    %252 = vector.shape_cast %251 : vector<1x8x256xf32> to vector<8x256xf32>
    %253 = vector.broadcast %26 : vector<1x256xf32> to vector<8x256xf32>
    %254 = arith.mulf %252, %253 : vector<8x256xf32>
    %c168_199 = arith.constant 168 : index
    %c0_200 = arith.constant 0 : index
    %255 = vector.load %arg7[%c168_199, %c0_200] : memref<200x256xf32, #tpu.memory_space<vmem>>, vector<8x256xf32>
    tpu.vector_store %arg7[%c168_199, %c0_200], %254 {strides = array<i32>} : memref<200x256xf32, #tpu.memory_space<vmem>>, vector<8x256xf32>,
    %c1_201 = arith.constant 1 : index
    %c0_202 = arith.constant 0 : index
    %c80_203 = arith.constant 80 : index
    %256 = vector.load %arg1[%c1_201, %c0_202, %c80_203] : memref<2x8x352xf32, #tpu.memory_space<vmem>>, vector<1x8x256xf32>
    %257 = vector.shape_cast %256 : vector<1x8x256xf32> to vector<8x256xf32>
    %c176_204 = arith.constant 176 : index
    %c0_205 = arith.constant 0 : index
    %258 = vector.load %arg7[%c176_204, %c0_205] : memref<200x256xf32, #tpu.memory_space<vmem>>, vector<8x256xf32>
    tpu.vector_store %arg7[%c176_204, %c0_205], %257 {strides = array<i32>} : memref<200x256xf32, #tpu.memory_space<vmem>>, vector<8x256xf32>,
    %c1_206 = arith.constant 1 : index
    %c0_207 = arith.constant 0 : index
    %c81_208 = arith.constant 81 : index
    %259 = vector.load %arg1[%c1_206, %c0_207, %c81_208] : memref<2x8x352xf32, #tpu.memory_space<vmem>>, vector<1x8x256xf32>
    %260 = vector.shape_cast %259 : vector<1x8x256xf32> to vector<8x256xf32>
    %261 = vector.broadcast %30 : vector<1x256xf32> to vector<8x256xf32>
    %262 = arith.mulf %260, %261 : vector<8x256xf32>
    %c184_209 = arith.constant 184 : index
    %c0_210 = arith.constant 0 : index
    %263 = vector.load %arg7[%c184_209, %c0_210] : memref<200x256xf32, #tpu.memory_space<vmem>>, vector<8x256xf32>
    tpu.vector_store %arg7[%c184_209, %c0_210], %262 {strides = array<i32>} : memref<200x256xf32, #tpu.memory_space<vmem>>, vector<8x256xf32>,
    %c1_211 = arith.constant 1 : index
    %c0_212 = arith.constant 0 : index
    %c82_213 = arith.constant 82 : index
    %264 = vector.load %arg1[%c1_211, %c0_212, %c82_213] : memref<2x8x352xf32, #tpu.memory_space<vmem>>, vector<1x8x256xf32>
    %265 = vector.shape_cast %264 : vector<1x8x256xf32> to vector<8x256xf32>
    %266 = vector.broadcast %34 : vector<1x256xf32> to vector<8x256xf32>
    %267 = arith.mulf %265, %266 : vector<8x256xf32>
    %c192_214 = arith.constant 192 : index
    %c0_215 = arith.constant 0 : index
    %268 = vector.load %arg7[%c192_214, %c0_215] : memref<200x256xf32, #tpu.memory_space<vmem>>, vector<8x256xf32>
    tpu.vector_store %arg7[%c192_214, %c0_215], %267 {strides = array<i32>} : memref<200x256xf32, #tpu.memory_space<vmem>>, vector<8x256xf32>,
    %c0_216 = arith.constant 0 : index
    %c0_217 = arith.constant 0 : index
    %269 = vector.load %arg7[%c0_216, %c0_217] : memref<200x256xf32, #tpu.memory_space<vmem>>, vector<200x256xf32>
    %270 = arith.truncf %269 : vector<200x256xf32> to vector<200x256xbf16>
    %cst_218 = arith.constant dense<0.000000e+00> : vector<8x256xf32>
    %271 = tpu.matmul %0, %270, %cst_218 {dimension_numbers = #tpu.dot_dimension_numbers<[1], [0], [0], [1], [0, 0, 1, 1], [], []>} : vector<8x200xbf16>, vector<200x256xbf16>, vector<8x256xf32> -> vector<8x256xf32>
    %c0_219 = arith.constant 0 : index
    %c256 = arith.constant 256 : index
    %272 = vector.load %arg8[%c0_219, %c256] : memref<8x512xf32, #tpu.memory_space<vmem>>, vector<8x256xf32>
    tpu.vector_store %arg8[%c0_219, %c256], %271 {strides = array<i32>} : memref<8x512xf32, #tpu.memory_space<vmem>>, vector<8x256xf32>,
    %c0_220 = arith.constant 0 : index
    %c0_221 = arith.constant 0 : index
    %273 = vector.load %arg8[%c0_220, %c0_221] : memref<8x512xf32, #tpu.memory_space<vmem>>, vector<8x512xf32>
    %cst_222 = arith.constant dense<0.000000e+00> : vector<8xf32>
    %274 = vector.multi_reduction <add>, %273, %cst_222 [1] : vector<8x512xf32> to vector<8xf32>
    %275 = vector.shape_cast %274 : vector<8xf32> to vector<8x1xf32>
    %cst_223 = arith.constant 0.001953125 : f32
    %276 = vector.broadcast %cst_223 : f32 to vector<8x1xf32>
    %277 = arith.mulf %275, %276 : vector<8x1xf32>
    %278 = arith.mulf %273, %273 : vector<8x512xf32>
    %cst_224 = arith.constant dense<0.000000e+00> : vector<8xf32>
    %279 = vector.multi_reduction <add>, %278, %cst_224 [1] : vector<8x512xf32> to vector<8xf32>
    %280 = vector.shape_cast %279 : vector<8xf32> to vector<8x1xf32>
    %cst_225 = arith.constant 0.001953125 : f32
    %281 = vector.broadcast %cst_225 : f32 to vector<8x1xf32>
    %282 = arith.mulf %280, %281 : vector<8x1xf32>
    %283 = arith.mulf %277, %277 : vector<8x1xf32>
    %284 = arith.subf %282, %283 : vector<8x1xf32>
    %cst_226 = arith.constant 0.000000e+00 : f32
    %285 = vector.broadcast %cst_226 : f32 to vector<8x1xf32>
    %286 = arith.maximumf %284, %285 : vector<8x1xf32>
    %c0_227 = arith.constant 0 : index
    %c0_228 = arith.constant 0 : index
    %287 = vector.load %arg4[%c0_227, %c0_228] : memref<8x1xf32, #tpu.memory_space<vmem>>, vector<8x1xf32>
    %cst_229 = arith.constant 9.99999974E-6 : f32
    %288 = vector.broadcast %cst_229 : f32 to vector<8x1xf32>
    %289 = arith.addf %286, %288 : vector<8x1xf32>
    %290 = math.rsqrt %289 : vector<8x1xf32>
    %291 = arith.mulf %287, %290 : vector<8x1xf32>
    %c0_230 = arith.constant 0 : index
    %c0_231 = arith.constant 0 : index
    %292 = vector.load %arg5[%c0_230, %c0_231] : memref<8x1xf32, #tpu.memory_space<vmem>>, vector<8x1xf32>
    %293 = arith.mulf %277, %291 : vector<8x1xf32>
    %294 = arith.subf %292, %293 : vector<8x1xf32>
    %295 = vector.broadcast %291 : vector<8x1xf32> to vector<8x512xf32>
    %296 = arith.mulf %273, %295 : vector<8x512xf32>
    %297 = vector.broadcast %294 : vector<8x1xf32> to vector<8x512xf32>
    %298 = arith.addf %296, %297 : vector<8x512xf32>
    %cst_232 = arith.constant 0.000000e+00 : f32
    %299 = vector.broadcast %cst_232 : f32 to vector<8x512xf32>
    %300 = arith.maximumf %298, %299 : vector<8x512xf32>
    %301 = vector.extract_strided_slice %300 {offsets = [0, 0], sizes = [8, 256], strides = [1, 1]} : vector<8x512xf32> to vector<8x256xf32>
    %302 = arith.truncf %301 : vector<8x256xf32> to vector<8x256xbf16>
    %cst_233 = arith.constant dense<0.000000e+00> : vector<8x64xf32>
    %303 = tpu.matmul %302, %1, %cst_233 {dimension_numbers = #tpu.dot_dimension_numbers<[1], [0], [0], [1], [0, 0, 1, 1], [], []>} : vector<8x256xbf16>, vector<256x64xbf16>, vector<8x64xf32> -> vector<8x64xf32>
    %c0_234 = arith.constant 0 : index
    %c0_235 = arith.constant 0 : index
    %304 = vector.load %arg6[%c0_234, %c0_235] : memref<8x128xf32, #tpu.memory_space<vmem>>, vector<8x64xf32>
    tpu.vector_store %arg6[%c0_234, %c0_235], %303 {strides = array<i32>} : memref<8x128xf32, #tpu.memory_space<vmem>>, vector<8x64xf32>,
    %305 = vector.extract_strided_slice %300 {offsets = [0, 256], sizes = [8, 256], strides = [1, 1]} : vector<8x512xf32> to vector<8x256xf32>
    %306 = arith.truncf %305 : vector<8x256xf32> to vector<8x256xbf16>
    %cst_236 = arith.constant dense<0.000000e+00> : vector<8x64xf32>
    %307 = tpu.matmul %306, %1, %cst_236 {dimension_numbers = #tpu.dot_dimension_numbers<[1], [0], [0], [1], [0, 0, 1, 1], [], []>} : vector<8x256xbf16>, vector<256x64xbf16>, vector<8x64xf32> -> vector<8x64xf32>
    %c0_237 = arith.constant 0 : index
    %c64_238 = arith.constant 64 : index
    %308 = vector.load %arg6[%c0_237, %c64_238] : memref<8x128xf32, #tpu.memory_space<vmem>>, vector<8x64xf32>
    tpu.vector_store %arg6[%c0_237, %c64_238], %307 {strides = array<i32>} : memref<8x128xf32, #tpu.memory_space<vmem>>, vector<8x64xf32>,
    return
  }
  func.func @transform_0(%arg0: i32) -> (i32, i32, i32) {
    %c0_i32 = arith.constant 0 : i32
    %c0_i32_0 = arith.constant 0 : i32
    %c0_i32_1 = arith.constant 0 : i32
    %c0_i32_2 = arith.constant 0 : i32
    return %c0_i32, %c0_i32_0, %c0_i32_1 : i32, i32, i32
  }
  func.func @transform_1(%arg0: i32) -> (i32, i32) {
    %c0_i32 = arith.constant 0 : i32
    %c0_i32_0 = arith.constant 0 : i32
    %c0_i32_1 = arith.constant 0 : i32
    return %c0_i32, %c0_i32_0 : i32, i32
  }
  func.func @transform_2(%arg0: i32) -> (i32, i32) {
    %c0_i32 = arith.constant 0 : i32
    %c0_i32_0 = arith.constant 0 : i32
    %c0_i32_1 = arith.constant 0 : i32
    return %c0_i32, %c0_i32_0 : i32, i32
  }
  func.func @transform_3(%arg0: i32) -> (i32, i32) {
    %c0_i32 = arith.constant 0 : i32
    %c0_i32_0 = arith.constant 0 : i32
    %c0_i32_1 = arith.constant 0 : i32
    return %c0_i32, %c0_i32_0 : i32, i32
  }
  func.func @transform_4(%arg0: i32) -> (i32, i32) {
    %c0_i32 = arith.constant 0 : i32
    %c0_i32_0 = arith.constant 0 : i32
    %c0_i32_1 = arith.constant 0 : i32
    return %c0_i32, %c0_i32_0 : i32, i32
  }
  func.func @transform_5(%arg0: i32) -> (i32, i32) {
    %c0_i32 = arith.constant 0 : i32
    %c0_i32_0 = arith.constant 0 : i32
    %c0_i32_1 = arith.constant 0 : i32
    return %c0_i32, %c0_i32_0 : i32, i32
  }
}

module attributes {stable_mosaic.version = 11 : i64} {
  func.func @_layer_kernel(%arg0: i32, %arg1: memref<2x4x1216xf32, #tpu.memory_space<vmem>>, %arg2: memref<8x200xbf16, #tpu.memory_space<vmem>>, %arg3: memref<1024x256xbf16, #tpu.memory_space<vmem>>, %arg4: memref<8x1xf32, #tpu.memory_space<vmem>>, %arg5: memref<8x1xf32, #tpu.memory_space<vmem>>, %arg6: memref<8x512xf32, #tpu.memory_space<vmem>>, %arg7: memref<200x1024xf32, #tpu.memory_space<vmem>>, %arg8: memref<8x2048xf32, #tpu.memory_space<vmem>>) attributes {dimension_semantics = [#tpu.dimension_semantics<arbitrary>], iteration_bounds = array<i64: 1>, scalar_prefetch = 0 : i64, scratch_operands = 2 : i64, tpu.core_type = #tpu.core_type<tc>, window_params = [{pipeline_mode = #tpu.pipeline_mode<synchronous>, transform_indices = @transform_0, window_bounds = array<i64: 2, 4, 1216>}, {pipeline_mode = #tpu.pipeline_mode<synchronous>, transform_indices = @transform_1, window_bounds = array<i64: 8, 200>}, {pipeline_mode = #tpu.pipeline_mode<synchronous>, transform_indices = @transform_2, window_bounds = array<i64: 1024, 256>}, {pipeline_mode = #tpu.pipeline_mode<synchronous>, transform_indices = @transform_3, window_bounds = array<i64: 8, 1>}, {pipeline_mode = #tpu.pipeline_mode<synchronous>, transform_indices = @transform_4, window_bounds = array<i64: 8, 1>}, {pipeline_mode = #tpu.pipeline_mode<synchronous>, transform_indices = @transform_5, window_bounds = array<i64: 8, 512>}]} {
    %c0 = arith.constant 0 : index
    %c0_0 = arith.constant 0 : index
    %0 = vector.load %arg2[%c0, %c0_0] : memref<8x200xbf16, #tpu.memory_space<vmem>>, vector<8x200xbf16>
    %c0_1 = arith.constant 0 : index
    %c0_2 = arith.constant 0 : index
    %1 = vector.load %arg3[%c0_1, %c0_2] : memref<1024x256xbf16, #tpu.memory_space<vmem>>, vector<1024x256xbf16>
    %2 = tpu.iota {dimensions = array<i32: 1>} : vector<1x1024xi32>
    %c32_i32 = arith.constant 32 : i32
    %c0_i32 = arith.constant 0 : i32
    %3 = arith.cmpi eq, %c32_i32, %c0_i32 : i32
    %c1_i32 = arith.constant 1 : i32
    %4 = arith.select %3, %c1_i32, %c32_i32 : i32
    %5 = vector.broadcast %4 : i32 to vector<1x1024xi32>
    %6 = arith.remsi %2, %5 : vector<1x1024xi32>
    %c0_i32_3 = arith.constant 0 : i32
    %7 = vector.broadcast %c0_i32_3 : i32 to vector<1x1024xi32>
    %8 = arith.cmpi ne, %6, %7 : vector<1x1024xi32>
    %c0_i32_4 = arith.constant 0 : i32
    %9 = vector.broadcast %c0_i32_4 : i32 to vector<1x1024xi32>
    %10 = arith.cmpi slt, %6, %9 : vector<1x1024xi32>
    %c0_i32_5 = arith.constant 0 : i32
    %11 = arith.cmpi slt, %4, %c0_i32_5 : i32
    %12 = vector.broadcast %11 : i1 to vector<1x1024xi1>
    %13 = vector.broadcast %12 : vector<1x1024xi1> to vector<1x1024xi1>
    %14 = arith.xori %10, %13 : vector<1x1024xi1>
    %15 = arith.andi %14, %8 : vector<1x1024xi1>
    %16 = vector.broadcast %4 : i32 to vector<1x1024xi32>
    %17 = arith.addi %6, %16 : vector<1x1024xi32>
    %18 = arith.select %15, %17, %6 : vector<1x1024xi1>, vector<1x1024xi32>
    %c2_i32 = arith.constant 2 : i32
    %19 = vector.broadcast %c2_i32 : i32 to vector<1x1024xi32>
    %20 = arith.cmpi sge, %18, %19 : vector<1x1024xi32>
    %21 = arith.extui %20 : vector<1x1024xi1> to vector<1x1024xi32>
    %22 = arith.sitofp %21 : vector<1x1024xi32> to vector<1x1024xf32>
    %c1_i32_6 = arith.constant 1 : i32
    %23 = vector.broadcast %c1_i32_6 : i32 to vector<1x1024xi32>
    %24 = arith.cmpi sge, %18, %23 : vector<1x1024xi32>
    %25 = arith.extui %24 : vector<1x1024xi1> to vector<1x1024xi32>
    %26 = arith.sitofp %25 : vector<1x1024xi32> to vector<1x1024xf32>
    %c31_i32 = arith.constant 31 : i32
    %27 = vector.broadcast %c31_i32 : i32 to vector<1x1024xi32>
    %28 = arith.cmpi slt, %18, %27 : vector<1x1024xi32>
    %29 = arith.extui %28 : vector<1x1024xi1> to vector<1x1024xi32>
    %30 = arith.sitofp %29 : vector<1x1024xi32> to vector<1x1024xf32>
    %c30_i32 = arith.constant 30 : i32
    %31 = vector.broadcast %c30_i32 : i32 to vector<1x1024xi32>
    %32 = arith.cmpi slt, %18, %31 : vector<1x1024xi32>
    %33 = arith.extui %32 : vector<1x1024xi1> to vector<1x1024xi32>
    %34 = arith.sitofp %33 : vector<1x1024xi32> to vector<1x1024xf32>
    %cst = arith.constant 0.000000e+00 : f32
    %35 = vector.broadcast %cst : f32 to vector<200x1024xf32>
    %c0_7 = arith.constant 0 : index
    %c0_8 = arith.constant 0 : index
    %36 = vector.load %arg7[%c0_7, %c0_8] : memref<200x1024xf32, #tpu.memory_space<vmem>>, vector<200x1024xf32>
    tpu.vector_store %arg7[%c0_7, %c0_8], %35 {strides = array<i32>} : memref<200x1024xf32, #tpu.memory_space<vmem>>, vector<200x1024xf32>,
    %c0_9 = arith.constant 0 : index
    %c0_10 = arith.constant 0 : index
    %c30 = arith.constant 30 : index
    %37 = vector.load %arg1[%c0_9, %c0_10, %c30] : memref<2x4x1216xf32, #tpu.memory_space<vmem>>, vector<1x4x1024xf32>
    %38 = vector.shape_cast %37 : vector<1x4x1024xf32> to vector<4x1024xf32>
    %39 = vector.broadcast %22 : vector<1x1024xf32> to vector<4x1024xf32>
    %40 = arith.mulf %38, %39 : vector<4x1024xf32>
    %c0_11 = arith.constant 0 : index
    %c0_12 = arith.constant 0 : index
    %41 = vector.load %arg7[%c0_11, %c0_12] : memref<200x1024xf32, #tpu.memory_space<vmem>>, vector<4x1024xf32>
    tpu.vector_store %arg7[%c0_11, %c0_12], %40 {strides = array<i32>} : memref<200x1024xf32, #tpu.memory_space<vmem>>, vector<4x1024xf32>,
    %c0_13 = arith.constant 0 : index
    %c0_14 = arith.constant 0 : index
    %c31 = arith.constant 31 : index
    %42 = vector.load %arg1[%c0_13, %c0_14, %c31] : memref<2x4x1216xf32, #tpu.memory_space<vmem>>, vector<1x4x1024xf32>
    %43 = vector.shape_cast %42 : vector<1x4x1024xf32> to vector<4x1024xf32>
    %44 = vector.broadcast %26 : vector<1x1024xf32> to vector<4x1024xf32>
    %45 = arith.mulf %43, %44 : vector<4x1024xf32>
    %c8 = arith.constant 8 : index
    %c0_15 = arith.constant 0 : index
    %46 = vector.load %arg7[%c8, %c0_15] : memref<200x1024xf32, #tpu.memory_space<vmem>>, vector<4x1024xf32>
    tpu.vector_store %arg7[%c8, %c0_15], %45 {strides = array<i32>} : memref<200x1024xf32, #tpu.memory_space<vmem>>, vector<4x1024xf32>,
    %c0_16 = arith.constant 0 : index
    %c0_17 = arith.constant 0 : index
    %c32 = arith.constant 32 : index
    %47 = vector.load %arg1[%c0_16, %c0_17, %c32] : memref<2x4x1216xf32, #tpu.memory_space<vmem>>, vector<1x4x1024xf32>
    %48 = vector.shape_cast %47 : vector<1x4x1024xf32> to vector<4x1024xf32>
    %c16 = arith.constant 16 : index
    %c0_18 = arith.constant 0 : index
    %49 = vector.load %arg7[%c16, %c0_18] : memref<200x1024xf32, #tpu.memory_space<vmem>>, vector<4x1024xf32>
    tpu.vector_store %arg7[%c16, %c0_18], %48 {strides = array<i32>} : memref<200x1024xf32, #tpu.memory_space<vmem>>, vector<4x1024xf32>,
    %c0_19 = arith.constant 0 : index
    %c0_20 = arith.constant 0 : index
    %c33 = arith.constant 33 : index
    %50 = vector.load %arg1[%c0_19, %c0_20, %c33] : memref<2x4x1216xf32, #tpu.memory_space<vmem>>, vector<1x4x1024xf32>
    %51 = vector.shape_cast %50 : vector<1x4x1024xf32> to vector<4x1024xf32>
    %52 = vector.broadcast %30 : vector<1x1024xf32> to vector<4x1024xf32>
    %53 = arith.mulf %51, %52 : vector<4x1024xf32>
    %c24 = arith.constant 24 : index
    %c0_21 = arith.constant 0 : index
    %54 = vector.load %arg7[%c24, %c0_21] : memref<200x1024xf32, #tpu.memory_space<vmem>>, vector<4x1024xf32>
    tpu.vector_store %arg7[%c24, %c0_21], %53 {strides = array<i32>} : memref<200x1024xf32, #tpu.memory_space<vmem>>, vector<4x1024xf32>,
    %c0_22 = arith.constant 0 : index
    %c0_23 = arith.constant 0 : index
    %c34 = arith.constant 34 : index
    %55 = vector.load %arg1[%c0_22, %c0_23, %c34] : memref<2x4x1216xf32, #tpu.memory_space<vmem>>, vector<1x4x1024xf32>
    %56 = vector.shape_cast %55 : vector<1x4x1024xf32> to vector<4x1024xf32>
    %57 = vector.broadcast %34 : vector<1x1024xf32> to vector<4x1024xf32>
    %58 = arith.mulf %56, %57 : vector<4x1024xf32>
    %c32_24 = arith.constant 32 : index
    %c0_25 = arith.constant 0 : index
    %59 = vector.load %arg7[%c32_24, %c0_25] : memref<200x1024xf32, #tpu.memory_space<vmem>>, vector<4x1024xf32>
    tpu.vector_store %arg7[%c32_24, %c0_25], %58 {strides = array<i32>} : memref<200x1024xf32, #tpu.memory_space<vmem>>, vector<4x1024xf32>,
    %c0_26 = arith.constant 0 : index
    %c0_27 = arith.constant 0 : index
    %c62 = arith.constant 62 : index
    %60 = vector.load %arg1[%c0_26, %c0_27, %c62] : memref<2x4x1216xf32, #tpu.memory_space<vmem>>, vector<1x4x1024xf32>
    %61 = vector.shape_cast %60 : vector<1x4x1024xf32> to vector<4x1024xf32>
    %62 = vector.broadcast %22 : vector<1x1024xf32> to vector<4x1024xf32>
    %63 = arith.mulf %61, %62 : vector<4x1024xf32>
    %c40 = arith.constant 40 : index
    %c0_28 = arith.constant 0 : index
    %64 = vector.load %arg7[%c40, %c0_28] : memref<200x1024xf32, #tpu.memory_space<vmem>>, vector<4x1024xf32>
    tpu.vector_store %arg7[%c40, %c0_28], %63 {strides = array<i32>} : memref<200x1024xf32, #tpu.memory_space<vmem>>, vector<4x1024xf32>,
    %c0_29 = arith.constant 0 : index
    %c0_30 = arith.constant 0 : index
    %c63 = arith.constant 63 : index
    %65 = vector.load %arg1[%c0_29, %c0_30, %c63] : memref<2x4x1216xf32, #tpu.memory_space<vmem>>, vector<1x4x1024xf32>
    %66 = vector.shape_cast %65 : vector<1x4x1024xf32> to vector<4x1024xf32>
    %67 = vector.broadcast %26 : vector<1x1024xf32> to vector<4x1024xf32>
    %68 = arith.mulf %66, %67 : vector<4x1024xf32>
    %c48 = arith.constant 48 : index
    %c0_31 = arith.constant 0 : index
    %69 = vector.load %arg7[%c48, %c0_31] : memref<200x1024xf32, #tpu.memory_space<vmem>>, vector<4x1024xf32>
    tpu.vector_store %arg7[%c48, %c0_31], %68 {strides = array<i32>} : memref<200x1024xf32, #tpu.memory_space<vmem>>, vector<4x1024xf32>,
    %c0_32 = arith.constant 0 : index
    %c0_33 = arith.constant 0 : index
    %c64 = arith.constant 64 : index
    %70 = vector.load %arg1[%c0_32, %c0_33, %c64] : memref<2x4x1216xf32, #tpu.memory_space<vmem>>, vector<1x4x1024xf32>
    %71 = vector.shape_cast %70 : vector<1x4x1024xf32> to vector<4x1024xf32>
    %c56 = arith.constant 56 : index
    %c0_34 = arith.constant 0 : index
    %72 = vector.load %arg7[%c56, %c0_34] : memref<200x1024xf32, #tpu.memory_space<vmem>>, vector<4x1024xf32>
    tpu.vector_store %arg7[%c56, %c0_34], %71 {strides = array<i32>} : memref<200x1024xf32, #tpu.memory_space<vmem>>, vector<4x1024xf32>,
    %c0_35 = arith.constant 0 : index
    %c0_36 = arith.constant 0 : index
    %c65 = arith.constant 65 : index
    %73 = vector.load %arg1[%c0_35, %c0_36, %c65] : memref<2x4x1216xf32, #tpu.memory_space<vmem>>, vector<1x4x1024xf32>
    %74 = vector.shape_cast %73 : vector<1x4x1024xf32> to vector<4x1024xf32>
    %75 = vector.broadcast %30 : vector<1x1024xf32> to vector<4x1024xf32>
    %76 = arith.mulf %74, %75 : vector<4x1024xf32>
    %c64_37 = arith.constant 64 : index
    %c0_38 = arith.constant 0 : index
    %77 = vector.load %arg7[%c64_37, %c0_38] : memref<200x1024xf32, #tpu.memory_space<vmem>>, vector<4x1024xf32>
    tpu.vector_store %arg7[%c64_37, %c0_38], %76 {strides = array<i32>} : memref<200x1024xf32, #tpu.memory_space<vmem>>, vector<4x1024xf32>,
    %c0_39 = arith.constant 0 : index
    %c0_40 = arith.constant 0 : index
    %c66 = arith.constant 66 : index
    %78 = vector.load %arg1[%c0_39, %c0_40, %c66] : memref<2x4x1216xf32, #tpu.memory_space<vmem>>, vector<1x4x1024xf32>
    %79 = vector.shape_cast %78 : vector<1x4x1024xf32> to vector<4x1024xf32>
    %80 = vector.broadcast %34 : vector<1x1024xf32> to vector<4x1024xf32>
    %81 = arith.mulf %79, %80 : vector<4x1024xf32>
    %c72 = arith.constant 72 : index
    %c0_41 = arith.constant 0 : index
    %82 = vector.load %arg7[%c72, %c0_41] : memref<200x1024xf32, #tpu.memory_space<vmem>>, vector<4x1024xf32>
    tpu.vector_store %arg7[%c72, %c0_41], %81 {strides = array<i32>} : memref<200x1024xf32, #tpu.memory_space<vmem>>, vector<4x1024xf32>,
    %c0_42 = arith.constant 0 : index
    %c0_43 = arith.constant 0 : index
    %c94 = arith.constant 94 : index
    %83 = vector.load %arg1[%c0_42, %c0_43, %c94] : memref<2x4x1216xf32, #tpu.memory_space<vmem>>, vector<1x4x1024xf32>
    %84 = vector.shape_cast %83 : vector<1x4x1024xf32> to vector<4x1024xf32>
    %85 = vector.broadcast %22 : vector<1x1024xf32> to vector<4x1024xf32>
    %86 = arith.mulf %84, %85 : vector<4x1024xf32>
    %c80 = arith.constant 80 : index
    %c0_44 = arith.constant 0 : index
    %87 = vector.load %arg7[%c80, %c0_44] : memref<200x1024xf32, #tpu.memory_space<vmem>>, vector<4x1024xf32>
    tpu.vector_store %arg7[%c80, %c0_44], %86 {strides = array<i32>} : memref<200x1024xf32, #tpu.memory_space<vmem>>, vector<4x1024xf32>,
    %c0_45 = arith.constant 0 : index
    %c0_46 = arith.constant 0 : index
    %c95 = arith.constant 95 : index
    %88 = vector.load %arg1[%c0_45, %c0_46, %c95] : memref<2x4x1216xf32, #tpu.memory_space<vmem>>, vector<1x4x1024xf32>
    %89 = vector.shape_cast %88 : vector<1x4x1024xf32> to vector<4x1024xf32>
    %90 = vector.broadcast %26 : vector<1x1024xf32> to vector<4x1024xf32>
    %91 = arith.mulf %89, %90 : vector<4x1024xf32>
    %c88 = arith.constant 88 : index
    %c0_47 = arith.constant 0 : index
    %92 = vector.load %arg7[%c88, %c0_47] : memref<200x1024xf32, #tpu.memory_space<vmem>>, vector<4x1024xf32>
    tpu.vector_store %arg7[%c88, %c0_47], %91 {strides = array<i32>} : memref<200x1024xf32, #tpu.memory_space<vmem>>, vector<4x1024xf32>,
    %c0_48 = arith.constant 0 : index
    %c0_49 = arith.constant 0 : index
    %c96 = arith.constant 96 : index
    %93 = vector.load %arg1[%c0_48, %c0_49, %c96] : memref<2x4x1216xf32, #tpu.memory_space<vmem>>, vector<1x4x1024xf32>
    %94 = vector.shape_cast %93 : vector<1x4x1024xf32> to vector<4x1024xf32>
    %c96_50 = arith.constant 96 : index
    %c0_51 = arith.constant 0 : index
    %95 = vector.load %arg7[%c96_50, %c0_51] : memref<200x1024xf32, #tpu.memory_space<vmem>>, vector<4x1024xf32>
    tpu.vector_store %arg7[%c96_50, %c0_51], %94 {strides = array<i32>} : memref<200x1024xf32, #tpu.memory_space<vmem>>, vector<4x1024xf32>,
    %c0_52 = arith.constant 0 : index
    %c0_53 = arith.constant 0 : index
    %c97 = arith.constant 97 : index
    %96 = vector.load %arg1[%c0_52, %c0_53, %c97] : memref<2x4x1216xf32, #tpu.memory_space<vmem>>, vector<1x4x1024xf32>
    %97 = vector.shape_cast %96 : vector<1x4x1024xf32> to vector<4x1024xf32>
    %98 = vector.broadcast %30 : vector<1x1024xf32> to vector<4x1024xf32>
    %99 = arith.mulf %97, %98 : vector<4x1024xf32>
    %c104 = arith.constant 104 : index
    %c0_54 = arith.constant 0 : index
    %100 = vector.load %arg7[%c104, %c0_54] : memref<200x1024xf32, #tpu.memory_space<vmem>>, vector<4x1024xf32>
    tpu.vector_store %arg7[%c104, %c0_54], %99 {strides = array<i32>} : memref<200x1024xf32, #tpu.memory_space<vmem>>, vector<4x1024xf32>,
    %c0_55 = arith.constant 0 : index
    %c0_56 = arith.constant 0 : index
    %c98 = arith.constant 98 : index
    %101 = vector.load %arg1[%c0_55, %c0_56, %c98] : memref<2x4x1216xf32, #tpu.memory_space<vmem>>, vector<1x4x1024xf32>
    %102 = vector.shape_cast %101 : vector<1x4x1024xf32> to vector<4x1024xf32>
    %103 = vector.broadcast %34 : vector<1x1024xf32> to vector<4x1024xf32>
    %104 = arith.mulf %102, %103 : vector<4x1024xf32>
    %c112 = arith.constant 112 : index
    %c0_57 = arith.constant 0 : index
    %105 = vector.load %arg7[%c112, %c0_57] : memref<200x1024xf32, #tpu.memory_space<vmem>>, vector<4x1024xf32>
    tpu.vector_store %arg7[%c112, %c0_57], %104 {strides = array<i32>} : memref<200x1024xf32, #tpu.memory_space<vmem>>, vector<4x1024xf32>,
    %c0_58 = arith.constant 0 : index
    %c0_59 = arith.constant 0 : index
    %c126 = arith.constant 126 : index
    %106 = vector.load %arg1[%c0_58, %c0_59, %c126] : memref<2x4x1216xf32, #tpu.memory_space<vmem>>, vector<1x4x1024xf32>
    %107 = vector.shape_cast %106 : vector<1x4x1024xf32> to vector<4x1024xf32>
    %108 = vector.broadcast %22 : vector<1x1024xf32> to vector<4x1024xf32>
    %109 = arith.mulf %107, %108 : vector<4x1024xf32>
    %c120 = arith.constant 120 : index
    %c0_60 = arith.constant 0 : index
    %110 = vector.load %arg7[%c120, %c0_60] : memref<200x1024xf32, #tpu.memory_space<vmem>>, vector<4x1024xf32>
    tpu.vector_store %arg7[%c120, %c0_60], %109 {strides = array<i32>} : memref<200x1024xf32, #tpu.memory_space<vmem>>, vector<4x1024xf32>,
    %c0_61 = arith.constant 0 : index
    %c0_62 = arith.constant 0 : index
    %c127 = arith.constant 127 : index
    %111 = vector.load %arg1[%c0_61, %c0_62, %c127] : memref<2x4x1216xf32, #tpu.memory_space<vmem>>, vector<1x4x1024xf32>
    %112 = vector.shape_cast %111 : vector<1x4x1024xf32> to vector<4x1024xf32>
    %113 = vector.broadcast %26 : vector<1x1024xf32> to vector<4x1024xf32>
    %114 = arith.mulf %112, %113 : vector<4x1024xf32>
    %c128 = arith.constant 128 : index
    %c0_63 = arith.constant 0 : index
    %115 = vector.load %arg7[%c128, %c0_63] : memref<200x1024xf32, #tpu.memory_space<vmem>>, vector<4x1024xf32>
    tpu.vector_store %arg7[%c128, %c0_63], %114 {strides = array<i32>} : memref<200x1024xf32, #tpu.memory_space<vmem>>, vector<4x1024xf32>,
    %c0_64 = arith.constant 0 : index
    %c0_65 = arith.constant 0 : index
    %c128_66 = arith.constant 128 : index
    %116 = vector.load %arg1[%c0_64, %c0_65, %c128_66] : memref<2x4x1216xf32, #tpu.memory_space<vmem>>, vector<1x4x1024xf32>
    %117 = vector.shape_cast %116 : vector<1x4x1024xf32> to vector<4x1024xf32>
    %c136 = arith.constant 136 : index
    %c0_67 = arith.constant 0 : index
    %118 = vector.load %arg7[%c136, %c0_67] : memref<200x1024xf32, #tpu.memory_space<vmem>>, vector<4x1024xf32>
    tpu.vector_store %arg7[%c136, %c0_67], %117 {strides = array<i32>} : memref<200x1024xf32, #tpu.memory_space<vmem>>, vector<4x1024xf32>,
    %c0_68 = arith.constant 0 : index
    %c0_69 = arith.constant 0 : index
    %c129 = arith.constant 129 : index
    %119 = vector.load %arg1[%c0_68, %c0_69, %c129] : memref<2x4x1216xf32, #tpu.memory_space<vmem>>, vector<1x4x1024xf32>
    %120 = vector.shape_cast %119 : vector<1x4x1024xf32> to vector<4x1024xf32>
    %121 = vector.broadcast %30 : vector<1x1024xf32> to vector<4x1024xf32>
    %122 = arith.mulf %120, %121 : vector<4x1024xf32>
    %c144 = arith.constant 144 : index
    %c0_70 = arith.constant 0 : index
    %123 = vector.load %arg7[%c144, %c0_70] : memref<200x1024xf32, #tpu.memory_space<vmem>>, vector<4x1024xf32>
    tpu.vector_store %arg7[%c144, %c0_70], %122 {strides = array<i32>} : memref<200x1024xf32, #tpu.memory_space<vmem>>, vector<4x1024xf32>,
    %c0_71 = arith.constant 0 : index
    %c0_72 = arith.constant 0 : index
    %c130 = arith.constant 130 : index
    %124 = vector.load %arg1[%c0_71, %c0_72, %c130] : memref<2x4x1216xf32, #tpu.memory_space<vmem>>, vector<1x4x1024xf32>
    %125 = vector.shape_cast %124 : vector<1x4x1024xf32> to vector<4x1024xf32>
    %126 = vector.broadcast %34 : vector<1x1024xf32> to vector<4x1024xf32>
    %127 = arith.mulf %125, %126 : vector<4x1024xf32>
    %c152 = arith.constant 152 : index
    %c0_73 = arith.constant 0 : index
    %128 = vector.load %arg7[%c152, %c0_73] : memref<200x1024xf32, #tpu.memory_space<vmem>>, vector<4x1024xf32>
    tpu.vector_store %arg7[%c152, %c0_73], %127 {strides = array<i32>} : memref<200x1024xf32, #tpu.memory_space<vmem>>, vector<4x1024xf32>,
    %c0_74 = arith.constant 0 : index
    %c0_75 = arith.constant 0 : index
    %c158 = arith.constant 158 : index
    %129 = vector.load %arg1[%c0_74, %c0_75, %c158] : memref<2x4x1216xf32, #tpu.memory_space<vmem>>, vector<1x4x1024xf32>
    %130 = vector.shape_cast %129 : vector<1x4x1024xf32> to vector<4x1024xf32>
    %131 = vector.broadcast %22 : vector<1x1024xf32> to vector<4x1024xf32>
    %132 = arith.mulf %130, %131 : vector<4x1024xf32>
    %c160 = arith.constant 160 : index
    %c0_76 = arith.constant 0 : index
    %133 = vector.load %arg7[%c160, %c0_76] : memref<200x1024xf32, #tpu.memory_space<vmem>>, vector<4x1024xf32>
    tpu.vector_store %arg7[%c160, %c0_76], %132 {strides = array<i32>} : memref<200x1024xf32, #tpu.memory_space<vmem>>, vector<4x1024xf32>,
    %c0_77 = arith.constant 0 : index
    %c0_78 = arith.constant 0 : index
    %c159 = arith.constant 159 : index
    %134 = vector.load %arg1[%c0_77, %c0_78, %c159] : memref<2x4x1216xf32, #tpu.memory_space<vmem>>, vector<1x4x1024xf32>
    %135 = vector.shape_cast %134 : vector<1x4x1024xf32> to vector<4x1024xf32>
    %136 = vector.broadcast %26 : vector<1x1024xf32> to vector<4x1024xf32>
    %137 = arith.mulf %135, %136 : vector<4x1024xf32>
    %c168 = arith.constant 168 : index
    %c0_79 = arith.constant 0 : index
    %138 = vector.load %arg7[%c168, %c0_79] : memref<200x1024xf32, #tpu.memory_space<vmem>>, vector<4x1024xf32>
    tpu.vector_store %arg7[%c168, %c0_79], %137 {strides = array<i32>} : memref<200x1024xf32, #tpu.memory_space<vmem>>, vector<4x1024xf32>,
    %c0_80 = arith.constant 0 : index
    %c0_81 = arith.constant 0 : index
    %c160_82 = arith.constant 160 : index
    %139 = vector.load %arg1[%c0_80, %c0_81, %c160_82] : memref<2x4x1216xf32, #tpu.memory_space<vmem>>, vector<1x4x1024xf32>
    %140 = vector.shape_cast %139 : vector<1x4x1024xf32> to vector<4x1024xf32>
    %c176 = arith.constant 176 : index
    %c0_83 = arith.constant 0 : index
    %141 = vector.load %arg7[%c176, %c0_83] : memref<200x1024xf32, #tpu.memory_space<vmem>>, vector<4x1024xf32>
    tpu.vector_store %arg7[%c176, %c0_83], %140 {strides = array<i32>} : memref<200x1024xf32, #tpu.memory_space<vmem>>, vector<4x1024xf32>,
    %c0_84 = arith.constant 0 : index
    %c0_85 = arith.constant 0 : index
    %c161 = arith.constant 161 : index
    %142 = vector.load %arg1[%c0_84, %c0_85, %c161] : memref<2x4x1216xf32, #tpu.memory_space<vmem>>, vector<1x4x1024xf32>
    %143 = vector.shape_cast %142 : vector<1x4x1024xf32> to vector<4x1024xf32>
    %144 = vector.broadcast %30 : vector<1x1024xf32> to vector<4x1024xf32>
    %145 = arith.mulf %143, %144 : vector<4x1024xf32>
    %c184 = arith.constant 184 : index
    %c0_86 = arith.constant 0 : index
    %146 = vector.load %arg7[%c184, %c0_86] : memref<200x1024xf32, #tpu.memory_space<vmem>>, vector<4x1024xf32>
    tpu.vector_store %arg7[%c184, %c0_86], %145 {strides = array<i32>} : memref<200x1024xf32, #tpu.memory_space<vmem>>, vector<4x1024xf32>,
    %c0_87 = arith.constant 0 : index
    %c0_88 = arith.constant 0 : index
    %c162 = arith.constant 162 : index
    %147 = vector.load %arg1[%c0_87, %c0_88, %c162] : memref<2x4x1216xf32, #tpu.memory_space<vmem>>, vector<1x4x1024xf32>
    %148 = vector.shape_cast %147 : vector<1x4x1024xf32> to vector<4x1024xf32>
    %149 = vector.broadcast %34 : vector<1x1024xf32> to vector<4x1024xf32>
    %150 = arith.mulf %148, %149 : vector<4x1024xf32>
    %c192 = arith.constant 192 : index
    %c0_89 = arith.constant 0 : index
    %151 = vector.load %arg7[%c192, %c0_89] : memref<200x1024xf32, #tpu.memory_space<vmem>>, vector<4x1024xf32>
    tpu.vector_store %arg7[%c192, %c0_89], %150 {strides = array<i32>} : memref<200x1024xf32, #tpu.memory_space<vmem>>, vector<4x1024xf32>,
    %c0_90 = arith.constant 0 : index
    %c0_91 = arith.constant 0 : index
    %152 = vector.load %arg7[%c0_90, %c0_91] : memref<200x1024xf32, #tpu.memory_space<vmem>>, vector<200x1024xf32>
    %153 = arith.truncf %152 : vector<200x1024xf32> to vector<200x1024xbf16>
    %cst_92 = arith.constant dense<0.000000e+00> : vector<8x1024xf32>
    %154 = tpu.matmul %0, %153, %cst_92 {dimension_numbers = #tpu.dot_dimension_numbers<[1], [0], [0], [1], [0, 0, 1, 1], [], []>} : vector<8x200xbf16>, vector<200x1024xbf16>, vector<8x1024xf32> -> vector<8x1024xf32>
    %c0_93 = arith.constant 0 : index
    %c0_94 = arith.constant 0 : index
    %155 = vector.load %arg8[%c0_93, %c0_94] : memref<8x2048xf32, #tpu.memory_space<vmem>>, vector<8x1024xf32>
    tpu.vector_store %arg8[%c0_93, %c0_94], %154 {strides = array<i32>} : memref<8x2048xf32, #tpu.memory_space<vmem>>, vector<8x1024xf32>,
    %c1 = arith.constant 1 : index
    %c0_95 = arith.constant 0 : index
    %c30_96 = arith.constant 30 : index
    %156 = vector.load %arg1[%c1, %c0_95, %c30_96] : memref<2x4x1216xf32, #tpu.memory_space<vmem>>, vector<1x4x1024xf32>
    %157 = vector.shape_cast %156 : vector<1x4x1024xf32> to vector<4x1024xf32>
    %158 = vector.broadcast %22 : vector<1x1024xf32> to vector<4x1024xf32>
    %159 = arith.mulf %157, %158 : vector<4x1024xf32>
    %c0_97 = arith.constant 0 : index
    %c0_98 = arith.constant 0 : index
    %160 = vector.load %arg7[%c0_97, %c0_98] : memref<200x1024xf32, #tpu.memory_space<vmem>>, vector<4x1024xf32>
    tpu.vector_store %arg7[%c0_97, %c0_98], %159 {strides = array<i32>} : memref<200x1024xf32, #tpu.memory_space<vmem>>, vector<4x1024xf32>,
    %c1_99 = arith.constant 1 : index
    %c0_100 = arith.constant 0 : index
    %c31_101 = arith.constant 31 : index
    %161 = vector.load %arg1[%c1_99, %c0_100, %c31_101] : memref<2x4x1216xf32, #tpu.memory_space<vmem>>, vector<1x4x1024xf32>
    %162 = vector.shape_cast %161 : vector<1x4x1024xf32> to vector<4x1024xf32>
    %163 = vector.broadcast %26 : vector<1x1024xf32> to vector<4x1024xf32>
    %164 = arith.mulf %162, %163 : vector<4x1024xf32>
    %c8_102 = arith.constant 8 : index
    %c0_103 = arith.constant 0 : index
    %165 = vector.load %arg7[%c8_102, %c0_103] : memref<200x1024xf32, #tpu.memory_space<vmem>>, vector<4x1024xf32>
    tpu.vector_store %arg7[%c8_102, %c0_103], %164 {strides = array<i32>} : memref<200x1024xf32, #tpu.memory_space<vmem>>, vector<4x1024xf32>,
    %c1_104 = arith.constant 1 : index
    %c0_105 = arith.constant 0 : index
    %c32_106 = arith.constant 32 : index
    %166 = vector.load %arg1[%c1_104, %c0_105, %c32_106] : memref<2x4x1216xf32, #tpu.memory_space<vmem>>, vector<1x4x1024xf32>
    %167 = vector.shape_cast %166 : vector<1x4x1024xf32> to vector<4x1024xf32>
    %c16_107 = arith.constant 16 : index
    %c0_108 = arith.constant 0 : index
    %168 = vector.load %arg7[%c16_107, %c0_108] : memref<200x1024xf32, #tpu.memory_space<vmem>>, vector<4x1024xf32>
    tpu.vector_store %arg7[%c16_107, %c0_108], %167 {strides = array<i32>} : memref<200x1024xf32, #tpu.memory_space<vmem>>, vector<4x1024xf32>,
    %c1_109 = arith.constant 1 : index
    %c0_110 = arith.constant 0 : index
    %c33_111 = arith.constant 33 : index
    %169 = vector.load %arg1[%c1_109, %c0_110, %c33_111] : memref<2x4x1216xf32, #tpu.memory_space<vmem>>, vector<1x4x1024xf32>
    %170 = vector.shape_cast %169 : vector<1x4x1024xf32> to vector<4x1024xf32>
    %171 = vector.broadcast %30 : vector<1x1024xf32> to vector<4x1024xf32>
    %172 = arith.mulf %170, %171 : vector<4x1024xf32>
    %c24_112 = arith.constant 24 : index
    %c0_113 = arith.constant 0 : index
    %173 = vector.load %arg7[%c24_112, %c0_113] : memref<200x1024xf32, #tpu.memory_space<vmem>>, vector<4x1024xf32>
    tpu.vector_store %arg7[%c24_112, %c0_113], %172 {strides = array<i32>} : memref<200x1024xf32, #tpu.memory_space<vmem>>, vector<4x1024xf32>,
    %c1_114 = arith.constant 1 : index
    %c0_115 = arith.constant 0 : index
    %c34_116 = arith.constant 34 : index
    %174 = vector.load %arg1[%c1_114, %c0_115, %c34_116] : memref<2x4x1216xf32, #tpu.memory_space<vmem>>, vector<1x4x1024xf32>
    %175 = vector.shape_cast %174 : vector<1x4x1024xf32> to vector<4x1024xf32>
    %176 = vector.broadcast %34 : vector<1x1024xf32> to vector<4x1024xf32>
    %177 = arith.mulf %175, %176 : vector<4x1024xf32>
    %c32_117 = arith.constant 32 : index
    %c0_118 = arith.constant 0 : index
    %178 = vector.load %arg7[%c32_117, %c0_118] : memref<200x1024xf32, #tpu.memory_space<vmem>>, vector<4x1024xf32>
    tpu.vector_store %arg7[%c32_117, %c0_118], %177 {strides = array<i32>} : memref<200x1024xf32, #tpu.memory_space<vmem>>, vector<4x1024xf32>,
    %c1_119 = arith.constant 1 : index
    %c0_120 = arith.constant 0 : index
    %c62_121 = arith.constant 62 : index
    %179 = vector.load %arg1[%c1_119, %c0_120, %c62_121] : memref<2x4x1216xf32, #tpu.memory_space<vmem>>, vector<1x4x1024xf32>
    %180 = vector.shape_cast %179 : vector<1x4x1024xf32> to vector<4x1024xf32>
    %181 = vector.broadcast %22 : vector<1x1024xf32> to vector<4x1024xf32>
    %182 = arith.mulf %180, %181 : vector<4x1024xf32>
    %c40_122 = arith.constant 40 : index
    %c0_123 = arith.constant 0 : index
    %183 = vector.load %arg7[%c40_122, %c0_123] : memref<200x1024xf32, #tpu.memory_space<vmem>>, vector<4x1024xf32>
    tpu.vector_store %arg7[%c40_122, %c0_123], %182 {strides = array<i32>} : memref<200x1024xf32, #tpu.memory_space<vmem>>, vector<4x1024xf32>,
    %c1_124 = arith.constant 1 : index
    %c0_125 = arith.constant 0 : index
    %c63_126 = arith.constant 63 : index
    %184 = vector.load %arg1[%c1_124, %c0_125, %c63_126] : memref<2x4x1216xf32, #tpu.memory_space<vmem>>, vector<1x4x1024xf32>
    %185 = vector.shape_cast %184 : vector<1x4x1024xf32> to vector<4x1024xf32>
    %186 = vector.broadcast %26 : vector<1x1024xf32> to vector<4x1024xf32>
    %187 = arith.mulf %185, %186 : vector<4x1024xf32>
    %c48_127 = arith.constant 48 : index
    %c0_128 = arith.constant 0 : index
    %188 = vector.load %arg7[%c48_127, %c0_128] : memref<200x1024xf32, #tpu.memory_space<vmem>>, vector<4x1024xf32>
    tpu.vector_store %arg7[%c48_127, %c0_128], %187 {strides = array<i32>} : memref<200x1024xf32, #tpu.memory_space<vmem>>, vector<4x1024xf32>,
    %c1_129 = arith.constant 1 : index
    %c0_130 = arith.constant 0 : index
    %c64_131 = arith.constant 64 : index
    %189 = vector.load %arg1[%c1_129, %c0_130, %c64_131] : memref<2x4x1216xf32, #tpu.memory_space<vmem>>, vector<1x4x1024xf32>
    %190 = vector.shape_cast %189 : vector<1x4x1024xf32> to vector<4x1024xf32>
    %c56_132 = arith.constant 56 : index
    %c0_133 = arith.constant 0 : index
    %191 = vector.load %arg7[%c56_132, %c0_133] : memref<200x1024xf32, #tpu.memory_space<vmem>>, vector<4x1024xf32>
    tpu.vector_store %arg7[%c56_132, %c0_133], %190 {strides = array<i32>} : memref<200x1024xf32, #tpu.memory_space<vmem>>, vector<4x1024xf32>,
    %c1_134 = arith.constant 1 : index
    %c0_135 = arith.constant 0 : index
    %c65_136 = arith.constant 65 : index
    %192 = vector.load %arg1[%c1_134, %c0_135, %c65_136] : memref<2x4x1216xf32, #tpu.memory_space<vmem>>, vector<1x4x1024xf32>
    %193 = vector.shape_cast %192 : vector<1x4x1024xf32> to vector<4x1024xf32>
    %194 = vector.broadcast %30 : vector<1x1024xf32> to vector<4x1024xf32>
    %195 = arith.mulf %193, %194 : vector<4x1024xf32>
    %c64_137 = arith.constant 64 : index
    %c0_138 = arith.constant 0 : index
    %196 = vector.load %arg7[%c64_137, %c0_138] : memref<200x1024xf32, #tpu.memory_space<vmem>>, vector<4x1024xf32>
    tpu.vector_store %arg7[%c64_137, %c0_138], %195 {strides = array<i32>} : memref<200x1024xf32, #tpu.memory_space<vmem>>, vector<4x1024xf32>,
    %c1_139 = arith.constant 1 : index
    %c0_140 = arith.constant 0 : index
    %c66_141 = arith.constant 66 : index
    %197 = vector.load %arg1[%c1_139, %c0_140, %c66_141] : memref<2x4x1216xf32, #tpu.memory_space<vmem>>, vector<1x4x1024xf32>
    %198 = vector.shape_cast %197 : vector<1x4x1024xf32> to vector<4x1024xf32>
    %199 = vector.broadcast %34 : vector<1x1024xf32> to vector<4x1024xf32>
    %200 = arith.mulf %198, %199 : vector<4x1024xf32>
    %c72_142 = arith.constant 72 : index
    %c0_143 = arith.constant 0 : index
    %201 = vector.load %arg7[%c72_142, %c0_143] : memref<200x1024xf32, #tpu.memory_space<vmem>>, vector<4x1024xf32>
    tpu.vector_store %arg7[%c72_142, %c0_143], %200 {strides = array<i32>} : memref<200x1024xf32, #tpu.memory_space<vmem>>, vector<4x1024xf32>,
    %c1_144 = arith.constant 1 : index
    %c0_145 = arith.constant 0 : index
    %c94_146 = arith.constant 94 : index
    %202 = vector.load %arg1[%c1_144, %c0_145, %c94_146] : memref<2x4x1216xf32, #tpu.memory_space<vmem>>, vector<1x4x1024xf32>
    %203 = vector.shape_cast %202 : vector<1x4x1024xf32> to vector<4x1024xf32>
    %204 = vector.broadcast %22 : vector<1x1024xf32> to vector<4x1024xf32>
    %205 = arith.mulf %203, %204 : vector<4x1024xf32>
    %c80_147 = arith.constant 80 : index
    %c0_148 = arith.constant 0 : index
    %206 = vector.load %arg7[%c80_147, %c0_148] : memref<200x1024xf32, #tpu.memory_space<vmem>>, vector<4x1024xf32>
    tpu.vector_store %arg7[%c80_147, %c0_148], %205 {strides = array<i32>} : memref<200x1024xf32, #tpu.memory_space<vmem>>, vector<4x1024xf32>,
    %c1_149 = arith.constant 1 : index
    %c0_150 = arith.constant 0 : index
    %c95_151 = arith.constant 95 : index
    %207 = vector.load %arg1[%c1_149, %c0_150, %c95_151] : memref<2x4x1216xf32, #tpu.memory_space<vmem>>, vector<1x4x1024xf32>
    %208 = vector.shape_cast %207 : vector<1x4x1024xf32> to vector<4x1024xf32>
    %209 = vector.broadcast %26 : vector<1x1024xf32> to vector<4x1024xf32>
    %210 = arith.mulf %208, %209 : vector<4x1024xf32>
    %c88_152 = arith.constant 88 : index
    %c0_153 = arith.constant 0 : index
    %211 = vector.load %arg7[%c88_152, %c0_153] : memref<200x1024xf32, #tpu.memory_space<vmem>>, vector<4x1024xf32>
    tpu.vector_store %arg7[%c88_152, %c0_153], %210 {strides = array<i32>} : memref<200x1024xf32, #tpu.memory_space<vmem>>, vector<4x1024xf32>,
    %c1_154 = arith.constant 1 : index
    %c0_155 = arith.constant 0 : index
    %c96_156 = arith.constant 96 : index
    %212 = vector.load %arg1[%c1_154, %c0_155, %c96_156] : memref<2x4x1216xf32, #tpu.memory_space<vmem>>, vector<1x4x1024xf32>
    %213 = vector.shape_cast %212 : vector<1x4x1024xf32> to vector<4x1024xf32>
    %c96_157 = arith.constant 96 : index
    %c0_158 = arith.constant 0 : index
    %214 = vector.load %arg7[%c96_157, %c0_158] : memref<200x1024xf32, #tpu.memory_space<vmem>>, vector<4x1024xf32>
    tpu.vector_store %arg7[%c96_157, %c0_158], %213 {strides = array<i32>} : memref<200x1024xf32, #tpu.memory_space<vmem>>, vector<4x1024xf32>,
    %c1_159 = arith.constant 1 : index
    %c0_160 = arith.constant 0 : index
    %c97_161 = arith.constant 97 : index
    %215 = vector.load %arg1[%c1_159, %c0_160, %c97_161] : memref<2x4x1216xf32, #tpu.memory_space<vmem>>, vector<1x4x1024xf32>
    %216 = vector.shape_cast %215 : vector<1x4x1024xf32> to vector<4x1024xf32>
    %217 = vector.broadcast %30 : vector<1x1024xf32> to vector<4x1024xf32>
    %218 = arith.mulf %216, %217 : vector<4x1024xf32>
    %c104_162 = arith.constant 104 : index
    %c0_163 = arith.constant 0 : index
    %219 = vector.load %arg7[%c104_162, %c0_163] : memref<200x1024xf32, #tpu.memory_space<vmem>>, vector<4x1024xf32>
    tpu.vector_store %arg7[%c104_162, %c0_163], %218 {strides = array<i32>} : memref<200x1024xf32, #tpu.memory_space<vmem>>, vector<4x1024xf32>,
    %c1_164 = arith.constant 1 : index
    %c0_165 = arith.constant 0 : index
    %c98_166 = arith.constant 98 : index
    %220 = vector.load %arg1[%c1_164, %c0_165, %c98_166] : memref<2x4x1216xf32, #tpu.memory_space<vmem>>, vector<1x4x1024xf32>
    %221 = vector.shape_cast %220 : vector<1x4x1024xf32> to vector<4x1024xf32>
    %222 = vector.broadcast %34 : vector<1x1024xf32> to vector<4x1024xf32>
    %223 = arith.mulf %221, %222 : vector<4x1024xf32>
    %c112_167 = arith.constant 112 : index
    %c0_168 = arith.constant 0 : index
    %224 = vector.load %arg7[%c112_167, %c0_168] : memref<200x1024xf32, #tpu.memory_space<vmem>>, vector<4x1024xf32>
    tpu.vector_store %arg7[%c112_167, %c0_168], %223 {strides = array<i32>} : memref<200x1024xf32, #tpu.memory_space<vmem>>, vector<4x1024xf32>,
    %c1_169 = arith.constant 1 : index
    %c0_170 = arith.constant 0 : index
    %c126_171 = arith.constant 126 : index
    %225 = vector.load %arg1[%c1_169, %c0_170, %c126_171] : memref<2x4x1216xf32, #tpu.memory_space<vmem>>, vector<1x4x1024xf32>
    %226 = vector.shape_cast %225 : vector<1x4x1024xf32> to vector<4x1024xf32>
    %227 = vector.broadcast %22 : vector<1x1024xf32> to vector<4x1024xf32>
    %228 = arith.mulf %226, %227 : vector<4x1024xf32>
    %c120_172 = arith.constant 120 : index
    %c0_173 = arith.constant 0 : index
    %229 = vector.load %arg7[%c120_172, %c0_173] : memref<200x1024xf32, #tpu.memory_space<vmem>>, vector<4x1024xf32>
    tpu.vector_store %arg7[%c120_172, %c0_173], %228 {strides = array<i32>} : memref<200x1024xf32, #tpu.memory_space<vmem>>, vector<4x1024xf32>,
    %c1_174 = arith.constant 1 : index
    %c0_175 = arith.constant 0 : index
    %c127_176 = arith.constant 127 : index
    %230 = vector.load %arg1[%c1_174, %c0_175, %c127_176] : memref<2x4x1216xf32, #tpu.memory_space<vmem>>, vector<1x4x1024xf32>
    %231 = vector.shape_cast %230 : vector<1x4x1024xf32> to vector<4x1024xf32>
    %232 = vector.broadcast %26 : vector<1x1024xf32> to vector<4x1024xf32>
    %233 = arith.mulf %231, %232 : vector<4x1024xf32>
    %c128_177 = arith.constant 128 : index
    %c0_178 = arith.constant 0 : index
    %234 = vector.load %arg7[%c128_177, %c0_178] : memref<200x1024xf32, #tpu.memory_space<vmem>>, vector<4x1024xf32>
    tpu.vector_store %arg7[%c128_177, %c0_178], %233 {strides = array<i32>} : memref<200x1024xf32, #tpu.memory_space<vmem>>, vector<4x1024xf32>,
    %c1_179 = arith.constant 1 : index
    %c0_180 = arith.constant 0 : index
    %c128_181 = arith.constant 128 : index
    %235 = vector.load %arg1[%c1_179, %c0_180, %c128_181] : memref<2x4x1216xf32, #tpu.memory_space<vmem>>, vector<1x4x1024xf32>
    %236 = vector.shape_cast %235 : vector<1x4x1024xf32> to vector<4x1024xf32>
    %c136_182 = arith.constant 136 : index
    %c0_183 = arith.constant 0 : index
    %237 = vector.load %arg7[%c136_182, %c0_183] : memref<200x1024xf32, #tpu.memory_space<vmem>>, vector<4x1024xf32>
    tpu.vector_store %arg7[%c136_182, %c0_183], %236 {strides = array<i32>} : memref<200x1024xf32, #tpu.memory_space<vmem>>, vector<4x1024xf32>,
    %c1_184 = arith.constant 1 : index
    %c0_185 = arith.constant 0 : index
    %c129_186 = arith.constant 129 : index
    %238 = vector.load %arg1[%c1_184, %c0_185, %c129_186] : memref<2x4x1216xf32, #tpu.memory_space<vmem>>, vector<1x4x1024xf32>
    %239 = vector.shape_cast %238 : vector<1x4x1024xf32> to vector<4x1024xf32>
    %240 = vector.broadcast %30 : vector<1x1024xf32> to vector<4x1024xf32>
    %241 = arith.mulf %239, %240 : vector<4x1024xf32>
    %c144_187 = arith.constant 144 : index
    %c0_188 = arith.constant 0 : index
    %242 = vector.load %arg7[%c144_187, %c0_188] : memref<200x1024xf32, #tpu.memory_space<vmem>>, vector<4x1024xf32>
    tpu.vector_store %arg7[%c144_187, %c0_188], %241 {strides = array<i32>} : memref<200x1024xf32, #tpu.memory_space<vmem>>, vector<4x1024xf32>,
    %c1_189 = arith.constant 1 : index
    %c0_190 = arith.constant 0 : index
    %c130_191 = arith.constant 130 : index
    %243 = vector.load %arg1[%c1_189, %c0_190, %c130_191] : memref<2x4x1216xf32, #tpu.memory_space<vmem>>, vector<1x4x1024xf32>
    %244 = vector.shape_cast %243 : vector<1x4x1024xf32> to vector<4x1024xf32>
    %245 = vector.broadcast %34 : vector<1x1024xf32> to vector<4x1024xf32>
    %246 = arith.mulf %244, %245 : vector<4x1024xf32>
    %c152_192 = arith.constant 152 : index
    %c0_193 = arith.constant 0 : index
    %247 = vector.load %arg7[%c152_192, %c0_193] : memref<200x1024xf32, #tpu.memory_space<vmem>>, vector<4x1024xf32>
    tpu.vector_store %arg7[%c152_192, %c0_193], %246 {strides = array<i32>} : memref<200x1024xf32, #tpu.memory_space<vmem>>, vector<4x1024xf32>,
    %c1_194 = arith.constant 1 : index
    %c0_195 = arith.constant 0 : index
    %c158_196 = arith.constant 158 : index
    %248 = vector.load %arg1[%c1_194, %c0_195, %c158_196] : memref<2x4x1216xf32, #tpu.memory_space<vmem>>, vector<1x4x1024xf32>
    %249 = vector.shape_cast %248 : vector<1x4x1024xf32> to vector<4x1024xf32>
    %250 = vector.broadcast %22 : vector<1x1024xf32> to vector<4x1024xf32>
    %251 = arith.mulf %249, %250 : vector<4x1024xf32>
    %c160_197 = arith.constant 160 : index
    %c0_198 = arith.constant 0 : index
    %252 = vector.load %arg7[%c160_197, %c0_198] : memref<200x1024xf32, #tpu.memory_space<vmem>>, vector<4x1024xf32>
    tpu.vector_store %arg7[%c160_197, %c0_198], %251 {strides = array<i32>} : memref<200x1024xf32, #tpu.memory_space<vmem>>, vector<4x1024xf32>,
    %c1_199 = arith.constant 1 : index
    %c0_200 = arith.constant 0 : index
    %c159_201 = arith.constant 159 : index
    %253 = vector.load %arg1[%c1_199, %c0_200, %c159_201] : memref<2x4x1216xf32, #tpu.memory_space<vmem>>, vector<1x4x1024xf32>
    %254 = vector.shape_cast %253 : vector<1x4x1024xf32> to vector<4x1024xf32>
    %255 = vector.broadcast %26 : vector<1x1024xf32> to vector<4x1024xf32>
    %256 = arith.mulf %254, %255 : vector<4x1024xf32>
    %c168_202 = arith.constant 168 : index
    %c0_203 = arith.constant 0 : index
    %257 = vector.load %arg7[%c168_202, %c0_203] : memref<200x1024xf32, #tpu.memory_space<vmem>>, vector<4x1024xf32>
    tpu.vector_store %arg7[%c168_202, %c0_203], %256 {strides = array<i32>} : memref<200x1024xf32, #tpu.memory_space<vmem>>, vector<4x1024xf32>,
    %c1_204 = arith.constant 1 : index
    %c0_205 = arith.constant 0 : index
    %c160_206 = arith.constant 160 : index
    %258 = vector.load %arg1[%c1_204, %c0_205, %c160_206] : memref<2x4x1216xf32, #tpu.memory_space<vmem>>, vector<1x4x1024xf32>
    %259 = vector.shape_cast %258 : vector<1x4x1024xf32> to vector<4x1024xf32>
    %c176_207 = arith.constant 176 : index
    %c0_208 = arith.constant 0 : index
    %260 = vector.load %arg7[%c176_207, %c0_208] : memref<200x1024xf32, #tpu.memory_space<vmem>>, vector<4x1024xf32>
    tpu.vector_store %arg7[%c176_207, %c0_208], %259 {strides = array<i32>} : memref<200x1024xf32, #tpu.memory_space<vmem>>, vector<4x1024xf32>,
    %c1_209 = arith.constant 1 : index
    %c0_210 = arith.constant 0 : index
    %c161_211 = arith.constant 161 : index
    %261 = vector.load %arg1[%c1_209, %c0_210, %c161_211] : memref<2x4x1216xf32, #tpu.memory_space<vmem>>, vector<1x4x1024xf32>
    %262 = vector.shape_cast %261 : vector<1x4x1024xf32> to vector<4x1024xf32>
    %263 = vector.broadcast %30 : vector<1x1024xf32> to vector<4x1024xf32>
    %264 = arith.mulf %262, %263 : vector<4x1024xf32>
    %c184_212 = arith.constant 184 : index
    %c0_213 = arith.constant 0 : index
    %265 = vector.load %arg7[%c184_212, %c0_213] : memref<200x1024xf32, #tpu.memory_space<vmem>>, vector<4x1024xf32>
    tpu.vector_store %arg7[%c184_212, %c0_213], %264 {strides = array<i32>} : memref<200x1024xf32, #tpu.memory_space<vmem>>, vector<4x1024xf32>,
    %c1_214 = arith.constant 1 : index
    %c0_215 = arith.constant 0 : index
    %c162_216 = arith.constant 162 : index
    %266 = vector.load %arg1[%c1_214, %c0_215, %c162_216] : memref<2x4x1216xf32, #tpu.memory_space<vmem>>, vector<1x4x1024xf32>
    %267 = vector.shape_cast %266 : vector<1x4x1024xf32> to vector<4x1024xf32>
    %268 = vector.broadcast %34 : vector<1x1024xf32> to vector<4x1024xf32>
    %269 = arith.mulf %267, %268 : vector<4x1024xf32>
    %c192_217 = arith.constant 192 : index
    %c0_218 = arith.constant 0 : index
    %270 = vector.load %arg7[%c192_217, %c0_218] : memref<200x1024xf32, #tpu.memory_space<vmem>>, vector<4x1024xf32>
    tpu.vector_store %arg7[%c192_217, %c0_218], %269 {strides = array<i32>} : memref<200x1024xf32, #tpu.memory_space<vmem>>, vector<4x1024xf32>,
    %c0_219 = arith.constant 0 : index
    %c0_220 = arith.constant 0 : index
    %271 = vector.load %arg7[%c0_219, %c0_220] : memref<200x1024xf32, #tpu.memory_space<vmem>>, vector<200x1024xf32>
    %272 = arith.truncf %271 : vector<200x1024xf32> to vector<200x1024xbf16>
    %cst_221 = arith.constant dense<0.000000e+00> : vector<8x1024xf32>
    %273 = tpu.matmul %0, %272, %cst_221 {dimension_numbers = #tpu.dot_dimension_numbers<[1], [0], [0], [1], [0, 0, 1, 1], [], []>} : vector<8x200xbf16>, vector<200x1024xbf16>, vector<8x1024xf32> -> vector<8x1024xf32>
    %c0_222 = arith.constant 0 : index
    %c1024 = arith.constant 1024 : index
    %274 = vector.load %arg8[%c0_222, %c1024] : memref<8x2048xf32, #tpu.memory_space<vmem>>, vector<8x1024xf32>
    tpu.vector_store %arg8[%c0_222, %c1024], %273 {strides = array<i32>} : memref<8x2048xf32, #tpu.memory_space<vmem>>, vector<8x1024xf32>,
    %c0_223 = arith.constant 0 : index
    %c0_224 = arith.constant 0 : index
    %275 = vector.load %arg8[%c0_223, %c0_224] : memref<8x2048xf32, #tpu.memory_space<vmem>>, vector<8x2048xf32>
    %cst_225 = arith.constant dense<0.000000e+00> : vector<8xf32>
    %276 = vector.multi_reduction <add>, %275, %cst_225 [1] : vector<8x2048xf32> to vector<8xf32>
    %277 = vector.shape_cast %276 : vector<8xf32> to vector<8x1xf32>
    %cst_226 = arith.constant 4.8828125E-4 : f32
    %278 = vector.broadcast %cst_226 : f32 to vector<8x1xf32>
    %279 = arith.mulf %277, %278 : vector<8x1xf32>
    %280 = arith.mulf %275, %275 : vector<8x2048xf32>
    %cst_227 = arith.constant dense<0.000000e+00> : vector<8xf32>
    %281 = vector.multi_reduction <add>, %280, %cst_227 [1] : vector<8x2048xf32> to vector<8xf32>
    %282 = vector.shape_cast %281 : vector<8xf32> to vector<8x1xf32>
    %cst_228 = arith.constant 4.8828125E-4 : f32
    %283 = vector.broadcast %cst_228 : f32 to vector<8x1xf32>
    %284 = arith.mulf %282, %283 : vector<8x1xf32>
    %285 = arith.mulf %279, %279 : vector<8x1xf32>
    %286 = arith.subf %284, %285 : vector<8x1xf32>
    %cst_229 = arith.constant 0.000000e+00 : f32
    %287 = vector.broadcast %cst_229 : f32 to vector<8x1xf32>
    %288 = arith.maximumf %286, %287 : vector<8x1xf32>
    %c0_230 = arith.constant 0 : index
    %c0_231 = arith.constant 0 : index
    %289 = vector.load %arg4[%c0_230, %c0_231] : memref<8x1xf32, #tpu.memory_space<vmem>>, vector<8x1xf32>
    %cst_232 = arith.constant 9.99999974E-6 : f32
    %290 = vector.broadcast %cst_232 : f32 to vector<8x1xf32>
    %291 = arith.addf %288, %290 : vector<8x1xf32>
    %292 = math.rsqrt %291 : vector<8x1xf32>
    %293 = arith.mulf %289, %292 : vector<8x1xf32>
    %c0_233 = arith.constant 0 : index
    %c0_234 = arith.constant 0 : index
    %294 = vector.load %arg5[%c0_233, %c0_234] : memref<8x1xf32, #tpu.memory_space<vmem>>, vector<8x1xf32>
    %295 = arith.mulf %279, %293 : vector<8x1xf32>
    %296 = arith.subf %294, %295 : vector<8x1xf32>
    %297 = vector.broadcast %293 : vector<8x1xf32> to vector<8x2048xf32>
    %298 = arith.mulf %275, %297 : vector<8x2048xf32>
    %299 = vector.broadcast %296 : vector<8x1xf32> to vector<8x2048xf32>
    %300 = arith.addf %298, %299 : vector<8x2048xf32>
    %cst_235 = arith.constant 0.000000e+00 : f32
    %301 = vector.broadcast %cst_235 : f32 to vector<8x2048xf32>
    %302 = arith.maximumf %300, %301 : vector<8x2048xf32>
    %303 = vector.extract_strided_slice %302 {offsets = [0, 0], sizes = [8, 1024], strides = [1, 1]} : vector<8x2048xf32> to vector<8x1024xf32>
    %304 = arith.truncf %303 : vector<8x1024xf32> to vector<8x1024xbf16>
    %cst_236 = arith.constant dense<0.000000e+00> : vector<8x256xf32>
    %305 = tpu.matmul %304, %1, %cst_236 {dimension_numbers = #tpu.dot_dimension_numbers<[1], [0], [0], [1], [0, 0, 1, 1], [], []>} : vector<8x1024xbf16>, vector<1024x256xbf16>, vector<8x256xf32> -> vector<8x256xf32>
    %c0_237 = arith.constant 0 : index
    %c0_238 = arith.constant 0 : index
    %306 = vector.load %arg6[%c0_237, %c0_238] : memref<8x512xf32, #tpu.memory_space<vmem>>, vector<8x256xf32>
    tpu.vector_store %arg6[%c0_237, %c0_238], %305 {strides = array<i32>} : memref<8x512xf32, #tpu.memory_space<vmem>>, vector<8x256xf32>,
    %307 = vector.extract_strided_slice %302 {offsets = [0, 1024], sizes = [8, 1024], strides = [1, 1]} : vector<8x2048xf32> to vector<8x1024xf32>
    %308 = arith.truncf %307 : vector<8x1024xf32> to vector<8x1024xbf16>
    %cst_239 = arith.constant dense<0.000000e+00> : vector<8x256xf32>
    %309 = tpu.matmul %308, %1, %cst_239 {dimension_numbers = #tpu.dot_dimension_numbers<[1], [0], [0], [1], [0, 0, 1, 1], [], []>} : vector<8x1024xbf16>, vector<1024x256xbf16>, vector<8x256xf32> -> vector<8x256xf32>
    %c0_240 = arith.constant 0 : index
    %c256 = arith.constant 256 : index
    %310 = vector.load %arg6[%c0_240, %c256] : memref<8x512xf32, #tpu.memory_space<vmem>>, vector<8x256xf32>
    tpu.vector_store %arg6[%c0_240, %c256], %309 {strides = array<i32>} : memref<8x512xf32, #tpu.memory_space<vmem>>, vector<8x256xf32>,
    return
  }
  func.func @transform_0(%arg0: i32) -> (i32, i32, i32) {
    %c0_i32 = arith.constant 0 : i32
    %c0_i32_0 = arith.constant 0 : i32
    %c0_i32_1 = arith.constant 0 : i32
    %c0_i32_2 = arith.constant 0 : i32
    return %c0_i32, %c0_i32_0, %c0_i32_1 : i32, i32, i32
  }
  func.func @transform_1(%arg0: i32) -> (i32, i32) {
    %c0_i32 = arith.constant 0 : i32
    %c0_i32_0 = arith.constant 0 : i32
    %c0_i32_1 = arith.constant 0 : i32
    return %c0_i32, %c0_i32_0 : i32, i32
  }
  func.func @transform_2(%arg0: i32) -> (i32, i32) {
    %c0_i32 = arith.constant 0 : i32
    %c0_i32_0 = arith.constant 0 : i32
    %c0_i32_1 = arith.constant 0 : i32
    return %c0_i32, %c0_i32_0 : i32, i32
  }
  func.func @transform_3(%arg0: i32) -> (i32, i32) {
    %c0_i32 = arith.constant 0 : i32
    %c0_i32_0 = arith.constant 0 : i32
    %c0_i32_1 = arith.constant 0 : i32
    return %c0_i32, %c0_i32_0 : i32, i32
  }
  func.func @transform_4(%arg0: i32) -> (i32, i32) {
    %c0_i32 = arith.constant 0 : i32
    %c0_i32_0 = arith.constant 0 : i32
    %c0_i32_1 = arith.constant 0 : i32
    return %c0_i32, %c0_i32_0 : i32, i32
  }
  func.func @transform_5(%arg0: i32) -> (i32, i32) {
    %c0_i32 = arith.constant 0 : i32
    %c0_i32_0 = arith.constant 0 : i32
    %c0_i32_1 = arith.constant 0 : i32
    return %c0_i32, %c0_i32_0 : i32, i32
  }
}

</mosaic_0001>

<llo_original>
// kernel: funnel_forward.3
$region0: #{funnel_forward.3}
  #allocation0 [shape = 'u32[]', space=smem, size = 0x4, offset = 0x4, fixed_abs, tag = 'smem constant byte address 0x4 - core index']
  #allocation1 [shape = 'u32[144,128]{1,0:T(1,128)}', space=vmem, size = 0x12000, scoped, tag = 'internal scratch']
  #allocation2 [shape = 'f32[200,256]{1,0:T(8,128)}', space=vmem, size = 0x32000, scoped, tag = 'scratch operand']
  #allocation3 [shape = 'f32[8,512]{1,0:T(8,128)}', space=vmem, size = 0x4000, scoped, tag = 'scratch operand']
  %s0 = inlined_call_operand.vmem [shape: f32[2,8,352], index: 0, kind: input, shape index: {}]
  %s1 = inlined_call_operand.vmem [shape: bf16[8,200], index: 1, kind: input, shape index: {}]
  %s2 = inlined_call_operand.vmem [shape: bf16[256,64], index: 2, kind: input, shape index: {}]
  %s3 = inlined_call_operand.vmem [shape: f32[8,1], index: 3, kind: input, shape index: {}]
  %s4 = inlined_call_operand.vmem [shape: f32[8,1], index: 4, kind: input, shape index: {}]
  %s5 = inlined_call_operand.vmem [shape: f32[8,128], index: 5, kind: output, shape index: {}]
  %s6 = sld [smem:[#allocation0]]
  $region30: #{funnel_forward.3} parent=0
    _
  %s8 = ssub.s32 1, %s6
  %s9 = scalar_select 0, %s8, %s6
  // Predicated region
  $region2: #{funnel_forward.3} parent=0 // pred_check
    _
  $region3: #{funnel_forward.3} parent=0 // pred_check_branch
    %11 = sbr.rel (0) target = $region5
  $region4: #{funnel_forward.3} parent=0 // pred_region
    _
  $region5: #{funnel_forward.3} parent=0 // pred_fallthru
    _
  // Predicated region
  $region6: #{funnel_forward.3} parent=0 // pred_check
    _
  $region7: #{funnel_forward.3} parent=0 // pred_check_branch
    %13 = sbr.rel (0) target = $region9
  $region8: #{funnel_forward.3} parent=0 // pred_region
    _
  $region9: #{funnel_forward.3} parent=0 // pred_fallthru
    _
  // Predicated region
  $region10: #{funnel_forward.3} parent=0 // pred_check
    _
  $region11: #{funnel_forward.3} parent=0 // pred_check_branch
    %15 = sbr.rel (0) target = $region13
  $region12: #{funnel_forward.3} parent=0 // pred_region
    _
  $region13: #{funnel_forward.3} parent=0 // pred_fallthru
    _
  // Predicated region
  $region14: #{funnel_forward.3} parent=0 // pred_check
    _
  $region15: #{funnel_forward.3} parent=0 // pred_check_branch
    %17 = sbr.rel (0) target = $region17
  $region16: #{funnel_forward.3} parent=0 // pred_region
    _
  $region17: #{funnel_forward.3} parent=0 // pred_fallthru
    _
  // Predicated region
  $region18: #{funnel_forward.3} parent=0 // pred_check
    _
  $region19: #{funnel_forward.3} parent=0 // pred_check_branch
    %19 = sbr.rel (0) target = $region21
  $region20: #{funnel_forward.3} parent=0 // pred_region
    _
  $region21: #{funnel_forward.3} parent=0 // pred_fallthru
    _
  %v21 = vld [vmem:[%s1] sm:$0xff]
  %v22 = vld [vmem:[%s2] sm:$0xf]
  %v23 = vld [vmem:[%s2 + $0x4] sm:$0xf]
  %v24 = vld [vmem:[%s2 + $0x8] sm:$0xf]
  %v25 = vld [vmem:[%s2 + $0xc] sm:$0xf]
  %v26 = vld [vmem:[%s2 + $0x10] sm:$0xf]
  %v27 = vld [vmem:[%s2 + $0x14] sm:$0xf]
  %v28 = vld [vmem:[%s2 + $0x18] sm:$0xf]
  %v29 = vld [vmem:[%s2 + $0x1c] sm:$0xf]
  %v30 = vld [vmem:[%s2 + $0x20] sm:$0xf]
  %v31 = vld [vmem:[%s2 + $0x24] sm:$0xf]
  %v32 = vld [vmem:[%s2 + $0x28] sm:$0xf]
  %v33 = vld [vmem:[%s2 + $0x2c] sm:$0xf]
  %v34 = vld [vmem:[%s2 + $0x30] sm:$0xf]
  %v35 = vld [vmem:[%s2 + $0x34] sm:$0xf]
  %v36 = vld [vmem:[%s2 + $0x38] sm:$0xf]
  %v37 = vld [vmem:[%s2 + $0x3c] sm:$0xf]
  %v38 = vld [vmem:[%s2 + $0x40] sm:$0xf]
  %v39 = vld [vmem:[%s2 + $0x44] sm:$0xf]
  %v40 = vld [vmem:[%s2 + $0x48] sm:$0xf]
  %v41 = vld [vmem:[%s2 + $0x4c] sm:$0xf]
  %v42 = vld [vmem:[%s2 + $0x50] sm:$0xf]
  %v43 = vld [vmem:[%s2 + $0x54] sm:$0xf]
  %v44 = vld [vmem:[%s2 + $0x58] sm:$0xf]
  %v45 = vld [vmem:[%s2 + $0x5c] sm:$0xf]
  %v46 = vld [vmem:[%s2 + $0x60] sm:$0xf]
  %v47 = vld [vmem:[%s2 + $0x64] sm:$0xf]
  %v48 = vld [vmem:[%s2 + $0x68] sm:$0xf]
  %v49 = vld [vmem:[%s2 + $0x6c] sm:$0xf]
  %v50 = vld [vmem:[%s2 + $0x70] sm:$0xf]
  %v51 = vld [vmem:[%s2 + $0x74] sm:$0xf]
  %v52 = vld [vmem:[%s2 + $0x78] sm:$0xf]
  %v53 = vld [vmem:[%s2 + $0x7c] sm:$0xf]
  %v54 = vlaneseq
  %v55 = vand.u32 %v54, 127
  %v56 = vadd.s32 %v55, 128
  %vm57 = vcmp.lt.s32.totalorder %v55, 0
  %v58 = vsub.s32 0, %v55
  %v59 = vsel %vm57, %v58, %v55
  %v60 = vshrl.u32 %v59, 4
  %v61 = vand.u32 %v59, 15
  %v62 = vsub.s32 0, %v61
  %v63 = vsel %vm57, %v62, %v61
  %vm64 = vcmp.lt.s32.totalorder %v56, 0
  %v65 = vsub.s32 0, %v56
  %v66 = vsel %vm64, %v65, %v56
  %v67 = vshrl.u32 %v66, 4
  %v68 = vand.u32 %v66, 15
  %v69 = vsub.s32 0, %v68
  %v70 = vsel %vm64, %v69, %v68
  %vm71 = vcmp.ne.s32.totalorder %v63, 0
  %vm72 = vcmp.ne.s32.totalorder %v70, 0
  %vm73 = vcmp.lt.s32.totalorder %v63, 0
  %vm74 = vcmp.lt.s32.totalorder %v70, 0
  %vm75 = vmand %vm73, %vm71
  %vm76 = vmand %vm74, %vm72
  %v77 = vadd.s32 %v63, 16
  %v78 = vadd.s32 %v70, 16
  %v79 = vsel %vm75, %v77, %v63
  %v80 = vsel %vm76, %v78, %v70
  %vm81 = vcmp.ge.s32.totalorder %v79, 2
  %vm82 = vcmp.ge.s32.totalorder %v80, 2
  %v83 = vsel %vm81, 1, 0
  %v84 = vsel %vm82, 1, 0
  %v85 = vcvt.s32.f32 %v83
  %v86 = vcvt.s32.f32 %v84
  %vm87 = vcmp.ge.s32.totalorder %v79, 1
  %vm88 = vcmp.ge.s32.totalorder %v80, 1
  %v89 = vsel %vm87, 1, 0
  %v90 = vsel %vm88, 1, 0
  %v91 = vcvt.s32.f32 %v89
  %v92 = vcvt.s32.f32 %v90
  %vm93 = vcmp.lt.s32.totalorder %v79, 15
  %vm94 = vcmp.lt.s32.totalorder %v80, 15
  %v95 = vsel %vm93, 1, 0
  %v96 = vsel %vm94, 1, 0
  %v97 = vcvt.s32.f32 %v95
  %v98 = vcvt.s32.f32 %v96
  %vm99 = vcmp.lt.s32.totalorder %v79, 14
  %vm100 = vcmp.lt.s32.totalorder %v80, 14
  %v101 = vsel %vm99, 1, 0
  %v102 = vsel %vm100, 1, 0
  %v103 = vcvt.s32.f32 %v101
  %v104 = vcvt.s32.f32 %v102
  %v105 = vld [vmem:[%s0] sm:$0xff]
  %v106 = vld [vmem:[%s0 + $0x8] sm:$0xff]
  %v107 = vld [vmem:[%s0 + $0x10] sm:$0xff]
  %110 = vrot.lane.b32.xlu0 %v85, 14
  %v111 = vpop.permute.xlu0 %110
  %112 = vrot.lane.b32.xlu0 %v86, 14
  %v113 = vpop.permute.xlu0 %112
  %vm114 = vcmask 113664
  %v115 = vsel %vm114, %v111, %v113
  %v119 = vmul.f32 %v105, %v111
  %v120 = vmul.f32 %v106, %v115
  %v121 = vmul.f32 %v107, %v113
  %125 = vrot.lane.b32.xlu0 %v119, 114
  %v126 = vpop.permute.xlu0 %125
  %127 = vrot.lane.b32.xlu0 %v120, 114
  %v128 = vpop.permute.xlu0 %127
  %129 = vrot.lane.b32.xlu0 %v121, 114
  %v130 = vpop.permute.xlu0 %129
  %vm131 = vcmask 932864
  %v132 = vsel %vm131, %v126, %v128
  %v133 = vsel %vm131, %v128, %v130
  %136 = vst [vmem:[#allocation2] sm:$0xff] %v132
  %137 = vst [vmem:[#allocation2 + $0x8] sm:$0xff] %v133
  %v138 = vld [vmem:[%s0] sm:$0xff]
  %v139 = vld [vmem:[%s0 + $0x8] sm:$0xff]
  %v140 = vld [vmem:[%s0 + $0x10] sm:$0xff]
  %143 = vrot.lane.b32.xlu0 %v91, 15
  %v144 = vpop.permute.xlu0 %143
  %145 = vrot.lane.b32.xlu0 %v92, 15
  %v146 = vpop.permute.xlu0 %145
  %vm147 = vcmask 121856
  %v148 = vsel %vm147, %v144, %v146
  %v152 = vmul.f32 %v138, %v144
  %v153 = vmul.f32 %v139, %v148
  %v154 = vmul.f32 %v140, %v146
  %158 = vrot.lane.b32.xlu0 %v152, 113
  %v159 = vpop.permute.xlu0 %158
  %160 = vrot.lane.b32.xlu0 %v153, 113
  %v161 = vpop.permute.xlu0 %160
  %162 = vrot.lane.b32.xlu0 %v154, 113
  %v163 = vpop.permute.xlu0 %162
  %vm164 = vcmask 924672
  %v165 = vsel %vm164, %v159, %v161
  %v166 = vsel %vm164, %v161, %v163
  %169 = vst [vmem:[#allocation2 + $0x10] sm:$0xff] %v165
  %170 = vst [vmem:[#allocation2 + $0x18] sm:$0xff] %v166
  %v171 = vld [vmem:[%s0] sm:$0xff]
  %v172 = vld [vmem:[%s0 + $0x8] sm:$0xff]
  %v173 = vld [vmem:[%s0 + $0x10] sm:$0xff]
  %177 = vrot.lane.b32.xlu0 %v171, 112
  %v178 = vpop.permute.xlu0 %177
  %179 = vrot.lane.b32.xlu0 %v172, 112
  %v180 = vpop.permute.xlu0 %179
  %181 = vrot.lane.b32.xlu0 %v173, 112
  %v182 = vpop.permute.xlu0 %181
  %vm183 = vcmask 916480
  %v184 = vsel %vm183, %v178, %v180
  %v185 = vsel %vm183, %v180, %v182
  %188 = vst [vmem:[#allocation2 + $0x20] sm:$0xff] %v184
  %189 = vst [vmem:[#allocation2 + $0x28] sm:$0xff] %v185
  %v190 = vld [vmem:[%s0] sm:$0xff]
  %v191 = vld [vmem:[%s0 + $0x8] sm:$0xff]
  %v192 = vld [vmem:[%s0 + $0x10] sm:$0xff]
  %195 = vrot.lane.b32.xlu0 %v97, 17
  %v196 = vpop.permute.xlu0 %195
  %197 = vrot.lane.b32.xlu0 %v98, 17
  %v198 = vpop.permute.xlu0 %197
  %vm199 = vcmask 138240
  %v200 = vsel %vm199, %v196, %v198
  %v204 = vmul.f32 %v190, %v196
  %v205 = vmul.f32 %v191, %v200
  %v206 = vmul.f32 %v192, %v198
  %210 = vrot.lane.b32.xlu0 %v204, 111
  %v211 = vpop.permute.xlu0 %210
  %212 = vrot.lane.b32.xlu0 %v205, 111
  %v213 = vpop.permute.xlu0 %212
  %214 = vrot.lane.b32.xlu0 %v206, 111
  %v215 = vpop.permute.xlu0 %214
  %vm216 = vcmask 908288
  %v217 = vsel %vm216, %v211, %v213
  %v218 = vsel %vm216, %v213, %v215
  %221 = vst [vmem:[#allocation2 + $0x30] sm:$0xff] %v217
  %222 = vst [vmem:[#allocation2 + $0x38] sm:$0xff] %v218
  %v223 = vld [vmem:[%s0] sm:$0xff]
  %v224 = vld [vmem:[%s0 + $0x8] sm:$0xff]
  %v225 = vld [vmem:[%s0 + $0x10] sm:$0xff]
  %228 = vrot.lane.b32.xlu0 %v103, 18
  %v229 = vpop.permute.xlu0 %228
  %230 = vrot.lane.b32.xlu0 %v104, 18
  %v231 = vpop.permute.xlu0 %230
  %vm232 = vcmask 146432
  %v233 = vsel %vm232, %v229, %v231
  %v237 = vmul.f32 %v223, %v229
  %v238 = vmul.f32 %v224, %v233
  %v239 = vmul.f32 %v225, %v231
  %243 = vrot.lane.b32.xlu0 %v237, 110
  %v244 = vpop.permute.xlu0 %243
  %245 = vrot.lane.b32.xlu0 %v238, 110
  %v246 = vpop.permute.xlu0 %245
  %247 = vrot.lane.b32.xlu0 %v239, 110
  %v248 = vpop.permute.xlu0 %247
  %vm249 = vcmask 900096
  %v250 = vsel %vm249, %v244, %v246
  %v251 = vsel %vm249, %v246, %v248
  %254 = vst [vmem:[#allocation2 + $0x40] sm:$0xff] %v250
  %255 = vst [vmem:[#allocation2 + $0x48] sm:$0xff] %v251
  %v256 = vld [vmem:[%s0] sm:$0xff]
  %v257 = vld [vmem:[%s0 + $0x8] sm:$0xff]
  %v258 = vld [vmem:[%s0 + $0x10] sm:$0xff]
  %259 = vrot.lane.b32.xlu0 %v85, 30
  %v260 = vpop.permute.xlu0 %259
  %261 = vrot.lane.b32.xlu0 %v86, 30
  %v262 = vpop.permute.xlu0 %261
  %vm263 = vcmask 244736
  %v264 = vsel %vm263, %v260, %v262
  %v268 = vmul.f32 %v256, %v260
  %v269 = vmul.f32 %v257, %v264
  %v270 = vmul.f32 %v258, %v262
  %274 = vrot.lane.b32.xlu0 %v268, 98
  %v275 = vpop.permute.xlu0 %274
  %276 = vrot.lane.b32.xlu0 %v269, 98
  %v277 = vpop.permute.xlu0 %276
  %278 = vrot.lane.b32.xlu0 %v270, 98
  %v279 = vpop.permute.xlu0 %278
  %vm280 = vcmask 801792
  %v281 = vsel %vm280, %v275, %v277
  %v282 = vsel %vm280, %v277, %v279
  %285 = vst [vmem:[#allocation2 + $0x50] sm:$0xff] %v281
  %286 = vst [vmem:[#allocation2 + $0x58] sm:$0xff] %v282
  %v287 = vld [vmem:[%s0] sm:$0xff]
  %v288 = vld [vmem:[%s0 + $0x8] sm:$0xff]
  %v289 = vld [vmem:[%s0 + $0x10] sm:$0xff]
  %290 = vrot.lane.b32.xlu0 %v91, 31
  %v291 = vpop.permute.xlu0 %290
  %292 = vrot.lane.b32.xlu0 %v92, 31
  %v293 = vpop.permute.xlu0 %292
  %vm294 = vcmask 252928
  %v295 = vsel %vm294, %v291, %v293
  %v299 = vmul.f32 %v287, %v291
  %v300 = vmul.f32 %v288, %v295
  %v301 = vmul.f32 %v289, %v293
  %305 = vrot.lane.b32.xlu0 %v299, 97
  %v306 = vpop.permute.xlu0 %305
  %307 = vrot.lane.b32.xlu0 %v300, 97
  %v308 = vpop.permute.xlu0 %307
  %309 = vrot.lane.b32.xlu0 %v301, 97
  %v310 = vpop.permute.xlu0 %309
  %vm311 = vcmask 793600
  %v312 = vsel %vm311, %v306, %v308
  %v313 = vsel %vm311, %v308, %v310
  %316 = vst [vmem:[#allocation2 + $0x60] sm:$0xff] %v312
  %317 = vst [vmem:[#allocation2 + $0x68] sm:$0xff] %v313
  %v318 = vld [vmem:[%s0] sm:$0xff]
  %v319 = vld [vmem:[%s0 + $0x8] sm:$0xff]
  %v320 = vld [vmem:[%s0 + $0x10] sm:$0xff]
  %324 = vrot.lane.b32.xlu0 %v318, 96
  %v325 = vpop.permute.xlu0 %324
  %326 = vrot.lane.b32.xlu0 %v319, 96
  %v327 = vpop.permute.xlu0 %326
  %328 = vrot.lane.b32.xlu0 %v320, 96
  %v329 = vpop.permute.xlu0 %328
  %vm330 = vcmask 785408
  %v331 = vsel %vm330, %v325, %v327
  %v332 = vsel %vm330, %v327, %v329
  %335 = vst [vmem:[#allocation2 + $0x70] sm:$0xff] %v331
  %336 = vst [vmem:[#allocation2 + $0x78] sm:$0xff] %v332
  %v337 = vld [vmem:[%s0] sm:$0xff]
  %v338 = vld [vmem:[%s0 + $0x8] sm:$0xff]
  %v339 = vld [vmem:[%s0 + $0x10] sm:$0xff]
  %340 = vrot.lane.b32.xlu0 %v97, 33
  %v341 = vpop.permute.xlu0 %340
  %342 = vrot.lane.b32.xlu0 %v98, 33
  %v343 = vpop.permute.xlu0 %342
  %vm344 = vcmask 269312
  %v345 = vsel %vm344, %v341, %v343
  %v349 = vmul.f32 %v337, %v341
  %v350 = vmul.f32 %v338, %v345
  %v351 = vmul.f32 %v339, %v343
  %355 = vrot.lane.b32.xlu0 %v349, 95
  %v356 = vpop.permute.xlu0 %355
  %357 = vrot.lane.b32.xlu0 %v350, 95
  %v358 = vpop.permute.xlu0 %357
  %359 = vrot.lane.b32.xlu0 %v351, 95
  %v360 = vpop.permute.xlu0 %359
  %vm361 = vcmask 777216
  %v362 = vsel %vm361, %v356, %v358
  %v363 = vsel %vm361, %v358, %v360
  %366 = vst [vmem:[#allocation2 + $0x80] sm:$0xff] %v362
  %367 = vst [vmem:[#allocation2 + $0x88] sm:$0xff] %v363
  %v368 = vld [vmem:[%s0] sm:$0xff]
  %v369 = vld [vmem:[%s0 + $0x8] sm:$0xff]
  %v370 = vld [vmem:[%s0 + $0x10] sm:$0xff]
  %371 = vrot.lane.b32.xlu0 %v103, 34
  %v372 = vpop.permute.xlu0 %371
  %373 = vrot.lane.b32.xlu0 %v104, 34
  %v374 = vpop.permute.xlu0 %373
  %vm375 = vcmask 277504
  %v376 = vsel %vm375, %v372, %v374
  %v380 = vmul.f32 %v368, %v372
  %v381 = vmul.f32 %v369, %v376
  %v382 = vmul.f32 %v370, %v374
  %386 = vrot.lane.b32.xlu0 %v380, 94
  %v387 = vpop.permute.xlu0 %386
  %388 = vrot.lane.b32.xlu0 %v381, 94
  %v389 = vpop.permute.xlu0 %388
  %390 = vrot.lane.b32.xlu0 %v382, 94
  %v391 = vpop.permute.xlu0 %390
  %vm392 = vcmask 769024
  %v393 = vsel %vm392, %v387, %v389
  %v394 = vsel %vm392, %v389, %v391
  %397 = vst [vmem:[#allocation2 + $0x90] sm:$0xff] %v393
  %398 = vst [vmem:[#allocation2 + $0x98] sm:$0xff] %v394
  %v399 = vld [vmem:[%s0] sm:$0xff]
  %v400 = vld [vmem:[%s0 + $0x8] sm:$0xff]
  %v401 = vld [vmem:[%s0 + $0x10] sm:$0xff]
  %402 = vrot.lane.b32.xlu0 %v85, 46
  %v403 = vpop.permute.xlu0 %402
  %404 = vrot.lane.b32.xlu0 %v86, 46
  %v405 = vpop.permute.xlu0 %404
  %vm406 = vcmask 375808
  %v407 = vsel %vm406, %v403, %v405
  %v411 = vmul.f32 %v399, %v403
  %v412 = vmul.f32 %v400, %v407
  %v413 = vmul.f32 %v401, %v405
  %417 = vrot.lane.b32.xlu0 %v411, 82
  %v418 = vpop.permute.xlu0 %417
  %419 = vrot.lane.b32.xlu0 %v412, 82
  %v420 = vpop.permute.xlu0 %419
  %421 = vrot.lane.b32.xlu0 %v413, 82
  %v422 = vpop.permute.xlu0 %421
  %vm423 = vcmask 670720
  %v424 = vsel %vm423, %v418, %v420
  %v425 = vsel %vm423, %v420, %v422
  %428 = vst [vmem:[#allocation2 + $0xa0] sm:$0xff] %v424
  %429 = vst [vmem:[#allocation2 + $0xa8] sm:$0xff] %v425
  %v430 = vld [vmem:[%s0] sm:$0xff]
  %v431 = vld [vmem:[%s0 + $0x8] sm:$0xff]
  %v432 = vld [vmem:[%s0 + $0x10] sm:$0xff]
  %433 = vrot.lane.b32.xlu0 %v91, 47
  %v434 = vpop.permute.xlu0 %433
  %435 = vrot.lane.b32.xlu0 %v92, 47
  %v436 = vpop.permute.xlu0 %435
  %vm437 = vcmask 384000
  %v438 = vsel %vm437, %v434, %v436
  %v442 = vmul.f32 %v430, %v434
  %v443 = vmul.f32 %v431, %v438
  %v444 = vmul.f32 %v432, %v436
  %448 = vrot.lane.b32.xlu0 %v442, 81
  %v449 = vpop.permute.xlu0 %448
  %450 = vrot.lane.b32.xlu0 %v443, 81
  %v451 = vpop.permute.xlu0 %450
  %452 = vrot.lane.b32.xlu0 %v444, 81
  %v453 = vpop.permute.xlu0 %452
  %vm454 = vcmask 662528
  %v455 = vsel %vm454, %v449, %v451
  %v456 = vsel %vm454, %v451, %v453
  %459 = vst [vmem:[#allocation2 + $0xb0] sm:$0xff] %v455
  %460 = vst [vmem:[#allocation2 + $0xb8] sm:$0xff] %v456
  %v461 = vld [vmem:[%s0] sm:$0xff]
  %v462 = vld [vmem:[%s0 + $0x8] sm:$0xff]
  %v463 = vld [vmem:[%s0 + $0x10] sm:$0xff]
  %467 = vrot.lane.b32.xlu0 %v461, 80
  %v468 = vpop.permute.xlu0 %467
  %469 = vrot.lane.b32.xlu0 %v462, 80
  %v470 = vpop.permute.xlu0 %469
  %471 = vrot.lane.b32.xlu0 %v463, 80
  %v472 = vpop.permute.xlu0 %471
  %vm473 = vcmask 654336
  %v474 = vsel %vm473, %v468, %v470
  %v475 = vsel %vm473, %v470, %v472
  %478 = vst [vmem:[#allocation2 + $0xc0] sm:$0xff] %v474
  %479 = vst [vmem:[#allocation2 + $0xc8] sm:$0xff] %v475
  %v480 = vld [vmem:[%s0] sm:$0xff]
  %v481 = vld [vmem:[%s0 + $0x8] sm:$0xff]
  %v482 = vld [vmem:[%s0 + $0x10] sm:$0xff]
  %483 = vrot.lane.b32.xlu0 %v97, 49
  %v484 = vpop.permute.xlu0 %483
  %485 = vrot.lane.b32.xlu0 %v98, 49
  %v486 = vpop.permute.xlu0 %485
  %vm487 = vcmask 400384
  %v488 = vsel %vm487, %v484, %v486
  %v492 = vmul.f32 %v480, %v484
  %v493 = vmul.f32 %v481, %v488
  %v494 = vmul.f32 %v482, %v486
  %498 = vrot.lane.b32.xlu0 %v492, 79
  %v499 = vpop.permute.xlu0 %498
  %500 = vrot.lane.b32.xlu0 %v493, 79
  %v501 = vpop.permute.xlu0 %500
  %502 = vrot.lane.b32.xlu0 %v494, 79
  %v503 = vpop.permute.xlu0 %502
  %vm504 = vcmask 646144
  %v505 = vsel %vm504, %v499, %v501
  %v506 = vsel %vm504, %v501, %v503
  %509 = vst [vmem:[#allocation2 + $0xd0] sm:$0xff] %v505
  %510 = vst [vmem:[#allocation2 + $0xd8] sm:$0xff] %v506
  %v511 = vld [vmem:[%s0] sm:$0xff]
  %v512 = vld [vmem:[%s0 + $0x8] sm:$0xff]
  %v513 = vld [vmem:[%s0 + $0x10] sm:$0xff]
  %514 = vrot.lane.b32.xlu0 %v103, 50
  %v515 = vpop.permute.xlu0 %514
  %516 = vrot.lane.b32.xlu0 %v104, 50
  %v517 = vpop.permute.xlu0 %516
  %vm518 = vcmask 408576
  %v519 = vsel %vm518, %v515, %v517
  %v523 = vmul.f32 %v511, %v515
  %v524 = vmul.f32 %v512, %v519
  %v525 = vmul.f32 %v513, %v517
  %529 = vrot.lane.b32.xlu0 %v523, 78
  %v530 = vpop.permute.xlu0 %529
  %531 = vrot.lane.b32.xlu0 %v524, 78
  %v532 = vpop.permute.xlu0 %531
  %533 = vrot.lane.b32.xlu0 %v525, 78
  %v534 = vpop.permute.xlu0 %533
  %vm535 = vcmask 637952
  %v536 = vsel %vm535, %v530, %v532
  %v537 = vsel %vm535, %v532, %v534
  %540 = vst [vmem:[#allocation2 + $0xe0] sm:$0xff] %v536
  %541 = vst [vmem:[#allocation2 + $0xe8] sm:$0xff] %v537
  %v542 = vld [vmem:[%s0] sm:$0xff]
  %v543 = vld [vmem:[%s0 + $0x8] sm:$0xff]
  %v544 = vld [vmem:[%s0 + $0x10] sm:$0xff]
  %545 = vrot.lane.b32.xlu0 %v85, 62
  %v546 = vpop.permute.xlu0 %545
  %547 = vrot.lane.b32.xlu0 %v86, 62
  %v548 = vpop.permute.xlu0 %547
  %vm549 = vcmask 506880
  %v550 = vsel %vm549, %v546, %v548
  %v554 = vmul.f32 %v542, %v546
  %v555 = vmul.f32 %v543, %v550
  %v556 = vmul.f32 %v544, %v548
  %560 = vrot.lane.b32.xlu0 %v554, 66
  %v561 = vpop.permute.xlu0 %560
  %562 = vrot.lane.b32.xlu0 %v555, 66
  %v563 = vpop.permute.xlu0 %562
  %564 = vrot.lane.b32.xlu0 %v556, 66
  %v565 = vpop.permute.xlu0 %564
  %vm566 = vcmask 539648
  %v567 = vsel %vm566, %v561, %v563
  %v568 = vsel %vm566, %v563, %v565
  %571 = vst [vmem:[#allocation2 + $0xf0] sm:$0xff] %v567
  %572 = vst [vmem:[#allocation2 + $0xf8] sm:$0xff] %v568
  %v573 = vld [vmem:[%s0] sm:$0xff]
  %v574 = vld [vmem:[%s0 + $0x8] sm:$0xff]
  %v575 = vld [vmem:[%s0 + $0x10] sm:$0xff]
  %576 = vrot.lane.b32.xlu0 %v91, 63
  %v577 = vpop.permute.xlu0 %576
  %578 = vrot.lane.b32.xlu0 %v92, 63
  %v579 = vpop.permute.xlu0 %578
  %vm580 = vcmask 515072
  %v581 = vsel %vm580, %v577, %v579
  %v585 = vmul.f32 %v573, %v577
  %v586 = vmul.f32 %v574, %v581
  %v587 = vmul.f32 %v575, %v579
  %591 = vrot.lane.b32.xlu0 %v585, 65
  %v592 = vpop.permute.xlu0 %591
  %593 = vrot.lane.b32.xlu0 %v586, 65
  %v594 = vpop.permute.xlu0 %593
  %595 = vrot.lane.b32.xlu0 %v587, 65
  %v596 = vpop.permute.xlu0 %595
  %vm597 = vcmask 531456
  %v598 = vsel %vm597, %v592, %v594
  %v599 = vsel %vm597, %v594, %v596
  %602 = vst [vmem:[#allocation2 + $0x100] sm:$0xff] %v598
  %603 = vst [vmem:[#allocation2 + $0x108] sm:$0xff] %v599
  %v604 = vld [vmem:[%s0] sm:$0xff]
  %v605 = vld [vmem:[%s0 + $0x8] sm:$0xff]
  %v606 = vld [vmem:[%s0 + $0x10] sm:$0xff]
  %610 = vrot.lane.b32.xlu0 %v604, 64
  %v611 = vpop.permute.xlu0 %610
  %612 = vrot.lane.b32.xlu0 %v605, 64
  %v613 = vpop.permute.xlu0 %612
  %614 = vrot.lane.b32.xlu0 %v606, 64
  %v615 = vpop.permute.xlu0 %614
  %vm616 = vcmask 523264
  %v617 = vsel %vm616, %v611, %v613
  %v618 = vsel %vm616, %v613, %v615
  %621 = vst [vmem:[#allocation2 + $0x110] sm:$0xff] %v617
  %622 = vst [vmem:[#allocation2 + $0x118] sm:$0xff] %v618
  %v623 = vld [vmem:[%s0] sm:$0xff]
  %v624 = vld [vmem:[%s0 + $0x8] sm:$0xff]
  %v625 = vld [vmem:[%s0 + $0x10] sm:$0xff]
  %626 = vrot.lane.b32.xlu0 %v97, 65
  %v627 = vpop.permute.xlu0 %626
  %628 = vrot.lane.b32.xlu0 %v98, 65
  %v629 = vpop.permute.xlu0 %628
  %v630 = vsel %vm597, %v627, %v629
  %v634 = vmul.f32 %v623, %v627
  %v635 = vmul.f32 %v624, %v630
  %v636 = vmul.f32 %v625, %v629
  %640 = vrot.lane.b32.xlu0 %v634, 63
  %v641 = vpop.permute.xlu0 %640
  %642 = vrot.lane.b32.xlu0 %v635, 63
  %v643 = vpop.permute.xlu0 %642
  %644 = vrot.lane.b32.xlu0 %v636, 63
  %v645 = vpop.permute.xlu0 %644
  %v646 = vsel %vm580, %v641, %v643
  %v647 = vsel %vm580, %v643, %v645
  %650 = vst [vmem:[#allocation2 + $0x120] sm:$0xff] %v646
  %651 = vst [vmem:[#allocation2 + $0x128] sm:$0xff] %v647
  %v652 = vld [vmem:[%s0] sm:$0xff]
  %v653 = vld [vmem:[%s0 + $0x8] sm:$0xff]
  %v654 = vld [vmem:[%s0 + $0x10] sm:$0xff]
  %655 = vrot.lane.b32.xlu0 %v103, 66
  %v656 = vpop.permute.xlu0 %655
  %657 = vrot.lane.b32.xlu0 %v104, 66
  %v658 = vpop.permute.xlu0 %657
  %v659 = vsel %vm566, %v656, %v658
  %v663 = vmul.f32 %v652, %v656
  %v664 = vmul.f32 %v653, %v659
  %v665 = vmul.f32 %v654, %v658
  %669 = vrot.lane.b32.xlu0 %v663, 62
  %v670 = vpop.permute.xlu0 %669
  %671 = vrot.lane.b32.xlu0 %v664, 62
  %v672 = vpop.permute.xlu0 %671
  %673 = vrot.lane.b32.xlu0 %v665, 62
  %v674 = vpop.permute.xlu0 %673
  %v675 = vsel %vm549, %v670, %v672
  %v676 = vsel %vm549, %v672, %v674
  %679 = vst [vmem:[#allocation2 + $0x130] sm:$0xff] %v675
  %680 = vst [vmem:[#allocation2 + $0x138] sm:$0xff] %v676
  %v681 = vld [vmem:[%s0] sm:$0xff]
  %v682 = vld [vmem:[%s0 + $0x8] sm:$0xff]
  %v683 = vld [vmem:[%s0 + $0x10] sm:$0xff]
  %684 = vrot.lane.b32.xlu0 %v85, 78
  %v685 = vpop.permute.xlu0 %684
  %686 = vrot.lane.b32.xlu0 %v86, 78
  %v687 = vpop.permute.xlu0 %686
  %v688 = vsel %vm535, %v685, %v687
  %v692 = vmul.f32 %v681, %v685
  %v693 = vmul.f32 %v682, %v688
  %v694 = vmul.f32 %v683, %v687
  %698 = vrot.lane.b32.xlu0 %v692, 50
  %v699 = vpop.permute.xlu0 %698
  %700 = vrot.lane.b32.xlu0 %v693, 50
  %v701 = vpop.permute.xlu0 %700
  %702 = vrot.lane.b32.xlu0 %v694, 50
  %v703 = vpop.permute.xlu0 %702
  %v704 = vsel %vm518, %v699, %v701
  %v705 = vsel %vm518, %v701, %v703
  %708 = vst [vmem:[#allocation2 + $0x140] sm:$0xff] %v704
  %709 = vst [vmem:[#allocation2 + $0x148] sm:$0xff] %v705
  %v710 = vld [vmem:[%s0] sm:$0xff]
  %v711 = vld [vmem:[%s0 + $0x8] sm:$0xff]
  %v712 = vld [vmem:[%s0 + $0x10] sm:$0xff]
  %713 = vrot.lane.b32.xlu0 %v91, 79
  %v714 = vpop.permute.xlu0 %713
  %715 = vrot.lane.b32.xlu0 %v92, 79
  %v716 = vpop.permute.xlu0 %715
  %v717 = vsel %vm504, %v714, %v716
  %v721 = vmul.f32 %v710, %v714
  %v722 = vmul.f32 %v711, %v717
  %v723 = vmul.f32 %v712, %v716
  %727 = vrot.lane.b32.xlu0 %v721, 49
  %v728 = vpop.permute.xlu0 %727
  %729 = vrot.lane.b32.xlu0 %v722, 49
  %v730 = vpop.permute.xlu0 %729
  %731 = vrot.lane.b32.xlu0 %v723, 49
  %v732 = vpop.permute.xlu0 %731
  %v733 = vsel %vm487, %v728, %v730
  %v734 = vsel %vm487, %v730, %v732
  %737 = vst [vmem:[#allocation2 + $0x150] sm:$0xff] %v733
  %738 = vst [vmem:[#allocation2 + $0x158] sm:$0xff] %v734
  %v739 = vld [vmem:[%s0] sm:$0xff]
  %v740 = vld [vmem:[%s0 + $0x8] sm:$0xff]
  %v741 = vld [vmem:[%s0 + $0x10] sm:$0xff]
  %745 = vrot.lane.b32.xlu0 %v739, 48
  %v746 = vpop.permute.xlu0 %745
  %747 = vrot.lane.b32.xlu0 %v740, 48
  %v748 = vpop.permute.xlu0 %747
  %749 = vrot.lane.b32.xlu0 %v741, 48
  %v750 = vpop.permute.xlu0 %749
  %vm751 = vcmask 392192
  %v752 = vsel %vm751, %v746, %v748
  %v753 = vsel %vm751, %v748, %v750
  %756 = vst [vmem:[#allocation2 + $0x160] sm:$0xff] %v752
  %757 = vst [vmem:[#allocation2 + $0x168] sm:$0xff] %v753
  %v758 = vld [vmem:[%s0] sm:$0xff]
  %v759 = vld [vmem:[%s0 + $0x8] sm:$0xff]
  %v760 = vld [vmem:[%s0 + $0x10] sm:$0xff]
  %761 = vrot.lane.b32.xlu0 %v97, 81
  %v762 = vpop.permute.xlu0 %761
  %763 = vrot.lane.b32.xlu0 %v98, 81
  %v764 = vpop.permute.xlu0 %763
  %v765 = vsel %vm454, %v762, %v764
  %v769 = vmul.f32 %v758, %v762
  %v770 = vmul.f32 %v759, %v765
  %v771 = vmul.f32 %v760, %v764
  %775 = vrot.lane.b32.xlu0 %v769, 47
  %v776 = vpop.permute.xlu0 %775
  %777 = vrot.lane.b32.xlu0 %v770, 47
  %v778 = vpop.permute.xlu0 %777
  %779 = vrot.lane.b32.xlu0 %v771, 47
  %v780 = vpop.permute.xlu0 %779
  %v781 = vsel %vm437, %v776, %v778
  %v782 = vsel %vm437, %v778, %v780
  %785 = vst [vmem:[#allocation2 + $0x170] sm:$0xff] %v781
  %786 = vst [vmem:[#allocation2 + $0x178] sm:$0xff] %v782
  %v787 = vld [vmem:[%s0] sm:$0xff]
  %v788 = vld [vmem:[%s0 + $0x8] sm:$0xff]
  %v789 = vld [vmem:[%s0 + $0x10] sm:$0xff]
  %790 = vrot.lane.b32.xlu0 %v103, 82
  %v791 = vpop.permute.xlu0 %790
  %792 = vrot.lane.b32.xlu0 %v104, 82
  %v793 = vpop.permute.xlu0 %792
  %v794 = vsel %vm423, %v791, %v793
  %v798 = vmul.f32 %v787, %v791
  %v799 = vmul.f32 %v788, %v794
  %v800 = vmul.f32 %v789, %v793
  %804 = vrot.lane.b32.xlu0 %v798, 46
  %v805 = vpop.permute.xlu0 %804
  %806 = vrot.lane.b32.xlu0 %v799, 46
  %v807 = vpop.permute.xlu0 %806
  %808 = vrot.lane.b32.xlu0 %v800, 46
  %v809 = vpop.permute.xlu0 %808
  %v810 = vsel %vm406, %v805, %v807
  %v811 = vsel %vm406, %v807, %v809
  %814 = vst [vmem:[#allocation2 + $0x180] sm:$0xff] %v810
  %815 = vst [vmem:[#allocation2 + $0x188] sm:$0xff] %v811
  %v816 = vld [vmem:[#allocation2] sm:$0xff]
  %v817 = vld [vmem:[#allocation2 + $0x8] sm:$0xff]
  %v818 = vld [vmem:[#allocation2 + $0x10] sm:$0xff]
  %v819 = vld [vmem:[#allocation2 + $0x18] sm:$0xff]
  %v820 = vld [vmem:[#allocation2 + $0x20] sm:$0xff]
  %v821 = vld [vmem:[#allocation2 + $0x28] sm:$0xff]
  %v822 = vld [vmem:[#allocation2 + $0x30] sm:$0xff]
  %v823 = vld [vmem:[#allocation2 + $0x38] sm:$0xff]
  %v824 = vld [vmem:[#allocation2 + $0x40] sm:$0xff]
  %v825 = vld [vmem:[#allocation2 + $0x48] sm:$0xff]
  %v826 = vld [vmem:[#allocation2 + $0x50] sm:$0xff]
  %v827 = vld [vmem:[#allocation2 + $0x58] sm:$0xff]
  %v828 = vld [vmem:[#allocation2 + $0x60] sm:$0xff]
  %v829 = vld [vmem:[#allocation2 + $0x68] sm:$0xff]
  %v830 = vld [vmem:[#allocation2 + $0x70] sm:$0xff]
  %v831 = vld [vmem:[#allocation2 + $0x78] sm:$0xff]
  %v832 = vld [vmem:[#allocation2 + $0x80] sm:$0xff]
  %v833 = vld [vmem:[#allocation2 + $0x88] sm:$0xff]
  %v834 = vld [vmem:[#allocation2 + $0x90] sm:$0xff]
  %v835 = vld [vmem:[#allocation2 + $0x98] sm:$0xff]
  %v836 = vld [vmem:[#allocation2 + $0xa0] sm:$0xff]
  %v837 = vld [vmem:[#allocation2 + $0xa8] sm:$0xff]
  %v838 = vld [vmem:[#allocation2 + $0xb0] sm:$0xff]
  %v839 = vld [vmem:[#allocation2 + $0xb8] sm:$0xff]
  %v840 = vld [vmem:[#allocation2 + $0xc0] sm:$0xff]
  %v841 = vld [vmem:[#allocation2 + $0xc8] sm:$0xff]
  %v842 = vld [vmem:[#allocation2 + $0xd0] sm:$0xff]
  %v843 = vld [vmem:[#allocation2 + $0xd8] sm:$0xff]
  %v844 = vld [vmem:[#allocation2 + $0xe0] sm:$0xff]
  %v845 = vld [vmem:[#allocation2 + $0xe8] sm:$0xff]
  %v846 = vld [vmem:[#allocation2 + $0xf0] sm:$0xff]
  %v847 = vld [vmem:[#allocation2 + $0xf8] sm:$0xff]
  %v848 = vld [vmem:[#allocation2 + $0x100] sm:$0xff]
  %v849 = vld [vmem:[#allocation2 + $0x108] sm:$0xff]
  %v850 = vld [vmem:[#allocation2 + $0x110] sm:$0xff]
  %v851 = vld [vmem:[#allocation2 + $0x118] sm:$0xff]
  %v852 = vld [vmem:[#allocation2 + $0x120] sm:$0xff]
  %v853 = vld [vmem:[#allocation2 + $0x128] sm:$0xff]
  %v854 = vld [vmem:[#allocation2 + $0x130] sm:$0xff]
  %v855 = vld [vmem:[#allocation2 + $0x138] sm:$0xff]
  %v856 = vld [vmem:[#allocation2 + $0x140] sm:$0xff]
  %v857 = vld [vmem:[#allocation2 + $0x148] sm:$0xff]
  %v858 = vld [vmem:[#allocation2 + $0x150] sm:$0xff]
  %v859 = vld [vmem:[#allocation2 + $0x158] sm:$0xff]
  %v860 = vld [vmem:[#allocation2 + $0x160] sm:$0xff]
  %v861 = vld [vmem:[#allocation2 + $0x168] sm:$0xff]
  %v862 = vld [vmem:[#allocation2 + $0x170] sm:$0xff]
  %v863 = vld [vmem:[#allocation2 + $0x178] sm:$0xff]
  %v864 = vld [vmem:[#allocation2 + $0x180] sm:$0xff]
  %v865 = vld [vmem:[#allocation2 + $0x188] sm:$0xff]
  %v866 = vpack.c.bf16 %v818, %v816
  %v867 = vpack.c.bf16 %v819, %v817
  %v868 = vpack.c.bf16 %v822, %v820
  %v869 = vpack.c.bf16 %v823, %v821
  %v870 = vpack.c.bf16 %v826, %v824
  %v871 = vpack.c.bf16 %v827, %v825
  %v872 = vpack.c.bf16 %v830, %v828
  %v873 = vpack.c.bf16 %v831, %v829
  %v874 = vpack.c.bf16 %v834, %v832
  %v875 = vpack.c.bf16 %v835, %v833
  %v876 = vpack.c.bf16 %v838, %v836
  %v877 = vpack.c.bf16 %v839, %v837
  %v878 = vpack.c.bf16 %v842, %v840
  %v879 = vpack.c.bf16 %v843, %v841
  %v880 = vpack.c.bf16 %v846, %v844
  %v881 = vpack.c.bf16 %v847, %v845
  %v882 = vpack.c.bf16 %v850, %v848
  %v883 = vpack.c.bf16 %v851, %v849
  %v884 = vpack.c.bf16 %v854, %v852
  %v885 = vpack.c.bf16 %v855, %v853
  %v886 = vpack.c.bf16 %v858, %v856
  %v887 = vpack.c.bf16 %v859, %v857
  %v888 = vpack.c.bf16 %v862, %v860
  %v889 = vpack.c.bf16 %v863, %v861
  %v890 = vpack.c.bf16 %v864, %v864
  %v891 = vpack.c.bf16 %v865, %v865
  %v893 = vunpack.c.l.b16 %v21
  %v894 = vunpack.c.h.b16 %v21
  %v895 = vpack.c.b16 %v893, %v893
  %v896 = vpack.c.b16 %v894, %v894
  %vm898 = vcmask 588800
  %v900 = vsel %vm898, %v896, 0
  %vm902 = vcmask 1043456
  %v904 = vsel %vm902, %v890, 0
  %v907 = vsel %vm902, %v891, 0
  %909 = vmatprep.subr.bf16.mxu0 %v867
  %910 = vmatpush1.bf16.msra.mxu0 %v866
  %911 = vmatprep.subr.bf16.mxu0 %v869
  %912 = vmatpush1.bf16.msra.mxu0 %v868
  %913 = vmatprep.subr.bf16.mxu0 %v871
  %914 = vmatpush1.bf16.msra.mxu0 %v870
  %915 = vmatprep.subr.bf16.mxu0 %v873
  %916 = vmatpush1.bf16.msra.mxu0 %v872
  %917 = vmatprep.subr.bf16.mxu0 %v875
  %918 = vmatpush1.bf16.msra.mxu0 %v874
  %919 = vmatprep.subr.bf16.mxu0 %v877
  %920 = vmatpush1.bf16.msra.mxu0 %v876
  %921 = vmatprep.subr.bf16.mxu0 %v879
  %922 = vmatpush1.bf16.msra.mxu0 %v878
  %923 = vmatprep.subr.bf16.mxu0 %v881
  %924 = vmatpush1.bf16.msra.mxu0 %v880
  %925 = vmatprep.subr.bf16.mxu0 %v883
  %926 = vmatpush1.bf16.msra.mxu0 %v882
  %927 = vmatprep.subr.bf16.mxu0 %v885
  %928 = vmatpush1.bf16.msra.mxu0 %v884
  %929 = vmatprep.subr.bf16.mxu0 %v887
  %930 = vmatpush1.bf16.msra.mxu0 %v886
  %931 = vmatprep.subr.bf16.mxu0 %v889
  %932 = vmatpush1.bf16.msra.mxu0 %v888
  %933 = vmatprep.subr.bf16.mxu0 %v907
  %934 = vmatpush1.bf16.msra.mxu0 %v904
  %935 = vmatprep.subr.bf16.mxu0 0
  %936 = vmatpush1.bf16.msra.mxu0 0
  %937 = vmatprep.subr.bf16.mxu0 0
  %938 = vmatpush1.bf16.msra.mxu0 0
  %939 = vmatprep.subr.bf16.mxu0 0
  %940 = vmatpush1.bf16.msra.mxu0 0
  %941 = vmatprep.mubr.bf16.mxu0 %v900
  %942 = vmatmul.mubr.bf16.gmra.mrb[0].mxu0 %v895
  %v943 = vpop.f32.mrb[0].mxu0
  %v944 = vadd.f32 0.0, %v943
  %v945 = vpop.f32.mrb[0].mxu0
  %v946 = vadd.f32 0.0, %v945
  %v947 = vpop.f32.mrb[0].mxu0
  %v948 = vpop.f32.mrb[0].mxu0
  %949 = vdwg.mxu0
  %950 = vst [vmem:[#allocation3] sm:$0xff] %v944
  %951 = vst [vmem:[#allocation3 + $0x8] sm:$0xff] %v946
  %s952 = scalar_lea.vmem %s0, 24
  %v953 = vld [vmem:[%s952] sm:$0xff]
  %v954 = vld [vmem:[%s952 + $0x8] sm:$0xff]
  %v955 = vld [vmem:[%s952 + $0x10] sm:$0xff]
  %v956 = vmul.f32 %v953, %v111
  %v957 = vmul.f32 %v954, %v115
  %v958 = vmul.f32 %v955, %v113
  %962 = vrot.lane.b32.xlu0 %v956, 114
  %v963 = vpop.permute.xlu0 %962
  %964 = vrot.lane.b32.xlu0 %v957, 114
  %v965 = vpop.permute.xlu0 %964
  %966 = vrot.lane.b32.xlu0 %v958, 114
  %v967 = vpop.permute.xlu0 %966
  %v968 = vsel %vm131, %v963, %v965
  %v969 = vsel %vm131, %v965, %v967
  %972 = vst [vmem:[#allocation2] sm:$0xff] %v968
  %973 = vst [vmem:[#allocation2 + $0x8] sm:$0xff] %v969
  %v974 = vld [vmem:[%s952] sm:$0xff]
  %v975 = vld [vmem:[%s952 + $0x8] sm:$0xff]
  %v976 = vld [vmem:[%s952 + $0x10] sm:$0xff]
  %v977 = vmul.f32 %v974, %v144
  %v978 = vmul.f32 %v975, %v148
  %v979 = vmul.f32 %v976, %v146
  %983 = vrot.lane.b32.xlu0 %v977, 113
  %v984 = vpop.permute.xlu0 %983
  %985 = vrot.lane.b32.xlu0 %v978, 113
  %v986 = vpop.permute.xlu0 %985
  %987 = vrot.lane.b32.xlu0 %v979, 113
  %v988 = vpop.permute.xlu0 %987
  %v989 = vsel %vm164, %v984, %v986
  %v990 = vsel %vm164, %v986, %v988
  %993 = vst [vmem:[#allocation2 + $0x10] sm:$0xff] %v989
  %994 = vst [vmem:[#allocation2 + $0x18] sm:$0xff] %v990
  %v995 = vld [vmem:[%s952] sm:$0xff]
  %v996 = vld [vmem:[%s952 + $0x8] sm:$0xff]
  %v997 = vld [vmem:[%s952 + $0x10] sm:$0xff]
  %1001 = vrot.lane.b32.xlu0 %v995, 112
  %v1002 = vpop.permute.xlu0 %1001
  %1003 = vrot.lane.b32.xlu0 %v996, 112
  %v1004 = vpop.permute.xlu0 %1003
  %1005 = vrot.lane.b32.xlu0 %v997, 112
  %v1006 = vpop.permute.xlu0 %1005
  %v1007 = vsel %vm183, %v1002, %v1004
  %v1008 = vsel %vm183, %v1004, %v1006
  %1011 = vst [vmem:[#allocation2 + $0x20] sm:$0xff] %v1007
  %1012 = vst [vmem:[#allocation2 + $0x28] sm:$0xff] %v1008
  %v1013 = vld [vmem:[%s952] sm:$0xff]
  %v1014 = vld [vmem:[%s952 + $0x8] sm:$0xff]
  %v1015 = vld [vmem:[%s952 + $0x10] sm:$0xff]
  %v1016 = vmul.f32 %v1013, %v196
  %v1017 = vmul.f32 %v1014, %v200
  %v1018 = vmul.f32 %v1015, %v198
  %1022 = vrot.lane.b32.xlu0 %v1016, 111
  %v1023 = vpop.permute.xlu0 %1022
  %1024 = vrot.lane.b32.xlu0 %v1017, 111
  %v1025 = vpop.permute.xlu0 %1024
  %1026 = vrot.lane.b32.xlu0 %v1018, 111
  %v1027 = vpop.permute.xlu0 %1026
  %v1028 = vsel %vm216, %v1023, %v1025
  %v1029 = vsel %vm216, %v1025, %v1027
  %1032 = vst [vmem:[#allocation2 + $0x30] sm:$0xff] %v1028
  %1033 = vst [vmem:[#allocation2 + $0x38] sm:$0xff] %v1029
  %v1034 = vld [vmem:[%s952] sm:$0xff]
  %v1035 = vld [vmem:[%s952 + $0x8] sm:$0xff]
  %v1036 = vld [vmem:[%s952 + $0x10] sm:$0xff]
  %v1037 = vmul.f32 %v1034, %v229
  %v1038 = vmul.f32 %v1035, %v233
  %v1039 = vmul.f32 %v1036, %v231
  %1043 = vrot.lane.b32.xlu0 %v1037, 110
  %v1044 = vpop.permute.xlu0 %1043
  %1045 = vrot.lane.b32.xlu0 %v1038, 110
  %v1046 = vpop.permute.xlu0 %1045
  %1047 = vrot.lane.b32.xlu0 %v1039, 110
  %v1048 = vpop.permute.xlu0 %1047
  %v1049 = vsel %vm249, %v1044, %v1046
  %v1050 = vsel %vm249, %v1046, %v1048
  %1053 = vst [vmem:[#allocation2 + $0x40] sm:$0xff] %v1049
  %1054 = vst [vmem:[#allocation2 + $0x48] sm:$0xff] %v1050
  %v1055 = vld [vmem:[%s952] sm:$0xff]
  %v1056 = vld [vmem:[%s952 + $0x8] sm:$0xff]
  %v1057 = vld [vmem:[%s952 + $0x10] sm:$0xff]
  %v1058 = vmul.f32 %v1055, %v260
  %v1059 = vmul.f32 %v1056, %v264
  %v1060 = vmul.f32 %v1057, %v262
  %1064 = vrot.lane.b32.xlu0 %v1058, 98
  %v1065 = vpop.permute.xlu0 %1064
  %1066 = vrot.lane.b32.xlu0 %v1059, 98
  %v1067 = vpop.permute.xlu0 %1066
  %1068 = vrot.lane.b32.xlu0 %v1060, 98
  %v1069 = vpop.permute.xlu0 %1068
  %v1070 = vsel %vm280, %v1065, %v1067
  %v1071 = vsel %vm280, %v1067, %v1069
  %1074 = vst [vmem:[#allocation2 + $0x50] sm:$0xff] %v1070
  %1075 = vst [vmem:[#allocation2 + $0x58] sm:$0xff] %v1071
  %v1076 = vld [vmem:[%s952] sm:$0xff]
  %v1077 = vld [vmem:[%s952 + $0x8] sm:$0xff]
  %v1078 = vld [vmem:[%s952 + $0x10] sm:$0xff]
  %v1079 = vmul.f32 %v1076, %v291
  %v1080 = vmul.f32 %v1077, %v295
  %v1081 = vmul.f32 %v1078, %v293
  %1085 = vrot.lane.b32.xlu0 %v1079, 97
  %v1086 = vpop.permute.xlu0 %1085
  %1087 = vrot.lane.b32.xlu0 %v1080, 97
  %v1088 = vpop.permute.xlu0 %1087
  %1089 = vrot.lane.b32.xlu0 %v1081, 97
  %v1090 = vpop.permute.xlu0 %1089
  %v1091 = vsel %vm311, %v1086, %v1088
  %v1092 = vsel %vm311, %v1088, %v1090
  %1095 = vst [vmem:[#allocation2 + $0x60] sm:$0xff] %v1091
  %1096 = vst [vmem:[#allocation2 + $0x68] sm:$0xff] %v1092
  %v1097 = vld [vmem:[%s952] sm:$0xff]
  %v1098 = vld [vmem:[%s952 + $0x8] sm:$0xff]
  %v1099 = vld [vmem:[%s952 + $0x10] sm:$0xff]
  %1103 = vrot.lane.b32.xlu0 %v1097, 96
  %v1104 = vpop.permute.xlu0 %1103
  %1105 = vrot.lane.b32.xlu0 %v1098, 96
  %v1106 = vpop.permute.xlu0 %1105
  %1107 = vrot.lane.b32.xlu0 %v1099, 96
  %v1108 = vpop.permute.xlu0 %1107
  %v1109 = vsel %vm330, %v1104, %v1106
  %v1110 = vsel %vm330, %v1106, %v1108
  %1113 = vst [vmem:[#allocation2 + $0x70] sm:$0xff] %v1109
  %1114 = vst [vmem:[#allocation2 + $0x78] sm:$0xff] %v1110
  %v1115 = vld [vmem:[%s952] sm:$0xff]
  %v1116 = vld [vmem:[%s952 + $0x8] sm:$0xff]
  %v1117 = vld [vmem:[%s952 + $0x10] sm:$0xff]
  %v1118 = vmul.f32 %v1115, %v341
  %v1119 = vmul.f32 %v1116, %v345
  %v1120 = vmul.f32 %v1117, %v343
  %1124 = vrot.lane.b32.xlu0 %v1118, 95
  %v1125 = vpop.permute.xlu0 %1124
  %1126 = vrot.lane.b32.xlu0 %v1119, 95
  %v1127 = vpop.permute.xlu0 %1126
  %1128 = vrot.lane.b32.xlu0 %v1120, 95
  %v1129 = vpop.permute.xlu0 %1128
  %v1130 = vsel %vm361, %v1125, %v1127
  %v1131 = vsel %vm361, %v1127, %v1129
  %1134 = vst [vmem:[#allocation2 + $0x80] sm:$0xff] %v1130
  %1135 = vst [vmem:[#allocation2 + $0x88] sm:$0xff] %v1131
  %v1136 = vld [vmem:[%s952] sm:$0xff]
  %v1137 = vld [vmem:[%s952 + $0x8] sm:$0xff]
  %v1138 = vld [vmem:[%s952 + $0x10] sm:$0xff]
  %v1139 = vmul.f32 %v1136, %v372
  %v1140 = vmul.f32 %v1137, %v376
  %v1141 = vmul.f32 %v1138, %v374
  %1145 = vrot.lane.b32.xlu0 %v1139, 94
  %v1146 = vpop.permute.xlu0 %1145
  %1147 = vrot.lane.b32.xlu0 %v1140, 94
  %v1148 = vpop.permute.xlu0 %1147
  %1149 = vrot.lane.b32.xlu0 %v1141, 94
  %v1150 = vpop.permute.xlu0 %1149
  %v1151 = vsel %vm392, %v1146, %v1148
  %v1152 = vsel %vm392, %v1148, %v1150
  %1155 = vst [vmem:[#allocation2 + $0x90] sm:$0xff] %v1151
  %1156 = vst [vmem:[#allocation2 + $0x98] sm:$0xff] %v1152
  %v1157 = vld [vmem:[%s952] sm:$0xff]
  %v1158 = vld [vmem:[%s952 + $0x8] sm:$0xff]
  %v1159 = vld [vmem:[%s952 + $0x10] sm:$0xff]
  %v1160 = vmul.f32 %v1157, %v403
  %v1161 = vmul.f32 %v1158, %v407
  %v1162 = vmul.f32 %v1159, %v405
  %1166 = vrot.lane.b32.xlu0 %v1160, 82
  %v1167 = vpop.permute.xlu0 %1166
  %1168 = vrot.lane.b32.xlu0 %v1161, 82
  %v1169 = vpop.permute.xlu0 %1168
  %1170 = vrot.lane.b32.xlu0 %v1162, 82
  %v1171 = vpop.permute.xlu0 %1170
  %v1172 = vsel %vm423, %v1167, %v1169
  %v1173 = vsel %vm423, %v1169, %v1171
  %1176 = vst [vmem:[#allocation2 + $0xa0] sm:$0xff] %v1172
  %1177 = vst [vmem:[#allocation2 + $0xa8] sm:$0xff] %v1173
  %v1178 = vld [vmem:[%s952] sm:$0xff]
  %v1179 = vld [vmem:[%s952 + $0x8] sm:$0xff]
  %v1180 = vld [vmem:[%s952 + $0x10] sm:$0xff]
  %v1181 = vmul.f32 %v1178, %v434
  %v1182 = vmul.f32 %v1179, %v438
  %v1183 = vmul.f32 %v1180, %v436
  %1187 = vrot.lane.b32.xlu0 %v1181, 81
  %v1188 = vpop.permute.xlu0 %1187
  %1189 = vrot.lane.b32.xlu0 %v1182, 81
  %v1190 = vpop.permute.xlu0 %1189
  %1191 = vrot.lane.b32.xlu0 %v1183, 81
  %v1192 = vpop.permute.xlu0 %1191
  %v1193 = vsel %vm454, %v1188, %v1190
  %v1194 = vsel %vm454, %v1190, %v1192
  %1197 = vst [vmem:[#allocation2 + $0xb0] sm:$0xff] %v1193
  %1198 = vst [vmem:[#allocation2 + $0xb8] sm:$0xff] %v1194
  %v1199 = vld [vmem:[%s952] sm:$0xff]
  %v1200 = vld [vmem:[%s952 + $0x8] sm:$0xff]
  %v1201 = vld [vmem:[%s952 + $0x10] sm:$0xff]
  %1205 = vrot.lane.b32.xlu0 %v1199, 80
  %v1206 = vpop.permute.xlu0 %1205
  %1207 = vrot.lane.b32.xlu0 %v1200, 80
  %v1208 = vpop.permute.xlu0 %1207
  %1209 = vrot.lane.b32.xlu0 %v1201, 80
  %v1210 = vpop.permute.xlu0 %1209
  %v1211 = vsel %vm473, %v1206, %v1208
  %v1212 = vsel %vm473, %v1208, %v1210
  %1215 = vst [vmem:[#allocation2 + $0xc0] sm:$0xff] %v1211
  %1216 = vst [vmem:[#allocation2 + $0xc8] sm:$0xff] %v1212
  %v1217 = vld [vmem:[%s952] sm:$0xff]
  %v1218 = vld [vmem:[%s952 + $0x8] sm:$0xff]
  %v1219 = vld [vmem:[%s952 + $0x10] sm:$0xff]
  %v1220 = vmul.f32 %v1217, %v484
  %v1221 = vmul.f32 %v1218, %v488
  %v1222 = vmul.f32 %v1219, %v486
  %1226 = vrot.lane.b32.xlu0 %v1220, 79
  %v1227 = vpop.permute.xlu0 %1226
  %1228 = vrot.lane.b32.xlu0 %v1221, 79
  %v1229 = vpop.permute.xlu0 %1228
  %1230 = vrot.lane.b32.xlu0 %v1222, 79
  %v1231 = vpop.permute.xlu0 %1230
  %v1232 = vsel %vm504, %v1227, %v1229
  %v1233 = vsel %vm504, %v1229, %v1231
  %1236 = vst [vmem:[#allocation2 + $0xd0] sm:$0xff] %v1232
  %1237 = vst [vmem:[#allocation2 + $0xd8] sm:$0xff] %v1233
  %v1238 = vld [vmem:[%s952] sm:$0xff]
  %v1239 = vld [vmem:[%s952 + $0x8] sm:$0xff]
  %v1240 = vld [vmem:[%s952 + $0x10] sm:$0xff]
  %v1241 = vmul.f32 %v1238, %v515
  %v1242 = vmul.f32 %v1239, %v519
  %v1243 = vmul.f32 %v1240, %v517
  %1247 = vrot.lane.b32.xlu0 %v1241, 78
  %v1248 = vpop.permute.xlu0 %1247
  %1249 = vrot.lane.b32.xlu0 %v1242, 78
  %v1250 = vpop.permute.xlu0 %1249
  %1251 = vrot.lane.b32.xlu0 %v1243, 78
  %v1252 = vpop.permute.xlu0 %1251
  %v1253 = vsel %vm535, %v1248, %v1250
  %v1254 = vsel %vm535, %v1250, %v1252
  %1257 = vst [vmem:[#allocation2 + $0xe0] sm:$0xff] %v1253
  %1258 = vst [vmem:[#allocation2 + $0xe8] sm:$0xff] %v1254
  %v1259 = vld [vmem:[%s952] sm:$0xff]
  %v1260 = vld [vmem:[%s952 + $0x8] sm:$0xff]
  %v1261 = vld [vmem:[%s952 + $0x10] sm:$0xff]
  %v1262 = vmul.f32 %v1259, %v546
  %v1263 = vmul.f32 %v1260, %v550
  %v1264 = vmul.f32 %v1261, %v548
  %1268 = vrot.lane.b32.xlu0 %v1262, 66
  %v1269 = vpop.permute.xlu0 %1268
  %1270 = vrot.lane.b32.xlu0 %v1263, 66
  %v1271 = vpop.permute.xlu0 %1270
  %1272 = vrot.lane.b32.xlu0 %v1264, 66
  %v1273 = vpop.permute.xlu0 %1272
  %v1274 = vsel %vm566, %v1269, %v1271
  %v1275 = vsel %vm566, %v1271, %v1273
  %1278 = vst [vmem:[#allocation2 + $0xf0] sm:$0xff] %v1274
  %1279 = vst [vmem:[#allocation2 + $0xf8] sm:$0xff] %v1275
  %v1280 = vld [vmem:[%s952] sm:$0xff]
  %v1281 = vld [vmem:[%s952 + $0x8] sm:$0xff]
  %v1282 = vld [vmem:[%s952 + $0x10] sm:$0xff]
  %v1283 = vmul.f32 %v1280, %v577
  %v1284 = vmul.f32 %v1281, %v581
  %v1285 = vmul.f32 %v1282, %v579
  %1289 = vrot.lane.b32.xlu0 %v1283, 65
  %v1290 = vpop.permute.xlu0 %1289
  %1291 = vrot.lane.b32.xlu0 %v1284, 65
  %v1292 = vpop.permute.xlu0 %1291
  %1293 = vrot.lane.b32.xlu0 %v1285, 65
  %v1294 = vpop.permute.xlu0 %1293
  %v1295 = vsel %vm597, %v1290, %v1292
  %v1296 = vsel %vm597, %v1292, %v1294
  %1299 = vst [vmem:[#allocation2 + $0x100] sm:$0xff] %v1295
  %1300 = vst [vmem:[#allocation2 + $0x108] sm:$0xff] %v1296
  %v1301 = vld [vmem:[%s952] sm:$0xff]
  %v1302 = vld [vmem:[%s952 + $0x8] sm:$0xff]
  %v1303 = vld [vmem:[%s952 + $0x10] sm:$0xff]
  %1307 = vrot.lane.b32.xlu0 %v1301, 64
  %v1308 = vpop.permute.xlu0 %1307
  %1309 = vrot.lane.b32.xlu0 %v1302, 64
  %v1310 = vpop.permute.xlu0 %1309
  %1311 = vrot.lane.b32.xlu0 %v1303, 64
  %v1312 = vpop.permute.xlu0 %1311
  %v1313 = vsel %vm616, %v1308, %v1310
  %v1314 = vsel %vm616, %v1310, %v1312
  %1317 = vst [vmem:[#allocation2 + $0x110] sm:$0xff] %v1313
  %1318 = vst [vmem:[#allocation2 + $0x118] sm:$0xff] %v1314
  %v1319 = vld [vmem:[%s952] sm:$0xff]
  %v1320 = vld [vmem:[%s952 + $0x8] sm:$0xff]
  %v1321 = vld [vmem:[%s952 + $0x10] sm:$0xff]
  %v1322 = vmul.f32 %v1319, %v627
  %v1323 = vmul.f32 %v1320, %v630
  %v1324 = vmul.f32 %v1321, %v629
  %1328 = vrot.lane.b32.xlu0 %v1322, 63
  %v1329 = vpop.permute.xlu0 %1328
  %1330 = vrot.lane.b32.xlu0 %v1323, 63
  %v1331 = vpop.permute.xlu0 %1330
  %1332 = vrot.lane.b32.xlu0 %v1324, 63
  %v1333 = vpop.permute.xlu0 %1332
  %v1334 = vsel %vm580, %v1329, %v1331
  %v1335 = vsel %vm580, %v1331, %v1333
  %1338 = vst [vmem:[#allocation2 + $0x120] sm:$0xff] %v1334
  %1339 = vst [vmem:[#allocation2 + $0x128] sm:$0xff] %v1335
  %v1340 = vld [vmem:[%s952] sm:$0xff]
  %v1341 = vld [vmem:[%s952 + $0x8] sm:$0xff]
  %v1342 = vld [vmem:[%s952 + $0x10] sm:$0xff]
  %v1343 = vmul.f32 %v1340, %v656
  %v1344 = vmul.f32 %v1341, %v659
  %v1345 = vmul.f32 %v1342, %v658
  %1349 = vrot.lane.b32.xlu0 %v1343, 62
  %v1350 = vpop.permute.xlu0 %1349
  %1351 = vrot.lane.b32.xlu0 %v1344, 62
  %v1352 = vpop.permute.xlu0 %1351
  %1353 = vrot.lane.b32.xlu0 %v1345, 62
  %v1354 = vpop.permute.xlu0 %1353
  %v1355 = vsel %vm549, %v1350, %v1352
  %v1356 = vsel %vm549, %v1352, %v1354
  %1359 = vst [vmem:[#allocation2 + $0x130] sm:$0xff] %v1355
  %1360 = vst [vmem:[#allocation2 + $0x138] sm:$0xff] %v1356
  %v1361 = vld [vmem:[%s952] sm:$0xff]
  %v1362 = vld [vmem:[%s952 + $0x8] sm:$0xff]
  %v1363 = vld [vmem:[%s952 + $0x10] sm:$0xff]
  %v1364 = vmul.f32 %v1361, %v685
  %v1365 = vmul.f32 %v1362, %v688
  %v1366 = vmul.f32 %v1363, %v687
  %1370 = vrot.lane.b32.xlu0 %v1364, 50
  %v1371 = vpop.permute.xlu0 %1370
  %1372 = vrot.lane.b32.xlu0 %v1365, 50
  %v1373 = vpop.permute.xlu0 %1372
  %1374 = vrot.lane.b32.xlu0 %v1366, 50
  %v1375 = vpop.permute.xlu0 %1374
  %v1376 = vsel %vm518, %v1371, %v1373
  %v1377 = vsel %vm518, %v1373, %v1375
  %1380 = vst [vmem:[#allocation2 + $0x140] sm:$0xff] %v1376
  %1381 = vst [vmem:[#allocation2 + $0x148] sm:$0xff] %v1377
  %v1382 = vld [vmem:[%s952] sm:$0xff]
  %v1383 = vld [vmem:[%s952 + $0x8] sm:$0xff]
  %v1384 = vld [vmem:[%s952 + $0x10] sm:$0xff]
  %v1385 = vmul.f32 %v1382, %v714
  %v1386 = vmul.f32 %v1383, %v717
  %v1387 = vmul.f32 %v1384, %v716
  %1391 = vrot.lane.b32.xlu0 %v1385, 49
  %v1392 = vpop.permute.xlu0 %1391
  %1393 = vrot.lane.b32.xlu0 %v1386, 49
  %v1394 = vpop.permute.xlu0 %1393
  %1395 = vrot.lane.b32.xlu0 %v1387, 49
  %v1396 = vpop.permute.xlu0 %1395
  %v1397 = vsel %vm487, %v1392, %v1394
  %v1398 = vsel %vm487, %v1394, %v1396
  %1401 = vst [vmem:[#allocation2 + $0x150] sm:$0xff] %v1397
  %1402 = vst [vmem:[#allocation2 + $0x158] sm:$0xff] %v1398
  %v1403 = vld [vmem:[%s952] sm:$0xff]
  %v1404 = vld [vmem:[%s952 + $0x8] sm:$0xff]
  %v1405 = vld [vmem:[%s952 + $0x10] sm:$0xff]
  %1409 = vrot.lane.b32.xlu0 %v1403, 48
  %v1410 = vpop.permute.xlu0 %1409
  %1411 = vrot.lane.b32.xlu0 %v1404, 48
  %v1412 = vpop.permute.xlu0 %1411
  %1413 = vrot.lane.b32.xlu0 %v1405, 48
  %v1414 = vpop.permute.xlu0 %1413
  %v1415 = vsel %vm751, %v1410, %v1412
  %v1416 = vsel %vm751, %v1412, %v1414
  %1419 = vst [vmem:[#allocation2 + $0x160] sm:$0xff] %v1415
  %1420 = vst [vmem:[#allocation2 + $0x168] sm:$0xff] %v1416
  %v1421 = vld [vmem:[%s952] sm:$0xff]
  %v1422 = vld [vmem:[%s952 + $0x8] sm:$0xff]
  %v1423 = vld [vmem:[%s952 + $0x10] sm:$0xff]
  %v1424 = vmul.f32 %v1421, %v762
  %v1425 = vmul.f32 %v1422, %v765
  %v1426 = vmul.f32 %v1423, %v764
  %1430 = vrot.lane.b32.xlu0 %v1424, 47
  %v1431 = vpop.permute.xlu0 %1430
  %1432 = vrot.lane.b32.xlu0 %v1425, 47
  %v1433 = vpop.permute.xlu0 %1432
  %1434 = vrot.lane.b32.xlu0 %v1426, 47
  %v1435 = vpop.permute.xlu0 %1434
  %v1436 = vsel %vm437, %v1431, %v1433
  %v1437 = vsel %vm437, %v1433, %v1435
  %1440 = vst [vmem:[#allocation2 + $0x170] sm:$0xff] %v1436
  %1441 = vst [vmem:[#allocation2 + $0x178] sm:$0xff] %v1437
  %v1442 = vld [vmem:[%s952] sm:$0xff]
  %v1443 = vld [vmem:[%s952 + $0x8] sm:$0xff]
  %v1444 = vld [vmem:[%s952 + $0x10] sm:$0xff]
  %v1445 = vmul.f32 %v1442, %v791
  %v1446 = vmul.f32 %v1443, %v794
  %v1447 = vmul.f32 %v1444, %v793
  %1451 = vrot.lane.b32.xlu0 %v1445, 46
  %v1452 = vpop.permute.xlu0 %1451
  %1453 = vrot.lane.b32.xlu0 %v1446, 46
  %v1454 = vpop.permute.xlu0 %1453
  %1455 = vrot.lane.b32.xlu0 %v1447, 46
  %v1456 = vpop.permute.xlu0 %1455
  %v1457 = vsel %vm406, %v1452, %v1454
  %v1458 = vsel %vm406, %v1454, %v1456
  %1461 = vst [vmem:[#allocation2 + $0x180] sm:$0xff] %v1457
  %1462 = vst [vmem:[#allocation2 + $0x188] sm:$0xff] %v1458
  %v1463 = vld [vmem:[#allocation2] sm:$0xff]
  %v1464 = vld [vmem:[#allocation2 + $0x8] sm:$0xff]
  %v1465 = vld [vmem:[#allocation2 + $0x10] sm:$0xff]
  %v1466 = vld [vmem:[#allocation2 + $0x18] sm:$0xff]
  %v1467 = vld [vmem:[#allocation2 + $0x20] sm:$0xff]
  %v1468 = vld [vmem:[#allocation2 + $0x28] sm:$0xff]
  %v1469 = vld [vmem:[#allocation2 + $0x30] sm:$0xff]
  %v1470 = vld [vmem:[#allocation2 + $0x38] sm:$0xff]
  %v1471 = vld [vmem:[#allocation2 + $0x40] sm:$0xff]
  %v1472 = vld [vmem:[#allocation2 + $0x48] sm:$0xff]
  %v1473 = vld [vmem:[#allocation2 + $0x50] sm:$0xff]
  %v1474 = vld [vmem:[#allocation2 + $0x58] sm:$0xff]
  %v1475 = vld [vmem:[#allocation2 + $0x60] sm:$0xff]
  %v1476 = vld [vmem:[#allocation2 + $0x68] sm:$0xff]
  %v1477 = vld [vmem:[#allocation2 + $0x70] sm:$0xff]
  %v1478 = vld [vmem:[#allocation2 + $0x78] sm:$0xff]
  %v1479 = vld [vmem:[#allocation2 + $0x80] sm:$0xff]
  %v1480 = vld [vmem:[#allocation2 + $0x88] sm:$0xff]
  %v1481 = vld [vmem:[#allocation2 + $0x90] sm:$0xff]
  %v1482 = vld [vmem:[#allocation2 + $0x98] sm:$0xff]
  %v1483 = vld [vmem:[#allocation2 + $0xa0] sm:$0xff]
  %v1484 = vld [vmem:[#allocation2 + $0xa8] sm:$0xff]
  %v1485 = vld [vmem:[#allocation2 + $0xb0] sm:$0xff]
  %v1486 = vld [vmem:[#allocation2 + $0xb8] sm:$0xff]
  %v1487 = vld [vmem:[#allocation2 + $0xc0] sm:$0xff]
  %v1488 = vld [vmem:[#allocation2 + $0xc8] sm:$0xff]
  %v1489 = vld [vmem:[#allocation2 + $0xd0] sm:$0xff]
  %v1490 = vld [vmem:[#allocation2 + $0xd8] sm:$0xff]
  %v1491 = vld [vmem:[#allocation2 + $0xe0] sm:$0xff]
  %v1492 = vld [vmem:[#allocation2 + $0xe8] sm:$0xff]
  %v1493 = vld [vmem:[#allocation2 + $0xf0] sm:$0xff]
  %v1494 = vld [vmem:[#allocation2 + $0xf8] sm:$0xff]
  %v1495 = vld [vmem:[#allocation2 + $0x100] sm:$0xff]
  %v1496 = vld [vmem:[#allocation2 + $0x108] sm:$0xff]
  %v1497 = vld [vmem:[#allocation2 + $0x110] sm:$0xff]
  %v1498 = vld [vmem:[#allocation2 + $0x118] sm:$0xff]
  %v1499 = vld [vmem:[#allocation2 + $0x120] sm:$0xff]
  %v1500 = vld [vmem:[#allocation2 + $0x128] sm:$0xff]
  %v1501 = vld [vmem:[#allocation2 + $0x130] sm:$0xff]
  %v1502 = vld [vmem:[#allocation2 + $0x138] sm:$0xff]
  %v1503 = vld [vmem:[#allocation2 + $0x140] sm:$0xff]
  %v1504 = vld [vmem:[#allocation2 + $0x148] sm:$0xff]
  %v1505 = vld [vmem:[#allocation2 + $0x150] sm:$0xff]
  %v1506 = vld [vmem:[#allocation2 + $0x158] sm:$0xff]
  %v1507 = vld [vmem:[#allocation2 + $0x160] sm:$0xff]
  %v1508 = vld [vmem:[#allocation2 + $0x168] sm:$0xff]
  %v1509 = vld [vmem:[#allocation2 + $0x170] sm:$0xff]
  %v1510 = vld [vmem:[#allocation2 + $0x178] sm:$0xff]
  %v1511 = vld [vmem:[#allocation2 + $0x180] sm:$0xff]
  %v1512 = vld [vmem:[#allocation2 + $0x188] sm:$0xff]
  %v1513 = vpack.c.bf16 %v1465, %v1463
  %v1514 = vpack.c.bf16 %v1466, %v1464
  %v1515 = vpack.c.bf16 %v1469, %v1467
  %v1516 = vpack.c.bf16 %v1470, %v1468
  %v1517 = vpack.c.bf16 %v1473, %v1471
  %v1518 = vpack.c.bf16 %v1474, %v1472
  %v1519 = vpack.c.bf16 %v1477, %v1475
  %v1520 = vpack.c.bf16 %v1478, %v1476
  %v1521 = vpack.c.bf16 %v1481, %v1479
  %v1522 = vpack.c.bf16 %v1482, %v1480
  %v1523 = vpack.c.bf16 %v1485, %v1483
  %v1524 = vpack.c.bf16 %v1486, %v1484
  %v1525 = vpack.c.bf16 %v1489, %v1487
  %v1526 = vpack.c.bf16 %v1490, %v1488
  %v1527 = vpack.c.bf16 %v1493, %v1491
  %v1528 = vpack.c.bf16 %v1494, %v1492
  %v1529 = vpack.c.bf16 %v1497, %v1495
  %v1530 = vpack.c.bf16 %v1498, %v1496
  %v1531 = vpack.c.bf16 %v1501, %v1499
  %v1532 = vpack.c.bf16 %v1502, %v1500
  %v1533 = vpack.c.bf16 %v1505, %v1503
  %v1534 = vpack.c.bf16 %v1506, %v1504
  %v1535 = vpack.c.bf16 %v1509, %v1507
  %v1536 = vpack.c.bf16 %v1510, %v1508
  %v1537 = vpack.c.bf16 %v1511, %v1511
  %v1538 = vpack.c.bf16 %v1512, %v1512
  %v1540 = vsel %vm902, %v1537, 0
  %v1543 = vsel %vm902, %v1538, 0
  %1545 = vmatprep.subr.bf16.mxu0 %v1514
  %1546 = vmatpush1.bf16.msra.mxu0 %v1513
  %1547 = vmatprep.subr.bf16.mxu0 %v1516
  %1548 = vmatpush1.bf16.msra.mxu0 %v1515
  %1549 = vmatprep.subr.bf16.mxu0 %v1518
  %1550 = vmatpush1.bf16.msra.mxu0 %v1517
  %1551 = vmatprep.subr.bf16.mxu0 %v1520
  %1552 = vmatpush1.bf16.msra.mxu0 %v1519
  %1553 = vmatprep.subr.bf16.mxu0 %v1522
  %1554 = vmatpush1.bf16.msra.mxu0 %v1521
  %1555 = vmatprep.subr.bf16.mxu0 %v1524
  %1556 = vmatpush1.bf16.msra.mxu0 %v1523
  %1557 = vmatprep.subr.bf16.mxu0 %v1526
  %1558 = vmatpush1.bf16.msra.mxu0 %v1525
  %1559 = vmatprep.subr.bf16.mxu0 %v1528
  %1560 = vmatpush1.bf16.msra.mxu0 %v1527
  %1561 = vmatprep.subr.bf16.mxu0 %v1530
  %1562 = vmatpush1.bf16.msra.mxu0 %v1529
  %1563 = vmatprep.subr.bf16.mxu0 %v1532
  %1564 = vmatpush1.bf16.msra.mxu0 %v1531
  %1565 = vmatprep.subr.bf16.mxu0 %v1534
  %1566 = vmatpush1.bf16.msra.mxu0 %v1533
  %1567 = vmatprep.subr.bf16.mxu0 %v1536
  %1568 = vmatpush1.bf16.msra.mxu0 %v1535
  %1569 = vmatprep.subr.bf16.mxu0 %v1543
  %1570 = vmatpush1.bf16.msra.mxu0 %v1540
  %1571 = vmatprep.subr.bf16.mxu0 0
  %1572 = vmatpush1.bf16.msra.mxu0 0
  %1573 = vmatprep.subr.bf16.mxu0 0
  %1574 = vmatpush1.bf16.msra.mxu0 0
  %1575 = vmatprep.subr.bf16.mxu0 0
  %1576 = vmatpush1.bf16.msra.mxu0 0
  %1577 = vmatprep.mubr.bf16.mxu0 %v900
  %1578 = vmatmul.mubr.bf16.gmra.mrb[0].mxu0 %v895
  %v1579 = vpop.f32.mrb[0].mxu0
  %v1580 = vadd.f32 0.0, %v1579
  %v1581 = vpop.f32.mrb[0].mxu0
  %v1582 = vadd.f32 0.0, %v1581
  %v1583 = vpop.f32.mrb[0].mxu0
  %v1584 = vpop.f32.mrb[0].mxu0
  %1585 = vdwg.mxu0
  %1586 = vst [vmem:[#allocation3 + $0x10] sm:$0xff] %v1580
  %1587 = vst [vmem:[#allocation3 + $0x18] sm:$0xff] %v1582
  %v1588 = vld [vmem:[#allocation3] sm:$0xff]
  %v1589 = vld [vmem:[#allocation3 + $0x8] sm:$0xff]
  %v1590 = vld [vmem:[#allocation3 + $0x10] sm:$0xff]
  %v1591 = vld [vmem:[#allocation3 + $0x18] sm:$0xff]
  %v1592 = vadd.f32 %v1588, %v1589
  %v1593 = vadd.f32 %v1592, %v1590
  %v1594 = vadd.f32 %v1593, %v1591
  %1595 = vadd.xlane.f32.xlu0 %v1594
  %v1596 = vpop.xlane.xlu0 %1595
  %v1597 = vmul.f32 %v1596, 0.001953125
  %v1598 = vmul.f32 %v1588, %v1588
  %v1599 = vmul.f32 %v1589, %v1589
  %v1600 = vmul.f32 %v1590, %v1590
  %v1601 = vmul.f32 %v1591, %v1591
  %v1602 = vadd.f32 %v1598, %v1599
  %v1603 = vadd.f32 %v1602, %v1600
  %v1604 = vadd.f32 %v1603, %v1601
  %1605 = vadd.xlane.f32.xlu0 %v1604
  %v1606 = vpop.xlane.xlu0 %1605
  %v1607 = vmul.f32 %v1606, 0.001953125
  %v1608 = vmul.f32 %v1597, %v1597
  %v1609 = vsub.f32 %v1607, %v1608
  %v1610 = vmax.f32 %v1609, 0.0
  %v1611 = vld [vmem:[%s3] sm:$0xff]
  %v1612 = vadd.f32 %v1610, 1e-05
  %v1613 = vrsqrt.pop %v1612
  %v1614 = vmul.f32 %v1611, %v1613
  %v1615 = vld [vmem:[%s4] sm:$0xff]
  %v1616 = vmul.f32 %v1597, %v1614
  %v1617 = vsub.f32 %v1615, %v1616
  %1619 = vset.pattern.permute.xlu0 0
  %1620 = vperm.xlu0 %1619, %v1614
  %v1621 = vpop.permute.xlu0 %1620
  %v1623 = vmul.f32 %v1588, %v1621
  %v1624 = vmul.f32 %v1589, %v1621
  %v1625 = vmul.f32 %v1590, %v1621
  %v1626 = vmul.f32 %v1591, %v1621
  %1628 = vset.pattern.permute.xlu0 0
  %1629 = vperm.xlu0 %1628, %v1617
  %v1630 = vpop.permute.xlu0 %1629
  %v1632 = vadd.f32 %v1623, %v1630
  %v1633 = vadd.f32 %v1624, %v1630
  %v1634 = vadd.f32 %v1625, %v1630
  %v1635 = vadd.f32 %v1626, %v1630
  %v1636 = vmax.f32 %v1632, 0.0
  %v1637 = vmax.f32 %v1633, 0.0
  %v1638 = vmax.f32 %v1634, 0.0
  %v1639 = vmax.f32 %v1635, 0.0
  %v1640 = vpack.c.bf16 %v1636, %v1636
  %v1641 = vpack.c.bf16 %v1637, %v1637
  %v1674 = vunpack.c.l.b16 %v22
  %v1675 = vunpack.c.l.b16 %v23
  %v1676 = vunpack.c.l.b16 %v24
  %v1677 = vunpack.c.l.b16 %v25
  %v1678 = vunpack.c.l.b16 %v26
  %v1679 = vunpack.c.l.b16 %v27
  %v1680 = vunpack.c.l.b16 %v28
  %v1681 = vunpack.c.l.b16 %v29
  %v1682 = vunpack.c.l.b16 %v30
  %v1683 = vunpack.c.l.b16 %v31
  %v1684 = vunpack.c.l.b16 %v32
  %v1685 = vunpack.c.l.b16 %v33
  %v1686 = vunpack.c.l.b16 %v34
  %v1687 = vunpack.c.l.b16 %v35
  %v1688 = vunpack.c.l.b16 %v36
  %v1689 = vunpack.c.l.b16 %v37
  %v1690 = vunpack.c.l.b16 %v38
  %v1691 = vunpack.c.l.b16 %v39
  %v1692 = vunpack.c.l.b16 %v40
  %v1693 = vunpack.c.l.b16 %v41
  %v1694 = vunpack.c.l.b16 %v42
  %v1695 = vunpack.c.l.b16 %v43
  %v1696 = vunpack.c.l.b16 %v44
  %v1697 = vunpack.c.l.b16 %v45
  %v1698 = vunpack.c.l.b16 %v46
  %v1699 = vunpack.c.l.b16 %v47
  %v1700 = vunpack.c.l.b16 %v48
  %v1701 = vunpack.c.l.b16 %v49
  %v1702 = vunpack.c.l.b16 %v50
  %v1703 = vunpack.c.l.b16 %v51
  %v1704 = vunpack.c.l.b16 %v52
  %v1705 = vunpack.c.l.b16 %v53
  %v1706 = vpack.c.b16 %v1675, %v1674
  %v1707 = vpack.c.b16 %v1677, %v1676
  %v1708 = vpack.c.b16 %v1679, %v1678
  %v1709 = vpack.c.b16 %v1681, %v1680
  %v1710 = vpack.c.b16 %v1683, %v1682
  %v1711 = vpack.c.b16 %v1685, %v1684
  %v1712 = vpack.c.b16 %v1687, %v1686
  %v1713 = vpack.c.b16 %v1689, %v1688
  %v1714 = vpack.c.b16 %v1691, %v1690
  %v1715 = vpack.c.b16 %v1693, %v1692
  %v1716 = vpack.c.b16 %v1695, %v1694
  %v1717 = vpack.c.b16 %v1697, %v1696
  %v1718 = vpack.c.b16 %v1699, %v1698
  %v1719 = vpack.c.b16 %v1701, %v1700
  %v1720 = vpack.c.b16 %v1703, %v1702
  %v1721 = vpack.c.b16 %v1705, %v1704
  %1738 = vmatprep.subr.bf16.mxu0 0
  %1739 = vmatpush1.bf16.msra.mxu0 %v1706
  %1740 = vmatprep.subr.bf16.mxu0 0
  %1741 = vmatpush1.bf16.msra.mxu0 %v1707
  %1742 = vmatprep.subr.bf16.mxu0 0
  %1743 = vmatpush1.bf16.msra.mxu0 %v1708
  %1744 = vmatprep.subr.bf16.mxu0 0
  %1745 = vmatpush1.bf16.msra.mxu0 %v1709
  %1746 = vmatprep.subr.bf16.mxu0 0
  %1747 = vmatpush1.bf16.msra.mxu0 %v1710
  %1748 = vmatprep.subr.bf16.mxu0 0
  %1749 = vmatpush1.bf16.msra.mxu0 %v1711
  %1750 = vmatprep.subr.bf16.mxu0 0
  %1751 = vmatpush1.bf16.msra.mxu0 %v1712
  %1752 = vmatprep.subr.bf16.mxu0 0
  %1753 = vmatpush1.bf16.msra.mxu0 %v1713
  %1754 = vmatprep.subr.bf16.mxu0 0
  %1755 = vmatpush1.bf16.msra.mxu0 %v1714
  %1756 = vmatprep.subr.bf16.mxu0 0
  %1757 = vmatpush1.bf16.msra.mxu0 %v1715
  %1758 = vmatprep.subr.bf16.mxu0 0
  %1759 = vmatpush1.bf16.msra.mxu0 %v1716
  %1760 = vmatprep.subr.bf16.mxu0 0
  %1761 = vmatpush1.bf16.msra.mxu0 %v1717
  %1762 = vmatprep.subr.bf16.mxu0 0
  %1763 = vmatpush1.bf16.msra.mxu0 %v1718
  %1764 = vmatprep.subr.bf16.mxu0 0
  %1765 = vmatpush1.bf16.msra.mxu0 %v1719
  %1766 = vmatprep.subr.bf16.mxu0 0
  %1767 = vmatpush1.bf16.msra.mxu0 %v1720
  %1768 = vmatprep.subr.bf16.mxu0 0
  %1769 = vmatpush1.bf16.msra.mxu0 %v1721
  %1770 = vmatprep.mubr.bf16.mxu0 %v1641
  %1771 = vmatmul.mubr.bf16.gmra.mrb[0].mxu0 %v1640
  %v1772 = vpop.f32.mrb[0].mxu0
  %v1773 = vadd.f32 0.0, %v1772
  %v1774 = vpop.f32.mrb[0].mxu0
  %v1775 = vpop.f32.mrb[0].mxu0
  %v1776 = vpop.f32.mrb[0].mxu0
  %1777 = vdwg.mxu0
  %1778 = vst.msk [vmem:[%s5] sm:$0xff] %vm616, %v1773
  %v1779 = vpack.c.bf16 %v1638, %v1638
  %v1780 = vpack.c.bf16 %v1639, %v1639
  %1781 = vmatprep.subr.bf16.mxu0 0
  %1782 = vmatpush1.bf16.msra.mxu0 %v1706
  %1783 = vmatprep.subr.bf16.mxu0 0
  %1784 = vmatpush1.bf16.msra.mxu0 %v1707
  %1785 = vmatprep.subr.bf16.mxu0 0
  %1786 = vmatpush1.bf16.msra.mxu0 %v1708
  %1787 = vmatprep.subr.bf16.mxu0 0
  %1788 = vmatpush1.bf16.msra.mxu0 %v1709
  %1789 = vmatprep.subr.bf16.mxu0 0
  %1790 = vmatpush1.bf16.msra.mxu0 %v1710
  %1791 = vmatprep.subr.bf16.mxu0 0
  %1792 = vmatpush1.bf16.msra.mxu0 %v1711
  %1793 = vmatprep.subr.bf16.mxu0 0
  %1794 = vmatpush1.bf16.msra.mxu0 %v1712
  %1795 = vmatprep.subr.bf16.mxu0 0
  %1796 = vmatpush1.bf16.msra.mxu0 %v1713
  %1797 = vmatprep.subr.bf16.mxu0 0
  %1798 = vmatpush1.bf16.msra.mxu0 %v1714
  %1799 = vmatprep.subr.bf16.mxu0 0
  %1800 = vmatpush1.bf16.msra.mxu0 %v1715
  %1801 = vmatprep.subr.bf16.mxu0 0
  %1802 = vmatpush1.bf16.msra.mxu0 %v1716
  %1803 = vmatprep.subr.bf16.mxu0 0
  %1804 = vmatpush1.bf16.msra.mxu0 %v1717
  %1805 = vmatprep.subr.bf16.mxu0 0
  %1806 = vmatpush1.bf16.msra.mxu0 %v1718
  %1807 = vmatprep.subr.bf16.mxu0 0
  %1808 = vmatpush1.bf16.msra.mxu0 %v1719
  %1809 = vmatprep.subr.bf16.mxu0 0
  %1810 = vmatpush1.bf16.msra.mxu0 %v1720
  %1811 = vmatprep.subr.bf16.mxu0 0
  %1812 = vmatpush1.bf16.msra.mxu0 %v1721
  %1813 = vmatprep.mubr.bf16.mxu0 %v1780
  %1814 = vmatmul.mubr.bf16.gmra.mrb[0].mxu0 %v1779
  %v1815 = vpop.f32.mrb[0].mxu0
  %v1816 = vadd.f32 0.0, %v1815
  %v1817 = vpop.f32.mrb[0].mxu0
  %v1818 = vpop.f32.mrb[0].mxu0
  %v1819 = vpop.f32.mrb[0].mxu0
  %1820 = vdwg.mxu0
  %1822 = vrot.lane.b32.xlu0 %v1816, 64
  %v1823 = vpop.permute.xlu0 %1822
  %vm1825 = vcmask 1048064
  %1826 = vst.msk [vmem:[%s5] sm:$0xff] %vm1825, %v1823
  // Predicated region
  $region22: #{funnel_forward.3} parent=0 // pred_check
    _
  $region23: #{funnel_forward.3} parent=0 // pred_check_branch
    %1828 = sbr.rel (0) target = $region25
  $region24: #{funnel_forward.3} parent=0 // pred_region
    _
  $region25: #{funnel_forward.3} parent=0 // pred_fallthru
    _
  // Predicated region
  $region26: #{funnel_forward.3} parent=0 // pred_check
    _
  $region27: #{funnel_forward.3} parent=0 // pred_check_branch
    %1830 = sbr.rel (0) target = $region29
  $region28: #{funnel_forward.3} parent=0 // pred_region
    _
  $region29: #{funnel_forward.3} parent=0 // pred_fallthru
    _

// kernel: funnel_forward.2
$region0: #{funnel_forward.2}
  #allocation0 [shape = 'u32[]', space=smem, size = 0x4, offset = 0x4, fixed_abs, tag = 'smem constant byte address 0x4 - core index']
  #allocation1 [shape = 'u32[144,128]{1,0:T(1,128)}', space=vmem, size = 0x12000, scoped, tag = 'internal scratch']
  #allocation2 [shape = 'f32[200,1024]{1,0:T(8,128)}', space=vmem, size = 0xc8000, scoped, tag = 'scratch operand']
  #allocation3 [shape = 'f32[8,2048]{1,0:T(8,128)}', space=vmem, size = 0x10000, scoped, tag = 'scratch operand']
  %s0 = inlined_call_operand.vmem [shape: f32[2,4,1216], index: 0, kind: input, shape index: {}]
  %s1 = inlined_call_operand.vmem [shape: bf16[8,200], index: 1, kind: input, shape index: {}]
  %s2 = inlined_call_operand.vmem [shape: bf16[1024,256], index: 2, kind: input, shape index: {}]
  %s3 = inlined_call_operand.vmem [shape: f32[8,1], index: 3, kind: input, shape index: {}]
  %s4 = inlined_call_operand.vmem [shape: f32[8,1], index: 4, kind: input, shape index: {}]
  %s5 = inlined_call_operand.vmem [shape: f32[8,512], index: 5, kind: output, shape index: {}]
  %s6 = sld [smem:[#allocation0]]
  $region30: #{funnel_forward.2} parent=0
    _
  %s8 = ssub.s32 1, %s6
  %s9 = scalar_select 0, %s8, %s6
  // Predicated region
  $region2: #{funnel_forward.2} parent=0 // pred_check
    _
  $region3: #{funnel_forward.2} parent=0 // pred_check_branch
    %11 = sbr.rel (0) target = $region5
  $region4: #{funnel_forward.2} parent=0 // pred_region
    _
  $region5: #{funnel_forward.2} parent=0 // pred_fallthru
    _
  // Predicated region
  $region6: #{funnel_forward.2} parent=0 // pred_check
    _
  $region7: #{funnel_forward.2} parent=0 // pred_check_branch
    %13 = sbr.rel (0) target = $region9
  $region8: #{funnel_forward.2} parent=0 // pred_region
    _
  $region9: #{funnel_forward.2} parent=0 // pred_fallthru
    _
  // Predicated region
  $region10: #{funnel_forward.2} parent=0 // pred_check
    _
  $region11: #{funnel_forward.2} parent=0 // pred_check_branch
    %15 = sbr.rel (0) target = $region13
  $region12: #{funnel_forward.2} parent=0 // pred_region
    _
  $region13: #{funnel_forward.2} parent=0 // pred_fallthru
    _
  // Predicated region
  $region14: #{funnel_forward.2} parent=0 // pred_check
    _
  $region15: #{funnel_forward.2} parent=0 // pred_check_branch
    %17 = sbr.rel (0) target = $region17
  $region16: #{funnel_forward.2} parent=0 // pred_region
    _
  $region17: #{funnel_forward.2} parent=0 // pred_fallthru
    _
  // Predicated region
  $region18: #{funnel_forward.2} parent=0 // pred_check
    _
  $region19: #{funnel_forward.2} parent=0 // pred_check_branch
    %19 = sbr.rel (0) target = $region21
  $region20: #{funnel_forward.2} parent=0 // pred_region
    _
  $region21: #{funnel_forward.2} parent=0 // pred_fallthru
    _
  %v21 = vld [vmem:[%s1] sm:$0xff]
  %v22 = vld [vmem:[%s2] sm:$0xff]
  %v23 = vld [vmem:[%s2 + $0x8] sm:$0xff]
  %v24 = vld [vmem:[%s2 + $0x10] sm:$0xff]
  %v25 = vld [vmem:[%s2 + $0x18] sm:$0xff]
  %v26 = vld [vmem:[%s2 + $0x20] sm:$0xff]
  %v27 = vld [vmem:[%s2 + $0x28] sm:$0xff]
  %v28 = vld [vmem:[%s2 + $0x30] sm:$0xff]
  %v29 = vld [vmem:[%s2 + $0x38] sm:$0xff]
  %v30 = vld [vmem:[%s2 + $0x40] sm:$0xff]
  %v31 = vld [vmem:[%s2 + $0x48] sm:$0xff]
  %v32 = vld [vmem:[%s2 + $0x50] sm:$0xff]
  %v33 = vld [vmem:[%s2 + $0x58] sm:$0xff]
  %v34 = vld [vmem:[%s2 + $0x60] sm:$0xff]
  %v35 = vld [vmem:[%s2 + $0x68] sm:$0xff]
  %v36 = vld [vmem:[%s2 + $0x70] sm:$0xff]
  %v37 = vld [vmem:[%s2 + $0x78] sm:$0xff]
  %v38 = vld [vmem:[%s2 + $0x80] sm:$0xff]
  %v39 = vld [vmem:[%s2 + $0x88] sm:$0xff]
  %v40 = vld [vmem:[%s2 + $0x90] sm:$0xff]
  %v41 = vld [vmem:[%s2 + $0x98] sm:$0xff]
  %v42 = vld [vmem:[%s2 + $0xa0] sm:$0xff]
  %v43 = vld [vmem:[%s2 + $0xa8] sm:$0xff]
  %v44 = vld [vmem:[%s2 + $0xb0] sm:$0xff]
  %v45 = vld [vmem:[%s2 + $0xb8] sm:$0xff]
  %v46 = vld [vmem:[%s2 + $0xc0] sm:$0xff]
  %v47 = vld [vmem:[%s2 + $0xc8] sm:$0xff]
  %v48 = vld [vmem:[%s2 + $0xd0] sm:$0xff]
  %v49 = vld [vmem:[%s2 + $0xd8] sm:$0xff]
  %v50 = vld [vmem:[%s2 + $0xe0] sm:$0xff]
  %v51 = vld [vmem:[%s2 + $0xe8] sm:$0xff]
  %v52 = vld [vmem:[%s2 + $0xf0] sm:$0xff]
  %v53 = vld [vmem:[%s2 + $0xf8] sm:$0xff]
  %v54 = vld [vmem:[%s2 + $0x100] sm:$0xff]
  %v55 = vld [vmem:[%s2 + $0x108] sm:$0xff]
  %v56 = vld [vmem:[%s2 + $0x110] sm:$0xff]
  %v57 = vld [vmem:[%s2 + $0x118] sm:$0xff]
  %v58 = vld [vmem:[%s2 + $0x120] sm:$0xff]
  %v59 = vld [vmem:[%s2 + $0x128] sm:$0xff]
  %v60 = vld [vmem:[%s2 + $0x130] sm:$0xff]
  %v61 = vld [vmem:[%s2 + $0x138] sm:$0xff]
  %v62 = vld [vmem:[%s2 + $0x140] sm:$0xff]
  %v63 = vld [vmem:[%s2 + $0x148] sm:$0xff]
  %v64 = vld [vmem:[%s2 + $0x150] sm:$0xff]
  %v65 = vld [vmem:[%s2 + $0x158] sm:$0xff]
  %v66 = vld [vmem:[%s2 + $0x160] sm:$0xff]
  %v67 = vld [vmem:[%s2 + $0x168] sm:$0xff]
  %v68 = vld [vmem:[%s2 + $0x170] sm:$0xff]
  %v69 = vld [vmem:[%s2 + $0x178] sm:$0xff]
  %v70 = vld [vmem:[%s2 + $0x180] sm:$0xff]
  %v71 = vld [vmem:[%s2 + $0x188] sm:$0xff]
  %v72 = vld [vmem:[%s2 + $0x190] sm:$0xff]
  %v73 = vld [vmem:[%s2 + $0x198] sm:$0xff]
  %v74 = vld [vmem:[%s2 + $0x1a0] sm:$0xff]
  %v75 = vld [vmem:[%s2 + $0x1a8] sm:$0xff]
  %v76 = vld [vmem:[%s2 + $0x1b0] sm:$0xff]
  %v77 = vld [vmem:[%s2 + $0x1b8] sm:$0xff]
  %v78 = vld [vmem:[%s2 + $0x1c0] sm:$0xff]
  %v79 = vld [vmem:[%s2 + $0x1c8] sm:$0xff]
  %v80 = vld [vmem:[%s2 + $0x1d0] sm:$0xff]
  %v81 = vld [vmem:[%s2 + $0x1d8] sm:$0xff]
  %v82 = vld [vmem:[%s2 + $0x1e0] sm:$0xff]
  %v83 = vld [vmem:[%s2 + $0x1e8] sm:$0xff]
  %v84 = vld [vmem:[%s2 + $0x1f0] sm:$0xff]
  %v85 = vld [vmem:[%s2 + $0x1f8] sm:$0xff]
  %v86 = vld [vmem:[%s2 + $0x200] sm:$0xff]
  %v87 = vld [vmem:[%s2 + $0x208] sm:$0xff]
  %v88 = vld [vmem:[%s2 + $0x210] sm:$0xff]
  %v89 = vld [vmem:[%s2 + $0x218] sm:$0xff]
  %v90 = vld [vmem:[%s2 + $0x220] sm:$0xff]
  %v91 = vld [vmem:[%s2 + $0x228] sm:$0xff]
  %v92 = vld [vmem:[%s2 + $0x230] sm:$0xff]
  %v93 = vld [vmem:[%s2 + $0x238] sm:$0xff]
  %v94 = vld [vmem:[%s2 + $0x240] sm:$0xff]
  %v95 = vld [vmem:[%s2 + $0x248] sm:$0xff]
  %v96 = vld [vmem:[%s2 + $0x250] sm:$0xff]
  %v97 = vld [vmem:[%s2 + $0x258] sm:$0xff]
  %v98 = vld [vmem:[%s2 + $0x260] sm:$0xff]
  %v99 = vld [vmem:[%s2 + $0x268] sm:$0xff]
  %v100 = vld [vmem:[%s2 + $0x270] sm:$0xff]
  %v101 = vld [vmem:[%s2 + $0x278] sm:$0xff]
  %v102 = vld [vmem:[%s2 + $0x280] sm:$0xff]
  %v103 = vld [vmem:[%s2 + $0x288] sm:$0xff]
  %v104 = vld [vmem:[%s2 + $0x290] sm:$0xff]
  %v105 = vld [vmem:[%s2 + $0x298] sm:$0xff]
  %v106 = vld [vmem:[%s2 + $0x2a0] sm:$0xff]
  %v107 = vld [vmem:[%s2 + $0x2a8] sm:$0xff]
  %v108 = vld [vmem:[%s2 + $0x2b0] sm:$0xff]
  %v109 = vld [vmem:[%s2 + $0x2b8] sm:$0xff]
  %v110 = vld [vmem:[%s2 + $0x2c0] sm:$0xff]
  %v111 = vld [vmem:[%s2 + $0x2c8] sm:$0xff]
  %v112 = vld [vmem:[%s2 + $0x2d0] sm:$0xff]
  %v113 = vld [vmem:[%s2 + $0x2d8] sm:$0xff]
  %v114 = vld [vmem:[%s2 + $0x2e0] sm:$0xff]
  %v115 = vld [vmem:[%s2 + $0x2e8] sm:$0xff]
  %v116 = vld [vmem:[%s2 + $0x2f0] sm:$0xff]
  %v117 = vld [vmem:[%s2 + $0x2f8] sm:$0xff]
  %v118 = vld [vmem:[%s2 + $0x300] sm:$0xff]
  %v119 = vld [vmem:[%s2 + $0x308] sm:$0xff]
  %v120 = vld [vmem:[%s2 + $0x310] sm:$0xff]
  %v121 = vld [vmem:[%s2 + $0x318] sm:$0xff]
  %v122 = vld [vmem:[%s2 + $0x320] sm:$0xff]
  %v123 = vld [vmem:[%s2 + $0x328] sm:$0xff]
  %v124 = vld [vmem:[%s2 + $0x330] sm:$0xff]
  %v125 = vld [vmem:[%s2 + $0x338] sm:$0xff]
  %v126 = vld [vmem:[%s2 + $0x340] sm:$0xff]
  %v127 = vld [vmem:[%s2 + $0x348] sm:$0xff]
  %v128 = vld [vmem:[%s2 + $0x350] sm:$0xff]
  %v129 = vld [vmem:[%s2 + $0x358] sm:$0xff]
  %v130 = vld [vmem:[%s2 + $0x360] sm:$0xff]
  %v131 = vld [vmem:[%s2 + $0x368] sm:$0xff]
  %v132 = vld [vmem:[%s2 + $0x370] sm:$0xff]
  %v133 = vld [vmem:[%s2 + $0x378] sm:$0xff]
  %v134 = vld [vmem:[%s2 + $0x380] sm:$0xff]
  %v135 = vld [vmem:[%s2 + $0x388] sm:$0xff]
  %v136 = vld [vmem:[%s2 + $0x390] sm:$0xff]
  %v137 = vld [vmem:[%s2 + $0x398] sm:$0xff]
  %v138 = vld [vmem:[%s2 + $0x3a0] sm:$0xff]
  %v139 = vld [vmem:[%s2 + $0x3a8] sm:$0xff]
  %v140 = vld [vmem:[%s2 + $0x3b0] sm:$0xff]
  %v141 = vld [vmem:[%s2 + $0x3b8] sm:$0xff]
  %v142 = vld [vmem:[%s2 + $0x3c0] sm:$0xff]
  %v143 = vld [vmem:[%s2 + $0x3c8] sm:$0xff]
  %v144 = vld [vmem:[%s2 + $0x3d0] sm:$0xff]
  %v145 = vld [vmem:[%s2 + $0x3d8] sm:$0xff]
  %v146 = vld [vmem:[%s2 + $0x3e0] sm:$0xff]
  %v147 = vld [vmem:[%s2 + $0x3e8] sm:$0xff]
  %v148 = vld [vmem:[%s2 + $0x3f0] sm:$0xff]
  %v149 = vld [vmem:[%s2 + $0x3f8] sm:$0xff]
  %v150 = vlaneseq
  %v151 = vand.u32 %v150, 127
  %v152 = vadd.s32 %v151, 128
  %v153 = vadd.s32 %v151, 256
  %v154 = vadd.s32 %v151, 384
  %v155 = vadd.s32 %v151, 512
  %v156 = vadd.s32 %v151, 640
  %v157 = vadd.s32 %v151, 768
  %v158 = vadd.s32 %v151, 896
  %vm159 = vcmp.lt.s32.totalorder %v151, 0
  %v160 = vsub.s32 0, %v151
  %v161 = vsel %vm159, %v160, %v151
  %v162 = vshrl.u32 %v161, 5
  %v163 = vand.u32 %v161, 31
  %v164 = vsub.s32 0, %v163
  %v165 = vsel %vm159, %v164, %v163
  %vm166 = vcmp.lt.s32.totalorder %v152, 0
  %v167 = vsub.s32 0, %v152
  %v168 = vsel %vm166, %v167, %v152
  %v169 = vshrl.u32 %v168, 5
  %v170 = vand.u32 %v168, 31
  %v171 = vsub.s32 0, %v170
  %v172 = vsel %vm166, %v171, %v170
  %vm173 = vcmp.lt.s32.totalorder %v153, 0
  %v174 = vsub.s32 0, %v153
  %v175 = vsel %vm173, %v174, %v153
  %v176 = vshrl.u32 %v175, 5
  %v177 = vand.u32 %v175, 31
  %v178 = vsub.s32 0, %v177
  %v179 = vsel %vm173, %v178, %v177
  %vm180 = vcmp.lt.s32.totalorder %v154, 0
  %v181 = vsub.s32 0, %v154
  %v182 = vsel %vm180, %v181, %v154
  %v183 = vshrl.u32 %v182, 5
  %v184 = vand.u32 %v182, 31
  %v185 = vsub.s32 0, %v184
  %v186 = vsel %vm180, %v185, %v184
  %vm187 = vcmp.lt.s32.totalorder %v155, 0
  %v188 = vsub.s32 0, %v155
  %v189 = vsel %vm187, %v188, %v155
  %v190 = vshrl.u32 %v189, 5
  %v191 = vand.u32 %v189, 31
  %v192 = vsub.s32 0, %v191
  %v193 = vsel %vm187, %v192, %v191
  %vm194 = vcmp.lt.s32.totalorder %v156, 0
  %v195 = vsub.s32 0, %v156
  %v196 = vsel %vm194, %v195, %v156
  %v197 = vshrl.u32 %v196, 5
  %v198 = vand.u32 %v196, 31
  %v199 = vsub.s32 0, %v198
  %v200 = vsel %vm194, %v199, %v198
  %vm201 = vcmp.lt.s32.totalorder %v157, 0
  %v202 = vsub.s32 0, %v157
  %v203 = vsel %vm201, %v202, %v157
  %v204 = vshrl.u32 %v203, 5
  %v205 = vand.u32 %v203, 31
  %v206 = vsub.s32 0, %v205
  %v207 = vsel %vm201, %v206, %v205
  %vm208 = vcmp.lt.s32.totalorder %v158, 0
  %v209 = vsub.s32 0, %v158
  %v210 = vsel %vm208, %v209, %v158
  %v211 = vshrl.u32 %v210, 5
  %v212 = vand.u32 %v210, 31
  %v213 = vsub.s32 0, %v212
  %v214 = vsel %vm208, %v213, %v212
  %vm215 = vcmp.ne.s32.totalorder %v165, 0
  %vm216 = vcmp.ne.s32.totalorder %v172, 0
  %vm217 = vcmp.ne.s32.totalorder %v179, 0
  %vm218 = vcmp.ne.s32.totalorder %v186, 0
  %vm219 = vcmp.ne.s32.totalorder %v193, 0
  %vm220 = vcmp.ne.s32.totalorder %v200, 0
  %vm221 = vcmp.ne.s32.totalorder %v207, 0
  %vm222 = vcmp.ne.s32.totalorder %v214, 0
  %vm223 = vcmp.lt.s32.totalorder %v165, 0
  %vm224 = vcmp.lt.s32.totalorder %v172, 0
  %vm225 = vcmp.lt.s32.totalorder %v179, 0
  %vm226 = vcmp.lt.s32.totalorder %v186, 0
  %vm227 = vcmp.lt.s32.totalorder %v193, 0
  %vm228 = vcmp.lt.s32.totalorder %v200, 0
  %vm229 = vcmp.lt.s32.totalorder %v207, 0
  %vm230 = vcmp.lt.s32.totalorder %v214, 0
  %vm231 = vmand %vm223, %vm215
  %vm232 = vmand %vm224, %vm216
  %vm233 = vmand %vm225, %vm217
  %vm234 = vmand %vm226, %vm218
  %vm235 = vmand %vm227, %vm219
  %vm236 = vmand %vm228, %vm220
  %vm237 = vmand %vm229, %vm221
  %vm238 = vmand %vm230, %vm222
  %v239 = vadd.s32 %v165, 32
  %v240 = vadd.s32 %v172, 32
  %v241 = vadd.s32 %v179, 32
  %v242 = vadd.s32 %v186, 32
  %v243 = vadd.s32 %v193, 32
  %v244 = vadd.s32 %v200, 32
  %v245 = vadd.s32 %v207, 32
  %v246 = vadd.s32 %v214, 32
  %v247 = vsel %vm231, %v239, %v165
  %v248 = vsel %vm232, %v240, %v172
  %v249 = vsel %vm233, %v241, %v179
  %v250 = vsel %vm234, %v242, %v186
  %v251 = vsel %vm235, %v243, %v193
  %v252 = vsel %vm236, %v244, %v200
  %v253 = vsel %vm237, %v245, %v207
  %v254 = vsel %vm238, %v246, %v214
  %vm255 = vcmp.ge.s32.totalorder %v247, 2
  %vm256 = vcmp.ge.s32.totalorder %v248, 2
  %vm257 = vcmp.ge.s32.totalorder %v249, 2
  %vm258 = vcmp.ge.s32.totalorder %v250, 2
  %vm259 = vcmp.ge.s32.totalorder %v251, 2
  %vm260 = vcmp.ge.s32.totalorder %v252, 2
  %vm261 = vcmp.ge.s32.totalorder %v253, 2
  %vm262 = vcmp.ge.s32.totalorder %v254, 2
  %v263 = vsel %vm255, 1, 0
  %v264 = vsel %vm256, 1, 0
  %v265 = vsel %vm257, 1, 0
  %v266 = vsel %vm258, 1, 0
  %v267 = vsel %vm259, 1, 0
  %v268 = vsel %vm260, 1, 0
  %v269 = vsel %vm261, 1, 0
  %v270 = vsel %vm262, 1, 0
  %v271 = vcvt.s32.f32 %v263
  %v272 = vcvt.s32.f32 %v264
  %v273 = vcvt.s32.f32 %v265
  %v274 = vcvt.s32.f32 %v266
  %v275 = vcvt.s32.f32 %v267
  %v276 = vcvt.s32.f32 %v268
  %v277 = vcvt.s32.f32 %v269
  %v278 = vcvt.s32.f32 %v270
  %vm279 = vcmp.ge.s32.totalorder %v247, 1
  %vm280 = vcmp.ge.s32.totalorder %v248, 1
  %vm281 = vcmp.ge.s32.totalorder %v249, 1
  %vm282 = vcmp.ge.s32.totalorder %v250, 1
  %vm283 = vcmp.ge.s32.totalorder %v251, 1
  %vm284 = vcmp.ge.s32.totalorder %v252, 1
  %vm285 = vcmp.ge.s32.totalorder %v253, 1
  %vm286 = vcmp.ge.s32.totalorder %v254, 1
  %v287 = vsel %vm279, 1, 0
  %v288 = vsel %vm280, 1, 0
  %v289 = vsel %vm281, 1, 0
  %v290 = vsel %vm282, 1, 0
  %v291 = vsel %vm283, 1, 0
  %v292 = vsel %vm284, 1, 0
  %v293 = vsel %vm285, 1, 0
  %v294 = vsel %vm286, 1, 0
  %v295 = vcvt.s32.f32 %v287
  %v296 = vcvt.s32.f32 %v288
  %v297 = vcvt.s32.f32 %v289
  %v298 = vcvt.s32.f32 %v290
  %v299 = vcvt.s32.f32 %v291
  %v300 = vcvt.s32.f32 %v292
  %v301 = vcvt.s32.f32 %v293
  %v302 = vcvt.s32.f32 %v294
  %vm303 = vcmp.lt.s32.totalorder %v247, 31
  %vm304 = vcmp.lt.s32.totalorder %v248, 31
  %vm305 = vcmp.lt.s32.totalorder %v249, 31
  %vm306 = vcmp.lt.s32.totalorder %v250, 31
  %vm307 = vcmp.lt.s32.totalorder %v251, 31
  %vm308 = vcmp.lt.s32.totalorder %v252, 31
  %vm309 = vcmp.lt.s32.totalorder %v253, 31
  %vm310 = vcmp.lt.s32.totalorder %v254, 31
  %v311 = vsel %vm303, 1, 0
  %v312 = vsel %vm304, 1, 0
  %v313 = vsel %vm305, 1, 0
  %v314 = vsel %vm306, 1, 0
  %v315 = vsel %vm307, 1, 0
  %v316 = vsel %vm308, 1, 0
  %v317 = vsel %vm309, 1, 0
  %v318 = vsel %vm310, 1, 0
  %v319 = vcvt.s32.f32 %v311
  %v320 = vcvt.s32.f32 %v312
  %v321 = vcvt.s32.f32 %v313
  %v322 = vcvt.s32.f32 %v314
  %v323 = vcvt.s32.f32 %v315
  %v324 = vcvt.s32.f32 %v316
  %v325 = vcvt.s32.f32 %v317
  %v326 = vcvt.s32.f32 %v318
  %vm327 = vcmp.lt.s32.totalorder %v247, 30
  %vm328 = vcmp.lt.s32.totalorder %v248, 30
  %vm329 = vcmp.lt.s32.totalorder %v249, 30
  %vm330 = vcmp.lt.s32.totalorder %v250, 30
  %vm331 = vcmp.lt.s32.totalorder %v251, 30
  %vm332 = vcmp.lt.s32.totalorder %v252, 30
  %vm333 = vcmp.lt.s32.totalorder %v253, 30
  %vm334 = vcmp.lt.s32.totalorder %v254, 30
  %v335 = vsel %vm327, 1, 0
  %v336 = vsel %vm328, 1, 0
  %v337 = vsel %vm329, 1, 0
  %v338 = vsel %vm330, 1, 0
  %v339 = vsel %vm331, 1, 0
  %v340 = vsel %vm332, 1, 0
  %v341 = vsel %vm333, 1, 0
  %v342 = vsel %vm334, 1, 0
  %v343 = vcvt.s32.f32 %v335
  %v344 = vcvt.s32.f32 %v336
  %v345 = vcvt.s32.f32 %v337
  %v346 = vcvt.s32.f32 %v338
  %v347 = vcvt.s32.f32 %v339
  %v348 = vcvt.s32.f32 %v340
  %v349 = vcvt.s32.f32 %v341
  %v350 = vcvt.s32.f32 %v342
  %351 = vst [vmem:[#allocation2] sm:$0xff] 0.0
  %352 = vst [vmem:[#allocation2 + $0x8] sm:$0xff] 0.0
  %353 = vst [vmem:[#allocation2 + $0x10] sm:$0xff] 0.0
  %354 = vst [vmem:[#allocation2 + $0x18] sm:$0xff] 0.0
  %355 = vst [vmem:[#allocation2 + $0x20] sm:$0xff] 0.0
  %356 = vst [vmem:[#allocation2 + $0x28] sm:$0xff] 0.0
  %357 = vst [vmem:[#allocation2 + $0x30] sm:$0xff] 0.0
  %358 = vst [vmem:[#allocation2 + $0x38] sm:$0xff] 0.0
  %359 = vst [vmem:[#allocation2 + $0x40] sm:$0xff] 0.0
  %360 = vst [vmem:[#allocation2 + $0x48] sm:$0xff] 0.0
  %361 = vst [vmem:[#allocation2 + $0x50] sm:$0xff] 0.0
  %362 = vst [vmem:[#allocation2 + $0x58] sm:$0xff] 0.0
  %363 = vst [vmem:[#allocation2 + $0x60] sm:$0xff] 0.0
  %364 = vst [vmem:[#allocation2 + $0x68] sm:$0xff] 0.0
  %365 = vst [vmem:[#allocation2 + $0x70] sm:$0xff] 0.0
  %366 = vst [vmem:[#allocation2 + $0x78] sm:$0xff] 0.0
  %367 = vst [vmem:[#allocation2 + $0x80] sm:$0xff] 0.0
  %368 = vst [vmem:[#allocation2 + $0x88] sm:$0xff] 0.0
  %369 = vst [vmem:[#allocation2 + $0x90] sm:$0xff] 0.0
  %370 = vst [vmem:[#allocation2 + $0x98] sm:$0xff] 0.0
  %371 = vst [vmem:[#allocation2 + $0xa0] sm:$0xff] 0.0
  %372 = vst [vmem:[#allocation2 + $0xa8] sm:$0xff] 0.0
  %373 = vst [vmem:[#allocation2 + $0xb0] sm:$0xff] 0.0
  %374 = vst [vmem:[#allocation2 + $0xb8] sm:$0xff] 0.0
  %375 = vst [vmem:[#allocation2 + $0xc0] sm:$0xff] 0.0
  %376 = vst [vmem:[#allocation2 + $0xc8] sm:$0xff] 0.0
  %377 = vst [vmem:[#allocation2 + $0xd0] sm:$0xff] 0.0
  %378 = vst [vmem:[#allocation2 + $0xd8] sm:$0xff] 0.0
  %379 = vst [vmem:[#allocation2 + $0xe0] sm:$0xff] 0.0
  %380 = vst [vmem:[#allocation2 + $0xe8] sm:$0xff] 0.0
  %381 = vst [vmem:[#allocation2 + $0xf0] sm:$0xff] 0.0
  %382 = vst [vmem:[#allocation2 + $0xf8] sm:$0xff] 0.0
  %383 = vst [vmem:[#allocation2 + $0x100] sm:$0xff] 0.0
  %384 = vst [vmem:[#allocation2 + $0x108] sm:$0xff] 0.0
  %385 = vst [vmem:[#allocation2 + $0x110] sm:$0xff] 0.0
  %386 = vst [vmem:[#allocation2 + $0x118] sm:$0xff] 0.0
  %387 = vst [vmem:[#allocation2 + $0x120] sm:$0xff] 0.0
  %388 = vst [vmem:[#allocation2 + $0x128] sm:$0xff] 0.0
  %389 = vst [vmem:[#allocation2 + $0x130] sm:$0xff] 0.0
  %390 = vst [vmem:[#allocation2 + $0x138] sm:$0xff] 0.0
  %391 = vst [vmem:[#allocation2 + $0x140] sm:$0xff] 0.0
  %392 = vst [vmem:[#allocation2 + $0x148] sm:$0xff] 0.0
  %393 = vst [vmem:[#allocation2 + $0x150] sm:$0xff] 0.0
  %394 = vst [vmem:[#allocation2 + $0x158] sm:$0xff] 0.0
  %395 = vst [vmem:[#allocation2 + $0x160] sm:$0xff] 0.0
  %396 = vst [vmem:[#allocation2 + $0x168] sm:$0xff] 0.0
  %397 = vst [vmem:[#allocation2 + $0x170] sm:$0xff] 0.0
  %398 = vst [vmem:[#allocation2 + $0x178] sm:$0xff] 0.0
  %399 = vst [vmem:[#allocation2 + $0x180] sm:$0xff] 0.0
  %400 = vst [vmem:[#allocation2 + $0x188] sm:$0xff] 0.0
  %401 = vst [vmem:[#allocation2 + $0x190] sm:$0xff] 0.0
  %402 = vst [vmem:[#allocation2 + $0x198] sm:$0xff] 0.0
  %403 = vst [vmem:[#allocation2 + $0x1a0] sm:$0xff] 0.0
  %404 = vst [vmem:[#allocation2 + $0x1a8] sm:$0xff] 0.0
  %405 = vst [vmem:[#allocation2 + $0x1b0] sm:$0xff] 0.0
  %406 = vst [vmem:[#allocation2 + $0x1b8] sm:$0xff] 0.0
  %407 = vst [vmem:[#allocation2 + $0x1c0] sm:$0xff] 0.0
  %408 = vst [vmem:[#allocation2 + $0x1c8] sm:$0xff] 0.0
  %409 = vst [vmem:[#allocation2 + $0x1d0] sm:$0xff] 0.0
  %410 = vst [vmem:[#allocation2 + $0x1d8] sm:$0xff] 0.0
  %411 = vst [vmem:[#allocation2 + $0x1e0] sm:$0xff] 0.0
  %412 = vst [vmem:[#allocation2 + $0x1e8] sm:$0xff] 0.0
  %413 = vst [vmem:[#allocation2 + $0x1f0] sm:$0xff] 0.0
  %414 = vst [vmem:[#allocation2 + $0x1f8] sm:$0xff] 0.0
  %415 = vst [vmem:[#allocation2 + $0x200] sm:$0xff] 0.0
  %416 = vst [vmem:[#allocation2 + $0x208] sm:$0xff] 0.0
  %417 = vst [vmem:[#allocation2 + $0x210] sm:$0xff] 0.0
  %418 = vst [vmem:[#allocation2 + $0x218] sm:$0xff] 0.0
  %419 = vst [vmem:[#allocation2 + $0x220] sm:$0xff] 0.0
  %420 = vst [vmem:[#allocation2 + $0x228] sm:$0xff] 0.0
  %421 = vst [vmem:[#allocation2 + $0x230] sm:$0xff] 0.0
  %422 = vst [vmem:[#allocation2 + $0x238] sm:$0xff] 0.0
  %423 = vst [vmem:[#allocation2 + $0x240] sm:$0xff] 0.0
  %424 = vst [vmem:[#allocation2 + $0x248] sm:$0xff] 0.0
  %425 = vst [vmem:[#allocation2 + $0x250] sm:$0xff] 0.0
  %426 = vst [vmem:[#allocation2 + $0x258] sm:$0xff] 0.0
  %427 = vst [vmem:[#allocation2 + $0x260] sm:$0xff] 0.0
  %428 = vst [vmem:[#allocation2 + $0x268] sm:$0xff] 0.0
  %429 = vst [vmem:[#allocation2 + $0x270] sm:$0xff] 0.0
  %430 = vst [vmem:[#allocation2 + $0x278] sm:$0xff] 0.0
  %431 = vst [vmem:[#allocation2 + $0x280] sm:$0xff] 0.0
  %432 = vst [vmem:[#allocation2 + $0x288] sm:$0xff] 0.0
  %433 = vst [vmem:[#allocation2 + $0x290] sm:$0xff] 0.0
  %434 = vst [vmem:[#allocation2 + $0x298] sm:$0xff] 0.0
  %435 = vst [vmem:[#allocation2 + $0x2a0] sm:$0xff] 0.0
  %436 = vst [vmem:[#allocation2 + $0x2a8] sm:$0xff] 0.0
  %437 = vst [vmem:[#allocation2 + $0x2b0] sm:$0xff] 0.0
  %438 = vst [vmem:[#allocation2 + $0x2b8] sm:$0xff] 0.0
  %439 = vst [vmem:[#allocation2 + $0x2c0] sm:$0xff] 0.0
  %440 = vst [vmem:[#allocation2 + $0x2c8] sm:$0xff] 0.0
  %441 = vst [vmem:[#allocation2 + $0x2d0] sm:$0xff] 0.0
  %442 = vst [vmem:[#allocation2 + $0x2d8] sm:$0xff] 0.0
  %443 = vst [vmem:[#allocation2 + $0x2e0] sm:$0xff] 0.0
  %444 = vst [vmem:[#allocation2 + $0x2e8] sm:$0xff] 0.0
  %445 = vst [vmem:[#allocation2 + $0x2f0] sm:$0xff] 0.0
  %446 = vst [vmem:[#allocation2 + $0x2f8] sm:$0xff] 0.0
  %447 = vst [vmem:[#allocation2 + $0x300] sm:$0xff] 0.0
  %448 = vst [vmem:[#allocation2 + $0x308] sm:$0xff] 0.0
  %449 = vst [vmem:[#allocation2 + $0x310] sm:$0xff] 0.0
  %450 = vst [vmem:[#allocation2 + $0x318] sm:$0xff] 0.0
  %451 = vst [vmem:[#allocation2 + $0x320] sm:$0xff] 0.0
  %452 = vst [vmem:[#allocation2 + $0x328] sm:$0xff] 0.0
  %453 = vst [vmem:[#allocation2 + $0x330] sm:$0xff] 0.0
  %454 = vst [vmem:[#allocation2 + $0x338] sm:$0xff] 0.0
  %455 = vst [vmem:[#allocation2 + $0x340] sm:$0xff] 0.0
  %456 = vst [vmem:[#allocation2 + $0x348] sm:$0xff] 0.0
  %457 = vst [vmem:[#allocation2 + $0x350] sm:$0xff] 0.0
  %458 = vst [vmem:[#allocation2 + $0x358] sm:$0xff] 0.0
  %459 = vst [vmem:[#allocation2 + $0x360] sm:$0xff] 0.0
  %460 = vst [vmem:[#allocation2 + $0x368] sm:$0xff] 0.0
  %461 = vst [vmem:[#allocation2 + $0x370] sm:$0xff] 0.0
  %462 = vst [vmem:[#allocation2 + $0x378] sm:$0xff] 0.0
  %463 = vst [vmem:[#allocation2 + $0x380] sm:$0xff] 0.0
  %464 = vst [vmem:[#allocation2 + $0x388] sm:$0xff] 0.0
  %465 = vst [vmem:[#allocation2 + $0x390] sm:$0xff] 0.0
  %466 = vst [vmem:[#allocation2 + $0x398] sm:$0xff] 0.0
  %467 = vst [vmem:[#allocation2 + $0x3a0] sm:$0xff] 0.0
  %468 = vst [vmem:[#allocation2 + $0x3a8] sm:$0xff] 0.0
  %469 = vst [vmem:[#allocation2 + $0x3b0] sm:$0xff] 0.0
  %470 = vst [vmem:[#allocation2 + $0x3b8] sm:$0xff] 0.0
  %471 = vst [vmem:[#allocation2 + $0x3c0] sm:$0xff] 0.0
  %472 = vst [vmem:[#allocation2 + $0x3c8] sm:$0xff] 0.0
  %473 = vst [vmem:[#allocation2 + $0x3d0] sm:$0xff] 0.0
  %474 = vst [vmem:[#allocation2 + $0x3d8] sm:$0xff] 0.0
  %475 = vst [vmem:[#allocation2 + $0x3e0] sm:$0xff] 0.0
  %476 = vst [vmem:[#allocation2 + $0x3e8] sm:$0xff] 0.0
  %477 = vst [vmem:[#allocation2 + $0x3f0] sm:$0xff] 0.0
  %478 = vst [vmem:[#allocation2 + $0x3f8] sm:$0xff] 0.0
  %479 = vst [vmem:[#allocation2 + $0x400] sm:$0xff] 0.0
  %480 = vst [vmem:[#allocation2 + $0x408] sm:$0xff] 0.0
  %481 = vst [vmem:[#allocation2 + $0x410] sm:$0xff] 0.0
  %482 = vst [vmem:[#allocation2 + $0x418] sm:$0xff] 0.0
  %483 = vst [vmem:[#allocation2 + $0x420] sm:$0xff] 0.0
  %484 = vst [vmem:[#allocation2 + $0x428] sm:$0xff] 0.0
  %485 = vst [vmem:[#allocation2 + $0x430] sm:$0xff] 0.0
  %486 = vst [vmem:[#allocation2 + $0x438] sm:$0xff] 0.0
  %487 = vst [vmem:[#allocation2 + $0x440] sm:$0xff] 0.0
  %488 = vst [vmem:[#allocation2 + $0x448] sm:$0xff] 0.0
  %489 = vst [vmem:[#allocation2 + $0x450] sm:$0xff] 0.0
  %490 = vst [vmem:[#allocation2 + $0x458] sm:$0xff] 0.0
  %491 = vst [vmem:[#allocation2 + $0x460] sm:$0xff] 0.0
  %492 = vst [vmem:[#allocation2 + $0x468] sm:$0xff] 0.0
  %493 = vst [vmem:[#allocation2 + $0x470] sm:$0xff] 0.0
  %494 = vst [vmem:[#allocation2 + $0x478] sm:$0xff] 0.0
  %495 = vst [vmem:[#allocation2 + $0x480] sm:$0xff] 0.0
  %496 = vst [vmem:[#allocation2 + $0x488] sm:$0xff] 0.0
  %497 = vst [vmem:[#allocation2 + $0x490] sm:$0xff] 0.0
  %498 = vst [vmem:[#allocation2 + $0x498] sm:$0xff] 0.0
  %499 = vst [vmem:[#allocation2 + $0x4a0] sm:$0xff] 0.0
  %500 = vst [vmem:[#allocation2 + $0x4a8] sm:$0xff] 0.0
  %501 = vst [vmem:[#allocation2 + $0x4b0] sm:$0xff] 0.0
  %502 = vst [vmem:[#allocation2 + $0x4b8] sm:$0xff] 0.0
  %503 = vst [vmem:[#allocation2 + $0x4c0] sm:$0xff] 0.0
  %504 = vst [vmem:[#allocation2 + $0x4c8] sm:$0xff] 0.0
  %505 = vst [vmem:[#allocation2 + $0x4d0] sm:$0xff] 0.0
  %506 = vst [vmem:[#allocation2 + $0x4d8] sm:$0xff] 0.0
  %507 = vst [vmem:[#allocation2 + $0x4e0] sm:$0xff] 0.0
  %508 = vst [vmem:[#allocation2 + $0x4e8] sm:$0xff] 0.0
  %509 = vst [vmem:[#allocation2 + $0x4f0] sm:$0xff] 0.0
  %510 = vst [vmem:[#allocation2 + $0x4f8] sm:$0xff] 0.0
  %511 = vst [vmem:[#allocation2 + $0x500] sm:$0xff] 0.0
  %512 = vst [vmem:[#allocation2 + $0x508] sm:$0xff] 0.0
  %513 = vst [vmem:[#allocation2 + $0x510] sm:$0xff] 0.0
  %514 = vst [vmem:[#allocation2 + $0x518] sm:$0xff] 0.0
  %515 = vst [vmem:[#allocation2 + $0x520] sm:$0xff] 0.0
  %516 = vst [vmem:[#allocation2 + $0x528] sm:$0xff] 0.0
  %517 = vst [vmem:[#allocation2 + $0x530] sm:$0xff] 0.0
  %518 = vst [vmem:[#allocation2 + $0x538] sm:$0xff] 0.0
  %519 = vst [vmem:[#allocation2 + $0x540] sm:$0xff] 0.0
  %520 = vst [vmem:[#allocation2 + $0x548] sm:$0xff] 0.0
  %521 = vst [vmem:[#allocation2 + $0x550] sm:$0xff] 0.0
  %522 = vst [vmem:[#allocation2 + $0x558] sm:$0xff] 0.0
  %523 = vst [vmem:[#allocation2 + $0x560] sm:$0xff] 0.0
  %524 = vst [vmem:[#allocation2 + $0x568] sm:$0xff] 0.0
  %525 = vst [vmem:[#allocation2 + $0x570] sm:$0xff] 0.0
  %526 = vst [vmem:[#allocation2 + $0x578] sm:$0xff] 0.0
  %527 = vst [vmem:[#allocation2 + $0x580] sm:$0xff] 0.0
  %528 = vst [vmem:[#allocation2 + $0x588] sm:$0xff] 0.0
  %529 = vst [vmem:[#allocation2 + $0x590] sm:$0xff] 0.0
  %530 = vst [vmem:[#allocation2 + $0x598] sm:$0xff] 0.0
  %531 = vst [vmem:[#allocation2 + $0x5a0] sm:$0xff] 0.0
  %532 = vst [vmem:[#allocation2 + $0x5a8] sm:$0xff] 0.0
  %533 = vst [vmem:[#allocation2 + $0x5b0] sm:$0xff] 0.0
  %534 = vst [vmem:[#allocation2 + $0x5b8] sm:$0xff] 0.0
  %535 = vst [vmem:[#allocation2 + $0x5c0] sm:$0xff] 0.0
  %536 = vst [vmem:[#allocation2 + $0x5c8] sm:$0xff] 0.0
  %537 = vst [vmem:[#allocation2 + $0x5d0] sm:$0xff] 0.0
  %538 = vst [vmem:[#allocation2 + $0x5d8] sm:$0xff] 0.0
  %539 = vst [vmem:[#allocation2 + $0x5e0] sm:$0xff] 0.0
  %540 = vst [vmem:[#allocation2 + $0x5e8] sm:$0xff] 0.0
  %541 = vst [vmem:[#allocation2 + $0x5f0] sm:$0xff] 0.0
  %542 = vst [vmem:[#allocation2 + $0x5f8] sm:$0xff] 0.0
  %543 = vst [vmem:[#allocation2 + $0x600] sm:$0xff] 0.0
  %544 = vst [vmem:[#allocation2 + $0x608] sm:$0xff] 0.0
  %545 = vst [vmem:[#allocation2 + $0x610] sm:$0xff] 0.0
  %546 = vst [vmem:[#allocation2 + $0x618] sm:$0xff] 0.0
  %547 = vst [vmem:[#allocation2 + $0x620] sm:$0xff] 0.0
  %548 = vst [vmem:[#allocation2 + $0x628] sm:$0xff] 0.0
  %549 = vst [vmem:[#allocation2 + $0x630] sm:$0xff] 0.0
  %550 = vst [vmem:[#allocation2 + $0x638] sm:$0xff] 0.0
  %v551 = vld [vmem:[%s0] sm:$0xff]
  %v552 = vld [vmem:[%s0 + $0x8] sm:$0xff]
  %v553 = vld [vmem:[%s0 + $0x10] sm:$0xff]
  %v554 = vld [vmem:[%s0 + $0x18] sm:$0xff]
  %v555 = vld [vmem:[%s0 + $0x20] sm:$0xf]
  %v564 = vcombine.low %v271, %v272
  %v565 = vcombine.low %v273, %v274
  %v566 = vcombine.low %v275, %v276
  %v567 = vcombine.low %v277, %v278
  %568 = vrot.lane.b32.xlu0 %v564, 30
  %v569 = vpop.permute.xlu0 %568
  %570 = vrot.lane.b32.xlu0 %v565, 30
  %v571 = vpop.permute.xlu0 %570
  %572 = vrot.lane.b32.xlu0 %v566, 30
  %v573 = vpop.permute.xlu0 %572
  %574 = vrot.lane.b32.xlu0 %v567, 30
  %v575 = vpop.permute.xlu0 %574
  %v576 = vrot.slane %v569, 4
  %v577 = vrot.slane %v571, 4
  %v578 = vrot.slane %v573, 4
  %v579 = vrot.slane %v575, 4
  %vm580 = vcmask 244736
  %v581 = vsel %vm580, %v576, %v569
  %vm582 = vcmask 1043456
  %v583 = vsel %vm582, %v576, %v577
  %v584 = vsel %vm580, %v583, %v571
  %v585 = vsel %vm582, %v577, %v578
  %v586 = vsel %vm580, %v585, %v573
  %v587 = vsel %vm582, %v578, %v579
  %v588 = vsel %vm580, %v587, %v575
  %v594 = vmul.f32 %v551, %v581
  %v595 = vmul.f32 %v552, %v584
  %v596 = vmul.f32 %v553, %v586
  %v597 = vmul.f32 %v554, %v588
  %v598 = vmul.f32 %v555, %v579
  %v604 = vcombine.high %v594, %v594
  %v605 = vcombine.high %v595, %v595
  %v606 = vcombine.high %v596, %v596
  %v607 = vcombine.high %v597, %v597
  %608 = vrot.lane.b32.xlu0 %v594, 98
  %v609 = vpop.permute.xlu0 %608
  %610 = vrot.lane.b32.xlu0 %v604, 98
  %v611 = vpop.permute.xlu0 %610
  %612 = vrot.lane.b32.xlu0 %v595, 98
  %v613 = vpop.permute.xlu0 %612
  %614 = vrot.lane.b32.xlu0 %v605, 98
  %v615 = vpop.permute.xlu0 %614
  %616 = vrot.lane.b32.xlu0 %v596, 98
  %v617 = vpop.permute.xlu0 %616
  %618 = vrot.lane.b32.xlu0 %v606, 98
  %v619 = vpop.permute.xlu0 %618
  %620 = vrot.lane.b32.xlu0 %v597, 98
  %v621 = vpop.permute.xlu0 %620
  %622 = vrot.lane.b32.xlu0 %v607, 98
  %v623 = vpop.permute.xlu0 %622
  %624 = vrot.lane.b32.xlu0 %v598, 98
  %v625 = vpop.permute.xlu0 %624
  %vm626 = vcmask 801792
  %v627 = vsel %vm626, %v609, %v611
  %v628 = vsel %vm626, %v611, %v613
  %v629 = vsel %vm626, %v613, %v615
  %v630 = vsel %vm626, %v615, %v617
  %v631 = vsel %vm626, %v617, %v619
  %v632 = vsel %vm626, %v619, %v621
  %v633 = vsel %vm626, %v621, %v623
  %v634 = vsel %vm626, %v623, %v625
  %643 = vst [vmem:[#allocation2] sm:$0xf] %v627
  %644 = vst [vmem:[#allocation2 + $0x8] sm:$0xf] %v628
  %645 = vst [vmem:[#allocation2 + $0x10] sm:$0xf] %v629
  %646 = vst [vmem:[#allocation2 + $0x18] sm:$0xf] %v630
  %647 = vst [vmem:[#allocation2 + $0x20] sm:$0xf] %v631
  %648 = vst [vmem:[#allocation2 + $0x28] sm:$0xf] %v632
  %649 = vst [vmem:[#allocation2 + $0x30] sm:$0xf] %v633
  %650 = vst [vmem:[#allocation2 + $0x38] sm:$0xf] %v634
  %v651 = vld [vmem:[%s0] sm:$0xff]
  %v652 = vld [vmem:[%s0 + $0x8] sm:$0xff]
  %v653 = vld [vmem:[%s0 + $0x10] sm:$0xff]
  %v654 = vld [vmem:[%s0 + $0x18] sm:$0xff]
  %v655 = vld [vmem:[%s0 + $0x20] sm:$0xf]
  %v664 = vcombine.low %v295, %v296
  %v665 = vcombine.low %v297, %v298
  %v666 = vcombine.low %v299, %v300
  %v667 = vcombine.low %v301, %v302
  %668 = vrot.lane.b32.xlu0 %v664, 31
  %v669 = vpop.permute.xlu0 %668
  %670 = vrot.lane.b32.xlu0 %v665, 31
  %v671 = vpop.permute.xlu0 %670
  %672 = vrot.lane.b32.xlu0 %v666, 31
  %v673 = vpop.permute.xlu0 %672
  %674 = vrot.lane.b32.xlu0 %v667, 31
  %v675 = vpop.permute.xlu0 %674
  %v676 = vrot.slane %v669, 4
  %v677 = vrot.slane %v671, 4
  %v678 = vrot.slane %v673, 4
  %v679 = vrot.slane %v675, 4
  %vm680 = vcmask 252928
  %v681 = vsel %vm680, %v676, %v669
  %v682 = vsel %vm582, %v676, %v677
  %v683 = vsel %vm680, %v682, %v671
  %v684 = vsel %vm582, %v677, %v678
  %v685 = vsel %vm680, %v684, %v673
  %v686 = vsel %vm582, %v678, %v679
  %v687 = vsel %vm680, %v686, %v675
  %v693 = vmul.f32 %v651, %v681
  %v694 = vmul.f32 %v652, %v683
  %v695 = vmul.f32 %v653, %v685
  %v696 = vmul.f32 %v654, %v687
  %v697 = vmul.f32 %v655, %v679
  %v703 = vcombine.high %v693, %v693
  %v704 = vcombine.high %v694, %v694
  %v705 = vcombine.high %v695, %v695
  %v706 = vcombine.high %v696, %v696
  %707 = vrot.lane.b32.xlu0 %v693, 97
  %v708 = vpop.permute.xlu0 %707
  %709 = vrot.lane.b32.xlu0 %v703, 97
  %v710 = vpop.permute.xlu0 %709
  %711 = vrot.lane.b32.xlu0 %v694, 97
  %v712 = vpop.permute.xlu0 %711
  %713 = vrot.lane.b32.xlu0 %v704, 97
  %v714 = vpop.permute.xlu0 %713
  %715 = vrot.lane.b32.xlu0 %v695, 97
  %v716 = vpop.permute.xlu0 %715
  %717 = vrot.lane.b32.xlu0 %v705, 97
  %v718 = vpop.permute.xlu0 %717
  %719 = vrot.lane.b32.xlu0 %v696, 97
  %v720 = vpop.permute.xlu0 %719
  %721 = vrot.lane.b32.xlu0 %v706, 97
  %v722 = vpop.permute.xlu0 %721
  %723 = vrot.lane.b32.xlu0 %v697, 97
  %v724 = vpop.permute.xlu0 %723
  %vm725 = vcmask 793600
  %v726 = vsel %vm725, %v708, %v710
  %v727 = vsel %vm725, %v710, %v712
  %v728 = vsel %vm725, %v712, %v714
  %v729 = vsel %vm725, %v714, %v716
  %v730 = vsel %vm725, %v716, %v718
  %v731 = vsel %vm725, %v718, %v720
  %v732 = vsel %vm725, %v720, %v722
  %v733 = vsel %vm725, %v722, %v724
  %742 = vst [vmem:[#allocation2 + $0x40] sm:$0xf] %v726
  %743 = vst [vmem:[#allocation2 + $0x48] sm:$0xf] %v727
  %744 = vst [vmem:[#allocation2 + $0x50] sm:$0xf] %v728
  %745 = vst [vmem:[#allocation2 + $0x58] sm:$0xf] %v729
  %746 = vst [vmem:[#allocation2 + $0x60] sm:$0xf] %v730
  %747 = vst [vmem:[#allocation2 + $0x68] sm:$0xf] %v731
  %748 = vst [vmem:[#allocation2 + $0x70] sm:$0xf] %v732
  %749 = vst [vmem:[#allocation2 + $0x78] sm:$0xf] %v733
  %v750 = vld [vmem:[%s0] sm:$0xff]
  %v751 = vld [vmem:[%s0 + $0x8] sm:$0xff]
  %v752 = vld [vmem:[%s0 + $0x10] sm:$0xff]
  %v753 = vld [vmem:[%s0 + $0x18] sm:$0xff]
  %v754 = vld [vmem:[%s0 + $0x20] sm:$0xf]
  %v760 = vcombine.high %v750, %v750
  %v761 = vcombine.high %v751, %v751
  %v762 = vcombine.high %v752, %v752
  %v763 = vcombine.high %v753, %v753
  %764 = vrot.lane.b32.xlu0 %v750, 96
  %v765 = vpop.permute.xlu0 %764
  %766 = vrot.lane.b32.xlu0 %v760, 96
  %v767 = vpop.permute.xlu0 %766
  %768 = vrot.lane.b32.xlu0 %v751, 96
  %v769 = vpop.permute.xlu0 %768
  %770 = vrot.lane.b32.xlu0 %v761, 96
  %v771 = vpop.permute.xlu0 %770
  %772 = vrot.lane.b32.xlu0 %v752, 96
  %v773 = vpop.permute.xlu0 %772
  %774 = vrot.lane.b32.xlu0 %v762, 96
  %v775 = vpop.permute.xlu0 %774
  %776 = vrot.lane.b32.xlu0 %v753, 96
  %v777 = vpop.permute.xlu0 %776
  %778 = vrot.lane.b32.xlu0 %v763, 96
  %v779 = vpop.permute.xlu0 %778
  %780 = vrot.lane.b32.xlu0 %v754, 96
  %v781 = vpop.permute.xlu0 %780
  %vm782 = vcmask 785408
  %v783 = vsel %vm782, %v765, %v767
  %v784 = vsel %vm782, %v767, %v769
  %v785 = vsel %vm782, %v769, %v771
  %v786 = vsel %vm782, %v771, %v773
  %v787 = vsel %vm782, %v773, %v775
  %v788 = vsel %vm782, %v775, %v777
  %v789 = vsel %vm782, %v777, %v779
  %v790 = vsel %vm782, %v779, %v781
  %799 = vst [vmem:[#allocation2 + $0x80] sm:$0xf] %v783
  %800 = vst [vmem:[#allocation2 + $0x88] sm:$0xf] %v784
  %801 = vst [vmem:[#allocation2 + $0x90] sm:$0xf] %v785
  %802 = vst [vmem:[#allocation2 + $0x98] sm:$0xf] %v786
  %803 = vst [vmem:[#allocation2 + $0xa0] sm:$0xf] %v787
  %804 = vst [vmem:[#allocation2 + $0xa8] sm:$0xf] %v788
  %805 = vst [vmem:[#allocation2 + $0xb0] sm:$0xf] %v789
  %806 = vst [vmem:[#allocation2 + $0xb8] sm:$0xf] %v790
  %v807 = vld [vmem:[%s0] sm:$0xff]
  %v808 = vld [vmem:[%s0 + $0x8] sm:$0xff]
  %v809 = vld [vmem:[%s0 + $0x10] sm:$0xff]
  %v810 = vld [vmem:[%s0 + $0x18] sm:$0xff]
  %v811 = vld [vmem:[%s0 + $0x20] sm:$0xf]
  %v820 = vcombine.low %v319, %v320
  %v821 = vcombine.low %v321, %v322
  %v822 = vcombine.low %v323, %v324
  %v823 = vcombine.low %v325, %v326
  %824 = vrot.lane.b32.xlu0 %v820, 33
  %v825 = vpop.permute.xlu0 %824
  %826 = vrot.lane.b32.xlu0 %v821, 33
  %v827 = vpop.permute.xlu0 %826
  %828 = vrot.lane.b32.xlu0 %v822, 33
  %v829 = vpop.permute.xlu0 %828
  %830 = vrot.lane.b32.xlu0 %v823, 33
  %v831 = vpop.permute.xlu0 %830
  %v832 = vrot.slane %v825, 4
  %v833 = vrot.slane %v827, 4
  %v834 = vrot.slane %v829, 4
  %v835 = vrot.slane %v831, 4
  %vm836 = vcmask 269312
  %v837 = vsel %vm836, %v832, %v825
  %v838 = vsel %vm582, %v832, %v833
  %v839 = vsel %vm836, %v838, %v827
  %v840 = vsel %vm582, %v833, %v834
  %v841 = vsel %vm836, %v840, %v829
  %v842 = vsel %vm582, %v834, %v835
  %v843 = vsel %vm836, %v842, %v831
  %v849 = vmul.f32 %v807, %v837
  %v850 = vmul.f32 %v808, %v839
  %v851 = vmul.f32 %v809, %v841
  %v852 = vmul.f32 %v810, %v843
  %v853 = vmul.f32 %v811, %v835
  %v859 = vcombine.high %v849, %v849
  %v860 = vcombine.high %v850, %v850
  %v861 = vcombine.high %v851, %v851
  %v862 = vcombine.high %v852, %v852
  %863 = vrot.lane.b32.xlu0 %v849, 95
  %v864 = vpop.permute.xlu0 %863
  %865 = vrot.lane.b32.xlu0 %v859, 95
  %v866 = vpop.permute.xlu0 %865
  %867 = vrot.lane.b32.xlu0 %v850, 95
  %v868 = vpop.permute.xlu0 %867
  %869 = vrot.lane.b32.xlu0 %v860, 95
  %v870 = vpop.permute.xlu0 %869
  %871 = vrot.lane.b32.xlu0 %v851, 95
  %v872 = vpop.permute.xlu0 %871
  %873 = vrot.lane.b32.xlu0 %v861, 95
  %v874 = vpop.permute.xlu0 %873
  %875 = vrot.lane.b32.xlu0 %v852, 95
  %v876 = vpop.permute.xlu0 %875
  %877 = vrot.lane.b32.xlu0 %v862, 95
  %v878 = vpop.permute.xlu0 %877
  %879 = vrot.lane.b32.xlu0 %v853, 95
  %v880 = vpop.permute.xlu0 %879
  %vm881 = vcmask 777216
  %v882 = vsel %vm881, %v864, %v866
  %v883 = vsel %vm881, %v866, %v868
  %v884 = vsel %vm881, %v868, %v870
  %v885 = vsel %vm881, %v870, %v872
  %v886 = vsel %vm881, %v872, %v874
  %v887 = vsel %vm881, %v874, %v876
  %v888 = vsel %vm881, %v876, %v878
  %v889 = vsel %vm881, %v878, %v880
  %898 = vst [vmem:[#allocation2 + $0xc0] sm:$0xf] %v882
  %899 = vst [vmem:[#allocation2 + $0xc8] sm:$0xf] %v883
  %900 = vst [vmem:[#allocation2 + $0xd0] sm:$0xf] %v884
  %901 = vst [vmem:[#allocation2 + $0xd8] sm:$0xf] %v885
  %902 = vst [vmem:[#allocation2 + $0xe0] sm:$0xf] %v886
  %903 = vst [vmem:[#allocation2 + $0xe8] sm:$0xf] %v887
  %904 = vst [vmem:[#allocation2 + $0xf0] sm:$0xf] %v888
  %905 = vst [vmem:[#allocation2 + $0xf8] sm:$0xf] %v889
  %v906 = vld [vmem:[%s0] sm:$0xff]
  %v907 = vld [vmem:[%s0 + $0x8] sm:$0xff]
  %v908 = vld [vmem:[%s0 + $0x10] sm:$0xff]
  %v909 = vld [vmem:[%s0 + $0x18] sm:$0xff]
  %v910 = vld [vmem:[%s0 + $0x20] sm:$0xf]
  %v919 = vcombine.low %v343, %v344
  %v920 = vcombine.low %v345, %v346
  %v921 = vcombine.low %v347, %v348
  %v922 = vcombine.low %v349, %v350
  %923 = vrot.lane.b32.xlu0 %v919, 34
  %v924 = vpop.permute.xlu0 %923
  %925 = vrot.lane.b32.xlu0 %v920, 34
  %v926 = vpop.permute.xlu0 %925
  %927 = vrot.lane.b32.xlu0 %v921, 34
  %v928 = vpop.permute.xlu0 %927
  %929 = vrot.lane.b32.xlu0 %v922, 34
  %v930 = vpop.permute.xlu0 %929
  %v931 = vrot.slane %v924, 4
  %v932 = vrot.slane %v926, 4
  %v933 = vrot.slane %v928, 4
  %v934 = vrot.slane %v930, 4
  %vm935 = vcmask 277504
  %v936 = vsel %vm935, %v931, %v924
  %v937 = vsel %vm582, %v931, %v932
  %v938 = vsel %vm935, %v937, %v926
  %v939 = vsel %vm582, %v932, %v933
  %v940 = vsel %vm935, %v939, %v928
  %v941 = vsel %vm582, %v933, %v934
  %v942 = vsel %vm935, %v941, %v930
  %v948 = vmul.f32 %v906, %v936
  %v949 = vmul.f32 %v907, %v938
  %v950 = vmul.f32 %v908, %v940
  %v951 = vmul.f32 %v909, %v942
  %v952 = vmul.f32 %v910, %v934
  %v958 = vcombine.high %v948, %v948
  %v959 = vcombine.high %v949, %v949
  %v960 = vcombine.high %v950, %v950
  %v961 = vcombine.high %v951, %v951
  %962 = vrot.lane.b32.xlu0 %v948, 94
  %v963 = vpop.permute.xlu0 %962
  %964 = vrot.lane.b32.xlu0 %v958, 94
  %v965 = vpop.permute.xlu0 %964
  %966 = vrot.lane.b32.xlu0 %v949, 94
  %v967 = vpop.permute.xlu0 %966
  %968 = vrot.lane.b32.xlu0 %v959, 94
  %v969 = vpop.permute.xlu0 %968
  %970 = vrot.lane.b32.xlu0 %v950, 94
  %v971 = vpop.permute.xlu0 %970
  %972 = vrot.lane.b32.xlu0 %v960, 94
  %v973 = vpop.permute.xlu0 %972
  %974 = vrot.lane.b32.xlu0 %v951, 94
  %v975 = vpop.permute.xlu0 %974
  %976 = vrot.lane.b32.xlu0 %v961, 94
  %v977 = vpop.permute.xlu0 %976
  %978 = vrot.lane.b32.xlu0 %v952, 94
  %v979 = vpop.permute.xlu0 %978
  %vm980 = vcmask 769024
  %v981 = vsel %vm980, %v963, %v965
  %v982 = vsel %vm980, %v965, %v967
  %v983 = vsel %vm980, %v967, %v969
  %v984 = vsel %vm980, %v969, %v971
  %v985 = vsel %vm980, %v971, %v973
  %v986 = vsel %vm980, %v973, %v975
  %v987 = vsel %vm980, %v975, %v977
  %v988 = vsel %vm980, %v977, %v979
  %997 = vst [vmem:[#allocation2 + $0x100] sm:$0xf] %v981
  %998 = vst [vmem:[#allocation2 + $0x108] sm:$0xf] %v982
  %999 = vst [vmem:[#allocation2 + $0x110] sm:$0xf] %v983
  %1000 = vst [vmem:[#allocation2 + $0x118] sm:$0xf] %v984
  %1001 = vst [vmem:[#allocation2 + $0x120] sm:$0xf] %v985
  %1002 = vst [vmem:[#allocation2 + $0x128] sm:$0xf] %v986
  %1003 = vst [vmem:[#allocation2 + $0x130] sm:$0xf] %v987
  %1004 = vst [vmem:[#allocation2 + $0x138] sm:$0xf] %v988
  %v1005 = vld [vmem:[%s0] sm:$0xff]
  %v1006 = vld [vmem:[%s0 + $0x8] sm:$0xff]
  %v1007 = vld [vmem:[%s0 + $0x10] sm:$0xff]
  %v1008 = vld [vmem:[%s0 + $0x18] sm:$0xff]
  %v1009 = vld [vmem:[%s0 + $0x20] sm:$0xf]
  %1010 = vrot.lane.b32.xlu0 %v564, 62
  %v1011 = vpop.permute.xlu0 %1010
  %1012 = vrot.lane.b32.xlu0 %v565, 62
  %v1013 = vpop.permute.xlu0 %1012
  %1014 = vrot.lane.b32.xlu0 %v566, 62
  %v1015 = vpop.permute.xlu0 %1014
  %1016 = vrot.lane.b32.xlu0 %v567, 62
  %v1017 = vpop.permute.xlu0 %1016
  %v1018 = vrot.slane %v1011, 4
  %v1019 = vrot.slane %v1013, 4
  %v1020 = vrot.slane %v1015, 4
  %v1021 = vrot.slane %v1017, 4
  %vm1022 = vcmask 506880
  %v1023 = vsel %vm1022, %v1018, %v1011
  %v1024 = vsel %vm582, %v1018, %v1019
  %v1025 = vsel %vm1022, %v1024, %v1013
  %v1026 = vsel %vm582, %v1019, %v1020
  %v1027 = vsel %vm1022, %v1026, %v1015
  %v1028 = vsel %vm582, %v1020, %v1021
  %v1029 = vsel %vm1022, %v1028, %v1017
  %v1035 = vmul.f32 %v1005, %v1023
  %v1036 = vmul.f32 %v1006, %v1025
  %v1037 = vmul.f32 %v1007, %v1027
  %v1038 = vmul.f32 %v1008, %v1029
  %v1039 = vmul.f32 %v1009, %v1021
  %v1045 = vcombine.high %v1035, %v1035
  %v1046 = vcombine.high %v1036, %v1036
  %v1047 = vcombine.high %v1037, %v1037
  %v1048 = vcombine.high %v1038, %v1038
  %1049 = vrot.lane.b32.xlu0 %v1035, 66
  %v1050 = vpop.permute.xlu0 %1049
  %1051 = vrot.lane.b32.xlu0 %v1045, 66
  %v1052 = vpop.permute.xlu0 %1051
  %1053 = vrot.lane.b32.xlu0 %v1036, 66
  %v1054 = vpop.permute.xlu0 %1053
  %1055 = vrot.lane.b32.xlu0 %v1046, 66
  %v1056 = vpop.permute.xlu0 %1055
  %1057 = vrot.lane.b32.xlu0 %v1037, 66
  %v1058 = vpop.permute.xlu0 %1057
  %1059 = vrot.lane.b32.xlu0 %v1047, 66
  %v1060 = vpop.permute.xlu0 %1059
  %1061 = vrot.lane.b32.xlu0 %v1038, 66
  %v1062 = vpop.permute.xlu0 %1061
  %1063 = vrot.lane.b32.xlu0 %v1048, 66
  %v1064 = vpop.permute.xlu0 %1063
  %1065 = vrot.lane.b32.xlu0 %v1039, 66
  %v1066 = vpop.permute.xlu0 %1065
  %vm1067 = vcmask 539648
  %v1068 = vsel %vm1067, %v1050, %v1052
  %v1069 = vsel %vm1067, %v1052, %v1054
  %v1070 = vsel %vm1067, %v1054, %v1056
  %v1071 = vsel %vm1067, %v1056, %v1058
  %v1072 = vsel %vm1067, %v1058, %v1060
  %v1073 = vsel %vm1067, %v1060, %v1062
  %v1074 = vsel %vm1067, %v1062, %v1064
  %v1075 = vsel %vm1067, %v1064, %v1066
  %1084 = vst [vmem:[#allocation2 + $0x140] sm:$0xf] %v1068
  %1085 = vst [vmem:[#allocation2 + $0x148] sm:$0xf] %v1069
  %1086 = vst [vmem:[#allocation2 + $0x150] sm:$0xf] %v1070
  %1087 = vst [vmem:[#allocation2 + $0x158] sm:$0xf] %v1071
  %1088 = vst [vmem:[#allocation2 + $0x160] sm:$0xf] %v1072
  %1089 = vst [vmem:[#allocation2 + $0x168] sm:$0xf] %v1073
  %1090 = vst [vmem:[#allocation2 + $0x170] sm:$0xf] %v1074
  %1091 = vst [vmem:[#allocation2 + $0x178] sm:$0xf] %v1075
  %v1092 = vld [vmem:[%s0] sm:$0xff]
  %v1093 = vld [vmem:[%s0 + $0x8] sm:$0xff]
  %v1094 = vld [vmem:[%s0 + $0x10] sm:$0xff]
  %v1095 = vld [vmem:[%s0 + $0x18] sm:$0xff]
  %v1096 = vld [vmem:[%s0 + $0x20] sm:$0xf]
  %1097 = vrot.lane.b32.xlu0 %v664, 63
  %v1098 = vpop.permute.xlu0 %1097
  %1099 = vrot.lane.b32.xlu0 %v665, 63
  %v1100 = vpop.permute.xlu0 %1099
  %1101 = vrot.lane.b32.xlu0 %v666, 63
  %v1102 = vpop.permute.xlu0 %1101
  %1103 = vrot.lane.b32.xlu0 %v667, 63
  %v1104 = vpop.permute.xlu0 %1103
  %v1105 = vrot.slane %v1098, 4
  %v1106 = vrot.slane %v1100, 4
  %v1107 = vrot.slane %v1102, 4
  %v1108 = vrot.slane %v1104, 4
  %vm1109 = vcmask 515072
  %v1110 = vsel %vm1109, %v1105, %v1098
  %v1111 = vsel %vm582, %v1105, %v1106
  %v1112 = vsel %vm1109, %v1111, %v1100
  %v1113 = vsel %vm582, %v1106, %v1107
  %v1114 = vsel %vm1109, %v1113, %v1102
  %v1115 = vsel %vm582, %v1107, %v1108
  %v1116 = vsel %vm1109, %v1115, %v1104
  %v1122 = vmul.f32 %v1092, %v1110
  %v1123 = vmul.f32 %v1093, %v1112
  %v1124 = vmul.f32 %v1094, %v1114
  %v1125 = vmul.f32 %v1095, %v1116
  %v1126 = vmul.f32 %v1096, %v1108
  %v1132 = vcombine.high %v1122, %v1122
  %v1133 = vcombine.high %v1123, %v1123
  %v1134 = vcombine.high %v1124, %v1124
  %v1135 = vcombine.high %v1125, %v1125
  %1136 = vrot.lane.b32.xlu0 %v1122, 65
  %v1137 = vpop.permute.xlu0 %1136
  %1138 = vrot.lane.b32.xlu0 %v1132, 65
  %v1139 = vpop.permute.xlu0 %1138
  %1140 = vrot.lane.b32.xlu0 %v1123, 65
  %v1141 = vpop.permute.xlu0 %1140
  %1142 = vrot.lane.b32.xlu0 %v1133, 65
  %v1143 = vpop.permute.xlu0 %1142
  %1144 = vrot.lane.b32.xlu0 %v1124, 65
  %v1145 = vpop.permute.xlu0 %1144
  %1146 = vrot.lane.b32.xlu0 %v1134, 65
  %v1147 = vpop.permute.xlu0 %1146
  %1148 = vrot.lane.b32.xlu0 %v1125, 65
  %v1149 = vpop.permute.xlu0 %1148
  %1150 = vrot.lane.b32.xlu0 %v1135, 65
  %v1151 = vpop.permute.xlu0 %1150
  %1152 = vrot.lane.b32.xlu0 %v1126, 65
  %v1153 = vpop.permute.xlu0 %1152
  %vm1154 = vcmask 531456
  %v1155 = vsel %vm1154, %v1137, %v1139
  %v1156 = vsel %vm1154, %v1139, %v1141
  %v1157 = vsel %vm1154, %v1141, %v1143
  %v1158 = vsel %vm1154, %v1143, %v1145
  %v1159 = vsel %vm1154, %v1145, %v1147
  %v1160 = vsel %vm1154, %v1147, %v1149
  %v1161 = vsel %vm1154, %v1149, %v1151
  %v1162 = vsel %vm1154, %v1151, %v1153
  %1171 = vst [vmem:[#allocation2 + $0x180] sm:$0xf] %v1155
  %1172 = vst [vmem:[#allocation2 + $0x188] sm:$0xf] %v1156
  %1173 = vst [vmem:[#allocation2 + $0x190] sm:$0xf] %v1157
  %1174 = vst [vmem:[#allocation2 + $0x198] sm:$0xf] %v1158
  %1175 = vst [vmem:[#allocation2 + $0x1a0] sm:$0xf] %v1159
  %1176 = vst [vmem:[#allocation2 + $0x1a8] sm:$0xf] %v1160
  %1177 = vst [vmem:[#allocation2 + $0x1b0] sm:$0xf] %v1161
  %1178 = vst [vmem:[#allocation2 + $0x1b8] sm:$0xf] %v1162
  %v1179 = vld [vmem:[%s0] sm:$0xff]
  %v1180 = vld [vmem:[%s0 + $0x8] sm:$0xff]
  %v1181 = vld [vmem:[%s0 + $0x10] sm:$0xff]
  %v1182 = vld [vmem:[%s0 + $0x18] sm:$0xff]
  %v1183 = vld [vmem:[%s0 + $0x20] sm:$0xf]
  %v1189 = vcombine.high %v1179, %v1179
  %v1190 = vcombine.high %v1180, %v1180
  %v1191 = vcombine.high %v1181, %v1181
  %v1192 = vcombine.high %v1182, %v1182
  %1193 = vrot.lane.b32.xlu0 %v1179, 64
  %v1194 = vpop.permute.xlu0 %1193
  %1195 = vrot.lane.b32.xlu0 %v1189, 64
  %v1196 = vpop.permute.xlu0 %1195
  %1197 = vrot.lane.b32.xlu0 %v1180, 64
  %v1198 = vpop.permute.xlu0 %1197
  %1199 = vrot.lane.b32.xlu0 %v1190, 64
  %v1200 = vpop.permute.xlu0 %1199
  %1201 = vrot.lane.b32.xlu0 %v1181, 64
  %v1202 = vpop.permute.xlu0 %1201
  %1203 = vrot.lane.b32.xlu0 %v1191, 64
  %v1204 = vpop.permute.xlu0 %1203
  %1205 = vrot.lane.b32.xlu0 %v1182, 64
  %v1206 = vpop.permute.xlu0 %1205
  %1207 = vrot.lane.b32.xlu0 %v1192, 64
  %v1208 = vpop.permute.xlu0 %1207
  %1209 = vrot.lane.b32.xlu0 %v1183, 64
  %v1210 = vpop.permute.xlu0 %1209
  %vm1211 = vcmask 523264
  %v1212 = vsel %vm1211, %v1194, %v1196
  %v1213 = vsel %vm1211, %v1196, %v1198
  %v1214 = vsel %vm1211, %v1198, %v1200
  %v1215 = vsel %vm1211, %v1200, %v1202
  %v1216 = vsel %vm1211, %v1202, %v1204
  %v1217 = vsel %vm1211, %v1204, %v1206
  %v1218 = vsel %vm1211, %v1206, %v1208
  %v1219 = vsel %vm1211, %v1208, %v1210
  %1228 = vst [vmem:[#allocation2 + $0x1c0] sm:$0xf] %v1212
  %1229 = vst [vmem:[#allocation2 + $0x1c8] sm:$0xf] %v1213
  %1230 = vst [vmem:[#allocation2 + $0x1d0] sm:$0xf] %v1214
  %1231 = vst [vmem:[#allocation2 + $0x1d8] sm:$0xf] %v1215
  %1232 = vst [vmem:[#allocation2 + $0x1e0] sm:$0xf] %v1216
  %1233 = vst [vmem:[#allocation2 + $0x1e8] sm:$0xf] %v1217
  %1234 = vst [vmem:[#allocation2 + $0x1f0] sm:$0xf] %v1218
  %1235 = vst [vmem:[#allocation2 + $0x1f8] sm:$0xf] %v1219
  %v1236 = vld [vmem:[%s0] sm:$0xff]
  %v1237 = vld [vmem:[%s0 + $0x8] sm:$0xff]
  %v1238 = vld [vmem:[%s0 + $0x10] sm:$0xff]
  %v1239 = vld [vmem:[%s0 + $0x18] sm:$0xff]
  %v1240 = vld [vmem:[%s0 + $0x20] sm:$0xf]
  %1241 = vrot.lane.b32.xlu0 %v820, 65
  %v1242 = vpop.permute.xlu0 %1241
  %1243 = vrot.lane.b32.xlu0 %v821, 65
  %v1244 = vpop.permute.xlu0 %1243
  %1245 = vrot.lane.b32.xlu0 %v822, 65
  %v1246 = vpop.permute.xlu0 %1245
  %1247 = vrot.lane.b32.xlu0 %v823, 65
  %v1248 = vpop.permute.xlu0 %1247
  %v1249 = vrot.slane %v1242, 4
  %v1250 = vrot.slane %v1244, 4
  %v1251 = vrot.slane %v1246, 4
  %v1252 = vrot.slane %v1248, 4
  %v1253 = vsel %vm1154, %v1249, %v1242
  %v1254 = vsel %vm582, %v1249, %v1250
  %v1255 = vsel %vm1154, %v1254, %v1244
  %v1256 = vsel %vm582, %v1250, %v1251
  %v1257 = vsel %vm1154, %v1256, %v1246
  %v1258 = vsel %vm582, %v1251, %v1252
  %v1259 = vsel %vm1154, %v1258, %v1248
  %v1265 = vmul.f32 %v1236, %v1253
  %v1266 = vmul.f32 %v1237, %v1255
  %v1267 = vmul.f32 %v1238, %v1257
  %v1268 = vmul.f32 %v1239, %v1259
  %v1269 = vmul.f32 %v1240, %v1252
  %v1275 = vcombine.high %v1265, %v1265
  %v1276 = vcombine.high %v1266, %v1266
  %v1277 = vcombine.high %v1267, %v1267
  %v1278 = vcombine.high %v1268, %v1268
  %1279 = vrot.lane.b32.xlu0 %v1265, 63
  %v1280 = vpop.permute.xlu0 %1279
  %1281 = vrot.lane.b32.xlu0 %v1275, 63
  %v1282 = vpop.permute.xlu0 %1281
  %1283 = vrot.lane.b32.xlu0 %v1266, 63
  %v1284 = vpop.permute.xlu0 %1283
  %1285 = vrot.lane.b32.xlu0 %v1276, 63
  %v1286 = vpop.permute.xlu0 %1285
  %1287 = vrot.lane.b32.xlu0 %v1267, 63
  %v1288 = vpop.permute.xlu0 %1287
  %1289 = vrot.lane.b32.xlu0 %v1277, 63
  %v1290 = vpop.permute.xlu0 %1289
  %1291 = vrot.lane.b32.xlu0 %v1268, 63
  %v1292 = vpop.permute.xlu0 %1291
  %1293 = vrot.lane.b32.xlu0 %v1278, 63
  %v1294 = vpop.permute.xlu0 %1293
  %1295 = vrot.lane.b32.xlu0 %v1269, 63
  %v1296 = vpop.permute.xlu0 %1295
  %v1297 = vsel %vm1109, %v1280, %v1282
  %v1298 = vsel %vm1109, %v1282, %v1284
  %v1299 = vsel %vm1109, %v1284, %v1286
  %v1300 = vsel %vm1109, %v1286, %v1288
  %v1301 = vsel %vm1109, %v1288, %v1290
  %v1302 = vsel %vm1109, %v1290, %v1292
  %v1303 = vsel %vm1109, %v1292, %v1294
  %v1304 = vsel %vm1109, %v1294, %v1296
  %1313 = vst [vmem:[#allocation2 + $0x200] sm:$0xf] %v1297
  %1314 = vst [vmem:[#allocation2 + $0x208] sm:$0xf] %v1298
  %1315 = vst [vmem:[#allocation2 + $0x210] sm:$0xf] %v1299
  %1316 = vst [vmem:[#allocation2 + $0x218] sm:$0xf] %v1300
  %1317 = vst [vmem:[#allocation2 + $0x220] sm:$0xf] %v1301
  %1318 = vst [vmem:[#allocation2 + $0x228] sm:$0xf] %v1302
  %1319 = vst [vmem:[#allocation2 + $0x230] sm:$0xf] %v1303
  %1320 = vst [vmem:[#allocation2 + $0x238] sm:$0xf] %v1304
  %v1321 = vld [vmem:[%s0] sm:$0xff]
  %v1322 = vld [vmem:[%s0 + $0x8] sm:$0xff]
  %v1323 = vld [vmem:[%s0 + $0x10] sm:$0xff]
  %v1324 = vld [vmem:[%s0 + $0x18] sm:$0xff]
  %v1325 = vld [vmem:[%s0 + $0x20] sm:$0xf]
  %1326 = vrot.lane.b32.xlu0 %v919, 66
  %v1327 = vpop.permute.xlu0 %1326
  %1328 = vrot.lane.b32.xlu0 %v920, 66
  %v1329 = vpop.permute.xlu0 %1328
  %1330 = vrot.lane.b32.xlu0 %v921, 66
  %v1331 = vpop.permute.xlu0 %1330
  %1332 = vrot.lane.b32.xlu0 %v922, 66
  %v1333 = vpop.permute.xlu0 %1332
  %v1334 = vrot.slane %v1327, 4
  %v1335 = vrot.slane %v1329, 4
  %v1336 = vrot.slane %v1331, 4
  %v1337 = vrot.slane %v1333, 4
  %v1338 = vsel %vm1067, %v1334, %v1327
  %v1339 = vsel %vm582, %v1334, %v1335
  %v1340 = vsel %vm1067, %v1339, %v1329
  %v1341 = vsel %vm582, %v1335, %v1336
  %v1342 = vsel %vm1067, %v1341, %v1331
  %v1343 = vsel %vm582, %v1336, %v1337
  %v1344 = vsel %vm1067, %v1343, %v1333
  %v1350 = vmul.f32 %v1321, %v1338
  %v1351 = vmul.f32 %v1322, %v1340
  %v1352 = vmul.f32 %v1323, %v1342
  %v1353 = vmul.f32 %v1324, %v1344
  %v1354 = vmul.f32 %v1325, %v1337
  %v1360 = vcombine.high %v1350, %v1350
  %v1361 = vcombine.high %v1351, %v1351
  %v1362 = vcombine.high %v1352, %v1352
  %v1363 = vcombine.high %v1353, %v1353
  %1364 = vrot.lane.b32.xlu0 %v1350, 62
  %v1365 = vpop.permute.xlu0 %1364
  %1366 = vrot.lane.b32.xlu0 %v1360, 62
  %v1367 = vpop.permute.xlu0 %1366
  %1368 = vrot.lane.b32.xlu0 %v1351, 62
  %v1369 = vpop.permute.xlu0 %1368
  %1370 = vrot.lane.b32.xlu0 %v1361, 62
  %v1371 = vpop.permute.xlu0 %1370
  %1372 = vrot.lane.b32.xlu0 %v1352, 62
  %v1373 = vpop.permute.xlu0 %1372
  %1374 = vrot.lane.b32.xlu0 %v1362, 62
  %v1375 = vpop.permute.xlu0 %1374
  %1376 = vrot.lane.b32.xlu0 %v1353, 62
  %v1377 = vpop.permute.xlu0 %1376
  %1378 = vrot.lane.b32.xlu0 %v1363, 62
  %v1379 = vpop.permute.xlu0 %1378
  %1380 = vrot.lane.b32.xlu0 %v1354, 62
  %v1381 = vpop.permute.xlu0 %1380
  %v1382 = vsel %vm1022, %v1365, %v1367
  %v1383 = vsel %vm1022, %v1367, %v1369
  %v1384 = vsel %vm1022, %v1369, %v1371
  %v1385 = vsel %vm1022, %v1371, %v1373
  %v1386 = vsel %vm1022, %v1373, %v1375
  %v1387 = vsel %vm1022, %v1375, %v1377
  %v1388 = vsel %vm1022, %v1377, %v1379
  %v1389 = vsel %vm1022, %v1379, %v1381
  %1398 = vst [vmem:[#allocation2 + $0x240] sm:$0xf] %v1382
  %1399 = vst [vmem:[#allocation2 + $0x248] sm:$0xf] %v1383
  %1400 = vst [vmem:[#allocation2 + $0x250] sm:$0xf] %v1384
  %1401 = vst [vmem:[#allocation2 + $0x258] sm:$0xf] %v1385
  %1402 = vst [vmem:[#allocation2 + $0x260] sm:$0xf] %v1386
  %1403 = vst [vmem:[#allocation2 + $0x268] sm:$0xf] %v1387
  %1404 = vst [vmem:[#allocation2 + $0x270] sm:$0xf] %v1388
  %1405 = vst [vmem:[#allocation2 + $0x278] sm:$0xf] %v1389
  %v1406 = vld [vmem:[%s0] sm:$0xff]
  %v1407 = vld [vmem:[%s0 + $0x8] sm:$0xff]
  %v1408 = vld [vmem:[%s0 + $0x10] sm:$0xff]
  %v1409 = vld [vmem:[%s0 + $0x18] sm:$0xff]
  %v1410 = vld [vmem:[%s0 + $0x20] sm:$0xf]
  %1411 = vrot.lane.b32.xlu0 %v564, 94
  %v1412 = vpop.permute.xlu0 %1411
  %1413 = vrot.lane.b32.xlu0 %v565, 94
  %v1414 = vpop.permute.xlu0 %1413
  %1415 = vrot.lane.b32.xlu0 %v566, 94
  %v1416 = vpop.permute.xlu0 %1415
  %1417 = vrot.lane.b32.xlu0 %v567, 94
  %v1418 = vpop.permute.xlu0 %1417
  %v1419 = vrot.slane %v1412, 4
  %v1420 = vrot.slane %v1414, 4
  %v1421 = vrot.slane %v1416, 4
  %v1422 = vrot.slane %v1418, 4
  %v1423 = vsel %vm980, %v1419, %v1412
  %v1424 = vsel %vm582, %v1419, %v1420
  %v1425 = vsel %vm980, %v1424, %v1414
  %v1426 = vsel %vm582, %v1420, %v1421
  %v1427 = vsel %vm980, %v1426, %v1416
  %v1428 = vsel %vm582, %v1421, %v1422
  %v1429 = vsel %vm980, %v1428, %v1418
  %v1435 = vmul.f32 %v1406, %v1423
  %v1436 = vmul.f32 %v1407, %v1425
  %v1437 = vmul.f32 %v1408, %v1427
  %v1438 = vmul.f32 %v1409, %v1429
  %v1439 = vmul.f32 %v1410, %v1422
  %v1445 = vcombine.high %v1435, %v1435
  %v1446 = vcombine.high %v1436, %v1436
  %v1447 = vcombine.high %v1437, %v1437
  %v1448 = vcombine.high %v1438, %v1438
  %1449 = vrot.lane.b32.xlu0 %v1435, 34
  %v1450 = vpop.permute.xlu0 %1449
  %1451 = vrot.lane.b32.xlu0 %v1445, 34
  %v1452 = vpop.permute.xlu0 %1451
  %1453 = vrot.lane.b32.xlu0 %v1436, 34
  %v1454 = vpop.permute.xlu0 %1453
  %1455 = vrot.lane.b32.xlu0 %v1446, 34
  %v1456 = vpop.permute.xlu0 %1455
  %1457 = vrot.lane.b32.xlu0 %v1437, 34
  %v1458 = vpop.permute.xlu0 %1457
  %1459 = vrot.lane.b32.xlu0 %v1447, 34
  %v1460 = vpop.permute.xlu0 %1459
  %1461 = vrot.lane.b32.xlu0 %v1438, 34
  %v1462 = vpop.permute.xlu0 %1461
  %1463 = vrot.lane.b32.xlu0 %v1448, 34
  %v1464 = vpop.permute.xlu0 %1463
  %1465 = vrot.lane.b32.xlu0 %v1439, 34
  %v1466 = vpop.permute.xlu0 %1465
  %v1467 = vsel %vm935, %v1450, %v1452
  %v1468 = vsel %vm935, %v1452, %v1454
  %v1469 = vsel %vm935, %v1454, %v1456
  %v1470 = vsel %vm935, %v1456, %v1458
  %v1471 = vsel %vm935, %v1458, %v1460
  %v1472 = vsel %vm935, %v1460, %v1462
  %v1473 = vsel %vm935, %v1462, %v1464
  %v1474 = vsel %vm935, %v1464, %v1466
  %1483 = vst [vmem:[#allocation2 + $0x280] sm:$0xf] %v1467
  %1484 = vst [vmem:[#allocation2 + $0x288] sm:$0xf] %v1468
  %1485 = vst [vmem:[#allocation2 + $0x290] sm:$0xf] %v1469
  %1486 = vst [vmem:[#allocation2 + $0x298] sm:$0xf] %v1470
  %1487 = vst [vmem:[#allocation2 + $0x2a0] sm:$0xf] %v1471
  %1488 = vst [vmem:[#allocation2 + $0x2a8] sm:$0xf] %v1472
  %1489 = vst [vmem:[#allocation2 + $0x2b0] sm:$0xf] %v1473
  %1490 = vst [vmem:[#allocation2 + $0x2b8] sm:$0xf] %v1474
  %v1491 = vld [vmem:[%s0] sm:$0xff]
  %v1492 = vld [vmem:[%s0 + $0x8] sm:$0xff]
  %v1493 = vld [vmem:[%s0 + $0x10] sm:$0xff]
  %v1494 = vld [vmem:[%s0 + $0x18] sm:$0xff]
  %v1495 = vld [vmem:[%s0 + $0x20] sm:$0xf]
  %1496 = vrot.lane.b32.xlu0 %v664, 95
  %v1497 = vpop.permute.xlu0 %1496
  %1498 = vrot.lane.b32.xlu0 %v665, 95
  %v1499 = vpop.permute.xlu0 %1498
  %1500 = vrot.lane.b32.xlu0 %v666, 95
  %v1501 = vpop.permute.xlu0 %1500
  %1502 = vrot.lane.b32.xlu0 %v667, 95
  %v1503 = vpop.permute.xlu0 %1502
  %v1504 = vrot.slane %v1497, 4
  %v1505 = vrot.slane %v1499, 4
  %v1506 = vrot.slane %v1501, 4
  %v1507 = vrot.slane %v1503, 4
  %v1508 = vsel %vm881, %v1504, %v1497
  %v1509 = vsel %vm582, %v1504, %v1505
  %v1510 = vsel %vm881, %v1509, %v1499
  %v1511 = vsel %vm582, %v1505, %v1506
  %v1512 = vsel %vm881, %v1511, %v1501
  %v1513 = vsel %vm582, %v1506, %v1507
  %v1514 = vsel %vm881, %v1513, %v1503
  %v1520 = vmul.f32 %v1491, %v1508
  %v1521 = vmul.f32 %v1492, %v1510
  %v1522 = vmul.f32 %v1493, %v1512
  %v1523 = vmul.f32 %v1494, %v1514
  %v1524 = vmul.f32 %v1495, %v1507
  %v1530 = vcombine.high %v1520, %v1520
  %v1531 = vcombine.high %v1521, %v1521
  %v1532 = vcombine.high %v1522, %v1522
  %v1533 = vcombine.high %v1523, %v1523
  %1534 = vrot.lane.b32.xlu0 %v1520, 33
  %v1535 = vpop.permute.xlu0 %1534
  %1536 = vrot.lane.b32.xlu0 %v1530, 33
  %v1537 = vpop.permute.xlu0 %1536
  %1538 = vrot.lane.b32.xlu0 %v1521, 33
  %v1539 = vpop.permute.xlu0 %1538
  %1540 = vrot.lane.b32.xlu0 %v1531, 33
  %v1541 = vpop.permute.xlu0 %1540
  %1542 = vrot.lane.b32.xlu0 %v1522, 33
  %v1543 = vpop.permute.xlu0 %1542
  %1544 = vrot.lane.b32.xlu0 %v1532, 33
  %v1545 = vpop.permute.xlu0 %1544
  %1546 = vrot.lane.b32.xlu0 %v1523, 33
  %v1547 = vpop.permute.xlu0 %1546
  %1548 = vrot.lane.b32.xlu0 %v1533, 33
  %v1549 = vpop.permute.xlu0 %1548
  %1550 = vrot.lane.b32.xlu0 %v1524, 33
  %v1551 = vpop.permute.xlu0 %1550
  %v1552 = vsel %vm836, %v1535, %v1537
  %v1553 = vsel %vm836, %v1537, %v1539
  %v1554 = vsel %vm836, %v1539, %v1541
  %v1555 = vsel %vm836, %v1541, %v1543
  %v1556 = vsel %vm836, %v1543, %v1545
  %v1557 = vsel %vm836, %v1545, %v1547
  %v1558 = vsel %vm836, %v1547, %v1549
  %v1559 = vsel %vm836, %v1549, %v1551
  %1568 = vst [vmem:[#allocation2 + $0x2c0] sm:$0xf] %v1552
  %1569 = vst [vmem:[#allocation2 + $0x2c8] sm:$0xf] %v1553
  %1570 = vst [vmem:[#allocation2 + $0x2d0] sm:$0xf] %v1554
  %1571 = vst [vmem:[#allocation2 + $0x2d8] sm:$0xf] %v1555
  %1572 = vst [vmem:[#allocation2 + $0x2e0] sm:$0xf] %v1556
  %1573 = vst [vmem:[#allocation2 + $0x2e8] sm:$0xf] %v1557
  %1574 = vst [vmem:[#allocation2 + $0x2f0] sm:$0xf] %v1558
  %1575 = vst [vmem:[#allocation2 + $0x2f8] sm:$0xf] %v1559
  %v1576 = vld [vmem:[%s0] sm:$0xff]
  %v1577 = vld [vmem:[%s0 + $0x8] sm:$0xff]
  %v1578 = vld [vmem:[%s0 + $0x10] sm:$0xff]
  %v1579 = vld [vmem:[%s0 + $0x18] sm:$0xff]
  %v1580 = vld [vmem:[%s0 + $0x20] sm:$0xf]
  %v1586 = vcombine.high %v1576, %v1576
  %v1587 = vcombine.high %v1577, %v1577
  %v1588 = vcombine.high %v1578, %v1578
  %v1589 = vcombine.high %v1579, %v1579
  %1590 = vrot.lane.b32.xlu0 %v1576, 32
  %v1591 = vpop.permute.xlu0 %1590
  %1592 = vrot.lane.b32.xlu0 %v1586, 32
  %v1593 = vpop.permute.xlu0 %1592
  %1594 = vrot.lane.b32.xlu0 %v1577, 32
  %v1595 = vpop.permute.xlu0 %1594
  %1596 = vrot.lane.b32.xlu0 %v1587, 32
  %v1597 = vpop.permute.xlu0 %1596
  %1598 = vrot.lane.b32.xlu0 %v1578, 32
  %v1599 = vpop.permute.xlu0 %1598
  %1600 = vrot.lane.b32.xlu0 %v1588, 32
  %v1601 = vpop.permute.xlu0 %1600
  %1602 = vrot.lane.b32.xlu0 %v1579, 32
  %v1603 = vpop.permute.xlu0 %1602
  %1604 = vrot.lane.b32.xlu0 %v1589, 32
  %v1605 = vpop.permute.xlu0 %1604
  %1606 = vrot.lane.b32.xlu0 %v1580, 32
  %v1607 = vpop.permute.xlu0 %1606
  %vm1608 = vcmask 261120
  %v1609 = vsel %vm1608, %v1591, %v1593
  %v1610 = vsel %vm1608, %v1593, %v1595
  %v1611 = vsel %vm1608, %v1595, %v1597
  %v1612 = vsel %vm1608, %v1597, %v1599
  %v1613 = vsel %vm1608, %v1599, %v1601
  %v1614 = vsel %vm1608, %v1601, %v1603
  %v1615 = vsel %vm1608, %v1603, %v1605
  %v1616 = vsel %vm1608, %v1605, %v1607
  %1625 = vst [vmem:[#allocation2 + $0x300] sm:$0xf] %v1609
  %1626 = vst [vmem:[#allocation2 + $0x308] sm:$0xf] %v1610
  %1627 = vst [vmem:[#allocation2 + $0x310] sm:$0xf] %v1611
  %1628 = vst [vmem:[#allocation2 + $0x318] sm:$0xf] %v1612
  %1629 = vst [vmem:[#allocation2 + $0x320] sm:$0xf] %v1613
  %1630 = vst [vmem:[#allocation2 + $0x328] sm:$0xf] %v1614
  %1631 = vst [vmem:[#allocation2 + $0x330] sm:$0xf] %v1615
  %1632 = vst [vmem:[#allocation2 + $0x338] sm:$0xf] %v1616
  %v1633 = vld [vmem:[%s0] sm:$0xff]
  %v1634 = vld [vmem:[%s0 + $0x8] sm:$0xff]
  %v1635 = vld [vmem:[%s0 + $0x10] sm:$0xff]
  %v1636 = vld [vmem:[%s0 + $0x18] sm:$0xff]
  %v1637 = vld [vmem:[%s0 + $0x20] sm:$0xf]
  %1638 = vrot.lane.b32.xlu0 %v820, 97
  %v1639 = vpop.permute.xlu0 %1638
  %1640 = vrot.lane.b32.xlu0 %v821, 97
  %v1641 = vpop.permute.xlu0 %1640
  %1642 = vrot.lane.b32.xlu0 %v822, 97
  %v1643 = vpop.permute.xlu0 %1642
  %1644 = vrot.lane.b32.xlu0 %v823, 97
  %v1645 = vpop.permute.xlu0 %1644
  %v1646 = vrot.slane %v1639, 4
  %v1647 = vrot.slane %v1641, 4
  %v1648 = vrot.slane %v1643, 4
  %v1649 = vrot.slane %v1645, 4
  %v1650 = vsel %vm725, %v1646, %v1639
  %v1651 = vsel %vm582, %v1646, %v1647
  %v1652 = vsel %vm725, %v1651, %v1641
  %v1653 = vsel %vm582, %v1647, %v1648
  %v1654 = vsel %vm725, %v1653, %v1643
  %v1655 = vsel %vm582, %v1648, %v1649
  %v1656 = vsel %vm725, %v1655, %v1645
  %v1662 = vmul.f32 %v1633, %v1650
  %v1663 = vmul.f32 %v1634, %v1652
  %v1664 = vmul.f32 %v1635, %v1654
  %v1665 = vmul.f32 %v1636, %v1656
  %v1666 = vmul.f32 %v1637, %v1649
  %v1672 = vcombine.high %v1662, %v1662
  %v1673 = vcombine.high %v1663, %v1663
  %v1674 = vcombine.high %v1664, %v1664
  %v1675 = vcombine.high %v1665, %v1665
  %1676 = vrot.lane.b32.xlu0 %v1662, 31
  %v1677 = vpop.permute.xlu0 %1676
  %1678 = vrot.lane.b32.xlu0 %v1672, 31
  %v1679 = vpop.permute.xlu0 %1678
  %1680 = vrot.lane.b32.xlu0 %v1663, 31
  %v1681 = vpop.permute.xlu0 %1680
  %1682 = vrot.lane.b32.xlu0 %v1673, 31
  %v1683 = vpop.permute.xlu0 %1682
  %1684 = vrot.lane.b32.xlu0 %v1664, 31
  %v1685 = vpop.permute.xlu0 %1684
  %1686 = vrot.lane.b32.xlu0 %v1674, 31
  %v1687 = vpop.permute.xlu0 %1686
  %1688 = vrot.lane.b32.xlu0 %v1665, 31
  %v1689 = vpop.permute.xlu0 %1688
  %1690 = vrot.lane.b32.xlu0 %v1675, 31
  %v1691 = vpop.permute.xlu0 %1690
  %1692 = vrot.lane.b32.xlu0 %v1666, 31
  %v1693 = vpop.permute.xlu0 %1692
  %v1694 = vsel %vm680, %v1677, %v1679
  %v1695 = vsel %vm680, %v1679, %v1681
  %v1696 = vsel %vm680, %v1681, %v1683
  %v1697 = vsel %vm680, %v1683, %v1685
  %v1698 = vsel %vm680, %v1685, %v1687
  %v1699 = vsel %vm680, %v1687, %v1689
  %v1700 = vsel %vm680, %v1689, %v1691
  %v1701 = vsel %vm680, %v1691, %v1693
  %1710 = vst [vmem:[#allocation2 + $0x340] sm:$0xf] %v1694
  %1711 = vst [vmem:[#allocation2 + $0x348] sm:$0xf] %v1695
  %1712 = vst [vmem:[#allocation2 + $0x350] sm:$0xf] %v1696
  %1713 = vst [vmem:[#allocation2 + $0x358] sm:$0xf] %v1697
  %1714 = vst [vmem:[#allocation2 + $0x360] sm:$0xf] %v1698
  %1715 = vst [vmem:[#allocation2 + $0x368] sm:$0xf] %v1699
  %1716 = vst [vmem:[#allocation2 + $0x370] sm:$0xf] %v1700
  %1717 = vst [vmem:[#allocation2 + $0x378] sm:$0xf] %v1701
  %v1718 = vld [vmem:[%s0] sm:$0xff]
  %v1719 = vld [vmem:[%s0 + $0x8] sm:$0xff]
  %v1720 = vld [vmem:[%s0 + $0x10] sm:$0xff]
  %v1721 = vld [vmem:[%s0 + $0x18] sm:$0xff]
  %v1722 = vld [vmem:[%s0 + $0x20] sm:$0xf]
  %1723 = vrot.lane.b32.xlu0 %v919, 98
  %v1724 = vpop.permute.xlu0 %1723
  %1725 = vrot.lane.b32.xlu0 %v920, 98
  %v1726 = vpop.permute.xlu0 %1725
  %1727 = vrot.lane.b32.xlu0 %v921, 98
  %v1728 = vpop.permute.xlu0 %1727
  %1729 = vrot.lane.b32.xlu0 %v922, 98
  %v1730 = vpop.permute.xlu0 %1729
  %v1731 = vrot.slane %v1724, 4
  %v1732 = vrot.slane %v1726, 4
  %v1733 = vrot.slane %v1728, 4
  %v1734 = vrot.slane %v1730, 4
  %v1735 = vsel %vm626, %v1731, %v1724
  %v1736 = vsel %vm582, %v1731, %v1732
  %v1737 = vsel %vm626, %v1736, %v1726
  %v1738 = vsel %vm582, %v1732, %v1733
  %v1739 = vsel %vm626, %v1738, %v1728
  %v1740 = vsel %vm582, %v1733, %v1734
  %v1741 = vsel %vm626, %v1740, %v1730
  %v1747 = vmul.f32 %v1718, %v1735
  %v1748 = vmul.f32 %v1719, %v1737
  %v1749 = vmul.f32 %v1720, %v1739
  %v1750 = vmul.f32 %v1721, %v1741
  %v1751 = vmul.f32 %v1722, %v1734
  %v1757 = vcombine.high %v1747, %v1747
  %v1758 = vcombine.high %v1748, %v1748
  %v1759 = vcombine.high %v1749, %v1749
  %v1760 = vcombine.high %v1750, %v1750
  %1761 = vrot.lane.b32.xlu0 %v1747, 30
  %v1762 = vpop.permute.xlu0 %1761
  %1763 = vrot.lane.b32.xlu0 %v1757, 30
  %v1764 = vpop.permute.xlu0 %1763
  %1765 = vrot.lane.b32.xlu0 %v1748, 30
  %v1766 = vpop.permute.xlu0 %1765
  %1767 = vrot.lane.b32.xlu0 %v1758, 30
  %v1768 = vpop.permute.xlu0 %1767
  %1769 = vrot.lane.b32.xlu0 %v1749, 30
  %v1770 = vpop.permute.xlu0 %1769
  %1771 = vrot.lane.b32.xlu0 %v1759, 30
  %v1772 = vpop.permute.xlu0 %1771
  %1773 = vrot.lane.b32.xlu0 %v1750, 30
  %v1774 = vpop.permute.xlu0 %1773
  %1775 = vrot.lane.b32.xlu0 %v1760, 30
  %v1776 = vpop.permute.xlu0 %1775
  %1777 = vrot.lane.b32.xlu0 %v1751, 30
  %v1778 = vpop.permute.xlu0 %1777
  %v1779 = vsel %vm580, %v1762, %v1764
  %v1780 = vsel %vm580, %v1764, %v1766
  %v1781 = vsel %vm580, %v1766, %v1768
  %v1782 = vsel %vm580, %v1768, %v1770
  %v1783 = vsel %vm580, %v1770, %v1772
  %v1784 = vsel %vm580, %v1772, %v1774
  %v1785 = vsel %vm580, %v1774, %v1776
  %v1786 = vsel %vm580, %v1776, %v1778
  %1795 = vst [vmem:[#allocation2 + $0x380] sm:$0xf] %v1779
  %1796 = vst [vmem:[#allocation2 + $0x388] sm:$0xf] %v1780
  %1797 = vst [vmem:[#allocation2 + $0x390] sm:$0xf] %v1781
  %1798 = vst [vmem:[#allocation2 + $0x398] sm:$0xf] %v1782
  %1799 = vst [vmem:[#allocation2 + $0x3a0] sm:$0xf] %v1783
  %1800 = vst [vmem:[#allocation2 + $0x3a8] sm:$0xf] %v1784
  %1801 = vst [vmem:[#allocation2 + $0x3b0] sm:$0xf] %v1785
  %1802 = vst [vmem:[#allocation2 + $0x3b8] sm:$0xf] %v1786
  %v1803 = vld [vmem:[%s0] sm:$0xff]
  %v1804 = vld [vmem:[%s0 + $0x8] sm:$0xff]
  %v1805 = vld [vmem:[%s0 + $0x10] sm:$0xff]
  %v1806 = vld [vmem:[%s0 + $0x18] sm:$0xff]
  %v1807 = vld [vmem:[%s0 + $0x20] sm:$0xf]
  %1808 = vrot.lane.b32.xlu0 %v564, 126
  %v1809 = vpop.permute.xlu0 %1808
  %1810 = vrot.lane.b32.xlu0 %v565, 126
  %v1811 = vpop.permute.xlu0 %1810
  %1812 = vrot.lane.b32.xlu0 %v566, 126
  %v1813 = vpop.permute.xlu0 %1812
  %1814 = vrot.lane.b32.xlu0 %v567, 126
  %v1815 = vpop.permute.xlu0 %1814
  %v1816 = vrot.slane %v1809, 4
  %v1817 = vrot.slane %v1811, 4
  %v1818 = vrot.slane %v1813, 4
  %v1819 = vrot.slane %v1815, 4
  %vm1820 = vcmask 1031168
  %v1821 = vsel %vm1820, %v1816, %v1809
  %v1822 = vsel %vm582, %v1816, %v1817
  %v1823 = vsel %vm1820, %v1822, %v1811
  %v1824 = vsel %vm582, %v1817, %v1818
  %v1825 = vsel %vm1820, %v1824, %v1813
  %v1826 = vsel %vm582, %v1818, %v1819
  %v1827 = vsel %vm1820, %v1826, %v1815
  %v1833 = vmul.f32 %v1803, %v1821
  %v1834 = vmul.f32 %v1804, %v1823
  %v1835 = vmul.f32 %v1805, %v1825
  %v1836 = vmul.f32 %v1806, %v1827
  %v1837 = vmul.f32 %v1807, %v1819
  %v1843 = vcombine.high %v1833, %v1833
  %v1844 = vcombine.high %v1834, %v1834
  %v1845 = vcombine.high %v1835, %v1835
  %v1846 = vcombine.high %v1836, %v1836
  %1847 = vrot.lane.b32.xlu0 %v1833, 2
  %v1848 = vpop.permute.xlu0 %1847
  %1849 = vrot.lane.b32.xlu0 %v1843, 2
  %v1850 = vpop.permute.xlu0 %1849
  %1851 = vrot.lane.b32.xlu0 %v1834, 2
  %v1852 = vpop.permute.xlu0 %1851
  %1853 = vrot.lane.b32.xlu0 %v1844, 2
  %v1854 = vpop.permute.xlu0 %1853
  %1855 = vrot.lane.b32.xlu0 %v1835, 2
  %v1856 = vpop.permute.xlu0 %1855
  %1857 = vrot.lane.b32.xlu0 %v1845, 2
  %v1858 = vpop.permute.xlu0 %1857
  %1859 = vrot.lane.b32.xlu0 %v1836, 2
  %v1860 = vpop.permute.xlu0 %1859
  %1861 = vrot.lane.b32.xlu0 %v1846, 2
  %v1862 = vpop.permute.xlu0 %1861
  %1863 = vrot.lane.b32.xlu0 %v1837, 2
  %v1864 = vpop.permute.xlu0 %1863
  %vm1865 = vcmask 15360
  %v1866 = vsel %vm1865, %v1848, %v1850
  %v1867 = vsel %vm1865, %v1850, %v1852
  %v1868 = vsel %vm1865, %v1852, %v1854
  %v1869 = vsel %vm1865, %v1854, %v1856
  %v1870 = vsel %vm1865, %v1856, %v1858
  %v1871 = vsel %vm1865, %v1858, %v1860
  %v1872 = vsel %vm1865, %v1860, %v1862
  %v1873 = vsel %vm1865, %v1862, %v1864
  %1882 = vst [vmem:[#allocation2 + $0x3c0] sm:$0xf] %v1866
  %1883 = vst [vmem:[#allocation2 + $0x3c8] sm:$0xf] %v1867
  %1884 = vst [vmem:[#allocation2 + $0x3d0] sm:$0xf] %v1868
  %1885 = vst [vmem:[#allocation2 + $0x3d8] sm:$0xf] %v1869
  %1886 = vst [vmem:[#allocation2 + $0x3e0] sm:$0xf] %v1870
  %1887 = vst [vmem:[#allocation2 + $0x3e8] sm:$0xf] %v1871
  %1888 = vst [vmem:[#allocation2 + $0x3f0] sm:$0xf] %v1872
  %1889 = vst [vmem:[#allocation2 + $0x3f8] sm:$0xf] %v1873
  %v1890 = vld [vmem:[%s0] sm:$0xff]
  %v1891 = vld [vmem:[%s0 + $0x8] sm:$0xff]
  %v1892 = vld [vmem:[%s0 + $0x10] sm:$0xff]
  %v1893 = vld [vmem:[%s0 + $0x18] sm:$0xff]
  %v1894 = vld [vmem:[%s0 + $0x20] sm:$0xf]
  %1895 = vrot.lane.b32.xlu0 %v664, 127
  %v1896 = vpop.permute.xlu0 %1895
  %1897 = vrot.lane.b32.xlu0 %v665, 127
  %v1898 = vpop.permute.xlu0 %1897
  %1899 = vrot.lane.b32.xlu0 %v666, 127
  %v1900 = vpop.permute.xlu0 %1899
  %1901 = vrot.lane.b32.xlu0 %v667, 127
  %v1902 = vpop.permute.xlu0 %1901
  %v1903 = vrot.slane %v1896, 4
  %v1904 = vrot.slane %v1898, 4
  %v1905 = vrot.slane %v1900, 4
  %v1906 = vrot.slane %v1902, 4
  %vm1907 = vcmask 1039360
  %v1908 = vsel %vm1907, %v1903, %v1896
  %v1909 = vsel %vm582, %v1903, %v1904
  %v1910 = vsel %vm1907, %v1909, %v1898
  %v1911 = vsel %vm582, %v1904, %v1905
  %v1912 = vsel %vm1907, %v1911, %v1900
  %v1913 = vsel %vm582, %v1905, %v1906
  %v1914 = vsel %vm1907, %v1913, %v1902
  %v1920 = vmul.f32 %v1890, %v1908
  %v1921 = vmul.f32 %v1891, %v1910
  %v1922 = vmul.f32 %v1892, %v1912
  %v1923 = vmul.f32 %v1893, %v1914
  %v1924 = vmul.f32 %v1894, %v1906
  %v1930 = vcombine.high %v1920, %v1920
  %v1931 = vcombine.high %v1921, %v1921
  %v1932 = vcombine.high %v1922, %v1922
  %v1933 = vcombine.high %v1923, %v1923
  %1934 = vrot.lane.b32.xlu0 %v1920, 1
  %v1935 = vpop.permute.xlu0 %1934
  %1936 = vrot.lane.b32.xlu0 %v1930, 1
  %v1937 = vpop.permute.xlu0 %1936
  %1938 = vrot.lane.b32.xlu0 %v1921, 1
  %v1939 = vpop.permute.xlu0 %1938
  %1940 = vrot.lane.b32.xlu0 %v1931, 1
  %v1941 = vpop.permute.xlu0 %1940
  %1942 = vrot.lane.b32.xlu0 %v1922, 1
  %v1943 = vpop.permute.xlu0 %1942
  %1944 = vrot.lane.b32.xlu0 %v1932, 1
  %v1945 = vpop.permute.xlu0 %1944
  %1946 = vrot.lane.b32.xlu0 %v1923, 1
  %v1947 = vpop.permute.xlu0 %1946
  %1948 = vrot.lane.b32.xlu0 %v1933, 1
  %v1949 = vpop.permute.xlu0 %1948
  %1950 = vrot.lane.b32.xlu0 %v1924, 1
  %v1951 = vpop.permute.xlu0 %1950
  %vm1952 = vcmask 7168
  %v1953 = vsel %vm1952, %v1935, %v1937
  %v1954 = vsel %vm1952, %v1937, %v1939
  %v1955 = vsel %vm1952, %v1939, %v1941
  %v1956 = vsel %vm1952, %v1941, %v1943
  %v1957 = vsel %vm1952, %v1943, %v1945
  %v1958 = vsel %vm1952, %v1945, %v1947
  %v1959 = vsel %vm1952, %v1947, %v1949
  %v1960 = vsel %vm1952, %v1949, %v1951
  %1969 = vst [vmem:[#allocation2 + $0x400] sm:$0xf] %v1953
  %1970 = vst [vmem:[#allocation2 + $0x408] sm:$0xf] %v1954
  %1971 = vst [vmem:[#allocation2 + $0x410] sm:$0xf] %v1955
  %1972 = vst [vmem:[#allocation2 + $0x418] sm:$0xf] %v1956
  %1973 = vst [vmem:[#allocation2 + $0x420] sm:$0xf] %v1957
  %1974 = vst [vmem:[#allocation2 + $0x428] sm:$0xf] %v1958
  %1975 = vst [vmem:[#allocation2 + $0x430] sm:$0xf] %v1959
  %1976 = vst [vmem:[#allocation2 + $0x438] sm:$0xf] %v1960
  %v1977 = vld [vmem:[%s0 + $0x4] sm:$0xff]
  %v1978 = vld [vmem:[%s0 + $0xc] sm:$0xff]
  %v1979 = vld [vmem:[%s0 + $0x14] sm:$0xff]
  %v1980 = vld [vmem:[%s0 + $0x1c] sm:$0xff]
  %v1985 = vcombine.high %v1977, %v1977
  %v1986 = vcombine.high %v1978, %v1978
  %v1987 = vcombine.high %v1979, %v1979
  %v1988 = vcombine.high %v1980, %v1980
  %1993 = vst [vmem:[#allocation2 + $0x440] sm:$0xf] %v1977
  %1994 = vst [vmem:[#allocation2 + $0x448] sm:$0xf] %v1985
  %1995 = vst [vmem:[#allocation2 + $0x450] sm:$0xf] %v1978
  %1996 = vst [vmem:[#allocation2 + $0x458] sm:$0xf] %v1986
  %1997 = vst [vmem:[#allocation2 + $0x460] sm:$0xf] %v1979
  %1998 = vst [vmem:[#allocation2 + $0x468] sm:$0xf] %v1987
  %1999 = vst [vmem:[#allocation2 + $0x470] sm:$0xf] %v1980
  %2000 = vst [vmem:[#allocation2 + $0x478] sm:$0xf] %v1988
  %v2001 = vld [vmem:[%s0 + $0x4] sm:$0xff]
  %v2002 = vld [vmem:[%s0 + $0xc] sm:$0xff]
  %v2003 = vld [vmem:[%s0 + $0x14] sm:$0xff]
  %v2004 = vld [vmem:[%s0 + $0x1c] sm:$0xff]
  %v2005 = vld [vmem:[%s0 + $0x24] sm:$0xf]
  %2006 = vrot.lane.b32.xlu0 %v820, 1
  %v2007 = vpop.permute.xlu0 %2006
  %2008 = vrot.lane.b32.xlu0 %v821, 1
  %v2009 = vpop.permute.xlu0 %2008
  %2010 = vrot.lane.b32.xlu0 %v822, 1
  %v2011 = vpop.permute.xlu0 %2010
  %2012 = vrot.lane.b32.xlu0 %v823, 1
  %v2013 = vpop.permute.xlu0 %2012
  %v2014 = vrot.slane %v2007, 4
  %v2015 = vrot.slane %v2009, 4
  %v2016 = vrot.slane %v2011, 4
  %v2017 = vrot.slane %v2013, 4
  %v2018 = vsel %vm1952, %v2014, %v2007
  %v2019 = vsel %vm582, %v2014, %v2015
  %v2020 = vsel %vm1952, %v2019, %v2009
  %v2021 = vsel %vm582, %v2015, %v2016
  %v2022 = vsel %vm1952, %v2021, %v2011
  %v2023 = vsel %vm582, %v2016, %v2017
  %v2024 = vsel %vm1952, %v2023, %v2013
  %v2030 = vmul.f32 %v2001, %v2018
  %v2031 = vmul.f32 %v2002, %v2020
  %v2032 = vmul.f32 %v2003, %v2022
  %v2033 = vmul.f32 %v2004, %v2024
  %v2034 = vmul.f32 %v2005, %v2017
  %v2040 = vcombine.high %v2030, %v2030
  %v2041 = vcombine.high %v2031, %v2031
  %v2042 = vcombine.high %v2032, %v2032
  %v2043 = vcombine.high %v2033, %v2033
  %2044 = vrot.lane.b32.xlu0 %v2030, 127
  %v2045 = vpop.permute.xlu0 %2044
  %2046 = vrot.lane.b32.xlu0 %v2040, 127
  %v2047 = vpop.permute.xlu0 %2046
  %2048 = vrot.lane.b32.xlu0 %v2031, 127
  %v2049 = vpop.permute.xlu0 %2048
  %2050 = vrot.lane.b32.xlu0 %v2041, 127
  %v2051 = vpop.permute.xlu0 %2050
  %2052 = vrot.lane.b32.xlu0 %v2032, 127
  %v2053 = vpop.permute.xlu0 %2052
  %2054 = vrot.lane.b32.xlu0 %v2042, 127
  %v2055 = vpop.permute.xlu0 %2054
  %2056 = vrot.lane.b32.xlu0 %v2033, 127
  %v2057 = vpop.permute.xlu0 %2056
  %2058 = vrot.lane.b32.xlu0 %v2043, 127
  %v2059 = vpop.permute.xlu0 %2058
  %2060 = vrot.lane.b32.xlu0 %v2034, 127
  %v2061 = vpop.permute.xlu0 %2060
  %v2062 = vsel %vm1907, %v2045, %v2047
  %v2063 = vsel %vm1907, %v2047, %v2049
  %v2064 = vsel %vm1907, %v2049, %v2051
  %v2065 = vsel %vm1907, %v2051, %v2053
  %v2066 = vsel %vm1907, %v2053, %v2055
  %v2067 = vsel %vm1907, %v2055, %v2057
  %v2068 = vsel %vm1907, %v2057, %v2059
  %v2069 = vsel %vm1907, %v2059, %v2061
  %2078 = vst [vmem:[#allocation2 + $0x480] sm:$0xf] %v2062
  %2079 = vst [vmem:[#allocation2 + $0x488] sm:$0xf] %v2063
  %2080 = vst [vmem:[#allocation2 + $0x490] sm:$0xf] %v2064
  %2081 = vst [vmem:[#allocation2 + $0x498] sm:$0xf] %v2065
  %2082 = vst [vmem:[#allocation2 + $0x4a0] sm:$0xf] %v2066
  %2083 = vst [vmem:[#allocation2 + $0x4a8] sm:$0xf] %v2067
  %2084 = vst [vmem:[#allocation2 + $0x4b0] sm:$0xf] %v2068
  %2085 = vst [vmem:[#allocation2 + $0x4b8] sm:$0xf] %v2069
  %v2086 = vld [vmem:[%s0 + $0x4] sm:$0xff]
  %v2087 = vld [vmem:[%s0 + $0xc] sm:$0xff]
  %v2088 = vld [vmem:[%s0 + $0x14] sm:$0xff]
  %v2089 = vld [vmem:[%s0 + $0x1c] sm:$0xff]
  %v2090 = vld [vmem:[%s0 + $0x24] sm:$0xf]
  %2091 = vrot.lane.b32.xlu0 %v919, 2
  %v2092 = vpop.permute.xlu0 %2091
  %2093 = vrot.lane.b32.xlu0 %v920, 2
  %v2094 = vpop.permute.xlu0 %2093
  %2095 = vrot.lane.b32.xlu0 %v921, 2
  %v2096 = vpop.permute.xlu0 %2095
  %2097 = vrot.lane.b32.xlu0 %v922, 2
  %v2098 = vpop.permute.xlu0 %2097
  %v2099 = vrot.slane %v2092, 4
  %v2100 = vrot.slane %v2094, 4
  %v2101 = vrot.slane %v2096, 4
  %v2102 = vrot.slane %v2098, 4
  %v2103 = vsel %vm1865, %v2099, %v2092
  %v2104 = vsel %vm582, %v2099, %v2100
  %v2105 = vsel %vm1865, %v2104, %v2094
  %v2106 = vsel %vm582, %v2100, %v2101
  %v2107 = vsel %vm1865, %v2106, %v2096
  %v2108 = vsel %vm582, %v2101, %v2102
  %v2109 = vsel %vm1865, %v2108, %v2098
  %v2115 = vmul.f32 %v2086, %v2103
  %v2116 = vmul.f32 %v2087, %v2105
  %v2117 = vmul.f32 %v2088, %v2107
  %v2118 = vmul.f32 %v2089, %v2109
  %v2119 = vmul.f32 %v2090, %v2102
  %v2125 = vcombine.high %v2115, %v2115
  %v2126 = vcombine.high %v2116, %v2116
  %v2127 = vcombine.high %v2117, %v2117
  %v2128 = vcombine.high %v2118, %v2118
  %2129 = vrot.lane.b32.xlu0 %v2115, 126
  %v2130 = vpop.permute.xlu0 %2129
  %2131 = vrot.lane.b32.xlu0 %v2125, 126
  %v2132 = vpop.permute.xlu0 %2131
  %2133 = vrot.lane.b32.xlu0 %v2116, 126
  %v2134 = vpop.permute.xlu0 %2133
  %2135 = vrot.lane.b32.xlu0 %v2126, 126
  %v2136 = vpop.permute.xlu0 %2135
  %2137 = vrot.lane.b32.xlu0 %v2117, 126
  %v2138 = vpop.permute.xlu0 %2137
  %2139 = vrot.lane.b32.xlu0 %v2127, 126
  %v2140 = vpop.permute.xlu0 %2139
  %2141 = vrot.lane.b32.xlu0 %v2118, 126
  %v2142 = vpop.permute.xlu0 %2141
  %2143 = vrot.lane.b32.xlu0 %v2128, 126
  %v2144 = vpop.permute.xlu0 %2143
  %2145 = vrot.lane.b32.xlu0 %v2119, 126
  %v2146 = vpop.permute.xlu0 %2145
  %v2147 = vsel %vm1820, %v2130, %v2132
  %v2148 = vsel %vm1820, %v2132, %v2134
  %v2149 = vsel %vm1820, %v2134, %v2136
  %v2150 = vsel %vm1820, %v2136, %v2138
  %v2151 = vsel %vm1820, %v2138, %v2140
  %v2152 = vsel %vm1820, %v2140, %v2142
  %v2153 = vsel %vm1820, %v2142, %v2144
  %v2154 = vsel %vm1820, %v2144, %v2146
  %2163 = vst [vmem:[#allocation2 + $0x4c0] sm:$0xf] %v2147
  %2164 = vst [vmem:[#allocation2 + $0x4c8] sm:$0xf] %v2148
  %2165 = vst [vmem:[#allocation2 + $0x4d0] sm:$0xf] %v2149
  %2166 = vst [vmem:[#allocation2 + $0x4d8] sm:$0xf] %v2150
  %2167 = vst [vmem:[#allocation2 + $0x4e0] sm:$0xf] %v2151
  %2168 = vst [vmem:[#allocation2 + $0x4e8] sm:$0xf] %v2152
  %2169 = vst [vmem:[#allocation2 + $0x4f0] sm:$0xf] %v2153
  %2170 = vst [vmem:[#allocation2 + $0x4f8] sm:$0xf] %v2154
  %v2171 = vld [vmem:[%s0 + $0x4] sm:$0xff]
  %v2172 = vld [vmem:[%s0 + $0xc] sm:$0xff]
  %v2173 = vld [vmem:[%s0 + $0x14] sm:$0xff]
  %v2174 = vld [vmem:[%s0 + $0x1c] sm:$0xff]
  %v2175 = vld [vmem:[%s0 + $0x24] sm:$0xf]
  %v2176 = vmul.f32 %v2171, %v581
  %v2177 = vmul.f32 %v2172, %v584
  %v2178 = vmul.f32 %v2173, %v586
  %v2179 = vmul.f32 %v2174, %v588
  %v2180 = vmul.f32 %v2175, %v579
  %v2186 = vcombine.high %v2176, %v2176
  %v2187 = vcombine.high %v2177, %v2177
  %v2188 = vcombine.high %v2178, %v2178
  %v2189 = vcombine.high %v2179, %v2179
  %2190 = vrot.lane.b32.xlu0 %v2176, 98
  %v2191 = vpop.permute.xlu0 %2190
  %2192 = vrot.lane.b32.xlu0 %v2186, 98
  %v2193 = vpop.permute.xlu0 %2192
  %2194 = vrot.lane.b32.xlu0 %v2177, 98
  %v2195 = vpop.permute.xlu0 %2194
  %2196 = vrot.lane.b32.xlu0 %v2187, 98
  %v2197 = vpop.permute.xlu0 %2196
  %2198 = vrot.lane.b32.xlu0 %v2178, 98
  %v2199 = vpop.permute.xlu0 %2198
  %2200 = vrot.lane.b32.xlu0 %v2188, 98
  %v2201 = vpop.permute.xlu0 %2200
  %2202 = vrot.lane.b32.xlu0 %v2179, 98
  %v2203 = vpop.permute.xlu0 %2202
  %2204 = vrot.lane.b32.xlu0 %v2189, 98
  %v2205 = vpop.permute.xlu0 %2204
  %2206 = vrot.lane.b32.xlu0 %v2180, 98
  %v2207 = vpop.permute.xlu0 %2206
  %v2208 = vsel %vm626, %v2191, %v2193
  %v2209 = vsel %vm626, %v2193, %v2195
  %v2210 = vsel %vm626, %v2195, %v2197
  %v2211 = vsel %vm626, %v2197, %v2199
  %v2212 = vsel %vm626, %v2199, %v2201
  %v2213 = vsel %vm626, %v2201, %v2203
  %v2214 = vsel %vm626, %v2203, %v2205
  %v2215 = vsel %vm626, %v2205, %v2207
  %2224 = vst [vmem:[#allocation2 + $0x500] sm:$0xf] %v2208
  %2225 = vst [vmem:[#allocation2 + $0x508] sm:$0xf] %v2209
  %2226 = vst [vmem:[#allocation2 + $0x510] sm:$0xf] %v2210
  %2227 = vst [vmem:[#allocation2 + $0x518] sm:$0xf] %v2211
  %2228 = vst [vmem:[#allocation2 + $0x520] sm:$0xf] %v2212
  %2229 = vst [vmem:[#allocation2 + $0x528] sm:$0xf] %v2213
  %2230 = vst [vmem:[#allocation2 + $0x530] sm:$0xf] %v2214
  %2231 = vst [vmem:[#allocation2 + $0x538] sm:$0xf] %v2215
  %v2232 = vld [vmem:[%s0 + $0x4] sm:$0xff]
  %v2233 = vld [vmem:[%s0 + $0xc] sm:$0xff]
  %v2234 = vld [vmem:[%s0 + $0x14] sm:$0xff]
  %v2235 = vld [vmem:[%s0 + $0x1c] sm:$0xff]
  %v2236 = vld [vmem:[%s0 + $0x24] sm:$0xf]
  %v2237 = vmul.f32 %v2232, %v681
  %v2238 = vmul.f32 %v2233, %v683
  %v2239 = vmul.f32 %v2234, %v685
  %v2240 = vmul.f32 %v2235, %v687
  %v2241 = vmul.f32 %v2236, %v679
  %v2247 = vcombine.high %v2237, %v2237
  %v2248 = vcombine.high %v2238, %v2238
  %v2249 = vcombine.high %v2239, %v2239
  %v2250 = vcombine.high %v2240, %v2240
  %2251 = vrot.lane.b32.xlu0 %v2237, 97
  %v2252 = vpop.permute.xlu0 %2251
  %2253 = vrot.lane.b32.xlu0 %v2247, 97
  %v2254 = vpop.permute.xlu0 %2253
  %2255 = vrot.lane.b32.xlu0 %v2238, 97
  %v2256 = vpop.permute.xlu0 %2255
  %2257 = vrot.lane.b32.xlu0 %v2248, 97
  %v2258 = vpop.permute.xlu0 %2257
  %2259 = vrot.lane.b32.xlu0 %v2239, 97
  %v2260 = vpop.permute.xlu0 %2259
  %2261 = vrot.lane.b32.xlu0 %v2249, 97
  %v2262 = vpop.permute.xlu0 %2261
  %2263 = vrot.lane.b32.xlu0 %v2240, 97
  %v2264 = vpop.permute.xlu0 %2263
  %2265 = vrot.lane.b32.xlu0 %v2250, 97
  %v2266 = vpop.permute.xlu0 %2265
  %2267 = vrot.lane.b32.xlu0 %v2241, 97
  %v2268 = vpop.permute.xlu0 %2267
  %v2269 = vsel %vm725, %v2252, %v2254
  %v2270 = vsel %vm725, %v2254, %v2256
  %v2271 = vsel %vm725, %v2256, %v2258
  %v2272 = vsel %vm725, %v2258, %v2260
  %v2273 = vsel %vm725, %v2260, %v2262
  %v2274 = vsel %vm725, %v2262, %v2264
  %v2275 = vsel %vm725, %v2264, %v2266
  %v2276 = vsel %vm725, %v2266, %v2268
  %2285 = vst [vmem:[#allocation2 + $0x540] sm:$0xf] %v2269
  %2286 = vst [vmem:[#allocation2 + $0x548] sm:$0xf] %v2270
  %2287 = vst [vmem:[#allocation2 + $0x550] sm:$0xf] %v2271
  %2288 = vst [vmem:[#allocation2 + $0x558] sm:$0xf] %v2272
  %2289 = vst [vmem:[#allocation2 + $0x560] sm:$0xf] %v2273
  %2290 = vst [vmem:[#allocation2 + $0x568] sm:$0xf] %v2274
  %2291 = vst [vmem:[#allocation2 + $0x570] sm:$0xf] %v2275
  %2292 = vst [vmem:[#allocation2 + $0x578] sm:$0xf] %v2276
  %v2293 = vld [vmem:[%s0 + $0x4] sm:$0xff]
  %v2294 = vld [vmem:[%s0 + $0xc] sm:$0xff]
  %v2295 = vld [vmem:[%s0 + $0x14] sm:$0xff]
  %v2296 = vld [vmem:[%s0 + $0x1c] sm:$0xff]
  %v2297 = vld [vmem:[%s0 + $0x24] sm:$0xf]
  %v2303 = vcombine.high %v2293, %v2293
  %v2304 = vcombine.high %v2294, %v2294
  %v2305 = vcombine.high %v2295, %v2295
  %v2306 = vcombine.high %v2296, %v2296
  %2307 = vrot.lane.b32.xlu0 %v2293, 96
  %v2308 = vpop.permute.xlu0 %2307
  %2309 = vrot.lane.b32.xlu0 %v2303, 96
  %v2310 = vpop.permute.xlu0 %2309
  %2311 = vrot.lane.b32.xlu0 %v2294, 96
  %v2312 = vpop.permute.xlu0 %2311
  %2313 = vrot.lane.b32.xlu0 %v2304, 96
  %v2314 = vpop.permute.xlu0 %2313
  %2315 = vrot.lane.b32.xlu0 %v2295, 96
  %v2316 = vpop.permute.xlu0 %2315
  %2317 = vrot.lane.b32.xlu0 %v2305, 96
  %v2318 = vpop.permute.xlu0 %2317
  %2319 = vrot.lane.b32.xlu0 %v2296, 96
  %v2320 = vpop.permute.xlu0 %2319
  %2321 = vrot.lane.b32.xlu0 %v2306, 96
  %v2322 = vpop.permute.xlu0 %2321
  %2323 = vrot.lane.b32.xlu0 %v2297, 96
  %v2324 = vpop.permute.xlu0 %2323
  %v2325 = vsel %vm782, %v2308, %v2310
  %v2326 = vsel %vm782, %v2310, %v2312
  %v2327 = vsel %vm782, %v2312, %v2314
  %v2328 = vsel %vm782, %v2314, %v2316
  %v2329 = vsel %vm782, %v2316, %v2318
  %v2330 = vsel %vm782, %v2318, %v2320
  %v2331 = vsel %vm782, %v2320, %v2322
  %v2332 = vsel %vm782, %v2322, %v2324
  %2341 = vst [vmem:[#allocation2 + $0x580] sm:$0xf] %v2325
  %2342 = vst [vmem:[#allocation2 + $0x588] sm:$0xf] %v2326
  %2343 = vst [vmem:[#allocation2 + $0x590] sm:$0xf] %v2327
  %2344 = vst [vmem:[#allocation2 + $0x598] sm:$0xf] %v2328
  %2345 = vst [vmem:[#allocation2 + $0x5a0] sm:$0xf] %v2329
  %2346 = vst [vmem:[#allocation2 + $0x5a8] sm:$0xf] %v2330
  %2347 = vst [vmem:[#allocation2 + $0x5b0] sm:$0xf] %v2331
  %2348 = vst [vmem:[#allocation2 + $0x5b8] sm:$0xf] %v2332
  %v2349 = vld [vmem:[%s0 + $0x4] sm:$0xff]
  %v2350 = vld [vmem:[%s0 + $0xc] sm:$0xff]
  %v2351 = vld [vmem:[%s0 + $0x14] sm:$0xff]
  %v2352 = vld [vmem:[%s0 + $0x1c] sm:$0xff]
  %v2353 = vld [vmem:[%s0 + $0x24] sm:$0xf]
  %v2354 = vmul.f32 %v2349, %v837
  %v2355 = vmul.f32 %v2350, %v839
  %v2356 = vmul.f32 %v2351, %v841
  %v2357 = vmul.f32 %v2352, %v843
  %v2358 = vmul.f32 %v2353, %v835
  %v2364 = vcombine.high %v2354, %v2354
  %v2365 = vcombine.high %v2355, %v2355
  %v2366 = vcombine.high %v2356, %v2356
  %v2367 = vcombine.high %v2357, %v2357
  %2368 = vrot.lane.b32.xlu0 %v2354, 95
  %v2369 = vpop.permute.xlu0 %2368
  %2370 = vrot.lane.b32.xlu0 %v2364, 95
  %v2371 = vpop.permute.xlu0 %2370
  %2372 = vrot.lane.b32.xlu0 %v2355, 95
  %v2373 = vpop.permute.xlu0 %2372
  %2374 = vrot.lane.b32.xlu0 %v2365, 95
  %v2375 = vpop.permute.xlu0 %2374
  %2376 = vrot.lane.b32.xlu0 %v2356, 95
  %v2377 = vpop.permute.xlu0 %2376
  %2378 = vrot.lane.b32.xlu0 %v2366, 95
  %v2379 = vpop.permute.xlu0 %2378
  %2380 = vrot.lane.b32.xlu0 %v2357, 95
  %v2381 = vpop.permute.xlu0 %2380
  %2382 = vrot.lane.b32.xlu0 %v2367, 95
  %v2383 = vpop.permute.xlu0 %2382
  %2384 = vrot.lane.b32.xlu0 %v2358, 95
  %v2385 = vpop.permute.xlu0 %2384
  %v2386 = vsel %vm881, %v2369, %v2371
  %v2387 = vsel %vm881, %v2371, %v2373
  %v2388 = vsel %vm881, %v2373, %v2375
  %v2389 = vsel %vm881, %v2375, %v2377
  %v2390 = vsel %vm881, %v2377, %v2379
  %v2391 = vsel %vm881, %v2379, %v2381
  %v2392 = vsel %vm881, %v2381, %v2383
  %v2393 = vsel %vm881, %v2383, %v2385
  %2402 = vst [vmem:[#allocation2 + $0x5c0] sm:$0xf] %v2386
  %2403 = vst [vmem:[#allocation2 + $0x5c8] sm:$0xf] %v2387
  %2404 = vst [vmem:[#allocation2 + $0x5d0] sm:$0xf] %v2388
  %2405 = vst [vmem:[#allocation2 + $0x5d8] sm:$0xf] %v2389
  %2406 = vst [vmem:[#allocation2 + $0x5e0] sm:$0xf] %v2390
  %2407 = vst [vmem:[#allocation2 + $0x5e8] sm:$0xf] %v2391
  %2408 = vst [vmem:[#allocation2 + $0x5f0] sm:$0xf] %v2392
  %2409 = vst [vmem:[#allocation2 + $0x5f8] sm:$0xf] %v2393
  %v2410 = vld [vmem:[%s0 + $0x4] sm:$0xff]
  %v2411 = vld [vmem:[%s0 + $0xc] sm:$0xff]
  %v2412 = vld [vmem:[%s0 + $0x14] sm:$0xff]
  %v2413 = vld [vmem:[%s0 + $0x1c] sm:$0xff]
  %v2414 = vld [vmem:[%s0 + $0x24] sm:$0xf]
  %v2415 = vmul.f32 %v2410, %v936
  %v2416 = vmul.f32 %v2411, %v938
  %v2417 = vmul.f32 %v2412, %v940
  %v2418 = vmul.f32 %v2413, %v942
  %v2419 = vmul.f32 %v2414, %v934
  %v2425 = vcombine.high %v2415, %v2415
  %v2426 = vcombine.high %v2416, %v2416
  %v2427 = vcombine.high %v2417, %v2417
  %v2428 = vcombine.high %v2418, %v2418
  %2429 = vrot.lane.b32.xlu0 %v2415, 94
  %v2430 = vpop.permute.xlu0 %2429
  %2431 = vrot.lane.b32.xlu0 %v2425, 94
  %v2432 = vpop.permute.xlu0 %2431
  %2433 = vrot.lane.b32.xlu0 %v2416, 94
  %v2434 = vpop.permute.xlu0 %2433
  %2435 = vrot.lane.b32.xlu0 %v2426, 94
  %v2436 = vpop.permute.xlu0 %2435
  %2437 = vrot.lane.b32.xlu0 %v2417, 94
  %v2438 = vpop.permute.xlu0 %2437
  %2439 = vrot.lane.b32.xlu0 %v2427, 94
  %v2440 = vpop.permute.xlu0 %2439
  %2441 = vrot.lane.b32.xlu0 %v2418, 94
  %v2442 = vpop.permute.xlu0 %2441
  %2443 = vrot.lane.b32.xlu0 %v2428, 94
  %v2444 = vpop.permute.xlu0 %2443
  %2445 = vrot.lane.b32.xlu0 %v2419, 94
  %v2446 = vpop.permute.xlu0 %2445
  %v2447 = vsel %vm980, %v2430, %v2432
  %v2448 = vsel %vm980, %v2432, %v2434
  %v2449 = vsel %vm980, %v2434, %v2436
  %v2450 = vsel %vm980, %v2436, %v2438
  %v2451 = vsel %vm980, %v2438, %v2440
  %v2452 = vsel %vm980, %v2440, %v2442
  %v2453 = vsel %vm980, %v2442, %v2444
  %v2454 = vsel %vm980, %v2444, %v2446
  %2463 = vst [vmem:[#allocation2 + $0x600] sm:$0xf] %v2447
  %2464 = vst [vmem:[#allocation2 + $0x608] sm:$0xf] %v2448
  %2465 = vst [vmem:[#allocation2 + $0x610] sm:$0xf] %v2449
  %2466 = vst [vmem:[#allocation2 + $0x618] sm:$0xf] %v2450
  %2467 = vst [vmem:[#allocation2 + $0x620] sm:$0xf] %v2451
  %2468 = vst [vmem:[#allocation2 + $0x628] sm:$0xf] %v2452
  %2469 = vst [vmem:[#allocation2 + $0x630] sm:$0xf] %v2453
  %2470 = vst [vmem:[#allocation2 + $0x638] sm:$0xf] %v2454
  %v2471 = vld [vmem:[#allocation2] sm:$0xff]
  %v2472 = vld [vmem:[#allocation2 + $0x8] sm:$0xff]
  %v2473 = vld [vmem:[#allocation2 + $0x10] sm:$0xff]
  %v2474 = vld [vmem:[#allocation2 + $0x18] sm:$0xff]
  %v2475 = vld [vmem:[#allocation2 + $0x20] sm:$0xff]
  %v2476 = vld [vmem:[#allocation2 + $0x28] sm:$0xff]
  %v2477 = vld [vmem:[#allocation2 + $0x30] sm:$0xff]
  %v2478 = vld [vmem:[#allocation2 + $0x38] sm:$0xff]
  %v2479 = vld [vmem:[#allocation2 + $0x40] sm:$0xff]
  %v2480 = vld [vmem:[#allocation2 + $0x48] sm:$0xff]
  %v2481 = vld [vmem:[#allocation2 + $0x50] sm:$0xff]
  %v2482 = vld [vmem:[#allocation2 + $0x58] sm:$0xff]
  %v2483 = vld [vmem:[#allocation2 + $0x60] sm:$0xff]
  %v2484 = vld [vmem:[#allocation2 + $0x68] sm:$0xff]
  %v2485 = vld [vmem:[#allocation2 + $0x70] sm:$0xff]
  %v2486 = vld [vmem:[#allocation2 + $0x78] sm:$0xff]
  %v2487 = vld [vmem:[#allocation2 + $0x80] sm:$0xff]
  %v2488 = vld [vmem:[#allocation2 + $0x88] sm:$0xff]
  %v2489 = vld [vmem:[#allocation2 + $0x90] sm:$0xff]
  %v2490 = vld [vmem:[#allocation2 + $0x98] sm:$0xff]
  %v2491 = vld [vmem:[#allocation2 + $0xa0] sm:$0xff]
  %v2492 = vld [vmem:[#allocation2 + $0xa8] sm:$0xff]
  %v2493 = vld [vmem:[#allocation2 + $0xb0] sm:$0xff]
  %v2494 = vld [vmem:[#allocation2 + $0xb8] sm:$0xff]
  %v2495 = vld [vmem:[#allocation2 + $0xc0] sm:$0xff]
  %v2496 = vld [vmem:[#allocation2 + $0xc8] sm:$0xff]
  %v2497 = vld [vmem:[#allocation2 + $0xd0] sm:$0xff]
  %v2498 = vld [vmem:[#allocation2 + $0xd8] sm:$0xff]
  %v2499 = vld [vmem:[#allocation2 + $0xe0] sm:$0xff]
  %v2500 = vld [vmem:[#allocation2 + $0xe8] sm:$0xff]
  %v2501 = vld [vmem:[#allocation2 + $0xf0] sm:$0xff]
  %v2502 = vld [vmem:[#allocation2 + $0xf8] sm:$0xff]
  %v2503 = vld [vmem:[#allocation2 + $0x100] sm:$0xff]
  %v2504 = vld [vmem:[#allocation2 + $0x108] sm:$0xff]
  %v2505 = vld [vmem:[#allocation2 + $0x110] sm:$0xff]
  %v2506 = vld [vmem:[#allocation2 + $0x118] sm:$0xff]
  %v2507 = vld [vmem:[#allocation2 + $0x120] sm:$0xff]
  %v2508 = vld [vmem:[#allocation2 + $0x128] sm:$0xff]
  %v2509 = vld [vmem:[#allocation2 + $0x130] sm:$0xff]
  %v2510 = vld [vmem:[#allocation2 + $0x138] sm:$0xff]
  %v2511 = vld [vmem:[#allocation2 + $0x140] sm:$0xff]
  %v2512 = vld [vmem:[#allocation2 + $0x148] sm:$0xff]
  %v2513 = vld [vmem:[#allocation2 + $0x150] sm:$0xff]
  %v2514 = vld [vmem:[#allocation2 + $0x158] sm:$0xff]
  %v2515 = vld [vmem:[#allocation2 + $0x160] sm:$0xff]
  %v2516 = vld [vmem:[#allocation2 + $0x168] sm:$0xff]
  %v2517 = vld [vmem:[#allocation2 + $0x170] sm:$0xff]
  %v2518 = vld [vmem:[#allocation2 + $0x178] sm:$0xff]
  %v2519 = vld [vmem:[#allocation2 + $0x180] sm:$0xff]
  %v2520 = vld [vmem:[#allocation2 + $0x188] sm:$0xff]
  %v2521 = vld [vmem:[#allocation2 + $0x190] sm:$0xff]
  %v2522 = vld [vmem:[#allocation2 + $0x198] sm:$0xff]
  %v2523 = vld [vmem:[#allocation2 + $0x1a0] sm:$0xff]
  %v2524 = vld [vmem:[#allocation2 + $0x1a8] sm:$0xff]
  %v2525 = vld [vmem:[#allocation2 + $0x1b0] sm:$0xff]
  %v2526 = vld [vmem:[#allocation2 + $0x1b8] sm:$0xff]
  %v2527 = vld [vmem:[#allocation2 + $0x1c0] sm:$0xff]
  %v2528 = vld [vmem:[#allocation2 + $0x1c8] sm:$0xff]
  %v2529 = vld [vmem:[#allocation2 + $0x1d0] sm:$0xff]
  %v2530 = vld [vmem:[#allocation2 + $0x1d8] sm:$0xff]
  %v2531 = vld [vmem:[#allocation2 + $0x1e0] sm:$0xff]
  %v2532 = vld [vmem:[#allocation2 + $0x1e8] sm:$0xff]
  %v2533 = vld [vmem:[#allocation2 + $0x1f0] sm:$0xff]
  %v2534 = vld [vmem:[#allocation2 + $0x1f8] sm:$0xff]
  %v2535 = vld [vmem:[#allocation2 + $0x200] sm:$0xff]
  %v2536 = vld [vmem:[#allocation2 + $0x208] sm:$0xff]
  %v2537 = vld [vmem:[#allocation2 + $0x210] sm:$0xff]
  %v2538 = vld [vmem:[#allocation2 + $0x218] sm:$0xff]
  %v2539 = vld [vmem:[#allocation2 + $0x220] sm:$0xff]
  %v2540 = vld [vmem:[#allocation2 + $0x228] sm:$0xff]
  %v2541 = vld [vmem:[#allocation2 + $0x230] sm:$0xff]
  %v2542 = vld [vmem:[#allocation2 + $0x238] sm:$0xff]
  %v2543 = vld [vmem:[#allocation2 + $0x240] sm:$0xff]
  %v2544 = vld [vmem:[#allocation2 + $0x248] sm:$0xff]
  %v2545 = vld [vmem:[#allocation2 + $0x250] sm:$0xff]
  %v2546 = vld [vmem:[#allocation2 + $0x258] sm:$0xff]
  %v2547 = vld [vmem:[#allocation2 + $0x260] sm:$0xff]
  %v2548 = vld [vmem:[#allocation2 + $0x268] sm:$0xff]
  %v2549 = vld [vmem:[#allocation2 + $0x270] sm:$0xff]
  %v2550 = vld [vmem:[#allocation2 + $0x278] sm:$0xff]
  %v2551 = vld [vmem:[#allocation2 + $0x280] sm:$0xff]
  %v2552 = vld [vmem:[#allocation2 + $0x288] sm:$0xff]
  %v2553 = vld [vmem:[#allocation2 + $0x290] sm:$0xff]
  %v2554 = vld [vmem:[#allocation2 + $0x298] sm:$0xff]
  %v2555 = vld [vmem:[#allocation2 + $0x2a0] sm:$0xff]
  %v2556 = vld [vmem:[#allocation2 + $0x2a8] sm:$0xff]
  %v2557 = vld [vmem:[#allocation2 + $0x2b0] sm:$0xff]
  %v2558 = vld [vmem:[#allocation2 + $0x2b8] sm:$0xff]
  %v2559 = vld [vmem:[#allocation2 + $0x2c0] sm:$0xff]
  %v2560 = vld [vmem:[#allocation2 + $0x2c8] sm:$0xff]
  %v2561 = vld [vmem:[#allocation2 + $0x2d0] sm:$0xff]
  %v2562 = vld [vmem:[#allocation2 + $0x2d8] sm:$0xff]
  %v2563 = vld [vmem:[#allocation2 + $0x2e0] sm:$0xff]
  %v2564 = vld [vmem:[#allocation2 + $0x2e8] sm:$0xff]
  %v2565 = vld [vmem:[#allocation2 + $0x2f0] sm:$0xff]
  %v2566 = vld [vmem:[#allocation2 + $0x2f8] sm:$0xff]
  %v2567 = vld [vmem:[#allocation2 + $0x300] sm:$0xff]
  %v2568 = vld [vmem:[#allocation2 + $0x308] sm:$0xff]
  %v2569 = vld [vmem:[#allocation2 + $0x310] sm:$0xff]
  %v2570 = vld [vmem:[#allocation2 + $0x318] sm:$0xff]
  %v2571 = vld [vmem:[#allocation2 + $0x320] sm:$0xff]
  %v2572 = vld [vmem:[#allocation2 + $0x328] sm:$0xff]
  %v2573 = vld [vmem:[#allocation2 + $0x330] sm:$0xff]
  %v2574 = vld [vmem:[#allocation2 + $0x338] sm:$0xff]
  %v2575 = vld [vmem:[#allocation2 + $0x340] sm:$0xff]
  %v2576 = vld [vmem:[#allocation2 + $0x348] sm:$0xff]
  %v2577 = vld [vmem:[#allocation2 + $0x350] sm:$0xff]
  %v2578 = vld [vmem:[#allocation2 + $0x358] sm:$0xff]
  %v2579 = vld [vmem:[#allocation2 + $0x360] sm:$0xff]
  %v2580 = vld [vmem:[#allocation2 + $0x368] sm:$0xff]
  %v2581 = vld [vmem:[#allocation2 + $0x370] sm:$0xff]
  %v2582 = vld [vmem:[#allocation2 + $0x378] sm:$0xff]
  %v2583 = vld [vmem:[#allocation2 + $0x380] sm:$0xff]
  %v2584 = vld [vmem:[#allocation2 + $0x388] sm:$0xff]
  %v2585 = vld [vmem:[#allocation2 + $0x390] sm:$0xff]
  %v2586 = vld [vmem:[#allocation2 + $0x398] sm:$0xff]
  %v2587 = vld [vmem:[#allocation2 + $0x3a0] sm:$0xff]
  %v2588 = vld [vmem:[#allocation2 + $0x3a8] sm:$0xff]
  %v2589 = vld [vmem:[#allocation2 + $0x3b0] sm:$0xff]
  %v2590 = vld [vmem:[#allocation2 + $0x3b8] sm:$0xff]
  %v2591 = vld [vmem:[#allocation2 + $0x3c0] sm:$0xff]
  %v2592 = vld [vmem:[#allocation2 + $0x3c8] sm:$0xff]
  %v2593 = vld [vmem:[#allocation2 + $0x3d0] sm:$0xff]
  %v2594 = vld [vmem:[#allocation2 + $0x3d8] sm:$0xff]
  %v2595 = vld [vmem:[#allocation2 + $0x3e0] sm:$0xff]
  %v2596 = vld [vmem:[#allocation2 + $0x3e8] sm:$0xff]
  %v2597 = vld [vmem:[#allocation2 + $0x3f0] sm:$0xff]
  %v2598 = vld [vmem:[#allocation2 + $0x3f8] sm:$0xff]
  %v2599 = vld [vmem:[#allocation2 + $0x400] sm:$0xff]
  %v2600 = vld [vmem:[#allocation2 + $0x408] sm:$0xff]
  %v2601 = vld [vmem:[#allocation2 + $0x410] sm:$0xff]
  %v2602 = vld [vmem:[#allocation2 + $0x418] sm:$0xff]
  %v2603 = vld [vmem:[#allocation2 + $0x420] sm:$0xff]
  %v2604 = vld [vmem:[#allocation2 + $0x428] sm:$0xff]
  %v2605 = vld [vmem:[#allocation2 + $0x430] sm:$0xff]
  %v2606 = vld [vmem:[#allocation2 + $0x438] sm:$0xff]
  %v2607 = vld [vmem:[#allocation2 + $0x440] sm:$0xff]
  %v2608 = vld [vmem:[#allocation2 + $0x448] sm:$0xff]
  %v2609 = vld [vmem:[#allocation2 + $0x450] sm:$0xff]
  %v2610 = vld [vmem:[#allocation2 + $0x458] sm:$0xff]
  %v2611 = vld [vmem:[#allocation2 + $0x460] sm:$0xff]
  %v2612 = vld [vmem:[#allocation2 + $0x468] sm:$0xff]
  %v2613 = vld [vmem:[#allocation2 + $0x470] sm:$0xff]
  %v2614 = vld [vmem:[#allocation2 + $0x478] sm:$0xff]
  %v2615 = vld [vmem:[#allocation2 + $0x480] sm:$0xff]
  %v2616 = vld [vmem:[#allocation2 + $0x488] sm:$0xff]
  %v2617 = vld [vmem:[#allocation2 + $0x490] sm:$0xff]
  %v2618 = vld [vmem:[#allocation2 + $0x498] sm:$0xff]
  %v2619 = vld [vmem:[#allocation2 + $0x4a0] sm:$0xff]
  %v2620 = vld [vmem:[#allocation2 + $0x4a8] sm:$0xff]
  %v2621 = vld [vmem:[#allocation2 + $0x4b0] sm:$0xff]
  %v2622 = vld [vmem:[#allocation2 + $0x4b8] sm:$0xff]
  %v2623 = vld [vmem:[#allocation2 + $0x4c0] sm:$0xff]
  %v2624 = vld [vmem:[#allocation2 + $0x4c8] sm:$0xff]
  %v2625 = vld [vmem:[#allocation2 + $0x4d0] sm:$0xff]
  %v2626 = vld [vmem:[#allocation2 + $0x4d8] sm:$0xff]
  %v2627 = vld [vmem:[#allocation2 + $0x4e0] sm:$0xff]
  %v2628 = vld [vmem:[#allocation2 + $0x4e8] sm:$0xff]
  %v2629 = vld [vmem:[#allocation2 + $0x4f0] sm:$0xff]
  %v2630 = vld [vmem:[#allocation2 + $0x4f8] sm:$0xff]
  %v2631 = vld [vmem:[#allocation2 + $0x500] sm:$0xff]
  %v2632 = vld [vmem:[#allocation2 + $0x508] sm:$0xff]
  %v2633 = vld [vmem:[#allocation2 + $0x510] sm:$0xff]
  %v2634 = vld [vmem:[#allocation2 + $0x518] sm:$0xff]
  %v2635 = vld [vmem:[#allocation2 + $0x520] sm:$0xff]
  %v2636 = vld [vmem:[#allocation2 + $0x528] sm:$0xff]
  %v2637 = vld [vmem:[#allocation2 + $0x530] sm:$0xff]
  %v2638 = vld [vmem:[#allocation2 + $0x538] sm:$0xff]
  %v2639 = vld [vmem:[#allocation2 + $0x540] sm:$0xff]
  %v2640 = vld [vmem:[#allocation2 + $0x548] sm:$0xff]
  %v2641 = vld [vmem:[#allocation2 + $0x550] sm:$0xff]
  %v2642 = vld [vmem:[#allocation2 + $0x558] sm:$0xff]
  %v2643 = vld [vmem:[#allocation2 + $0x560] sm:$0xff]
  %v2644 = vld [vmem:[#allocation2 + $0x568] sm:$0xff]
  %v2645 = vld [vmem:[#allocation2 + $0x570] sm:$0xff]
  %v2646 = vld [vmem:[#allocation2 + $0x578] sm:$0xff]
  %v2647 = vld [vmem:[#allocation2 + $0x580] sm:$0xff]
  %v2648 = vld [vmem:[#allocation2 + $0x588] sm:$0xff]
  %v2649 = vld [vmem:[#allocation2 + $0x590] sm:$0xff]
  %v2650 = vld [vmem:[#allocation2 + $0x598] sm:$0xff]
  %v2651 = vld [vmem:[#allocation2 + $0x5a0] sm:$0xff]
  %v2652 = vld [vmem:[#allocation2 + $0x5a8] sm:$0xff]
  %v2653 = vld [vmem:[#allocation2 + $0x5b0] sm:$0xff]
  %v2654 = vld [vmem:[#allocation2 + $0x5b8] sm:$0xff]
  %v2655 = vld [vmem:[#allocation2 + $0x5c0] sm:$0xff]
  %v2656 = vld [vmem:[#allocation2 + $0x5c8] sm:$0xff]
  %v2657 = vld [vmem:[#allocation2 + $0x5d0] sm:$0xff]
  %v2658 = vld [vmem:[#allocation2 + $0x5d8] sm:$0xff]
  %v2659 = vld [vmem:[#allocation2 + $0x5e0] sm:$0xff]
  %v2660 = vld [vmem:[#allocation2 + $0x5e8] sm:$0xff]
  %v2661 = vld [vmem:[#allocation2 + $0x5f0] sm:$0xff]
  %v2662 = vld [vmem:[#allocation2 + $0x5f8] sm:$0xff]
  %v2663 = vld [vmem:[#allocation2 + $0x600] sm:$0xff]
  %v2664 = vld [vmem:[#allocation2 + $0x608] sm:$0xff]
  %v2665 = vld [vmem:[#allocation2 + $0x610] sm:$0xff]
  %v2666 = vld [vmem:[#allocation2 + $0x618] sm:$0xff]
  %v2667 = vld [vmem:[#allocation2 + $0x620] sm:$0xff]
  %v2668 = vld [vmem:[#allocation2 + $0x628] sm:$0xff]
  %v2669 = vld [vmem:[#allocation2 + $0x630] sm:$0xff]
  %v2670 = vld [vmem:[#allocation2 + $0x638] sm:$0xff]
  %v2671 = vpack.c.bf16 %v2479, %v2471
  %v2672 = vpack.c.bf16 %v2480, %v2472
  %v2673 = vpack.c.bf16 %v2481, %v2473
  %v2674 = vpack.c.bf16 %v2482, %v2474
  %v2675 = vpack.c.bf16 %v2483, %v2475
  %v2676 = vpack.c.bf16 %v2484, %v2476
  %v2677 = vpack.c.bf16 %v2485, %v2477
  %v2678 = vpack.c.bf16 %v2486, %v2478
  %v2679 = vpack.c.bf16 %v2495, %v2487
  %v2680 = vpack.c.bf16 %v2496, %v2488
  %v2681 = vpack.c.bf16 %v2497, %v2489
  %v2682 = vpack.c.bf16 %v2498, %v2490
  %v2683 = vpack.c.bf16 %v2499, %v2491
  %v2684 = vpack.c.bf16 %v2500, %v2492
  %v2685 = vpack.c.bf16 %v2501, %v2493
  %v2686 = vpack.c.bf16 %v2502, %v2494
  %v2687 = vpack.c.bf16 %v2511, %v2503
  %v2688 = vpack.c.bf16 %v2512, %v2504
  %v2689 = vpack.c.bf16 %v2513, %v2505
  %v2690 = vpack.c.bf16 %v2514, %v2506
  %v2691 = vpack.c.bf16 %v2515, %v2507
  %v2692 = vpack.c.bf16 %v2516, %v2508
  %v2693 = vpack.c.bf16 %v2517, %v2509
  %v2694 = vpack.c.bf16 %v2518, %v2510
  %v2695 = vpack.c.bf16 %v2527, %v2519
  %v2696 = vpack.c.bf16 %v2528, %v2520
  %v2697 = vpack.c.bf16 %v2529, %v2521
  %v2698 = vpack.c.bf16 %v2530, %v2522
  %v2699 = vpack.c.bf16 %v2531, %v2523
  %v2700 = vpack.c.bf16 %v2532, %v2524
  %v2701 = vpack.c.bf16 %v2533, %v2525
  %v2702 = vpack.c.bf16 %v2534, %v2526
  %v2703 = vpack.c.bf16 %v2543, %v2535
  %v2704 = vpack.c.bf16 %v2544, %v2536
  %v2705 = vpack.c.bf16 %v2545, %v2537
  %v2706 = vpack.c.bf16 %v2546, %v2538
  %v2707 = vpack.c.bf16 %v2547, %v2539
  %v2708 = vpack.c.bf16 %v2548, %v2540
  %v2709 = vpack.c.bf16 %v2549, %v2541
  %v2710 = vpack.c.bf16 %v2550, %v2542
  %v2711 = vpack.c.bf16 %v2559, %v2551
  %v2712 = vpack.c.bf16 %v2560, %v2552
  %v2713 = vpack.c.bf16 %v2561, %v2553
  %v2714 = vpack.c.bf16 %v2562, %v2554
  %v2715 = vpack.c.bf16 %v2563, %v2555
  %v2716 = vpack.c.bf16 %v2564, %v2556
  %v2717 = vpack.c.bf16 %v2565, %v2557
  %v2718 = vpack.c.bf16 %v2566, %v2558
  %v2719 = vpack.c.bf16 %v2575, %v2567
  %v2720 = vpack.c.bf16 %v2576, %v2568
  %v2721 = vpack.c.bf16 %v2577, %v2569
  %v2722 = vpack.c.bf16 %v2578, %v2570
  %v2723 = vpack.c.bf16 %v2579, %v2571
  %v2724 = vpack.c.bf16 %v2580, %v2572
  %v2725 = vpack.c.bf16 %v2581, %v2573
  %v2726 = vpack.c.bf16 %v2582, %v2574
  %v2727 = vpack.c.bf16 %v2591, %v2583
  %v2728 = vpack.c.bf16 %v2592, %v2584
  %v2729 = vpack.c.bf16 %v2593, %v2585
  %v2730 = vpack.c.bf16 %v2594, %v2586
  %v2731 = vpack.c.bf16 %v2595, %v2587
  %v2732 = vpack.c.bf16 %v2596, %v2588
  %v2733 = vpack.c.bf16 %v2597, %v2589
  %v2734 = vpack.c.bf16 %v2598, %v2590
  %v2735 = vpack.c.bf16 %v2607, %v2599
  %v2736 = vpack.c.bf16 %v2608, %v2600
  %v2737 = vpack.c.bf16 %v2609, %v2601
  %v2738 = vpack.c.bf16 %v2610, %v2602
  %v2739 = vpack.c.bf16 %v2611, %v2603
  %v2740 = vpack.c.bf16 %v2612, %v2604
  %v2741 = vpack.c.bf16 %v2613, %v2605
  %v2742 = vpack.c.bf16 %v2614, %v2606
  %v2743 = vpack.c.bf16 %v2623, %v2615
  %v2744 = vpack.c.bf16 %v2624, %v2616
  %v2745 = vpack.c.bf16 %v2625, %v2617
  %v2746 = vpack.c.bf16 %v2626, %v2618
  %v2747 = vpack.c.bf16 %v2627, %v2619
  %v2748 = vpack.c.bf16 %v2628, %v2620
  %v2749 = vpack.c.bf16 %v2629, %v2621
  %v2750 = vpack.c.bf16 %v2630, %v2622
  %v2751 = vpack.c.bf16 %v2639, %v2631
  %v2752 = vpack.c.bf16 %v2640, %v2632
  %v2753 = vpack.c.bf16 %v2641, %v2633
  %v2754 = vpack.c.bf16 %v2642, %v2634
  %v2755 = vpack.c.bf16 %v2643, %v2635
  %v2756 = vpack.c.bf16 %v2644, %v2636
  %v2757 = vpack.c.bf16 %v2645, %v2637
  %v2758 = vpack.c.bf16 %v2646, %v2638
  %v2759 = vpack.c.bf16 %v2655, %v2647
  %v2760 = vpack.c.bf16 %v2656, %v2648
  %v2761 = vpack.c.bf16 %v2657, %v2649
  %v2762 = vpack.c.bf16 %v2658, %v2650
  %v2763 = vpack.c.bf16 %v2659, %v2651
  %v2764 = vpack.c.bf16 %v2660, %v2652
  %v2765 = vpack.c.bf16 %v2661, %v2653
  %v2766 = vpack.c.bf16 %v2662, %v2654
  %v2767 = vpack.c.bf16 %v2663, %v2663
  %v2768 = vpack.c.bf16 %v2664, %v2664
  %v2769 = vpack.c.bf16 %v2665, %v2665
  %v2770 = vpack.c.bf16 %v2666, %v2666
  %v2771 = vpack.c.bf16 %v2667, %v2667
  %v2772 = vpack.c.bf16 %v2668, %v2668
  %v2773 = vpack.c.bf16 %v2669, %v2669
  %v2774 = vpack.c.bf16 %v2670, %v2670
  %v2776 = vunpack.c.l.b16 %v21
  %v2777 = vunpack.c.h.b16 %v21
  %v2778 = vpack.c.b16 %v2776, %v2776
  %v2779 = vpack.c.b16 %v2777, %v2777
  %vm2781 = vcmask 588800
  %v2783 = vsel %vm2781, %v2779, 0
  %v2786 = vsel %vm582, %v2767, 0
  %v2789 = vsel %vm582, %v2768, 0
  %v2792 = vsel %vm582, %v2769, 0
  %v2795 = vsel %vm582, %v2770, 0
  %v2798 = vsel %vm582, %v2771, 0
  %v2801 = vsel %vm582, %v2772, 0
  %v2804 = vsel %vm582, %v2773, 0
  %v2807 = vsel %vm582, %v2774, 0
  %2809 = vmatprep.subr.bf16.mxu0 %v2672
  %2810 = vmatpush1.bf16.msra.mxu0 %v2671
  %2811 = vmatprep.subr.bf16.mxu0 %v2680
  %2812 = vmatpush1.bf16.msra.mxu0 %v2679
  %2813 = vmatprep.subr.bf16.mxu0 %v2688
  %2814 = vmatpush1.bf16.msra.mxu0 %v2687
  %2815 = vmatprep.subr.bf16.mxu0 %v2696
  %2816 = vmatpush1.bf16.msra.mxu0 %v2695
  %2817 = vmatprep.subr.bf16.mxu0 %v2704
  %2818 = vmatpush1.bf16.msra.mxu0 %v2703
  %2819 = vmatprep.subr.bf16.mxu0 %v2712
  %2820 = vmatpush1.bf16.msra.mxu0 %v2711
  %2821 = vmatprep.subr.bf16.mxu0 %v2720
  %2822 = vmatpush1.bf16.msra.mxu0 %v2719
  %2823 = vmatprep.subr.bf16.mxu0 %v2728
  %2824 = vmatpush1.bf16.msra.mxu0 %v2727
  %2825 = vmatprep.subr.bf16.mxu0 %v2736
  %2826 = vmatpush1.bf16.msra.mxu0 %v2735
  %2827 = vmatprep.subr.bf16.mxu0 %v2744
  %2828 = vmatpush1.bf16.msra.mxu0 %v2743
  %2829 = vmatprep.subr.bf16.mxu0 %v2752
  %2830 = vmatpush1.bf16.msra.mxu0 %v2751
  %2831 = vmatprep.subr.bf16.mxu0 %v2760
  %2832 = vmatpush1.bf16.msra.mxu0 %v2759
  %2833 = vmatprep.subr.bf16.mxu0 %v2789
  %2834 = vmatpush1.bf16.msra.mxu0 %v2786
  %2835 = vmatprep.subr.bf16.mxu0 0
  %2836 = vmatpush1.bf16.msra.mxu0 0
  %2837 = vmatprep.subr.bf16.mxu0 0
  %2838 = vmatpush1.bf16.msra.mxu0 0
  %2839 = vmatprep.subr.bf16.mxu0 0
  %2840 = vmatpush1.bf16.msra.mxu0 0
  %2841 = vmatprep.mubr.bf16.mxu0 %v2783
  %2842 = vmatmul.mubr.bf16.gmra.mrb[0].mxu0 %v2778
  %v2843 = vpop.f32.mrb[0].mxu0
  %v2844 = vadd.f32 0.0, %v2843
  %v2845 = vpop.f32.mrb[0].mxu0
  %v2846 = vadd.f32 0.0, %v2845
  %v2847 = vpop.f32.mrb[0].mxu0
  %v2848 = vpop.f32.mrb[0].mxu0
  %2849 = vdwg.mxu0
  %2850 = vmatprep.subr.bf16.mxu0 %v2674
  %2851 = vmatpush1.bf16.msra.mxu0 %v2673
  %2852 = vmatprep.subr.bf16.mxu0 %v2682
  %2853 = vmatpush1.bf16.msra.mxu0 %v2681
  %2854 = vmatprep.subr.bf16.mxu0 %v2690
  %2855 = vmatpush1.bf16.msra.mxu0 %v2689
  %2856 = vmatprep.subr.bf16.mxu0 %v2698
  %2857 = vmatpush1.bf16.msra.mxu0 %v2697
  %2858 = vmatprep.subr.bf16.mxu0 %v2706
  %2859 = vmatpush1.bf16.msra.mxu0 %v2705
  %2860 = vmatprep.subr.bf16.mxu0 %v2714
  %2861 = vmatpush1.bf16.msra.mxu0 %v2713
  %2862 = vmatprep.subr.bf16.mxu0 %v2722
  %2863 = vmatpush1.bf16.msra.mxu0 %v2721
  %2864 = vmatprep.subr.bf16.mxu0 %v2730
  %2865 = vmatpush1.bf16.msra.mxu0 %v2729
  %2866 = vmatprep.subr.bf16.mxu0 %v2738
  %2867 = vmatpush1.bf16.msra.mxu0 %v2737
  %2868 = vmatprep.subr.bf16.mxu0 %v2746
  %2869 = vmatpush1.bf16.msra.mxu0 %v2745
  %2870 = vmatprep.subr.bf16.mxu0 %v2754
  %2871 = vmatpush1.bf16.msra.mxu0 %v2753
  %2872 = vmatprep.subr.bf16.mxu0 %v2762
  %2873 = vmatpush1.bf16.msra.mxu0 %v2761
  %2874 = vmatprep.subr.bf16.mxu0 %v2795
  %2875 = vmatpush1.bf16.msra.mxu0 %v2792
  %2876 = vmatprep.subr.bf16.mxu0 0
  %2877 = vmatpush1.bf16.msra.mxu0 0
  %2878 = vmatprep.subr.bf16.mxu0 0
  %2879 = vmatpush1.bf16.msra.mxu0 0
  %2880 = vmatprep.subr.bf16.mxu0 0
  %2881 = vmatpush1.bf16.msra.mxu0 0
  %2882 = vmatprep.mubr.bf16.mxu0 %v2783
  %2883 = vmatmul.mubr.bf16.gmra.mrb[0].mxu0 %v2778
  %v2884 = vpop.f32.mrb[0].mxu0
  %v2885 = vadd.f32 0.0, %v2884
  %v2886 = vpop.f32.mrb[0].mxu0
  %v2887 = vadd.f32 0.0, %v2886
  %v2888 = vpop.f32.mrb[0].mxu0
  %v2889 = vpop.f32.mrb[0].mxu0
  %2890 = vdwg.mxu0
  %2891 = vmatprep.subr.bf16.mxu0 %v2676
  %2892 = vmatpush1.bf16.msra.mxu0 %v2675
  %2893 = vmatprep.subr.bf16.mxu0 %v2684
  %2894 = vmatpush1.bf16.msra.mxu0 %v2683
  %2895 = vmatprep.subr.bf16.mxu0 %v2692
  %2896 = vmatpush1.bf16.msra.mxu0 %v2691
  %2897 = vmatprep.subr.bf16.mxu0 %v2700
  %2898 = vmatpush1.bf16.msra.mxu0 %v2699
  %2899 = vmatprep.subr.bf16.mxu0 %v2708
  %2900 = vmatpush1.bf16.msra.mxu0 %v2707
  %2901 = vmatprep.subr.bf16.mxu0 %v2716
  %2902 = vmatpush1.bf16.msra.mxu0 %v2715
  %2903 = vmatprep.subr.bf16.mxu0 %v2724
  %2904 = vmatpush1.bf16.msra.mxu0 %v2723
  %2905 = vmatprep.subr.bf16.mxu0 %v2732
  %2906 = vmatpush1.bf16.msra.mxu0 %v2731
  %2907 = vmatprep.subr.bf16.mxu0 %v2740
  %2908 = vmatpush1.bf16.msra.mxu0 %v2739
  %2909 = vmatprep.subr.bf16.mxu0 %v2748
  %2910 = vmatpush1.bf16.msra.mxu0 %v2747
  %2911 = vmatprep.subr.bf16.mxu0 %v2756
  %2912 = vmatpush1.bf16.msra.mxu0 %v2755
  %2913 = vmatprep.subr.bf16.mxu0 %v2764
  %2914 = vmatpush1.bf16.msra.mxu0 %v2763
  %2915 = vmatprep.subr.bf16.mxu0 %v2801
  %2916 = vmatpush1.bf16.msra.mxu0 %v2798
  %2917 = vmatprep.subr.bf16.mxu0 0
  %2918 = vmatpush1.bf16.msra.mxu0 0
  %2919 = vmatprep.subr.bf16.mxu0 0
  %2920 = vmatpush1.bf16.msra.mxu0 0
  %2921 = vmatprep.subr.bf16.mxu0 0
  %2922 = vmatpush1.bf16.msra.mxu0 0
  %2923 = vmatprep.mubr.bf16.mxu0 %v2783
  %2924 = vmatmul.mubr.bf16.gmra.mrb[0].mxu0 %v2778
  %v2925 = vpop.f32.mrb[0].mxu0
  %v2926 = vadd.f32 0.0, %v2925
  %v2927 = vpop.f32.mrb[0].mxu0
  %v2928 = vadd.f32 0.0, %v2927
  %v2929 = vpop.f32.mrb[0].mxu0
  %v2930 = vpop.f32.mrb[0].mxu0
  %2931 = vdwg.mxu0
  %2932 = vmatprep.subr.bf16.mxu0 %v2678
  %2933 = vmatpush1.bf16.msra.mxu0 %v2677
  %2934 = vmatprep.subr.bf16.mxu0 %v2686
  %2935 = vmatpush1.bf16.msra.mxu0 %v2685
  %2936 = vmatprep.subr.bf16.mxu0 %v2694
  %2937 = vmatpush1.bf16.msra.mxu0 %v2693
  %2938 = vmatprep.subr.bf16.mxu0 %v2702
  %2939 = vmatpush1.bf16.msra.mxu0 %v2701
  %2940 = vmatprep.subr.bf16.mxu0 %v2710
  %2941 = vmatpush1.bf16.msra.mxu0 %v2709
  %2942 = vmatprep.subr.bf16.mxu0 %v2718
  %2943 = vmatpush1.bf16.msra.mxu0 %v2717
  %2944 = vmatprep.subr.bf16.mxu0 %v2726
  %2945 = vmatpush1.bf16.msra.mxu0 %v2725
  %2946 = vmatprep.subr.bf16.mxu0 %v2734
  %2947 = vmatpush1.bf16.msra.mxu0 %v2733
  %2948 = vmatprep.subr.bf16.mxu0 %v2742
  %2949 = vmatpush1.bf16.msra.mxu0 %v2741
  %2950 = vmatprep.subr.bf16.mxu0 %v2750
  %2951 = vmatpush1.bf16.msra.mxu0 %v2749
  %2952 = vmatprep.subr.bf16.mxu0 %v2758
  %2953 = vmatpush1.bf16.msra.mxu0 %v2757
  %2954 = vmatprep.subr.bf16.mxu0 %v2766
  %2955 = vmatpush1.bf16.msra.mxu0 %v2765
  %2956 = vmatprep.subr.bf16.mxu0 %v2807
  %2957 = vmatpush1.bf16.msra.mxu0 %v2804
  %2958 = vmatprep.subr.bf16.mxu0 0
  %2959 = vmatpush1.bf16.msra.mxu0 0
  %2960 = vmatprep.subr.bf16.mxu0 0
  %2961 = vmatpush1.bf16.msra.mxu0 0
  %2962 = vmatprep.subr.bf16.mxu0 0
  %2963 = vmatpush1.bf16.msra.mxu0 0
  %2964 = vmatprep.mubr.bf16.mxu0 %v2783
  %2965 = vmatmul.mubr.bf16.gmra.mrb[0].mxu0 %v2778
  %v2966 = vpop.f32.mrb[0].mxu0
  %v2967 = vadd.f32 0.0, %v2966
  %v2968 = vpop.f32.mrb[0].mxu0
  %v2969 = vadd.f32 0.0, %v2968
  %v2970 = vpop.f32.mrb[0].mxu0
  %v2971 = vpop.f32.mrb[0].mxu0
  %2972 = vdwg.mxu0
  %2973 = vst [vmem:[#allocation3] sm:$0xff] %v2844
  %2974 = vst [vmem:[#allocation3 + $0x8] sm:$0xff] %v2846
  %2975 = vst [vmem:[#allocation3 + $0x10] sm:$0xff] %v2885
  %2976 = vst [vmem:[#allocation3 + $0x18] sm:$0xff] %v2887
  %2977 = vst [vmem:[#allocation3 + $0x20] sm:$0xff] %v2926
  %2978 = vst [vmem:[#allocation3 + $0x28] sm:$0xff] %v2928
  %2979 = vst [vmem:[#allocation3 + $0x30] sm:$0xff] %v2967
  %2980 = vst [vmem:[#allocation3 + $0x38] sm:$0xff] %v2969
  %s2981 = scalar_lea.vmem %s0, 40
  %v2982 = vld [vmem:[%s2981] sm:$0xff]
  %v2983 = vld [vmem:[%s2981 + $0x8] sm:$0xff]
  %v2984 = vld [vmem:[%s2981 + $0x10] sm:$0xff]
  %v2985 = vld [vmem:[%s2981 + $0x18] sm:$0xff]
  %v2986 = vld [vmem:[%s2981 + $0x20] sm:$0xf]
  %v2987 = vmul.f32 %v2982, %v581
  %v2988 = vmul.f32 %v2983, %v584
  %v2989 = vmul.f32 %v2984, %v586
  %v2990 = vmul.f32 %v2985, %v588
  %v2991 = vmul.f32 %v2986, %v579
  %v2997 = vcombine.high %v2987, %v2987
  %v2998 = vcombine.high %v2988, %v2988
  %v2999 = vcombine.high %v2989, %v2989
  %v3000 = vcombine.high %v2990, %v2990
  %3001 = vrot.lane.b32.xlu0 %v2987, 98
  %v3002 = vpop.permute.xlu0 %3001
  %3003 = vrot.lane.b32.xlu0 %v2997, 98
  %v3004 = vpop.permute.xlu0 %3003
  %3005 = vrot.lane.b32.xlu0 %v2988, 98
  %v3006 = vpop.permute.xlu0 %3005
  %3007 = vrot.lane.b32.xlu0 %v2998, 98
  %v3008 = vpop.permute.xlu0 %3007
  %3009 = vrot.lane.b32.xlu0 %v2989, 98
  %v3010 = vpop.permute.xlu0 %3009
  %3011 = vrot.lane.b32.xlu0 %v2999, 98
  %v3012 = vpop.permute.xlu0 %3011
  %3013 = vrot.lane.b32.xlu0 %v2990, 98
  %v3014 = vpop.permute.xlu0 %3013
  %3015 = vrot.lane.b32.xlu0 %v3000, 98
  %v3016 = vpop.permute.xlu0 %3015
  %3017 = vrot.lane.b32.xlu0 %v2991, 98
  %v3018 = vpop.permute.xlu0 %3017
  %v3019 = vsel %vm626, %v3002, %v3004
  %v3020 = vsel %vm626, %v3004, %v3006
  %v3021 = vsel %vm626, %v3006, %v3008
  %v3022 = vsel %vm626, %v3008, %v3010
  %v3023 = vsel %vm626, %v3010, %v3012
  %v3024 = vsel %vm626, %v3012, %v3014
  %v3025 = vsel %vm626, %v3014, %v3016
  %v3026 = vsel %vm626, %v3016, %v3018
  %3035 = vst [vmem:[#allocation2] sm:$0xf] %v3019
  %3036 = vst [vmem:[#allocation2 + $0x8] sm:$0xf] %v3020
  %3037 = vst [vmem:[#allocation2 + $0x10] sm:$0xf] %v3021
  %3038 = vst [vmem:[#allocation2 + $0x18] sm:$0xf] %v3022
  %3039 = vst [vmem:[#allocation2 + $0x20] sm:$0xf] %v3023
  %3040 = vst [vmem:[#allocation2 + $0x28] sm:$0xf] %v3024
  %3041 = vst [vmem:[#allocation2 + $0x30] sm:$0xf] %v3025
  %3042 = vst [vmem:[#allocation2 + $0x38] sm:$0xf] %v3026
  %v3043 = vld [vmem:[%s2981] sm:$0xff]
  %v3044 = vld [vmem:[%s2981 + $0x8] sm:$0xff]
  %v3045 = vld [vmem:[%s2981 + $0x10] sm:$0xff]
  %v3046 = vld [vmem:[%s2981 + $0x18] sm:$0xff]
  %v3047 = vld [vmem:[%s2981 + $0x20] sm:$0xf]
  %v3048 = vmul.f32 %v3043, %v681
  %v3049 = vmul.f32 %v3044, %v683
  %v3050 = vmul.f32 %v3045, %v685
  %v3051 = vmul.f32 %v3046, %v687
  %v3052 = vmul.f32 %v3047, %v679
  %v3058 = vcombine.high %v3048, %v3048
  %v3059 = vcombine.high %v3049, %v3049
  %v3060 = vcombine.high %v3050, %v3050
  %v3061 = vcombine.high %v3051, %v3051
  %3062 = vrot.lane.b32.xlu0 %v3048, 97
  %v3063 = vpop.permute.xlu0 %3062
  %3064 = vrot.lane.b32.xlu0 %v3058, 97
  %v3065 = vpop.permute.xlu0 %3064
  %3066 = vrot.lane.b32.xlu0 %v3049, 97
  %v3067 = vpop.permute.xlu0 %3066
  %3068 = vrot.lane.b32.xlu0 %v3059, 97
  %v3069 = vpop.permute.xlu0 %3068
  %3070 = vrot.lane.b32.xlu0 %v3050, 97
  %v3071 = vpop.permute.xlu0 %3070
  %3072 = vrot.lane.b32.xlu0 %v3060, 97
  %v3073 = vpop.permute.xlu0 %3072
  %3074 = vrot.lane.b32.xlu0 %v3051, 97
  %v3075 = vpop.permute.xlu0 %3074
  %3076 = vrot.lane.b32.xlu0 %v3061, 97
  %v3077 = vpop.permute.xlu0 %3076
  %3078 = vrot.lane.b32.xlu0 %v3052, 97
  %v3079 = vpop.permute.xlu0 %3078
  %v3080 = vsel %vm725, %v3063, %v3065
  %v3081 = vsel %vm725, %v3065, %v3067
  %v3082 = vsel %vm725, %v3067, %v3069
  %v3083 = vsel %vm725, %v3069, %v3071
  %v3084 = vsel %vm725, %v3071, %v3073
  %v3085 = vsel %vm725, %v3073, %v3075
  %v3086 = vsel %vm725, %v3075, %v3077
  %v3087 = vsel %vm725, %v3077, %v3079
  %3096 = vst [vmem:[#allocation2 + $0x40] sm:$0xf] %v3080
  %3097 = vst [vmem:[#allocation2 + $0x48] sm:$0xf] %v3081
  %3098 = vst [vmem:[#allocation2 + $0x50] sm:$0xf] %v3082
  %3099 = vst [vmem:[#allocation2 + $0x58] sm:$0xf] %v3083
  %3100 = vst [vmem:[#allocation2 + $0x60] sm:$0xf] %v3084
  %3101 = vst [vmem:[#allocation2 + $0x68] sm:$0xf] %v3085
  %3102 = vst [vmem:[#allocation2 + $0x70] sm:$0xf] %v3086
  %3103 = vst [vmem:[#allocation2 + $0x78] sm:$0xf] %v3087
  %v3104 = vld [vmem:[%s2981] sm:$0xff]
  %v3105 = vld [vmem:[%s2981 + $0x8] sm:$0xff]
  %v3106 = vld [vmem:[%s2981 + $0x10] sm:$0xff]
  %v3107 = vld [vmem:[%s2981 + $0x18] sm:$0xff]
  %v3108 = vld [vmem:[%s2981 + $0x20] sm:$0xf]
  %v3114 = vcombine.high %v3104, %v3104
  %v3115 = vcombine.high %v3105, %v3105
  %v3116 = vcombine.high %v3106, %v3106
  %v3117 = vcombine.high %v3107, %v3107
  %3118 = vrot.lane.b32.xlu0 %v3104, 96
  %v3119 = vpop.permute.xlu0 %3118
  %3120 = vrot.lane.b32.xlu0 %v3114, 96
  %v3121 = vpop.permute.xlu0 %3120
  %3122 = vrot.lane.b32.xlu0 %v3105, 96
  %v3123 = vpop.permute.xlu0 %3122
  %3124 = vrot.lane.b32.xlu0 %v3115, 96
  %v3125 = vpop.permute.xlu0 %3124
  %3126 = vrot.lane.b32.xlu0 %v3106, 96
  %v3127 = vpop.permute.xlu0 %3126
  %3128 = vrot.lane.b32.xlu0 %v3116, 96
  %v3129 = vpop.permute.xlu0 %3128
  %3130 = vrot.lane.b32.xlu0 %v3107, 96
  %v3131 = vpop.permute.xlu0 %3130
  %3132 = vrot.lane.b32.xlu0 %v3117, 96
  %v3133 = vpop.permute.xlu0 %3132
  %3134 = vrot.lane.b32.xlu0 %v3108, 96
  %v3135 = vpop.permute.xlu0 %3134
  %v3136 = vsel %vm782, %v3119, %v3121
  %v3137 = vsel %vm782, %v3121, %v3123
  %v3138 = vsel %vm782, %v3123, %v3125
  %v3139 = vsel %vm782, %v3125, %v3127
  %v3140 = vsel %vm782, %v3127, %v3129
  %v3141 = vsel %vm782, %v3129, %v3131
  %v3142 = vsel %vm782, %v3131, %v3133
  %v3143 = vsel %vm782, %v3133, %v3135
  %3152 = vst [vmem:[#allocation2 + $0x80] sm:$0xf] %v3136
  %3153 = vst [vmem:[#allocation2 + $0x88] sm:$0xf] %v3137
  %3154 = vst [vmem:[#allocation2 + $0x90] sm:$0xf] %v3138
  %3155 = vst [vmem:[#allocation2 + $0x98] sm:$0xf] %v3139
  %3156 = vst [vmem:[#allocation2 + $0xa0] sm:$0xf] %v3140
  %3157 = vst [vmem:[#allocation2 + $0xa8] sm:$0xf] %v3141
  %3158 = vst [vmem:[#allocation2 + $0xb0] sm:$0xf] %v3142
  %3159 = vst [vmem:[#allocation2 + $0xb8] sm:$0xf] %v3143
  %v3160 = vld [vmem:[%s2981] sm:$0xff]
  %v3161 = vld [vmem:[%s2981 + $0x8] sm:$0xff]
  %v3162 = vld [vmem:[%s2981 + $0x10] sm:$0xff]
  %v3163 = vld [vmem:[%s2981 + $0x18] sm:$0xff]
  %v3164 = vld [vmem:[%s2981 + $0x20] sm:$0xf]
  %v3165 = vmul.f32 %v3160, %v837
  %v3166 = vmul.f32 %v3161, %v839
  %v3167 = vmul.f32 %v3162, %v841
  %v3168 = vmul.f32 %v3163, %v843
  %v3169 = vmul.f32 %v3164, %v835
  %v3175 = vcombine.high %v3165, %v3165
  %v3176 = vcombine.high %v3166, %v3166
  %v3177 = vcombine.high %v3167, %v3167
  %v3178 = vcombine.high %v3168, %v3168
  %3179 = vrot.lane.b32.xlu0 %v3165, 95
  %v3180 = vpop.permute.xlu0 %3179
  %3181 = vrot.lane.b32.xlu0 %v3175, 95
  %v3182 = vpop.permute.xlu0 %3181
  %3183 = vrot.lane.b32.xlu0 %v3166, 95
  %v3184 = vpop.permute.xlu0 %3183
  %3185 = vrot.lane.b32.xlu0 %v3176, 95
  %v3186 = vpop.permute.xlu0 %3185
  %3187 = vrot.lane.b32.xlu0 %v3167, 95
  %v3188 = vpop.permute.xlu0 %3187
  %3189 = vrot.lane.b32.xlu0 %v3177, 95
  %v3190 = vpop.permute.xlu0 %3189
  %3191 = vrot.lane.b32.xlu0 %v3168, 95
  %v3192 = vpop.permute.xlu0 %3191
  %3193 = vrot.lane.b32.xlu0 %v3178, 95
  %v3194 = vpop.permute.xlu0 %3193
  %3195 = vrot.lane.b32.xlu0 %v3169, 95
  %v3196 = vpop.permute.xlu0 %3195
  %v3197 = vsel %vm881, %v3180, %v3182
  %v3198 = vsel %vm881, %v3182, %v3184
  %v3199 = vsel %vm881, %v3184, %v3186
  %v3200 = vsel %vm881, %v3186, %v3188
  %v3201 = vsel %vm881, %v3188, %v3190
  %v3202 = vsel %vm881, %v3190, %v3192
  %v3203 = vsel %vm881, %v3192, %v3194
  %v3204 = vsel %vm881, %v3194, %v3196
  %3213 = vst [vmem:[#allocation2 + $0xc0] sm:$0xf] %v3197
  %3214 = vst [vmem:[#allocation2 + $0xc8] sm:$0xf] %v3198
  %3215 = vst [vmem:[#allocation2 + $0xd0] sm:$0xf] %v3199
  %3216 = vst [vmem:[#allocation2 + $0xd8] sm:$0xf] %v3200
  %3217 = vst [vmem:[#allocation2 + $0xe0] sm:$0xf] %v3201
  %3218 = vst [vmem:[#allocation2 + $0xe8] sm:$0xf] %v3202
  %3219 = vst [vmem:[#allocation2 + $0xf0] sm:$0xf] %v3203
  %3220 = vst [vmem:[#allocation2 + $0xf8] sm:$0xf] %v3204
  %v3221 = vld [vmem:[%s2981] sm:$0xff]
  %v3222 = vld [vmem:[%s2981 + $0x8] sm:$0xff]
  %v3223 = vld [vmem:[%s2981 + $0x10] sm:$0xff]
  %v3224 = vld [vmem:[%s2981 + $0x18] sm:$0xff]
  %v3225 = vld [vmem:[%s2981 + $0x20] sm:$0xf]
  %v3226 = vmul.f32 %v3221, %v936
  %v3227 = vmul.f32 %v3222, %v938
  %v3228 = vmul.f32 %v3223, %v940
  %v3229 = vmul.f32 %v3224, %v942
  %v3230 = vmul.f32 %v3225, %v934
  %v3236 = vcombine.high %v3226, %v3226
  %v3237 = vcombine.high %v3227, %v3227
  %v3238 = vcombine.high %v3228, %v3228
  %v3239 = vcombine.high %v3229, %v3229
  %3240 = vrot.lane.b32.xlu0 %v3226, 94
  %v3241 = vpop.permute.xlu0 %3240
  %3242 = vrot.lane.b32.xlu0 %v3236, 94
  %v3243 = vpop.permute.xlu0 %3242
  %3244 = vrot.lane.b32.xlu0 %v3227, 94
  %v3245 = vpop.permute.xlu0 %3244
  %3246 = vrot.lane.b32.xlu0 %v3237, 94
  %v3247 = vpop.permute.xlu0 %3246
  %3248 = vrot.lane.b32.xlu0 %v3228, 94
  %v3249 = vpop.permute.xlu0 %3248
  %3250 = vrot.lane.b32.xlu0 %v3238, 94
  %v3251 = vpop.permute.xlu0 %3250
  %3252 = vrot.lane.b32.xlu0 %v3229, 94
  %v3253 = vpop.permute.xlu0 %3252
  %3254 = vrot.lane.b32.xlu0 %v3239, 94
  %v3255 = vpop.permute.xlu0 %3254
  %3256 = vrot.lane.b32.xlu0 %v3230, 94
  %v3257 = vpop.permute.xlu0 %3256
  %v3258 = vsel %vm980, %v3241, %v3243
  %v3259 = vsel %vm980, %v3243, %v3245
  %v3260 = vsel %vm980, %v3245, %v3247
  %v3261 = vsel %vm980, %v3247, %v3249
  %v3262 = vsel %vm980, %v3249, %v3251
  %v3263 = vsel %vm980, %v3251, %v3253
  %v3264 = vsel %vm980, %v3253, %v3255
  %v3265 = vsel %vm980, %v3255, %v3257
  %3274 = vst [vmem:[#allocation2 + $0x100] sm:$0xf] %v3258
  %3275 = vst [vmem:[#allocation2 + $0x108] sm:$0xf] %v3259
  %3276 = vst [vmem:[#allocation2 + $0x110] sm:$0xf] %v3260
  %3277 = vst [vmem:[#allocation2 + $0x118] sm:$0xf] %v3261
  %3278 = vst [vmem:[#allocation2 + $0x120] sm:$0xf] %v3262
  %3279 = vst [vmem:[#allocation2 + $0x128] sm:$0xf] %v3263
  %3280 = vst [vmem:[#allocation2 + $0x130] sm:$0xf] %v3264
  %3281 = vst [vmem:[#allocation2 + $0x138] sm:$0xf] %v3265
  %v3282 = vld [vmem:[%s2981] sm:$0xff]
  %v3283 = vld [vmem:[%s2981 + $0x8] sm:$0xff]
  %v3284 = vld [vmem:[%s2981 + $0x10] sm:$0xff]
  %v3285 = vld [vmem:[%s2981 + $0x18] sm:$0xff]
  %v3286 = vld [vmem:[%s2981 + $0x20] sm:$0xf]
  %v3287 = vmul.f32 %v3282, %v1023
  %v3288 = vmul.f32 %v3283, %v1025
  %v3289 = vmul.f32 %v3284, %v1027
  %v3290 = vmul.f32 %v3285, %v1029
  %v3291 = vmul.f32 %v3286, %v1021
  %v3297 = vcombine.high %v3287, %v3287
  %v3298 = vcombine.high %v3288, %v3288
  %v3299 = vcombine.high %v3289, %v3289
  %v3300 = vcombine.high %v3290, %v3290
  %3301 = vrot.lane.b32.xlu0 %v3287, 66
  %v3302 = vpop.permute.xlu0 %3301
  %3303 = vrot.lane.b32.xlu0 %v3297, 66
  %v3304 = vpop.permute.xlu0 %3303
  %3305 = vrot.lane.b32.xlu0 %v3288, 66
  %v3306 = vpop.permute.xlu0 %3305
  %3307 = vrot.lane.b32.xlu0 %v3298, 66
  %v3308 = vpop.permute.xlu0 %3307
  %3309 = vrot.lane.b32.xlu0 %v3289, 66
  %v3310 = vpop.permute.xlu0 %3309
  %3311 = vrot.lane.b32.xlu0 %v3299, 66
  %v3312 = vpop.permute.xlu0 %3311
  %3313 = vrot.lane.b32.xlu0 %v3290, 66
  %v3314 = vpop.permute.xlu0 %3313
  %3315 = vrot.lane.b32.xlu0 %v3300, 66
  %v3316 = vpop.permute.xlu0 %3315
  %3317 = vrot.lane.b32.xlu0 %v3291, 66
  %v3318 = vpop.permute.xlu0 %3317
  %v3319 = vsel %vm1067, %v3302, %v3304
  %v3320 = vsel %vm1067, %v3304, %v3306
  %v3321 = vsel %vm1067, %v3306, %v3308
  %v3322 = vsel %vm1067, %v3308, %v3310
  %v3323 = vsel %vm1067, %v3310, %v3312
  %v3324 = vsel %vm1067, %v3312, %v3314
  %v3325 = vsel %vm1067, %v3314, %v3316
  %v3326 = vsel %vm1067, %v3316, %v3318
  %3335 = vst [vmem:[#allocation2 + $0x140] sm:$0xf] %v3319
  %3336 = vst [vmem:[#allocation2 + $0x148] sm:$0xf] %v3320
  %3337 = vst [vmem:[#allocation2 + $0x150] sm:$0xf] %v3321
  %3338 = vst [vmem:[#allocation2 + $0x158] sm:$0xf] %v3322
  %3339 = vst [vmem:[#allocation2 + $0x160] sm:$0xf] %v3323
  %3340 = vst [vmem:[#allocation2 + $0x168] sm:$0xf] %v3324
  %3341 = vst [vmem:[#allocation2 + $0x170] sm:$0xf] %v3325
  %3342 = vst [vmem:[#allocation2 + $0x178] sm:$0xf] %v3326
  %v3343 = vld [vmem:[%s2981] sm:$0xff]
  %v3344 = vld [vmem:[%s2981 + $0x8] sm:$0xff]
  %v3345 = vld [vmem:[%s2981 + $0x10] sm:$0xff]
  %v3346 = vld [vmem:[%s2981 + $0x18] sm:$0xff]
  %v3347 = vld [vmem:[%s2981 + $0x20] sm:$0xf]
  %v3348 = vmul.f32 %v3343, %v1110
  %v3349 = vmul.f32 %v3344, %v1112
  %v3350 = vmul.f32 %v3345, %v1114
  %v3351 = vmul.f32 %v3346, %v1116
  %v3352 = vmul.f32 %v3347, %v1108
  %v3358 = vcombine.high %v3348, %v3348
  %v3359 = vcombine.high %v3349, %v3349
  %v3360 = vcombine.high %v3350, %v3350
  %v3361 = vcombine.high %v3351, %v3351
  %3362 = vrot.lane.b32.xlu0 %v3348, 65
  %v3363 = vpop.permute.xlu0 %3362
  %3364 = vrot.lane.b32.xlu0 %v3358, 65
  %v3365 = vpop.permute.xlu0 %3364
  %3366 = vrot.lane.b32.xlu0 %v3349, 65
  %v3367 = vpop.permute.xlu0 %3366
  %3368 = vrot.lane.b32.xlu0 %v3359, 65
  %v3369 = vpop.permute.xlu0 %3368
  %3370 = vrot.lane.b32.xlu0 %v3350, 65
  %v3371 = vpop.permute.xlu0 %3370
  %3372 = vrot.lane.b32.xlu0 %v3360, 65
  %v3373 = vpop.permute.xlu0 %3372
  %3374 = vrot.lane.b32.xlu0 %v3351, 65
  %v3375 = vpop.permute.xlu0 %3374
  %3376 = vrot.lane.b32.xlu0 %v3361, 65
  %v3377 = vpop.permute.xlu0 %3376
  %3378 = vrot.lane.b32.xlu0 %v3352, 65
  %v3379 = vpop.permute.xlu0 %3378
  %v3380 = vsel %vm1154, %v3363, %v3365
  %v3381 = vsel %vm1154, %v3365, %v3367
  %v3382 = vsel %vm1154, %v3367, %v3369
  %v3383 = vsel %vm1154, %v3369, %v3371
  %v3384 = vsel %vm1154, %v3371, %v3373
  %v3385 = vsel %vm1154, %v3373, %v3375
  %v3386 = vsel %vm1154, %v3375, %v3377
  %v3387 = vsel %vm1154, %v3377, %v3379
  %3396 = vst [vmem:[#allocation2 + $0x180] sm:$0xf] %v3380
  %3397 = vst [vmem:[#allocation2 + $0x188] sm:$0xf] %v3381
  %3398 = vst [vmem:[#allocation2 + $0x190] sm:$0xf] %v3382
  %3399 = vst [vmem:[#allocation2 + $0x198] sm:$0xf] %v3383
  %3400 = vst [vmem:[#allocation2 + $0x1a0] sm:$0xf] %v3384
  %3401 = vst [vmem:[#allocation2 + $0x1a8] sm:$0xf] %v3385
  %3402 = vst [vmem:[#allocation2 + $0x1b0] sm:$0xf] %v3386
  %3403 = vst [vmem:[#allocation2 + $0x1b8] sm:$0xf] %v3387
  %v3404 = vld [vmem:[%s2981] sm:$0xff]
  %v3405 = vld [vmem:[%s2981 + $0x8] sm:$0xff]
  %v3406 = vld [vmem:[%s2981 + $0x10] sm:$0xff]
  %v3407 = vld [vmem:[%s2981 + $0x18] sm:$0xff]
  %v3408 = vld [vmem:[%s2981 + $0x20] sm:$0xf]
  %v3414 = vcombine.high %v3404, %v3404
  %v3415 = vcombine.high %v3405, %v3405
  %v3416 = vcombine.high %v3406, %v3406
  %v3417 = vcombine.high %v3407, %v3407
  %3418 = vrot.lane.b32.xlu0 %v3404, 64
  %v3419 = vpop.permute.xlu0 %3418
  %3420 = vrot.lane.b32.xlu0 %v3414, 64
  %v3421 = vpop.permute.xlu0 %3420
  %3422 = vrot.lane.b32.xlu0 %v3405, 64
  %v3423 = vpop.permute.xlu0 %3422
  %3424 = vrot.lane.b32.xlu0 %v3415, 64
  %v3425 = vpop.permute.xlu0 %3424
  %3426 = vrot.lane.b32.xlu0 %v3406, 64
  %v3427 = vpop.permute.xlu0 %3426
  %3428 = vrot.lane.b32.xlu0 %v3416, 64
  %v3429 = vpop.permute.xlu0 %3428
  %3430 = vrot.lane.b32.xlu0 %v3407, 64
  %v3431 = vpop.permute.xlu0 %3430
  %3432 = vrot.lane.b32.xlu0 %v3417, 64
  %v3433 = vpop.permute.xlu0 %3432
  %3434 = vrot.lane.b32.xlu0 %v3408, 64
  %v3435 = vpop.permute.xlu0 %3434
  %v3436 = vsel %vm1211, %v3419, %v3421
  %v3437 = vsel %vm1211, %v3421, %v3423
  %v3438 = vsel %vm1211, %v3423, %v3425
  %v3439 = vsel %vm1211, %v3425, %v3427
  %v3440 = vsel %vm1211, %v3427, %v3429
  %v3441 = vsel %vm1211, %v3429, %v3431
  %v3442 = vsel %vm1211, %v3431, %v3433
  %v3443 = vsel %vm1211, %v3433, %v3435
  %3452 = vst [vmem:[#allocation2 + $0x1c0] sm:$0xf] %v3436
  %3453 = vst [vmem:[#allocation2 + $0x1c8] sm:$0xf] %v3437
  %3454 = vst [vmem:[#allocation2 + $0x1d0] sm:$0xf] %v3438
  %3455 = vst [vmem:[#allocation2 + $0x1d8] sm:$0xf] %v3439
  %3456 = vst [vmem:[#allocation2 + $0x1e0] sm:$0xf] %v3440
  %3457 = vst [vmem:[#allocation2 + $0x1e8] sm:$0xf] %v3441
  %3458 = vst [vmem:[#allocation2 + $0x1f0] sm:$0xf] %v3442
  %3459 = vst [vmem:[#allocation2 + $0x1f8] sm:$0xf] %v3443
  %v3460 = vld [vmem:[%s2981] sm:$0xff]
  %v3461 = vld [vmem:[%s2981 + $0x8] sm:$0xff]
  %v3462 = vld [vmem:[%s2981 + $0x10] sm:$0xff]
  %v3463 = vld [vmem:[%s2981 + $0x18] sm:$0xff]
  %v3464 = vld [vmem:[%s2981 + $0x20] sm:$0xf]
  %v3465 = vmul.f32 %v3460, %v1253
  %v3466 = vmul.f32 %v3461, %v1255
  %v3467 = vmul.f32 %v3462, %v1257
  %v3468 = vmul.f32 %v3463, %v1259
  %v3469 = vmul.f32 %v3464, %v1252
  %v3475 = vcombine.high %v3465, %v3465
  %v3476 = vcombine.high %v3466, %v3466
  %v3477 = vcombine.high %v3467, %v3467
  %v3478 = vcombine.high %v3468, %v3468
  %3479 = vrot.lane.b32.xlu0 %v3465, 63
  %v3480 = vpop.permute.xlu0 %3479
  %3481 = vrot.lane.b32.xlu0 %v3475, 63
  %v3482 = vpop.permute.xlu0 %3481
  %3483 = vrot.lane.b32.xlu0 %v3466, 63
  %v3484 = vpop.permute.xlu0 %3483
  %3485 = vrot.lane.b32.xlu0 %v3476, 63
  %v3486 = vpop.permute.xlu0 %3485
  %3487 = vrot.lane.b32.xlu0 %v3467, 63
  %v3488 = vpop.permute.xlu0 %3487
  %3489 = vrot.lane.b32.xlu0 %v3477, 63
  %v3490 = vpop.permute.xlu0 %3489
  %3491 = vrot.lane.b32.xlu0 %v3468, 63
  %v3492 = vpop.permute.xlu0 %3491
  %3493 = vrot.lane.b32.xlu0 %v3478, 63
  %v3494 = vpop.permute.xlu0 %3493
  %3495 = vrot.lane.b32.xlu0 %v3469, 63
  %v3496 = vpop.permute.xlu0 %3495
  %v3497 = vsel %vm1109, %v3480, %v3482
  %v3498 = vsel %vm1109, %v3482, %v3484
  %v3499 = vsel %vm1109, %v3484, %v3486
  %v3500 = vsel %vm1109, %v3486, %v3488
  %v3501 = vsel %vm1109, %v3488, %v3490
  %v3502 = vsel %vm1109, %v3490, %v3492
  %v3503 = vsel %vm1109, %v3492, %v3494
  %v3504 = vsel %vm1109, %v3494, %v3496
  %3513 = vst [vmem:[#allocation2 + $0x200] sm:$0xf] %v3497
  %3514 = vst [vmem:[#allocation2 + $0x208] sm:$0xf] %v3498
  %3515 = vst [vmem:[#allocation2 + $0x210] sm:$0xf] %v3499
  %3516 = vst [vmem:[#allocation2 + $0x218] sm:$0xf] %v3500
  %3517 = vst [vmem:[#allocation2 + $0x220] sm:$0xf] %v3501
  %3518 = vst [vmem:[#allocation2 + $0x228] sm:$0xf] %v3502
  %3519 = vst [vmem:[#allocation2 + $0x230] sm:$0xf] %v3503
  %3520 = vst [vmem:[#allocation2 + $0x238] sm:$0xf] %v3504
  %v3521 = vld [vmem:[%s2981] sm:$0xff]
  %v3522 = vld [vmem:[%s2981 + $0x8] sm:$0xff]
  %v3523 = vld [vmem:[%s2981 + $0x10] sm:$0xff]
  %v3524 = vld [vmem:[%s2981 + $0x18] sm:$0xff]
  %v3525 = vld [vmem:[%s2981 + $0x20] sm:$0xf]
  %v3526 = vmul.f32 %v3521, %v1338
  %v3527 = vmul.f32 %v3522, %v1340
  %v3528 = vmul.f32 %v3523, %v1342
  %v3529 = vmul.f32 %v3524, %v1344
  %v3530 = vmul.f32 %v3525, %v1337
  %v3536 = vcombine.high %v3526, %v3526
  %v3537 = vcombine.high %v3527, %v3527
  %v3538 = vcombine.high %v3528, %v3528
  %v3539 = vcombine.high %v3529, %v3529
  %3540 = vrot.lane.b32.xlu0 %v3526, 62
  %v3541 = vpop.permute.xlu0 %3540
  %3542 = vrot.lane.b32.xlu0 %v3536, 62
  %v3543 = vpop.permute.xlu0 %3542
  %3544 = vrot.lane.b32.xlu0 %v3527, 62
  %v3545 = vpop.permute.xlu0 %3544
  %3546 = vrot.lane.b32.xlu0 %v3537, 62
  %v3547 = vpop.permute.xlu0 %3546
  %3548 = vrot.lane.b32.xlu0 %v3528, 62
  %v3549 = vpop.permute.xlu0 %3548
  %3550 = vrot.lane.b32.xlu0 %v3538, 62
  %v3551 = vpop.permute.xlu0 %3550
  %3552 = vrot.lane.b32.xlu0 %v3529, 62
  %v3553 = vpop.permute.xlu0 %3552
  %3554 = vrot.lane.b32.xlu0 %v3539, 62
  %v3555 = vpop.permute.xlu0 %3554
  %3556 = vrot.lane.b32.xlu0 %v3530, 62
  %v3557 = vpop.permute.xlu0 %3556
  %v3558 = vsel %vm1022, %v3541, %v3543
  %v3559 = vsel %vm1022, %v3543, %v3545
  %v3560 = vsel %vm1022, %v3545, %v3547
  %v3561 = vsel %vm1022, %v3547, %v3549
  %v3562 = vsel %vm1022, %v3549, %v3551
  %v3563 = vsel %vm1022, %v3551, %v3553
  %v3564 = vsel %vm1022, %v3553, %v3555
  %v3565 = vsel %vm1022, %v3555, %v3557
  %3574 = vst [vmem:[#allocation2 + $0x240] sm:$0xf] %v3558
  %3575 = vst [vmem:[#allocation2 + $0x248] sm:$0xf] %v3559
  %3576 = vst [vmem:[#allocation2 + $0x250] sm:$0xf] %v3560
  %3577 = vst [vmem:[#allocation2 + $0x258] sm:$0xf] %v3561
  %3578 = vst [vmem:[#allocation2 + $0x260] sm:$0xf] %v3562
  %3579 = vst [vmem:[#allocation2 + $0x268] sm:$0xf] %v3563
  %3580 = vst [vmem:[#allocation2 + $0x270] sm:$0xf] %v3564
  %3581 = vst [vmem:[#allocation2 + $0x278] sm:$0xf] %v3565
  %v3582 = vld [vmem:[%s2981] sm:$0xff]
  %v3583 = vld [vmem:[%s2981 + $0x8] sm:$0xff]
  %v3584 = vld [vmem:[%s2981 + $0x10] sm:$0xff]
  %v3585 = vld [vmem:[%s2981 + $0x18] sm:$0xff]
  %v3586 = vld [vmem:[%s2981 + $0x20] sm:$0xf]
  %v3587 = vmul.f32 %v3582, %v1423
  %v3588 = vmul.f32 %v3583, %v1425
  %v3589 = vmul.f32 %v3584, %v1427
  %v3590 = vmul.f32 %v3585, %v1429
  %v3591 = vmul.f32 %v3586, %v1422
  %v3597 = vcombine.high %v3587, %v3587
  %v3598 = vcombine.high %v3588, %v3588
  %v3599 = vcombine.high %v3589, %v3589
  %v3600 = vcombine.high %v3590, %v3590
  %3601 = vrot.lane.b32.xlu0 %v3587, 34
  %v3602 = vpop.permute.xlu0 %3601
  %3603 = vrot.lane.b32.xlu0 %v3597, 34
  %v3604 = vpop.permute.xlu0 %3603
  %3605 = vrot.lane.b32.xlu0 %v3588, 34
  %v3606 = vpop.permute.xlu0 %3605
  %3607 = vrot.lane.b32.xlu0 %v3598, 34
  %v3608 = vpop.permute.xlu0 %3607
  %3609 = vrot.lane.b32.xlu0 %v3589, 34
  %v3610 = vpop.permute.xlu0 %3609
  %3611 = vrot.lane.b32.xlu0 %v3599, 34
  %v3612 = vpop.permute.xlu0 %3611
  %3613 = vrot.lane.b32.xlu0 %v3590, 34
  %v3614 = vpop.permute.xlu0 %3613
  %3615 = vrot.lane.b32.xlu0 %v3600, 34
  %v3616 = vpop.permute.xlu0 %3615
  %3617 = vrot.lane.b32.xlu0 %v3591, 34
  %v3618 = vpop.permute.xlu0 %3617
  %v3619 = vsel %vm935, %v3602, %v3604
  %v3620 = vsel %vm935, %v3604, %v3606
  %v3621 = vsel %vm935, %v3606, %v3608
  %v3622 = vsel %vm935, %v3608, %v3610
  %v3623 = vsel %vm935, %v3610, %v3612
  %v3624 = vsel %vm935, %v3612, %v3614
  %v3625 = vsel %vm935, %v3614, %v3616
  %v3626 = vsel %vm935, %v3616, %v3618
  %3635 = vst [vmem:[#allocation2 + $0x280] sm:$0xf] %v3619
  %3636 = vst [vmem:[#allocation2 + $0x288] sm:$0xf] %v3620
  %3637 = vst [vmem:[#allocation2 + $0x290] sm:$0xf] %v3621
  %3638 = vst [vmem:[#allocation2 + $0x298] sm:$0xf] %v3622
  %3639 = vst [vmem:[#allocation2 + $0x2a0] sm:$0xf] %v3623
  %3640 = vst [vmem:[#allocation2 + $0x2a8] sm:$0xf] %v3624
  %3641 = vst [vmem:[#allocation2 + $0x2b0] sm:$0xf] %v3625
  %3642 = vst [vmem:[#allocation2 + $0x2b8] sm:$0xf] %v3626
  %v3643 = vld [vmem:[%s2981] sm:$0xff]
  %v3644 = vld [vmem:[%s2981 + $0x8] sm:$0xff]
  %v3645 = vld [vmem:[%s2981 + $0x10] sm:$0xff]
  %v3646 = vld [vmem:[%s2981 + $0x18] sm:$0xff]
  %v3647 = vld [vmem:[%s2981 + $0x20] sm:$0xf]
  %v3648 = vmul.f32 %v3643, %v1508
  %v3649 = vmul.f32 %v3644, %v1510
  %v3650 = vmul.f32 %v3645, %v1512
  %v3651 = vmul.f32 %v3646, %v1514
  %v3652 = vmul.f32 %v3647, %v1507
  %v3658 = vcombine.high %v3648, %v3648
  %v3659 = vcombine.high %v3649, %v3649
  %v3660 = vcombine.high %v3650, %v3650
  %v3661 = vcombine.high %v3651, %v3651
  %3662 = vrot.lane.b32.xlu0 %v3648, 33
  %v3663 = vpop.permute.xlu0 %3662
  %3664 = vrot.lane.b32.xlu0 %v3658, 33
  %v3665 = vpop.permute.xlu0 %3664
  %3666 = vrot.lane.b32.xlu0 %v3649, 33
  %v3667 = vpop.permute.xlu0 %3666
  %3668 = vrot.lane.b32.xlu0 %v3659, 33
  %v3669 = vpop.permute.xlu0 %3668
  %3670 = vrot.lane.b32.xlu0 %v3650, 33
  %v3671 = vpop.permute.xlu0 %3670
  %3672 = vrot.lane.b32.xlu0 %v3660, 33
  %v3673 = vpop.permute.xlu0 %3672
  %3674 = vrot.lane.b32.xlu0 %v3651, 33
  %v3675 = vpop.permute.xlu0 %3674
  %3676 = vrot.lane.b32.xlu0 %v3661, 33
  %v3677 = vpop.permute.xlu0 %3676
  %3678 = vrot.lane.b32.xlu0 %v3652, 33
  %v3679 = vpop.permute.xlu0 %3678
  %v3680 = vsel %vm836, %v3663, %v3665
  %v3681 = vsel %vm836, %v3665, %v3667
  %v3682 = vsel %vm836, %v3667, %v3669
  %v3683 = vsel %vm836, %v3669, %v3671
  %v3684 = vsel %vm836, %v3671, %v3673
  %v3685 = vsel %vm836, %v3673, %v3675
  %v3686 = vsel %vm836, %v3675, %v3677
  %v3687 = vsel %vm836, %v3677, %v3679
  %3696 = vst [vmem:[#allocation2 + $0x2c0] sm:$0xf] %v3680
  %3697 = vst [vmem:[#allocation2 + $0x2c8] sm:$0xf] %v3681
  %3698 = vst [vmem:[#allocation2 + $0x2d0] sm:$0xf] %v3682
  %3699 = vst [vmem:[#allocation2 + $0x2d8] sm:$0xf] %v3683
  %3700 = vst [vmem:[#allocation2 + $0x2e0] sm:$0xf] %v3684
  %3701 = vst [vmem:[#allocation2 + $0x2e8] sm:$0xf] %v3685
  %3702 = vst [vmem:[#allocation2 + $0x2f0] sm:$0xf] %v3686
  %3703 = vst [vmem:[#allocation2 + $0x2f8] sm:$0xf] %v3687
  %v3704 = vld [vmem:[%s2981] sm:$0xff]
  %v3705 = vld [vmem:[%s2981 + $0x8] sm:$0xff]
  %v3706 = vld [vmem:[%s2981 + $0x10] sm:$0xff]
  %v3707 = vld [vmem:[%s2981 + $0x18] sm:$0xff]
  %v3708 = vld [vmem:[%s2981 + $0x20] sm:$0xf]
  %v3714 = vcombine.high %v3704, %v3704
  %v3715 = vcombine.high %v3705, %v3705
  %v3716 = vcombine.high %v3706, %v3706
  %v3717 = vcombine.high %v3707, %v3707
  %3718 = vrot.lane.b32.xlu0 %v3704, 32
  %v3719 = vpop.permute.xlu0 %3718
  %3720 = vrot.lane.b32.xlu0 %v3714, 32
  %v3721 = vpop.permute.xlu0 %3720
  %3722 = vrot.lane.b32.xlu0 %v3705, 32
  %v3723 = vpop.permute.xlu0 %3722
  %3724 = vrot.lane.b32.xlu0 %v3715, 32
  %v3725 = vpop.permute.xlu0 %3724
  %3726 = vrot.lane.b32.xlu0 %v3706, 32
  %v3727 = vpop.permute.xlu0 %3726
  %3728 = vrot.lane.b32.xlu0 %v3716, 32
  %v3729 = vpop.permute.xlu0 %3728
  %3730 = vrot.lane.b32.xlu0 %v3707, 32
  %v3731 = vpop.permute.xlu0 %3730
  %3732 = vrot.lane.b32.xlu0 %v3717, 32
  %v3733 = vpop.permute.xlu0 %3732
  %3734 = vrot.lane.b32.xlu0 %v3708, 32
  %v3735 = vpop.permute.xlu0 %3734
  %v3736 = vsel %vm1608, %v3719, %v3721
  %v3737 = vsel %vm1608, %v3721, %v3723
  %v3738 = vsel %vm1608, %v3723, %v3725
  %v3739 = vsel %vm1608, %v3725, %v3727
  %v3740 = vsel %vm1608, %v3727, %v3729
  %v3741 = vsel %vm1608, %v3729, %v3731
  %v3742 = vsel %vm1608, %v3731, %v3733
  %v3743 = vsel %vm1608, %v3733, %v3735
  %3752 = vst [vmem:[#allocation2 + $0x300] sm:$0xf] %v3736
  %3753 = vst [vmem:[#allocation2 + $0x308] sm:$0xf] %v3737
  %3754 = vst [vmem:[#allocation2 + $0x310] sm:$0xf] %v3738
  %3755 = vst [vmem:[#allocation2 + $0x318] sm:$0xf] %v3739
  %3756 = vst [vmem:[#allocation2 + $0x320] sm:$0xf] %v3740
  %3757 = vst [vmem:[#allocation2 + $0x328] sm:$0xf] %v3741
  %3758 = vst [vmem:[#allocation2 + $0x330] sm:$0xf] %v3742
  %3759 = vst [vmem:[#allocation2 + $0x338] sm:$0xf] %v3743
  %v3760 = vld [vmem:[%s2981] sm:$0xff]
  %v3761 = vld [vmem:[%s2981 + $0x8] sm:$0xff]
  %v3762 = vld [vmem:[%s2981 + $0x10] sm:$0xff]
  %v3763 = vld [vmem:[%s2981 + $0x18] sm:$0xff]
  %v3764 = vld [vmem:[%s2981 + $0x20] sm:$0xf]
  %v3765 = vmul.f32 %v3760, %v1650
  %v3766 = vmul.f32 %v3761, %v1652
  %v3767 = vmul.f32 %v3762, %v1654
  %v3768 = vmul.f32 %v3763, %v1656
  %v3769 = vmul.f32 %v3764, %v1649
  %v3775 = vcombine.high %v3765, %v3765
  %v3776 = vcombine.high %v3766, %v3766
  %v3777 = vcombine.high %v3767, %v3767
  %v3778 = vcombine.high %v3768, %v3768
  %3779 = vrot.lane.b32.xlu0 %v3765, 31
  %v3780 = vpop.permute.xlu0 %3779
  %3781 = vrot.lane.b32.xlu0 %v3775, 31
  %v3782 = vpop.permute.xlu0 %3781
  %3783 = vrot.lane.b32.xlu0 %v3766, 31
  %v3784 = vpop.permute.xlu0 %3783
  %3785 = vrot.lane.b32.xlu0 %v3776, 31
  %v3786 = vpop.permute.xlu0 %3785
  %3787 = vrot.lane.b32.xlu0 %v3767, 31
  %v3788 = vpop.permute.xlu0 %3787
  %3789 = vrot.lane.b32.xlu0 %v3777, 31
  %v3790 = vpop.permute.xlu0 %3789
  %3791 = vrot.lane.b32.xlu0 %v3768, 31
  %v3792 = vpop.permute.xlu0 %3791
  %3793 = vrot.lane.b32.xlu0 %v3778, 31
  %v3794 = vpop.permute.xlu0 %3793
  %3795 = vrot.lane.b32.xlu0 %v3769, 31
  %v3796 = vpop.permute.xlu0 %3795
  %v3797 = vsel %vm680, %v3780, %v3782
  %v3798 = vsel %vm680, %v3782, %v3784
  %v3799 = vsel %vm680, %v3784, %v3786
  %v3800 = vsel %vm680, %v3786, %v3788
  %v3801 = vsel %vm680, %v3788, %v3790
  %v3802 = vsel %vm680, %v3790, %v3792
  %v3803 = vsel %vm680, %v3792, %v3794
  %v3804 = vsel %vm680, %v3794, %v3796
  %3813 = vst [vmem:[#allocation2 + $0x340] sm:$0xf] %v3797
  %3814 = vst [vmem:[#allocation2 + $0x348] sm:$0xf] %v3798
  %3815 = vst [vmem:[#allocation2 + $0x350] sm:$0xf] %v3799
  %3816 = vst [vmem:[#allocation2 + $0x358] sm:$0xf] %v3800
  %3817 = vst [vmem:[#allocation2 + $0x360] sm:$0xf] %v3801
  %3818 = vst [vmem:[#allocation2 + $0x368] sm:$0xf] %v3802
  %3819 = vst [vmem:[#allocation2 + $0x370] sm:$0xf] %v3803
  %3820 = vst [vmem:[#allocation2 + $0x378] sm:$0xf] %v3804
  %v3821 = vld [vmem:[%s2981] sm:$0xff]
  %v3822 = vld [vmem:[%s2981 + $0x8] sm:$0xff]
  %v3823 = vld [vmem:[%s2981 + $0x10] sm:$0xff]
  %v3824 = vld [vmem:[%s2981 + $0x18] sm:$0xff]
  %v3825 = vld [vmem:[%s2981 + $0x20] sm:$0xf]
  %v3826 = vmul.f32 %v3821, %v1735
  %v3827 = vmul.f32 %v3822, %v1737
  %v3828 = vmul.f32 %v3823, %v1739
  %v3829 = vmul.f32 %v3824, %v1741
  %v3830 = vmul.f32 %v3825, %v1734
  %v3836 = vcombine.high %v3826, %v3826
  %v3837 = vcombine.high %v3827, %v3827
  %v3838 = vcombine.high %v3828, %v3828
  %v3839 = vcombine.high %v3829, %v3829
  %3840 = vrot.lane.b32.xlu0 %v3826, 30
  %v3841 = vpop.permute.xlu0 %3840
  %3842 = vrot.lane.b32.xlu0 %v3836, 30
  %v3843 = vpop.permute.xlu0 %3842
  %3844 = vrot.lane.b32.xlu0 %v3827, 30
  %v3845 = vpop.permute.xlu0 %3844
  %3846 = vrot.lane.b32.xlu0 %v3837, 30
  %v3847 = vpop.permute.xlu0 %3846
  %3848 = vrot.lane.b32.xlu0 %v3828, 30
  %v3849 = vpop.permute.xlu0 %3848
  %3850 = vrot.lane.b32.xlu0 %v3838, 30
  %v3851 = vpop.permute.xlu0 %3850
  %3852 = vrot.lane.b32.xlu0 %v3829, 30
  %v3853 = vpop.permute.xlu0 %3852
  %3854 = vrot.lane.b32.xlu0 %v3839, 30
  %v3855 = vpop.permute.xlu0 %3854
  %3856 = vrot.lane.b32.xlu0 %v3830, 30
  %v3857 = vpop.permute.xlu0 %3856
  %v3858 = vsel %vm580, %v3841, %v3843
  %v3859 = vsel %vm580, %v3843, %v3845
  %v3860 = vsel %vm580, %v3845, %v3847
  %v3861 = vsel %vm580, %v3847, %v3849
  %v3862 = vsel %vm580, %v3849, %v3851
  %v3863 = vsel %vm580, %v3851, %v3853
  %v3864 = vsel %vm580, %v3853, %v3855
  %v3865 = vsel %vm580, %v3855, %v3857
  %3874 = vst [vmem:[#allocation2 + $0x380] sm:$0xf] %v3858
  %3875 = vst [vmem:[#allocation2 + $0x388] sm:$0xf] %v3859
  %3876 = vst [vmem:[#allocation2 + $0x390] sm:$0xf] %v3860
  %3877 = vst [vmem:[#allocation2 + $0x398] sm:$0xf] %v3861
  %3878 = vst [vmem:[#allocation2 + $0x3a0] sm:$0xf] %v3862
  %3879 = vst [vmem:[#allocation2 + $0x3a8] sm:$0xf] %v3863
  %3880 = vst [vmem:[#allocation2 + $0x3b0] sm:$0xf] %v3864
  %3881 = vst [vmem:[#allocation2 + $0x3b8] sm:$0xf] %v3865
  %v3882 = vld [vmem:[%s2981] sm:$0xff]
  %v3883 = vld [vmem:[%s2981 + $0x8] sm:$0xff]
  %v3884 = vld [vmem:[%s2981 + $0x10] sm:$0xff]
  %v3885 = vld [vmem:[%s2981 + $0x18] sm:$0xff]
  %v3886 = vld [vmem:[%s2981 + $0x20] sm:$0xf]
  %v3887 = vmul.f32 %v3882, %v1821
  %v3888 = vmul.f32 %v3883, %v1823
  %v3889 = vmul.f32 %v3884, %v1825
  %v3890 = vmul.f32 %v3885, %v1827
  %v3891 = vmul.f32 %v3886, %v1819
  %v3897 = vcombine.high %v3887, %v3887
  %v3898 = vcombine.high %v3888, %v3888
  %v3899 = vcombine.high %v3889, %v3889
  %v3900 = vcombine.high %v3890, %v3890
  %3901 = vrot.lane.b32.xlu0 %v3887, 2
  %v3902 = vpop.permute.xlu0 %3901
  %3903 = vrot.lane.b32.xlu0 %v3897, 2
  %v3904 = vpop.permute.xlu0 %3903
  %3905 = vrot.lane.b32.xlu0 %v3888, 2
  %v3906 = vpop.permute.xlu0 %3905
  %3907 = vrot.lane.b32.xlu0 %v3898, 2
  %v3908 = vpop.permute.xlu0 %3907
  %3909 = vrot.lane.b32.xlu0 %v3889, 2
  %v3910 = vpop.permute.xlu0 %3909
  %3911 = vrot.lane.b32.xlu0 %v3899, 2
  %v3912 = vpop.permute.xlu0 %3911
  %3913 = vrot.lane.b32.xlu0 %v3890, 2
  %v3914 = vpop.permute.xlu0 %3913
  %3915 = vrot.lane.b32.xlu0 %v3900, 2
  %v3916 = vpop.permute.xlu0 %3915
  %3917 = vrot.lane.b32.xlu0 %v3891, 2
  %v3918 = vpop.permute.xlu0 %3917
  %v3919 = vsel %vm1865, %v3902, %v3904
  %v3920 = vsel %vm1865, %v3904, %v3906
  %v3921 = vsel %vm1865, %v3906, %v3908
  %v3922 = vsel %vm1865, %v3908, %v3910
  %v3923 = vsel %vm1865, %v3910, %v3912
  %v3924 = vsel %vm1865, %v3912, %v3914
  %v3925 = vsel %vm1865, %v3914, %v3916
  %v3926 = vsel %vm1865, %v3916, %v3918
  %3935 = vst [vmem:[#allocation2 + $0x3c0] sm:$0xf] %v3919
  %3936 = vst [vmem:[#allocation2 + $0x3c8] sm:$0xf] %v3920
  %3937 = vst [vmem:[#allocation2 + $0x3d0] sm:$0xf] %v3921
  %3938 = vst [vmem:[#allocation2 + $0x3d8] sm:$0xf] %v3922
  %3939 = vst [vmem:[#allocation2 + $0x3e0] sm:$0xf] %v3923
  %3940 = vst [vmem:[#allocation2 + $0x3e8] sm:$0xf] %v3924
  %3941 = vst [vmem:[#allocation2 + $0x3f0] sm:$0xf] %v3925
  %3942 = vst [vmem:[#allocation2 + $0x3f8] sm:$0xf] %v3926
  %v3943 = vld [vmem:[%s2981] sm:$0xff]
  %v3944 = vld [vmem:[%s2981 + $0x8] sm:$0xff]
  %v3945 = vld [vmem:[%s2981 + $0x10] sm:$0xff]
  %v3946 = vld [vmem:[%s2981 + $0x18] sm:$0xff]
  %v3947 = vld [vmem:[%s2981 + $0x20] sm:$0xf]
  %v3948 = vmul.f32 %v3943, %v1908
  %v3949 = vmul.f32 %v3944, %v1910
  %v3950 = vmul.f32 %v3945, %v1912
  %v3951 = vmul.f32 %v3946, %v1914
  %v3952 = vmul.f32 %v3947, %v1906
  %v3958 = vcombine.high %v3948, %v3948
  %v3959 = vcombine.high %v3949, %v3949
  %v3960 = vcombine.high %v3950, %v3950
  %v3961 = vcombine.high %v3951, %v3951
  %3962 = vrot.lane.b32.xlu0 %v3948, 1
  %v3963 = vpop.permute.xlu0 %3962
  %3964 = vrot.lane.b32.xlu0 %v3958, 1
  %v3965 = vpop.permute.xlu0 %3964
  %3966 = vrot.lane.b32.xlu0 %v3949, 1
  %v3967 = vpop.permute.xlu0 %3966
  %3968 = vrot.lane.b32.xlu0 %v3959, 1
  %v3969 = vpop.permute.xlu0 %3968
  %3970 = vrot.lane.b32.xlu0 %v3950, 1
  %v3971 = vpop.permute.xlu0 %3970
  %3972 = vrot.lane.b32.xlu0 %v3960, 1
  %v3973 = vpop.permute.xlu0 %3972
  %3974 = vrot.lane.b32.xlu0 %v3951, 1
  %v3975 = vpop.permute.xlu0 %3974
  %3976 = vrot.lane.b32.xlu0 %v3961, 1
  %v3977 = vpop.permute.xlu0 %3976
  %3978 = vrot.lane.b32.xlu0 %v3952, 1
  %v3979 = vpop.permute.xlu0 %3978
  %v3980 = vsel %vm1952, %v3963, %v3965
  %v3981 = vsel %vm1952, %v3965, %v3967
  %v3982 = vsel %vm1952, %v3967, %v3969
  %v3983 = vsel %vm1952, %v3969, %v3971
  %v3984 = vsel %vm1952, %v3971, %v3973
  %v3985 = vsel %vm1952, %v3973, %v3975
  %v3986 = vsel %vm1952, %v3975, %v3977
  %v3987 = vsel %vm1952, %v3977, %v3979
  %3996 = vst [vmem:[#allocation2 + $0x400] sm:$0xf] %v3980
  %3997 = vst [vmem:[#allocation2 + $0x408] sm:$0xf] %v3981
  %3998 = vst [vmem:[#allocation2 + $0x410] sm:$0xf] %v3982
  %3999 = vst [vmem:[#allocation2 + $0x418] sm:$0xf] %v3983
  %4000 = vst [vmem:[#allocation2 + $0x420] sm:$0xf] %v3984
  %4001 = vst [vmem:[#allocation2 + $0x428] sm:$0xf] %v3985
  %4002 = vst [vmem:[#allocation2 + $0x430] sm:$0xf] %v3986
  %4003 = vst [vmem:[#allocation2 + $0x438] sm:$0xf] %v3987
  %v4004 = vld [vmem:[%s2981 + $0x4] sm:$0xff]
  %v4005 = vld [vmem:[%s2981 + $0xc] sm:$0xff]
  %v4006 = vld [vmem:[%s2981 + $0x14] sm:$0xff]
  %v4007 = vld [vmem:[%s2981 + $0x1c] sm:$0xff]
  %v4012 = vcombine.high %v4004, %v4004
  %v4013 = vcombine.high %v4005, %v4005
  %v4014 = vcombine.high %v4006, %v4006
  %v4015 = vcombine.high %v4007, %v4007
  %4020 = vst [vmem:[#allocation2 + $0x440] sm:$0xf] %v4004
  %4021 = vst [vmem:[#allocation2 + $0x448] sm:$0xf] %v4012
  %4022 = vst [vmem:[#allocation2 + $0x450] sm:$0xf] %v4005
  %4023 = vst [vmem:[#allocation2 + $0x458] sm:$0xf] %v4013
  %4024 = vst [vmem:[#allocation2 + $0x460] sm:$0xf] %v4006
  %4025 = vst [vmem:[#allocation2 + $0x468] sm:$0xf] %v4014
  %4026 = vst [vmem:[#allocation2 + $0x470] sm:$0xf] %v4007
  %4027 = vst [vmem:[#allocation2 + $0x478] sm:$0xf] %v4015
  %v4028 = vld [vmem:[%s2981 + $0x4] sm:$0xff]
  %v4029 = vld [vmem:[%s2981 + $0xc] sm:$0xff]
  %v4030 = vld [vmem:[%s2981 + $0x14] sm:$0xff]
  %v4031 = vld [vmem:[%s2981 + $0x1c] sm:$0xff]
  %v4032 = vld [vmem:[%s2981 + $0x24] sm:$0xf]
  %v4033 = vmul.f32 %v4028, %v2018
  %v4034 = vmul.f32 %v4029, %v2020
  %v4035 = vmul.f32 %v4030, %v2022
  %v4036 = vmul.f32 %v4031, %v2024
  %v4037 = vmul.f32 %v4032, %v2017
  %v4043 = vcombine.high %v4033, %v4033
  %v4044 = vcombine.high %v4034, %v4034
  %v4045 = vcombine.high %v4035, %v4035
  %v4046 = vcombine.high %v4036, %v4036
  %4047 = vrot.lane.b32.xlu0 %v4033, 127
  %v4048 = vpop.permute.xlu0 %4047
  %4049 = vrot.lane.b32.xlu0 %v4043, 127
  %v4050 = vpop.permute.xlu0 %4049
  %4051 = vrot.lane.b32.xlu0 %v4034, 127
  %v4052 = vpop.permute.xlu0 %4051
  %4053 = vrot.lane.b32.xlu0 %v4044, 127
  %v4054 = vpop.permute.xlu0 %4053
  %4055 = vrot.lane.b32.xlu0 %v4035, 127
  %v4056 = vpop.permute.xlu0 %4055
  %4057 = vrot.lane.b32.xlu0 %v4045, 127
  %v4058 = vpop.permute.xlu0 %4057
  %4059 = vrot.lane.b32.xlu0 %v4036, 127
  %v4060 = vpop.permute.xlu0 %4059
  %4061 = vrot.lane.b32.xlu0 %v4046, 127
  %v4062 = vpop.permute.xlu0 %4061
  %4063 = vrot.lane.b32.xlu0 %v4037, 127
  %v4064 = vpop.permute.xlu0 %4063
  %v4065 = vsel %vm1907, %v4048, %v4050
  %v4066 = vsel %vm1907, %v4050, %v4052
  %v4067 = vsel %vm1907, %v4052, %v4054
  %v4068 = vsel %vm1907, %v4054, %v4056
  %v4069 = vsel %vm1907, %v4056, %v4058
  %v4070 = vsel %vm1907, %v4058, %v4060
  %v4071 = vsel %vm1907, %v4060, %v4062
  %v4072 = vsel %vm1907, %v4062, %v4064
  %4081 = vst [vmem:[#allocation2 + $0x480] sm:$0xf] %v4065
  %4082 = vst [vmem:[#allocation2 + $0x488] sm:$0xf] %v4066
  %4083 = vst [vmem:[#allocation2 + $0x490] sm:$0xf] %v4067
  %4084 = vst [vmem:[#allocation2 + $0x498] sm:$0xf] %v4068
  %4085 = vst [vmem:[#allocation2 + $0x4a0] sm:$0xf] %v4069
  %4086 = vst [vmem:[#allocation2 + $0x4a8] sm:$0xf] %v4070
  %4087 = vst [vmem:[#allocation2 + $0x4b0] sm:$0xf] %v4071
  %4088 = vst [vmem:[#allocation2 + $0x4b8] sm:$0xf] %v4072
  %v4089 = vld [vmem:[%s2981 + $0x4] sm:$0xff]
  %v4090 = vld [vmem:[%s2981 + $0xc] sm:$0xff]
  %v4091 = vld [vmem:[%s2981 + $0x14] sm:$0xff]
  %v4092 = vld [vmem:[%s2981 + $0x1c] sm:$0xff]
  %v4093 = vld [vmem:[%s2981 + $0x24] sm:$0xf]
  %v4094 = vmul.f32 %v4089, %v2103
  %v4095 = vmul.f32 %v4090, %v2105
  %v4096 = vmul.f32 %v4091, %v2107
  %v4097 = vmul.f32 %v4092, %v2109
  %v4098 = vmul.f32 %v4093, %v2102
  %v4104 = vcombine.high %v4094, %v4094
  %v4105 = vcombine.high %v4095, %v4095
  %v4106 = vcombine.high %v4096, %v4096
  %v4107 = vcombine.high %v4097, %v4097
  %4108 = vrot.lane.b32.xlu0 %v4094, 126
  %v4109 = vpop.permute.xlu0 %4108
  %4110 = vrot.lane.b32.xlu0 %v4104, 126
  %v4111 = vpop.permute.xlu0 %4110
  %4112 = vrot.lane.b32.xlu0 %v4095, 126
  %v4113 = vpop.permute.xlu0 %4112
  %4114 = vrot.lane.b32.xlu0 %v4105, 126
  %v4115 = vpop.permute.xlu0 %4114
  %4116 = vrot.lane.b32.xlu0 %v4096, 126
  %v4117 = vpop.permute.xlu0 %4116
  %4118 = vrot.lane.b32.xlu0 %v4106, 126
  %v4119 = vpop.permute.xlu0 %4118
  %4120 = vrot.lane.b32.xlu0 %v4097, 126
  %v4121 = vpop.permute.xlu0 %4120
  %4122 = vrot.lane.b32.xlu0 %v4107, 126
  %v4123 = vpop.permute.xlu0 %4122
  %4124 = vrot.lane.b32.xlu0 %v4098, 126
  %v4125 = vpop.permute.xlu0 %4124
  %v4126 = vsel %vm1820, %v4109, %v4111
  %v4127 = vsel %vm1820, %v4111, %v4113
  %v4128 = vsel %vm1820, %v4113, %v4115
  %v4129 = vsel %vm1820, %v4115, %v4117
  %v4130 = vsel %vm1820, %v4117, %v4119
  %v4131 = vsel %vm1820, %v4119, %v4121
  %v4132 = vsel %vm1820, %v4121, %v4123
  %v4133 = vsel %vm1820, %v4123, %v4125
  %4142 = vst [vmem:[#allocation2 + $0x4c0] sm:$0xf] %v4126
  %4143 = vst [vmem:[#allocation2 + $0x4c8] sm:$0xf] %v4127
  %4144 = vst [vmem:[#allocation2 + $0x4d0] sm:$0xf] %v4128
  %4145 = vst [vmem:[#allocation2 + $0x4d8] sm:$0xf] %v4129
  %4146 = vst [vmem:[#allocation2 + $0x4e0] sm:$0xf] %v4130
  %4147 = vst [vmem:[#allocation2 + $0x4e8] sm:$0xf] %v4131
  %4148 = vst [vmem:[#allocation2 + $0x4f0] sm:$0xf] %v4132
  %4149 = vst [vmem:[#allocation2 + $0x4f8] sm:$0xf] %v4133
  %v4150 = vld [vmem:[%s2981 + $0x4] sm:$0xff]
  %v4151 = vld [vmem:[%s2981 + $0xc] sm:$0xff]
  %v4152 = vld [vmem:[%s2981 + $0x14] sm:$0xff]
  %v4153 = vld [vmem:[%s2981 + $0x1c] sm:$0xff]
  %v4154 = vld [vmem:[%s2981 + $0x24] sm:$0xf]
  %v4155 = vmul.f32 %v4150, %v581
  %v4156 = vmul.f32 %v4151, %v584
  %v4157 = vmul.f32 %v4152, %v586
  %v4158 = vmul.f32 %v4153, %v588
  %v4159 = vmul.f32 %v4154, %v579
  %v4165 = vcombine.high %v4155, %v4155
  %v4166 = vcombine.high %v4156, %v4156
  %v4167 = vcombine.high %v4157, %v4157
  %v4168 = vcombine.high %v4158, %v4158
  %4169 = vrot.lane.b32.xlu0 %v4155, 98
  %v4170 = vpop.permute.xlu0 %4169
  %4171 = vrot.lane.b32.xlu0 %v4165, 98
  %v4172 = vpop.permute.xlu0 %4171
  %4173 = vrot.lane.b32.xlu0 %v4156, 98
  %v4174 = vpop.permute.xlu0 %4173
  %4175 = vrot.lane.b32.xlu0 %v4166, 98
  %v4176 = vpop.permute.xlu0 %4175
  %4177 = vrot.lane.b32.xlu0 %v4157, 98
  %v4178 = vpop.permute.xlu0 %4177
  %4179 = vrot.lane.b32.xlu0 %v4167, 98
  %v4180 = vpop.permute.xlu0 %4179
  %4181 = vrot.lane.b32.xlu0 %v4158, 98
  %v4182 = vpop.permute.xlu0 %4181
  %4183 = vrot.lane.b32.xlu0 %v4168, 98
  %v4184 = vpop.permute.xlu0 %4183
  %4185 = vrot.lane.b32.xlu0 %v4159, 98
  %v4186 = vpop.permute.xlu0 %4185
  %v4187 = vsel %vm626, %v4170, %v4172
  %v4188 = vsel %vm626, %v4172, %v4174
  %v4189 = vsel %vm626, %v4174, %v4176
  %v4190 = vsel %vm626, %v4176, %v4178
  %v4191 = vsel %vm626, %v4178, %v4180
  %v4192 = vsel %vm626, %v4180, %v4182
  %v4193 = vsel %vm626, %v4182, %v4184
  %v4194 = vsel %vm626, %v4184, %v4186
  %4203 = vst [vmem:[#allocation2 + $0x500] sm:$0xf] %v4187
  %4204 = vst [vmem:[#allocation2 + $0x508] sm:$0xf] %v4188
  %4205 = vst [vmem:[#allocation2 + $0x510] sm:$0xf] %v4189
  %4206 = vst [vmem:[#allocation2 + $0x518] sm:$0xf] %v4190
  %4207 = vst [vmem:[#allocation2 + $0x520] sm:$0xf] %v4191
  %4208 = vst [vmem:[#allocation2 + $0x528] sm:$0xf] %v4192
  %4209 = vst [vmem:[#allocation2 + $0x530] sm:$0xf] %v4193
  %4210 = vst [vmem:[#allocation2 + $0x538] sm:$0xf] %v4194
  %v4211 = vld [vmem:[%s2981 + $0x4] sm:$0xff]
  %v4212 = vld [vmem:[%s2981 + $0xc] sm:$0xff]
  %v4213 = vld [vmem:[%s2981 + $0x14] sm:$0xff]
  %v4214 = vld [vmem:[%s2981 + $0x1c] sm:$0xff]
  %v4215 = vld [vmem:[%s2981 + $0x24] sm:$0xf]
  %v4216 = vmul.f32 %v4211, %v681
  %v4217 = vmul.f32 %v4212, %v683
  %v4218 = vmul.f32 %v4213, %v685
  %v4219 = vmul.f32 %v4214, %v687
  %v4220 = vmul.f32 %v4215, %v679
  %v4226 = vcombine.high %v4216, %v4216
  %v4227 = vcombine.high %v4217, %v4217
  %v4228 = vcombine.high %v4218, %v4218
  %v4229 = vcombine.high %v4219, %v4219
  %4230 = vrot.lane.b32.xlu0 %v4216, 97
  %v4231 = vpop.permute.xlu0 %4230
  %4232 = vrot.lane.b32.xlu0 %v4226, 97
  %v4233 = vpop.permute.xlu0 %4232
  %4234 = vrot.lane.b32.xlu0 %v4217, 97
  %v4235 = vpop.permute.xlu0 %4234
  %4236 = vrot.lane.b32.xlu0 %v4227, 97
  %v4237 = vpop.permute.xlu0 %4236
  %4238 = vrot.lane.b32.xlu0 %v4218, 97
  %v4239 = vpop.permute.xlu0 %4238
  %4240 = vrot.lane.b32.xlu0 %v4228, 97
  %v4241 = vpop.permute.xlu0 %4240
  %4242 = vrot.lane.b32.xlu0 %v4219, 97
  %v4243 = vpop.permute.xlu0 %4242
  %4244 = vrot.lane.b32.xlu0 %v4229, 97
  %v4245 = vpop.permute.xlu0 %4244
  %4246 = vrot.lane.b32.xlu0 %v4220, 97
  %v4247 = vpop.permute.xlu0 %4246
  %v4248 = vsel %vm725, %v4231, %v4233
  %v4249 = vsel %vm725, %v4233, %v4235
  %v4250 = vsel %vm725, %v4235, %v4237
  %v4251 = vsel %vm725, %v4237, %v4239
  %v4252 = vsel %vm725, %v4239, %v4241
  %v4253 = vsel %vm725, %v4241, %v4243
  %v4254 = vsel %vm725, %v4243, %v4245
  %v4255 = vsel %vm725, %v4245, %v4247
  %4264 = vst [vmem:[#allocation2 + $0x540] sm:$0xf] %v4248
  %4265 = vst [vmem:[#allocation2 + $0x548] sm:$0xf] %v4249
  %4266 = vst [vmem:[#allocation2 + $0x550] sm:$0xf] %v4250
  %4267 = vst [vmem:[#allocation2 + $0x558] sm:$0xf] %v4251
  %4268 = vst [vmem:[#allocation2 + $0x560] sm:$0xf] %v4252
  %4269 = vst [vmem:[#allocation2 + $0x568] sm:$0xf] %v4253
  %4270 = vst [vmem:[#allocation2 + $0x570] sm:$0xf] %v4254
  %4271 = vst [vmem:[#allocation2 + $0x578] sm:$0xf] %v4255
  %v4272 = vld [vmem:[%s2981 + $0x4] sm:$0xff]
  %v4273 = vld [vmem:[%s2981 + $0xc] sm:$0xff]
  %v4274 = vld [vmem:[%s2981 + $0x14] sm:$0xff]
  %v4275 = vld [vmem:[%s2981 + $0x1c] sm:$0xff]
  %v4276 = vld [vmem:[%s2981 + $0x24] sm:$0xf]
  %v4282 = vcombine.high %v4272, %v4272
  %v4283 = vcombine.high %v4273, %v4273
  %v4284 = vcombine.high %v4274, %v4274
  %v4285 = vcombine.high %v4275, %v4275
  %4286 = vrot.lane.b32.xlu0 %v4272, 96
  %v4287 = vpop.permute.xlu0 %4286
  %4288 = vrot.lane.b32.xlu0 %v4282, 96
  %v4289 = vpop.permute.xlu0 %4288
  %4290 = vrot.lane.b32.xlu0 %v4273, 96
  %v4291 = vpop.permute.xlu0 %4290
  %4292 = vrot.lane.b32.xlu0 %v4283, 96
  %v4293 = vpop.permute.xlu0 %4292
  %4294 = vrot.lane.b32.xlu0 %v4274, 96
  %v4295 = vpop.permute.xlu0 %4294
  %4296 = vrot.lane.b32.xlu0 %v4284, 96
  %v4297 = vpop.permute.xlu0 %4296
  %4298 = vrot.lane.b32.xlu0 %v4275, 96
  %v4299 = vpop.permute.xlu0 %4298
  %4300 = vrot.lane.b32.xlu0 %v4285, 96
  %v4301 = vpop.permute.xlu0 %4300
  %4302 = vrot.lane.b32.xlu0 %v4276, 96
  %v4303 = vpop.permute.xlu0 %4302
  %v4304 = vsel %vm782, %v4287, %v4289
  %v4305 = vsel %vm782, %v4289, %v4291
  %v4306 = vsel %vm782, %v4291, %v4293
  %v4307 = vsel %vm782, %v4293, %v4295
  %v4308 = vsel %vm782, %v4295, %v4297
  %v4309 = vsel %vm782, %v4297, %v4299
  %v4310 = vsel %vm782, %v4299, %v4301
  %v4311 = vsel %vm782, %v4301, %v4303
  %4320 = vst [vmem:[#allocation2 + $0x580] sm:$0xf] %v4304
  %4321 = vst [vmem:[#allocation2 + $0x588] sm:$0xf] %v4305
  %4322 = vst [vmem:[#allocation2 + $0x590] sm:$0xf] %v4306
  %4323 = vst [vmem:[#allocation2 + $0x598] sm:$0xf] %v4307
  %4324 = vst [vmem:[#allocation2 + $0x5a0] sm:$0xf] %v4308
  %4325 = vst [vmem:[#allocation2 + $0x5a8] sm:$0xf] %v4309
  %4326 = vst [vmem:[#allocation2 + $0x5b0] sm:$0xf] %v4310
  %4327 = vst [vmem:[#allocation2 + $0x5b8] sm:$0xf] %v4311
  %v4328 = vld [vmem:[%s2981 + $0x4] sm:$0xff]
  %v4329 = vld [vmem:[%s2981 + $0xc] sm:$0xff]
  %v4330 = vld [vmem:[%s2981 + $0x14] sm:$0xff]
  %v4331 = vld [vmem:[%s2981 + $0x1c] sm:$0xff]
  %v4332 = vld [vmem:[%s2981 + $0x24] sm:$0xf]
  %v4333 = vmul.f32 %v4328, %v837
  %v4334 = vmul.f32 %v4329, %v839
  %v4335 = vmul.f32 %v4330, %v841
  %v4336 = vmul.f32 %v4331, %v843
  %v4337 = vmul.f32 %v4332, %v835
  %v4343 = vcombine.high %v4333, %v4333
  %v4344 = vcombine.high %v4334, %v4334
  %v4345 = vcombine.high %v4335, %v4335
  %v4346 = vcombine.high %v4336, %v4336
  %4347 = vrot.lane.b32.xlu0 %v4333, 95
  %v4348 = vpop.permute.xlu0 %4347
  %4349 = vrot.lane.b32.xlu0 %v4343, 95
  %v4350 = vpop.permute.xlu0 %4349
  %4351 = vrot.lane.b32.xlu0 %v4334, 95
  %v4352 = vpop.permute.xlu0 %4351
  %4353 = vrot.lane.b32.xlu0 %v4344, 95
  %v4354 = vpop.permute.xlu0 %4353
  %4355 = vrot.lane.b32.xlu0 %v4335, 95
  %v4356 = vpop.permute.xlu0 %4355
  %4357 = vrot.lane.b32.xlu0 %v4345, 95
  %v4358 = vpop.permute.xlu0 %4357
  %4359 = vrot.lane.b32.xlu0 %v4336, 95
  %v4360 = vpop.permute.xlu0 %4359
  %4361 = vrot.lane.b32.xlu0 %v4346, 95
  %v4362 = vpop.permute.xlu0 %4361
  %4363 = vrot.lane.b32.xlu0 %v4337, 95
  %v4364 = vpop.permute.xlu0 %4363
  %v4365 = vsel %vm881, %v4348, %v4350
  %v4366 = vsel %vm881, %v4350, %v4352
  %v4367 = vsel %vm881, %v4352, %v4354
  %v4368 = vsel %vm881, %v4354, %v4356
  %v4369 = vsel %vm881, %v4356, %v4358
  %v4370 = vsel %vm881, %v4358, %v4360
  %v4371 = vsel %vm881, %v4360, %v4362
  %v4372 = vsel %vm881, %v4362, %v4364
  %4381 = vst [vmem:[#allocation2 + $0x5c0] sm:$0xf] %v4365
  %4382 = vst [vmem:[#allocation2 + $0x5c8] sm:$0xf] %v4366
  %4383 = vst [vmem:[#allocation2 + $0x5d0] sm:$0xf] %v4367
  %4384 = vst [vmem:[#allocation2 + $0x5d8] sm:$0xf] %v4368
  %4385 = vst [vmem:[#allocation2 + $0x5e0] sm:$0xf] %v4369
  %4386 = vst [vmem:[#allocation2 + $0x5e8] sm:$0xf] %v4370
  %4387 = vst [vmem:[#allocation2 + $0x5f0] sm:$0xf] %v4371
  %4388 = vst [vmem:[#allocation2 + $0x5f8] sm:$0xf] %v4372
  %v4389 = vld [vmem:[%s2981 + $0x4] sm:$0xff]
  %v4390 = vld [vmem:[%s2981 + $0xc] sm:$0xff]
  %v4391 = vld [vmem:[%s2981 + $0x14] sm:$0xff]
  %v4392 = vld [vmem:[%s2981 + $0x1c] sm:$0xff]
  %v4393 = vld [vmem:[%s2981 + $0x24] sm:$0xf]
  %v4394 = vmul.f32 %v4389, %v936
  %v4395 = vmul.f32 %v4390, %v938
  %v4396 = vmul.f32 %v4391, %v940
  %v4397 = vmul.f32 %v4392, %v942
  %v4398 = vmul.f32 %v4393, %v934
  %v4404 = vcombine.high %v4394, %v4394
  %v4405 = vcombine.high %v4395, %v4395
  %v4406 = vcombine.high %v4396, %v4396
  %v4407 = vcombine.high %v4397, %v4397
  %4408 = vrot.lane.b32.xlu0 %v4394, 94
  %v4409 = vpop.permute.xlu0 %4408
  %4410 = vrot.lane.b32.xlu0 %v4404, 94
  %v4411 = vpop.permute.xlu0 %4410
  %4412 = vrot.lane.b32.xlu0 %v4395, 94
  %v4413 = vpop.permute.xlu0 %4412
  %4414 = vrot.lane.b32.xlu0 %v4405, 94
  %v4415 = vpop.permute.xlu0 %4414
  %4416 = vrot.lane.b32.xlu0 %v4396, 94
  %v4417 = vpop.permute.xlu0 %4416
  %4418 = vrot.lane.b32.xlu0 %v4406, 94
  %v4419 = vpop.permute.xlu0 %4418
  %4420 = vrot.lane.b32.xlu0 %v4397, 94
  %v4421 = vpop.permute.xlu0 %4420
  %4422 = vrot.lane.b32.xlu0 %v4407, 94
  %v4423 = vpop.permute.xlu0 %4422
  %4424 = vrot.lane.b32.xlu0 %v4398, 94
  %v4425 = vpop.permute.xlu0 %4424
  %v4426 = vsel %vm980, %v4409, %v4411
  %v4427 = vsel %vm980, %v4411, %v4413
  %v4428 = vsel %vm980, %v4413, %v4415
  %v4429 = vsel %vm980, %v4415, %v4417
  %v4430 = vsel %vm980, %v4417, %v4419
  %v4431 = vsel %vm980, %v4419, %v4421
  %v4432 = vsel %vm980, %v4421, %v4423
  %v4433 = vsel %vm980, %v4423, %v4425
  %4442 = vst [vmem:[#allocation2 + $0x600] sm:$0xf] %v4426
  %4443 = vst [vmem:[#allocation2 + $0x608] sm:$0xf] %v4427
  %4444 = vst [vmem:[#allocation2 + $0x610] sm:$0xf] %v4428
  %4445 = vst [vmem:[#allocation2 + $0x618] sm:$0xf] %v4429
  %4446 = vst [vmem:[#allocation2 + $0x620] sm:$0xf] %v4430
  %4447 = vst [vmem:[#allocation2 + $0x628] sm:$0xf] %v4431
  %4448 = vst [vmem:[#allocation2 + $0x630] sm:$0xf] %v4432
  %4449 = vst [vmem:[#allocation2 + $0x638] sm:$0xf] %v4433
  %v4450 = vld [vmem:[#allocation2] sm:$0xff]
  %v4451 = vld [vmem:[#allocation2 + $0x8] sm:$0xff]
  %v4452 = vld [vmem:[#allocation2 + $0x10] sm:$0xff]
  %v4453 = vld [vmem:[#allocation2 + $0x18] sm:$0xff]
  %v4454 = vld [vmem:[#allocation2 + $0x20] sm:$0xff]
  %v4455 = vld [vmem:[#allocation2 + $0x28] sm:$0xff]
  %v4456 = vld [vmem:[#allocation2 + $0x30] sm:$0xff]
  %v4457 = vld [vmem:[#allocation2 + $0x38] sm:$0xff]
  %v4458 = vld [vmem:[#allocation2 + $0x40] sm:$0xff]
  %v4459 = vld [vmem:[#allocation2 + $0x48] sm:$0xff]
  %v4460 = vld [vmem:[#allocation2 + $0x50] sm:$0xff]
  %v4461 = vld [vmem:[#allocation2 + $0x58] sm:$0xff]
  %v4462 = vld [vmem:[#allocation2 + $0x60] sm:$0xff]
  %v4463 = vld [vmem:[#allocation2 + $0x68] sm:$0xff]
  %v4464 = vld [vmem:[#allocation2 + $0x70] sm:$0xff]
  %v4465 = vld [vmem:[#allocation2 + $0x78] sm:$0xff]
  %v4466 = vld [vmem:[#allocation2 + $0x80] sm:$0xff]
  %v4467 = vld [vmem:[#allocation2 + $0x88] sm:$0xff]
  %v4468 = vld [vmem:[#allocation2 + $0x90] sm:$0xff]
  %v4469 = vld [vmem:[#allocation2 + $0x98] sm:$0xff]
  %v4470 = vld [vmem:[#allocation2 + $0xa0] sm:$0xff]
  %v4471 = vld [vmem:[#allocation2 + $0xa8] sm:$0xff]
  %v4472 = vld [vmem:[#allocation2 + $0xb0] sm:$0xff]
  %v4473 = vld [vmem:[#allocation2 + $0xb8] sm:$0xff]
  %v4474 = vld [vmem:[#allocation2 + $0xc0] sm:$0xff]
  %v4475 = vld [vmem:[#allocation2 + $0xc8] sm:$0xff]
  %v4476 = vld [vmem:[#allocation2 + $0xd0] sm:$0xff]
  %v4477 = vld [vmem:[#allocation2 + $0xd8] sm:$0xff]
  %v4478 = vld [vmem:[#allocation2 + $0xe0] sm:$0xff]
  %v4479 = vld [vmem:[#allocation2 + $0xe8] sm:$0xff]
  %v4480 = vld [vmem:[#allocation2 + $0xf0] sm:$0xff]
  %v4481 = vld [vmem:[#allocation2 + $0xf8] sm:$0xff]
  %v4482 = vld [vmem:[#allocation2 + $0x100] sm:$0xff]
  %v4483 = vld [vmem:[#allocation2 + $0x108] sm:$0xff]
  %v4484 = vld [vmem:[#allocation2 + $0x110] sm:$0xff]
  %v4485 = vld [vmem:[#allocation2 + $0x118] sm:$0xff]
  %v4486 = vld [vmem:[#allocation2 + $0x120] sm:$0xff]
  %v4487 = vld [vmem:[#allocation2 + $0x128] sm:$0xff]
  %v4488 = vld [vmem:[#allocation2 + $0x130] sm:$0xff]
  %v4489 = vld [vmem:[#allocation2 + $0x138] sm:$0xff]
  %v4490 = vld [vmem:[#allocation2 + $0x140] sm:$0xff]
  %v4491 = vld [vmem:[#allocation2 + $0x148] sm:$0xff]
  %v4492 = vld [vmem:[#allocation2 + $0x150] sm:$0xff]
  %v4493 = vld [vmem:[#allocation2 + $0x158] sm:$0xff]
  %v4494 = vld [vmem:[#allocation2 + $0x160] sm:$0xff]
  %v4495 = vld [vmem:[#allocation2 + $0x168] sm:$0xff]
  %v4496 = vld [vmem:[#allocation2 + $0x170] sm:$0xff]
  %v4497 = vld [vmem:[#allocation2 + $0x178] sm:$0xff]
  %v4498 = vld [vmem:[#allocation2 + $0x180] sm:$0xff]
  %v4499 = vld [vmem:[#allocation2 + $0x188] sm:$0xff]
  %v4500 = vld [vmem:[#allocation2 + $0x190] sm:$0xff]
  %v4501 = vld [vmem:[#allocation2 + $0x198] sm:$0xff]
  %v4502 = vld [vmem:[#allocation2 + $0x1a0] sm:$0xff]
  %v4503 = vld [vmem:[#allocation2 + $0x1a8] sm:$0xff]
  %v4504 = vld [vmem:[#allocation2 + $0x1b0] sm:$0xff]
  %v4505 = vld [vmem:[#allocation2 + $0x1b8] sm:$0xff]
  %v4506 = vld [vmem:[#allocation2 + $0x1c0] sm:$0xff]
  %v4507 = vld [vmem:[#allocation2 + $0x1c8] sm:$0xff]
  %v4508 = vld [vmem:[#allocation2 + $0x1d0] sm:$0xff]
  %v4509 = vld [vmem:[#allocation2 + $0x1d8] sm:$0xff]
  %v4510 = vld [vmem:[#allocation2 + $0x1e0] sm:$0xff]
  %v4511 = vld [vmem:[#allocation2 + $0x1e8] sm:$0xff]
  %v4512 = vld [vmem:[#allocation2 + $0x1f0] sm:$0xff]
  %v4513 = vld [vmem:[#allocation2 + $0x1f8] sm:$0xff]
  %v4514 = vld [vmem:[#allocation2 + $0x200] sm:$0xff]
  %v4515 = vld [vmem:[#allocation2 + $0x208] sm:$0xff]
  %v4516 = vld [vmem:[#allocation2 + $0x210] sm:$0xff]
  %v4517 = vld [vmem:[#allocation2 + $0x218] sm:$0xff]
  %v4518 = vld [vmem:[#allocation2 + $0x220] sm:$0xff]
  %v4519 = vld [vmem:[#allocation2 + $0x228] sm:$0xff]
  %v4520 = vld [vmem:[#allocation2 + $0x230] sm:$0xff]
  %v4521 = vld [vmem:[#allocation2 + $0x238] sm:$0xff]
  %v4522 = vld [vmem:[#allocation2 + $0x240] sm:$0xff]
  %v4523 = vld [vmem:[#allocation2 + $0x248] sm:$0xff]
  %v4524 = vld [vmem:[#allocation2 + $0x250] sm:$0xff]
  %v4525 = vld [vmem:[#allocation2 + $0x258] sm:$0xff]
  %v4526 = vld [vmem:[#allocation2 + $0x260] sm:$0xff]
  %v4527 = vld [vmem:[#allocation2 + $0x268] sm:$0xff]
  %v4528 = vld [vmem:[#allocation2 + $0x270] sm:$0xff]
  %v4529 = vld [vmem:[#allocation2 + $0x278] sm:$0xff]
  %v4530 = vld [vmem:[#allocation2 + $0x280] sm:$0xff]
  %v4531 = vld [vmem:[#allocation2 + $0x288] sm:$0xff]
  %v4532 = vld [vmem:[#allocation2 + $0x290] sm:$0xff]
  %v4533 = vld [vmem:[#allocation2 + $0x298] sm:$0xff]
  %v4534 = vld [vmem:[#allocation2 + $0x2a0] sm:$0xff]
  %v4535 = vld [vmem:[#allocation2 + $0x2a8] sm:$0xff]
  %v4536 = vld [vmem:[#allocation2 + $0x2b0] sm:$0xff]
  %v4537 = vld [vmem:[#allocation2 + $0x2b8] sm:$0xff]
  %v4538 = vld [vmem:[#allocation2 + $0x2c0] sm:$0xff]
  %v4539 = vld [vmem:[#allocation2 + $0x2c8] sm:$0xff]
  %v4540 = vld [vmem:[#allocation2 + $0x2d0] sm:$0xff]
  %v4541 = vld [vmem:[#allocation2 + $0x2d8] sm:$0xff]
  %v4542 = vld [vmem:[#allocation2 + $0x2e0] sm:$0xff]
  %v4543 = vld [vmem:[#allocation2 + $0x2e8] sm:$0xff]
  %v4544 = vld [vmem:[#allocation2 + $0x2f0] sm:$0xff]
  %v4545 = vld [vmem:[#allocation2 + $0x2f8] sm:$0xff]
  %v4546 = vld [vmem:[#allocation2 + $0x300] sm:$0xff]
  %v4547 = vld [vmem:[#allocation2 + $0x308] sm:$0xff]
  %v4548 = vld [vmem:[#allocation2 + $0x310] sm:$0xff]
  %v4549 = vld [vmem:[#allocation2 + $0x318] sm:$0xff]
  %v4550 = vld [vmem:[#allocation2 + $0x320] sm:$0xff]
  %v4551 = vld [vmem:[#allocation2 + $0x328] sm:$0xff]
  %v4552 = vld [vmem:[#allocation2 + $0x330] sm:$0xff]
  %v4553 = vld [vmem:[#allocation2 + $0x338] sm:$0xff]
  %v4554 = vld [vmem:[#allocation2 + $0x340] sm:$0xff]
  %v4555 = vld [vmem:[#allocation2 + $0x348] sm:$0xff]
  %v4556 = vld [vmem:[#allocation2 + $0x350] sm:$0xff]
  %v4557 = vld [vmem:[#allocation2 + $0x358] sm:$0xff]
  %v4558 = vld [vmem:[#allocation2 + $0x360] sm:$0xff]
  %v4559 = vld [vmem:[#allocation2 + $0x368] sm:$0xff]
  %v4560 = vld [vmem:[#allocation2 + $0x370] sm:$0xff]
  %v4561 = vld [vmem:[#allocation2 + $0x378] sm:$0xff]
  %v4562 = vld [vmem:[#allocation2 + $0x380] sm:$0xff]
  %v4563 = vld [vmem:[#allocation2 + $0x388] sm:$0xff]
  %v4564 = vld [vmem:[#allocation2 + $0x390] sm:$0xff]
  %v4565 = vld [vmem:[#allocation2 + $0x398] sm:$0xff]
  %v4566 = vld [vmem:[#allocation2 + $0x3a0] sm:$0xff]
  %v4567 = vld [vmem:[#allocation2 + $0x3a8] sm:$0xff]
  %v4568 = vld [vmem:[#allocation2 + $0x3b0] sm:$0xff]
  %v4569 = vld [vmem:[#allocation2 + $0x3b8] sm:$0xff]
  %v4570 = vld [vmem:[#allocation2 + $0x3c0] sm:$0xff]
  %v4571 = vld [vmem:[#allocation2 + $0x3c8] sm:$0xff]
  %v4572 = vld [vmem:[#allocation2 + $0x3d0] sm:$0xff]
  %v4573 = vld [vmem:[#allocation2 + $0x3d8] sm:$0xff]
  %v4574 = vld [vmem:[#allocation2 + $0x3e0] sm:$0xff]
  %v4575 = vld [vmem:[#allocation2 + $0x3e8] sm:$0xff]
  %v4576 = vld [vmem:[#allocation2 + $0x3f0] sm:$0xff]
  %v4577 = vld [vmem:[#allocation2 + $0x3f8] sm:$0xff]
  %v4578 = vld [vmem:[#allocation2 + $0x400] sm:$0xff]
  %v4579 = vld [vmem:[#allocation2 + $0x408] sm:$0xff]
  %v4580 = vld [vmem:[#allocation2 + $0x410] sm:$0xff]
  %v4581 = vld [vmem:[#allocation2 + $0x418] sm:$0xff]
  %v4582 = vld [vmem:[#allocation2 + $0x420] sm:$0xff]
  %v4583 = vld [vmem:[#allocation2 + $0x428] sm:$0xff]
  %v4584 = vld [vmem:[#allocation2 + $0x430] sm:$0xff]
  %v4585 = vld [vmem:[#allocation2 + $0x438] sm:$0xff]
  %v4586 = vld [vmem:[#allocation2 + $0x440] sm:$0xff]
  %v4587 = vld [vmem:[#allocation2 + $0x448] sm:$0xff]
  %v4588 = vld [vmem:[#allocation2 + $0x450] sm:$0xff]
  %v4589 = vld [vmem:[#allocation2 + $0x458] sm:$0xff]
  %v4590 = vld [vmem:[#allocation2 + $0x460] sm:$0xff]
  %v4591 = vld [vmem:[#allocation2 + $0x468] sm:$0xff]
  %v4592 = vld [vmem:[#allocation2 + $0x470] sm:$0xff]
  %v4593 = vld [vmem:[#allocation2 + $0x478] sm:$0xff]
  %v4594 = vld [vmem:[#allocation2 + $0x480] sm:$0xff]
  %v4595 = vld [vmem:[#allocation2 + $0x488] sm:$0xff]
  %v4596 = vld [vmem:[#allocation2 + $0x490] sm:$0xff]
  %v4597 = vld [vmem:[#allocation2 + $0x498] sm:$0xff]
  %v4598 = vld [vmem:[#allocation2 + $0x4a0] sm:$0xff]
  %v4599 = vld [vmem:[#allocation2 + $0x4a8] sm:$0xff]
  %v4600 = vld [vmem:[#allocation2 + $0x4b0] sm:$0xff]
  %v4601 = vld [vmem:[#allocation2 + $0x4b8] sm:$0xff]
  %v4602 = vld [vmem:[#allocation2 + $0x4c0] sm:$0xff]
  %v4603 = vld [vmem:[#allocation2 + $0x4c8] sm:$0xff]
  %v4604 = vld [vmem:[#allocation2 + $0x4d0] sm:$0xff]
  %v4605 = vld [vmem:[#allocation2 + $0x4d8] sm:$0xff]
  %v4606 = vld [vmem:[#allocation2 + $0x4e0] sm:$0xff]
  %v4607 = vld [vmem:[#allocation2 + $0x4e8] sm:$0xff]
  %v4608 = vld [vmem:[#allocation2 + $0x4f0] sm:$0xff]
  %v4609 = vld [vmem:[#allocation2 + $0x4f8] sm:$0xff]
  %v4610 = vld [vmem:[#allocation2 + $0x500] sm:$0xff]
  %v4611 = vld [vmem:[#allocation2 + $0x508] sm:$0xff]
  %v4612 = vld [vmem:[#allocation2 + $0x510] sm:$0xff]
  %v4613 = vld [vmem:[#allocation2 + $0x518] sm:$0xff]
  %v4614 = vld [vmem:[#allocation2 + $0x520] sm:$0xff]
  %v4615 = vld [vmem:[#allocation2 + $0x528] sm:$0xff]
  %v4616 = vld [vmem:[#allocation2 + $0x530] sm:$0xff]
  %v4617 = vld [vmem:[#allocation2 + $0x538] sm:$0xff]
  %v4618 = vld [vmem:[#allocation2 + $0x540] sm:$0xff]
  %v4619 = vld [vmem:[#allocation2 + $0x548] sm:$0xff]
  %v4620 = vld [vmem:[#allocation2 + $0x550] sm:$0xff]
  %v4621 = vld [vmem:[#allocation2 + $0x558] sm:$0xff]
  %v4622 = vld [vmem:[#allocation2 + $0x560] sm:$0xff]
  %v4623 = vld [vmem:[#allocation2 + $0x568] sm:$0xff]
  %v4624 = vld [vmem:[#allocation2 + $0x570] sm:$0xff]
  %v4625 = vld [vmem:[#allocation2 + $0x578] sm:$0xff]
  %v4626 = vld [vmem:[#allocation2 + $0x580] sm:$0xff]
  %v4627 = vld [vmem:[#allocation2 + $0x588] sm:$0xff]
  %v4628 = vld [vmem:[#allocation2 + $0x590] sm:$0xff]
  %v4629 = vld [vmem:[#allocation2 + $0x598] sm:$0xff]
  %v4630 = vld [vmem:[#allocation2 + $0x5a0] sm:$0xff]
  %v4631 = vld [vmem:[#allocation2 + $0x5a8] sm:$0xff]
  %v4632 = vld [vmem:[#allocation2 + $0x5b0] sm:$0xff]
  %v4633 = vld [vmem:[#allocation2 + $0x5b8] sm:$0xff]
  %v4634 = vld [vmem:[#allocation2 + $0x5c0] sm:$0xff]
  %v4635 = vld [vmem:[#allocation2 + $0x5c8] sm:$0xff]
  %v4636 = vld [vmem:[#allocation2 + $0x5d0] sm:$0xff]
  %v4637 = vld [vmem:[#allocation2 + $0x5d8] sm:$0xff]
  %v4638 = vld [vmem:[#allocation2 + $0x5e0] sm:$0xff]
  %v4639 = vld [vmem:[#allocation2 + $0x5e8] sm:$0xff]
  %v4640 = vld [vmem:[#allocation2 + $0x5f0] sm:$0xff]
  %v4641 = vld [vmem:[#allocation2 + $0x5f8] sm:$0xff]
  %v4642 = vld [vmem:[#allocation2 + $0x600] sm:$0xff]
  %v4643 = vld [vmem:[#allocation2 + $0x608] sm:$0xff]
  %v4644 = vld [vmem:[#allocation2 + $0x610] sm:$0xff]
  %v4645 = vld [vmem:[#allocation2 + $0x618] sm:$0xff]
  %v4646 = vld [vmem:[#allocation2 + $0x620] sm:$0xff]
  %v4647 = vld [vmem:[#allocation2 + $0x628] sm:$0xff]
  %v4648 = vld [vmem:[#allocation2 + $0x630] sm:$0xff]
  %v4649 = vld [vmem:[#allocation2 + $0x638] sm:$0xff]
  %v4650 = vpack.c.bf16 %v4458, %v4450
  %v4651 = vpack.c.bf16 %v4459, %v4451
  %v4652 = vpack.c.bf16 %v4460, %v4452
  %v4653 = vpack.c.bf16 %v4461, %v4453
  %v4654 = vpack.c.bf16 %v4462, %v4454
  %v4655 = vpack.c.bf16 %v4463, %v4455
  %v4656 = vpack.c.bf16 %v4464, %v4456
  %v4657 = vpack.c.bf16 %v4465, %v4457
  %v4658 = vpack.c.bf16 %v4474, %v4466
  %v4659 = vpack.c.bf16 %v4475, %v4467
  %v4660 = vpack.c.bf16 %v4476, %v4468
  %v4661 = vpack.c.bf16 %v4477, %v4469
  %v4662 = vpack.c.bf16 %v4478, %v4470
  %v4663 = vpack.c.bf16 %v4479, %v4471
  %v4664 = vpack.c.bf16 %v4480, %v4472
  %v4665 = vpack.c.bf16 %v4481, %v4473
  %v4666 = vpack.c.bf16 %v4490, %v4482
  %v4667 = vpack.c.bf16 %v4491, %v4483
  %v4668 = vpack.c.bf16 %v4492, %v4484
  %v4669 = vpack.c.bf16 %v4493, %v4485
  %v4670 = vpack.c.bf16 %v4494, %v4486
  %v4671 = vpack.c.bf16 %v4495, %v4487
  %v4672 = vpack.c.bf16 %v4496, %v4488
  %v4673 = vpack.c.bf16 %v4497, %v4489
  %v4674 = vpack.c.bf16 %v4506, %v4498
  %v4675 = vpack.c.bf16 %v4507, %v4499
  %v4676 = vpack.c.bf16 %v4508, %v4500
  %v4677 = vpack.c.bf16 %v4509, %v4501
  %v4678 = vpack.c.bf16 %v4510, %v4502
  %v4679 = vpack.c.bf16 %v4511, %v4503
  %v4680 = vpack.c.bf16 %v4512, %v4504
  %v4681 = vpack.c.bf16 %v4513, %v4505
  %v4682 = vpack.c.bf16 %v4522, %v4514
  %v4683 = vpack.c.bf16 %v4523, %v4515
  %v4684 = vpack.c.bf16 %v4524, %v4516
  %v4685 = vpack.c.bf16 %v4525, %v4517
  %v4686 = vpack.c.bf16 %v4526, %v4518
  %v4687 = vpack.c.bf16 %v4527, %v4519
  %v4688 = vpack.c.bf16 %v4528, %v4520
  %v4689 = vpack.c.bf16 %v4529, %v4521
  %v4690 = vpack.c.bf16 %v4538, %v4530
  %v4691 = vpack.c.bf16 %v4539, %v4531
  %v4692 = vpack.c.bf16 %v4540, %v4532
  %v4693 = vpack.c.bf16 %v4541, %v4533
  %v4694 = vpack.c.bf16 %v4542, %v4534
  %v4695 = vpack.c.bf16 %v4543, %v4535
  %v4696 = vpack.c.bf16 %v4544, %v4536
  %v4697 = vpack.c.bf16 %v4545, %v4537
  %v4698 = vpack.c.bf16 %v4554, %v4546
  %v4699 = vpack.c.bf16 %v4555, %v4547
  %v4700 = vpack.c.bf16 %v4556, %v4548
  %v4701 = vpack.c.bf16 %v4557, %v4549
  %v4702 = vpack.c.bf16 %v4558, %v4550
  %v4703 = vpack.c.bf16 %v4559, %v4551
  %v4704 = vpack.c.bf16 %v4560, %v4552
  %v4705 = vpack.c.bf16 %v4561, %v4553
  %v4706 = vpack.c.bf16 %v4570, %v4562
  %v4707 = vpack.c.bf16 %v4571, %v4563
  %v4708 = vpack.c.bf16 %v4572, %v4564
  %v4709 = vpack.c.bf16 %v4573, %v4565
  %v4710 = vpack.c.bf16 %v4574, %v4566
  %v4711 = vpack.c.bf16 %v4575, %v4567
  %v4712 = vpack.c.bf16 %v4576, %v4568
  %v4713 = vpack.c.bf16 %v4577, %v4569
  %v4714 = vpack.c.bf16 %v4586, %v4578
  %v4715 = vpack.c.bf16 %v4587, %v4579
  %v4716 = vpack.c.bf16 %v4588, %v4580
  %v4717 = vpack.c.bf16 %v4589, %v4581
  %v4718 = vpack.c.bf16 %v4590, %v4582
  %v4719 = vpack.c.bf16 %v4591, %v4583
  %v4720 = vpack.c.bf16 %v4592, %v4584
  %v4721 = vpack.c.bf16 %v4593, %v4585
  %v4722 = vpack.c.bf16 %v4602, %v4594
  %v4723 = vpack.c.bf16 %v4603, %v4595
  %v4724 = vpack.c.bf16 %v4604, %v4596
  %v4725 = vpack.c.bf16 %v4605, %v4597
  %v4726 = vpack.c.bf16 %v4606, %v4598
  %v4727 = vpack.c.bf16 %v4607, %v4599
  %v4728 = vpack.c.bf16 %v4608, %v4600
  %v4729 = vpack.c.bf16 %v4609, %v4601
  %v4730 = vpack.c.bf16 %v4618, %v4610
  %v4731 = vpack.c.bf16 %v4619, %v4611
  %v4732 = vpack.c.bf16 %v4620, %v4612
  %v4733 = vpack.c.bf16 %v4621, %v4613
  %v4734 = vpack.c.bf16 %v4622, %v4614
  %v4735 = vpack.c.bf16 %v4623, %v4615
  %v4736 = vpack.c.bf16 %v4624, %v4616
  %v4737 = vpack.c.bf16 %v4625, %v4617
  %v4738 = vpack.c.bf16 %v4634, %v4626
  %v4739 = vpack.c.bf16 %v4635, %v4627
  %v4740 = vpack.c.bf16 %v4636, %v4628
  %v4741 = vpack.c.bf16 %v4637, %v4629
  %v4742 = vpack.c.bf16 %v4638, %v4630
  %v4743 = vpack.c.bf16 %v4639, %v4631
  %v4744 = vpack.c.bf16 %v4640, %v4632
  %v4745 = vpack.c.bf16 %v4641, %v4633
  %v4746 = vpack.c.bf16 %v4642, %v4642
  %v4747 = vpack.c.bf16 %v4643, %v4643
  %v4748 = vpack.c.bf16 %v4644, %v4644
  %v4749 = vpack.c.bf16 %v4645, %v4645
  %v4750 = vpack.c.bf16 %v4646, %v4646
  %v4751 = vpack.c.bf16 %v4647, %v4647
  %v4752 = vpack.c.bf16 %v4648, %v4648
  %v4753 = vpack.c.bf16 %v4649, %v4649
  %v4755 = vsel %vm582, %v4746, 0
  %v4758 = vsel %vm582, %v4747, 0
  %v4761 = vsel %vm582, %v4748, 0
  %v4764 = vsel %vm582, %v4749, 0
  %v4767 = vsel %vm582, %v4750, 0
  %v4770 = vsel %vm582, %v4751, 0
  %v4773 = vsel %vm582, %v4752, 0
  %v4776 = vsel %vm582, %v4753, 0
  %4778 = vmatprep.subr.bf16.mxu0 %v4651
  %4779 = vmatpush1.bf16.msra.mxu0 %v4650
  %4780 = vmatprep.subr.bf16.mxu0 %v4659
  %4781 = vmatpush1.bf16.msra.mxu0 %v4658
  %4782 = vmatprep.subr.bf16.mxu0 %v4667
  %4783 = vmatpush1.bf16.msra.mxu0 %v4666
  %4784 = vmatprep.subr.bf16.mxu0 %v4675
  %4785 = vmatpush1.bf16.msra.mxu0 %v4674
  %4786 = vmatprep.subr.bf16.mxu0 %v4683
  %4787 = vmatpush1.bf16.msra.mxu0 %v4682
  %4788 = vmatprep.subr.bf16.mxu0 %v4691
  %4789 = vmatpush1.bf16.msra.mxu0 %v4690
  %4790 = vmatprep.subr.bf16.mxu0 %v4699
  %4791 = vmatpush1.bf16.msra.mxu0 %v4698
  %4792 = vmatprep.subr.bf16.mxu0 %v4707
  %4793 = vmatpush1.bf16.msra.mxu0 %v4706
  %4794 = vmatprep.subr.bf16.mxu0 %v4715
  %4795 = vmatpush1.bf16.msra.mxu0 %v4714
  %4796 = vmatprep.subr.bf16.mxu0 %v4723
  %4797 = vmatpush1.bf16.msra.mxu0 %v4722
  %4798 = vmatprep.subr.bf16.mxu0 %v4731
  %4799 = vmatpush1.bf16.msra.mxu0 %v4730
  %4800 = vmatprep.subr.bf16.mxu0 %v4739
  %4801 = vmatpush1.bf16.msra.mxu0 %v4738
  %4802 = vmatprep.subr.bf16.mxu0 %v4758
  %4803 = vmatpush1.bf16.msra.mxu0 %v4755
  %4804 = vmatprep.subr.bf16.mxu0 0
  %4805 = vmatpush1.bf16.msra.mxu0 0
  %4806 = vmatprep.subr.bf16.mxu0 0
  %4807 = vmatpush1.bf16.msra.mxu0 0
  %4808 = vmatprep.subr.bf16.mxu0 0
  %4809 = vmatpush1.bf16.msra.mxu0 0
  %4810 = vmatprep.mubr.bf16.mxu0 %v2783
  %4811 = vmatmul.mubr.bf16.gmra.mrb[0].mxu0 %v2778
  %v4812 = vpop.f32.mrb[0].mxu0
  %v4813 = vadd.f32 0.0, %v4812
  %v4814 = vpop.f32.mrb[0].mxu0
  %v4815 = vadd.f32 0.0, %v4814
  %v4816 = vpop.f32.mrb[0].mxu0
  %v4817 = vpop.f32.mrb[0].mxu0
  %4818 = vdwg.mxu0
  %4819 = vmatprep.subr.bf16.mxu0 %v4653
  %4820 = vmatpush1.bf16.msra.mxu0 %v4652
  %4821 = vmatprep.subr.bf16.mxu0 %v4661
  %4822 = vmatpush1.bf16.msra.mxu0 %v4660
  %4823 = vmatprep.subr.bf16.mxu0 %v4669
  %4824 = vmatpush1.bf16.msra.mxu0 %v4668
  %4825 = vmatprep.subr.bf16.mxu0 %v4677
  %4826 = vmatpush1.bf16.msra.mxu0 %v4676
  %4827 = vmatprep.subr.bf16.mxu0 %v4685
  %4828 = vmatpush1.bf16.msra.mxu0 %v4684
  %4829 = vmatprep.subr.bf16.mxu0 %v4693
  %4830 = vmatpush1.bf16.msra.mxu0 %v4692
  %4831 = vmatprep.subr.bf16.mxu0 %v4701
  %4832 = vmatpush1.bf16.msra.mxu0 %v4700
  %4833 = vmatprep.subr.bf16.mxu0 %v4709
  %4834 = vmatpush1.bf16.msra.mxu0 %v4708
  %4835 = vmatprep.subr.bf16.mxu0 %v4717
  %4836 = vmatpush1.bf16.msra.mxu0 %v4716
  %4837 = vmatprep.subr.bf16.mxu0 %v4725
  %4838 = vmatpush1.bf16.msra.mxu0 %v4724
  %4839 = vmatprep.subr.bf16.mxu0 %v4733
  %4840 = vmatpush1.bf16.msra.mxu0 %v4732
  %4841 = vmatprep.subr.bf16.mxu0 %v4741
  %4842 = vmatpush1.bf16.msra.mxu0 %v4740
  %4843 = vmatprep.subr.bf16.mxu0 %v4764
  %4844 = vmatpush1.bf16.msra.mxu0 %v4761
  %4845 = vmatprep.subr.bf16.mxu0 0
  %4846 = vmatpush1.bf16.msra.mxu0 0
  %4847 = vmatprep.subr.bf16.mxu0 0
  %4848 = vmatpush1.bf16.msra.mxu0 0
  %4849 = vmatprep.subr.bf16.mxu0 0
  %4850 = vmatpush1.bf16.msra.mxu0 0
  %4851 = vmatprep.mubr.bf16.mxu0 %v2783
  %4852 = vmatmul.mubr.bf16.gmra.mrb[0].mxu0 %v2778
  %v4853 = vpop.f32.mrb[0].mxu0
  %v4854 = vadd.f32 0.0, %v4853
  %v4855 = vpop.f32.mrb[0].mxu0
  %v4856 = vadd.f32 0.0, %v4855
  %v4857 = vpop.f32.mrb[0].mxu0
  %v4858 = vpop.f32.mrb[0].mxu0
  %4859 = vdwg.mxu0
  %4860 = vmatprep.subr.bf16.mxu0 %v4655
  %4861 = vmatpush1.bf16.msra.mxu0 %v4654
  %4862 = vmatprep.subr.bf16.mxu0 %v4663
  %4863 = vmatpush1.bf16.msra.mxu0 %v4662
  %4864 = vmatprep.subr.bf16.mxu0 %v4671
  %4865 = vmatpush1.bf16.msra.mxu0 %v4670
  %4866 = vmatprep.subr.bf16.mxu0 %v4679
  %4867 = vmatpush1.bf16.msra.mxu0 %v4678
  %4868 = vmatprep.subr.bf16.mxu0 %v4687
  %4869 = vmatpush1.bf16.msra.mxu0 %v4686
  %4870 = vmatprep.subr.bf16.mxu0 %v4695
  %4871 = vmatpush1.bf16.msra.mxu0 %v4694
  %4872 = vmatprep.subr.bf16.mxu0 %v4703
  %4873 = vmatpush1.bf16.msra.mxu0 %v4702
  %4874 = vmatprep.subr.bf16.mxu0 %v4711
  %4875 = vmatpush1.bf16.msra.mxu0 %v4710
  %4876 = vmatprep.subr.bf16.mxu0 %v4719
  %4877 = vmatpush1.bf16.msra.mxu0 %v4718
  %4878 = vmatprep.subr.bf16.mxu0 %v4727
  %4879 = vmatpush1.bf16.msra.mxu0 %v4726
  %4880 = vmatprep.subr.bf16.mxu0 %v4735
  %4881 = vmatpush1.bf16.msra.mxu0 %v4734
  %4882 = vmatprep.subr.bf16.mxu0 %v4743
  %4883 = vmatpush1.bf16.msra.mxu0 %v4742
  %4884 = vmatprep.subr.bf16.mxu0 %v4770
  %4885 = vmatpush1.bf16.msra.mxu0 %v4767
  %4886 = vmatprep.subr.bf16.mxu0 0
  %4887 = vmatpush1.bf16.msra.mxu0 0
  %4888 = vmatprep.subr.bf16.mxu0 0
  %4889 = vmatpush1.bf16.msra.mxu0 0
  %4890 = vmatprep.subr.bf16.mxu0 0
  %4891 = vmatpush1.bf16.msra.mxu0 0
  %4892 = vmatprep.mubr.bf16.mxu0 %v2783
  %4893 = vmatmul.mubr.bf16.gmra.mrb[0].mxu0 %v2778
  %v4894 = vpop.f32.mrb[0].mxu0
  %v4895 = vadd.f32 0.0, %v4894
  %v4896 = vpop.f32.mrb[0].mxu0
  %v4897 = vadd.f32 0.0, %v4896
  %v4898 = vpop.f32.mrb[0].mxu0
  %v4899 = vpop.f32.mrb[0].mxu0
  %4900 = vdwg.mxu0
  %4901 = vmatprep.subr.bf16.mxu0 %v4657
  %4902 = vmatpush1.bf16.msra.mxu0 %v4656
  %4903 = vmatprep.subr.bf16.mxu0 %v4665
  %4904 = vmatpush1.bf16.msra.mxu0 %v4664
  %4905 = vmatprep.subr.bf16.mxu0 %v4673
  %4906 = vmatpush1.bf16.msra.mxu0 %v4672
  %4907 = vmatprep.subr.bf16.mxu0 %v4681
  %4908 = vmatpush1.bf16.msra.mxu0 %v4680
  %4909 = vmatprep.subr.bf16.mxu0 %v4689
  %4910 = vmatpush1.bf16.msra.mxu0 %v4688
  %4911 = vmatprep.subr.bf16.mxu0 %v4697
  %4912 = vmatpush1.bf16.msra.mxu0 %v4696
  %4913 = vmatprep.subr.bf16.mxu0 %v4705
  %4914 = vmatpush1.bf16.msra.mxu0 %v4704
  %4915 = vmatprep.subr.bf16.mxu0 %v4713
  %4916 = vmatpush1.bf16.msra.mxu0 %v4712
  %4917 = vmatprep.subr.bf16.mxu0 %v4721
  %4918 = vmatpush1.bf16.msra.mxu0 %v4720
  %4919 = vmatprep.subr.bf16.mxu0 %v4729
  %4920 = vmatpush1.bf16.msra.mxu0 %v4728
  %4921 = vmatprep.subr.bf16.mxu0 %v4737
  %4922 = vmatpush1.bf16.msra.mxu0 %v4736
  %4923 = vmatprep.subr.bf16.mxu0 %v4745
  %4924 = vmatpush1.bf16.msra.mxu0 %v4744
  %4925 = vmatprep.subr.bf16.mxu0 %v4776
  %4926 = vmatpush1.bf16.msra.mxu0 %v4773
  %4927 = vmatprep.subr.bf16.mxu0 0
  %4928 = vmatpush1.bf16.msra.mxu0 0
  %4929 = vmatprep.subr.bf16.mxu0 0
  %4930 = vmatpush1.bf16.msra.mxu0 0
  %4931 = vmatprep.subr.bf16.mxu0 0
  %4932 = vmatpush1.bf16.msra.mxu0 0
  %4933 = vmatprep.mubr.bf16.mxu0 %v2783
  %4934 = vmatmul.mubr.bf16.gmra.mrb[0].mxu0 %v2778
  %v4935 = vpop.f32.mrb[0].mxu0
  %v4936 = vadd.f32 0.0, %v4935
  %v4937 = vpop.f32.mrb[0].mxu0
  %v4938 = vadd.f32 0.0, %v4937
  %v4939 = vpop.f32.mrb[0].mxu0
  %v4940 = vpop.f32.mrb[0].mxu0
  %4941 = vdwg.mxu0
  %4942 = vst [vmem:[#allocation3 + $0x40] sm:$0xff] %v4813
  %4943 = vst [vmem:[#allocation3 + $0x48] sm:$0xff] %v4815
  %4944 = vst [vmem:[#allocation3 + $0x50] sm:$0xff] %v4854
  %4945 = vst [vmem:[#allocation3 + $0x58] sm:$0xff] %v4856
  %4946 = vst [vmem:[#allocation3 + $0x60] sm:$0xff] %v4895
  %4947 = vst [vmem:[#allocation3 + $0x68] sm:$0xff] %v4897
  %4948 = vst [vmem:[#allocation3 + $0x70] sm:$0xff] %v4936
  %4949 = vst [vmem:[#allocation3 + $0x78] sm:$0xff] %v4938
  %v4950 = vld [vmem:[#allocation3] sm:$0xff]
  %v4951 = vld [vmem:[#allocation3 + $0x8] sm:$0xff]
  %v4952 = vld [vmem:[#allocation3 + $0x10] sm:$0xff]
  %v4953 = vld [vmem:[#allocation3 + $0x18] sm:$0xff]
  %v4954 = vld [vmem:[#allocation3 + $0x20] sm:$0xff]
  %v4955 = vld [vmem:[#allocation3 + $0x28] sm:$0xff]
  %v4956 = vld [vmem:[#allocation3 + $0x30] sm:$0xff]
  %v4957 = vld [vmem:[#allocation3 + $0x38] sm:$0xff]
  %v4958 = vld [vmem:[#allocation3 + $0x40] sm:$0xff]
  %v4959 = vld [vmem:[#allocation3 + $0x48] sm:$0xff]
  %v4960 = vld [vmem:[#allocation3 + $0x50] sm:$0xff]
  %v4961 = vld [vmem:[#allocation3 + $0x58] sm:$0xff]
  %v4962 = vld [vmem:[#allocation3 + $0x60] sm:$0xff]
  %v4963 = vld [vmem:[#allocation3 + $0x68] sm:$0xff]
  %v4964 = vld [vmem:[#allocation3 + $0x70] sm:$0xff]
  %v4965 = vld [vmem:[#allocation3 + $0x78] sm:$0xff]
  %v4966 = vadd.f32 %v4950, %v4951
  %v4967 = vadd.f32 %v4966, %v4952
  %v4968 = vadd.f32 %v4967, %v4953
  %v4969 = vadd.f32 %v4968, %v4954
  %v4970 = vadd.f32 %v4969, %v4955
  %v4971 = vadd.f32 %v4970, %v4956
  %v4972 = vadd.f32 %v4971, %v4957
  %v4973 = vadd.f32 %v4972, %v4958
  %v4974 = vadd.f32 %v4973, %v4959
  %v4975 = vadd.f32 %v4974, %v4960
  %v4976 = vadd.f32 %v4975, %v4961
  %v4977 = vadd.f32 %v4976, %v4962
  %v4978 = vadd.f32 %v4977, %v4963
  %v4979 = vadd.f32 %v4978, %v4964
  %v4980 = vadd.f32 %v4979, %v4965
  %4981 = vadd.xlane.f32.xlu0 %v4980
  %v4982 = vpop.xlane.xlu0 %4981
  %v4983 = vmul.f32 %v4982, 0.00048828125
  %v4984 = vmul.f32 %v4950, %v4950
  %v4985 = vmul.f32 %v4951, %v4951
  %v4986 = vmul.f32 %v4952, %v4952
  %v4987 = vmul.f32 %v4953, %v4953
  %v4988 = vmul.f32 %v4954, %v4954
  %v4989 = vmul.f32 %v4955, %v4955
  %v4990 = vmul.f32 %v4956, %v4956
  %v4991 = vmul.f32 %v4957, %v4957
  %v4992 = vmul.f32 %v4958, %v4958
  %v4993 = vmul.f32 %v4959, %v4959
  %v4994 = vmul.f32 %v4960, %v4960
  %v4995 = vmul.f32 %v4961, %v4961
  %v4996 = vmul.f32 %v4962, %v4962
  %v4997 = vmul.f32 %v4963, %v4963
  %v4998 = vmul.f32 %v4964, %v4964
  %v4999 = vmul.f32 %v4965, %v4965
  %v5000 = vadd.f32 %v4984, %v4985
  %v5001 = vadd.f32 %v5000, %v4986
  %v5002 = vadd.f32 %v5001, %v4987
  %v5003 = vadd.f32 %v5002, %v4988
  %v5004 = vadd.f32 %v5003, %v4989
  %v5005 = vadd.f32 %v5004, %v4990
  %v5006 = vadd.f32 %v5005, %v4991
  %v5007 = vadd.f32 %v5006, %v4992
  %v5008 = vadd.f32 %v5007, %v4993
  %v5009 = vadd.f32 %v5008, %v4994
  %v5010 = vadd.f32 %v5009, %v4995
  %v5011 = vadd.f32 %v5010, %v4996
  %v5012 = vadd.f32 %v5011, %v4997
  %v5013 = vadd.f32 %v5012, %v4998
  %v5014 = vadd.f32 %v5013, %v4999
  %5015 = vadd.xlane.f32.xlu0 %v5014
  %v5016 = vpop.xlane.xlu0 %5015
  %v5017 = vmul.f32 %v5016, 0.00048828125
  %v5018 = vmul.f32 %v4983, %v4983
  %v5019 = vsub.f32 %v5017, %v5018
  %v5020 = vmax.f32 %v5019, 0.0
  %v5021 = vld [vmem:[%s3] sm:$0xff]
  %v5022 = vadd.f32 %v5020, 1e-05
  %v5023 = vrsqrt.pop %v5022
  %v5024 = vmul.f32 %v5021, %v5023
  %v5025 = vld [vmem:[%s4] sm:$0xff]
  %v5026 = vmul.f32 %v4983, %v5024
  %v5027 = vsub.f32 %v5025, %v5026
  %5029 = vset.pattern.permute.xlu0 0
  %5030 = vperm.xlu0 %5029, %v5024
  %v5031 = vpop.permute.xlu0 %5030
  %v5033 = vmul.f32 %v4950, %v5031
  %v5034 = vmul.f32 %v4951, %v5031
  %v5035 = vmul.f32 %v4952, %v5031
  %v5036 = vmul.f32 %v4953, %v5031
  %v5037 = vmul.f32 %v4954, %v5031
  %v5038 = vmul.f32 %v4955, %v5031
  %v5039 = vmul.f32 %v4956, %v5031
  %v5040 = vmul.f32 %v4957, %v5031
  %v5041 = vmul.f32 %v4958, %v5031
  %v5042 = vmul.f32 %v4959, %v5031
  %v5043 = vmul.f32 %v4960, %v5031
  %v5044 = vmul.f32 %v4961, %v5031
  %v5045 = vmul.f32 %v4962, %v5031
  %v5046 = vmul.f32 %v4963, %v5031
  %v5047 = vmul.f32 %v4964, %v5031
  %v5048 = vmul.f32 %v4965, %v5031
  %5050 = vset.pattern.permute.xlu0 0
  %5051 = vperm.xlu0 %5050, %v5027
  %v5052 = vpop.permute.xlu0 %5051
  %v5054 = vadd.f32 %v5033, %v5052
  %v5055 = vadd.f32 %v5034, %v5052
  %v5056 = vadd.f32 %v5035, %v5052
  %v5057 = vadd.f32 %v5036, %v5052
  %v5058 = vadd.f32 %v5037, %v5052
  %v5059 = vadd.f32 %v5038, %v5052
  %v5060 = vadd.f32 %v5039, %v5052
  %v5061 = vadd.f32 %v5040, %v5052
  %v5062 = vadd.f32 %v5041, %v5052
  %v5063 = vadd.f32 %v5042, %v5052
  %v5064 = vadd.f32 %v5043, %v5052
  %v5065 = vadd.f32 %v5044, %v5052
  %v5066 = vadd.f32 %v5045, %v5052
  %v5067 = vadd.f32 %v5046, %v5052
  %v5068 = vadd.f32 %v5047, %v5052
  %v5069 = vadd.f32 %v5048, %v5052
  %v5070 = vmax.f32 %v5054, 0.0
  %v5071 = vmax.f32 %v5055, 0.0
  %v5072 = vmax.f32 %v5056, 0.0
  %v5073 = vmax.f32 %v5057, 0.0
  %v5074 = vmax.f32 %v5058, 0.0
  %v5075 = vmax.f32 %v5059, 0.0
  %v5076 = vmax.f32 %v5060, 0.0
  %v5077 = vmax.f32 %v5061, 0.0
  %v5078 = vmax.f32 %v5062, 0.0
  %v5079 = vmax.f32 %v5063, 0.0
  %v5080 = vmax.f32 %v5064, 0.0
  %v5081 = vmax.f32 %v5065, 0.0
  %v5082 = vmax.f32 %v5066, 0.0
  %v5083 = vmax.f32 %v5067, 0.0
  %v5084 = vmax.f32 %v5068, 0.0
  %v5085 = vmax.f32 %v5069, 0.0
  %v5086 = vpack.c.bf16 %v5070, %v5070
  %v5087 = vpack.c.bf16 %v5071, %v5071
  %v5088 = vpack.c.bf16 %v5072, %v5072
  %v5089 = vpack.c.bf16 %v5073, %v5073
  %v5090 = vpack.c.bf16 %v5074, %v5074
  %v5091 = vpack.c.bf16 %v5075, %v5075
  %v5092 = vpack.c.bf16 %v5076, %v5076
  %v5093 = vpack.c.bf16 %v5077, %v5077
  %v5222 = vunpack.c.l.b16 %v22
  %v5223 = vunpack.c.h.b16 %v22
  %v5224 = vunpack.c.l.b16 %v23
  %v5225 = vunpack.c.h.b16 %v23
  %v5226 = vunpack.c.l.b16 %v24
  %v5227 = vunpack.c.h.b16 %v24
  %v5228 = vunpack.c.l.b16 %v25
  %v5229 = vunpack.c.h.b16 %v25
  %v5230 = vunpack.c.l.b16 %v26
  %v5231 = vunpack.c.h.b16 %v26
  %v5232 = vunpack.c.l.b16 %v27
  %v5233 = vunpack.c.h.b16 %v27
  %v5234 = vunpack.c.l.b16 %v28
  %v5235 = vunpack.c.h.b16 %v28
  %v5236 = vunpack.c.l.b16 %v29
  %v5237 = vunpack.c.h.b16 %v29
  %v5238 = vunpack.c.l.b16 %v30
  %v5239 = vunpack.c.h.b16 %v30
  %v5240 = vunpack.c.l.b16 %v31
  %v5241 = vunpack.c.h.b16 %v31
  %v5242 = vunpack.c.l.b16 %v32
  %v5243 = vunpack.c.h.b16 %v32
  %v5244 = vunpack.c.l.b16 %v33
  %v5245 = vunpack.c.h.b16 %v33
  %v5246 = vunpack.c.l.b16 %v34
  %v5247 = vunpack.c.h.b16 %v34
  %v5248 = vunpack.c.l.b16 %v35
  %v5249 = vunpack.c.h.b16 %v35
  %v5250 = vunpack.c.l.b16 %v36
  %v5251 = vunpack.c.h.b16 %v36
  %v5252 = vunpack.c.l.b16 %v37
  %v5253 = vunpack.c.h.b16 %v37
  %v5254 = vunpack.c.l.b16 %v38
  %v5255 = vunpack.c.h.b16 %v38
  %v5256 = vunpack.c.l.b16 %v39
  %v5257 = vunpack.c.h.b16 %v39
  %v5258 = vunpack.c.l.b16 %v40
  %v5259 = vunpack.c.h.b16 %v40
  %v5260 = vunpack.c.l.b16 %v41
  %v5261 = vunpack.c.h.b16 %v41
  %v5262 = vunpack.c.l.b16 %v42
  %v5263 = vunpack.c.h.b16 %v42
  %v5264 = vunpack.c.l.b16 %v43
  %v5265 = vunpack.c.h.b16 %v43
  %v5266 = vunpack.c.l.b16 %v44
  %v5267 = vunpack.c.h.b16 %v44
  %v5268 = vunpack.c.l.b16 %v45
  %v5269 = vunpack.c.h.b16 %v45
  %v5270 = vunpack.c.l.b16 %v46
  %v5271 = vunpack.c.h.b16 %v46
  %v5272 = vunpack.c.l.b16 %v47
  %v5273 = vunpack.c.h.b16 %v47
  %v5274 = vunpack.c.l.b16 %v48
  %v5275 = vunpack.c.h.b16 %v48
  %v5276 = vunpack.c.l.b16 %v49
  %v5277 = vunpack.c.h.b16 %v49
  %v5278 = vunpack.c.l.b16 %v50
  %v5279 = vunpack.c.h.b16 %v50
  %v5280 = vunpack.c.l.b16 %v51
  %v5281 = vunpack.c.h.b16 %v51
  %v5282 = vunpack.c.l.b16 %v52
  %v5283 = vunpack.c.h.b16 %v52
  %v5284 = vunpack.c.l.b16 %v53
  %v5285 = vunpack.c.h.b16 %v53
  %v5286 = vunpack.c.l.b16 %v54
  %v5287 = vunpack.c.h.b16 %v54
  %v5288 = vunpack.c.l.b16 %v55
  %v5289 = vunpack.c.h.b16 %v55
  %v5290 = vunpack.c.l.b16 %v56
  %v5291 = vunpack.c.h.b16 %v56
  %v5292 = vunpack.c.l.b16 %v57
  %v5293 = vunpack.c.h.b16 %v57
  %v5294 = vunpack.c.l.b16 %v58
  %v5295 = vunpack.c.h.b16 %v58
  %v5296 = vunpack.c.l.b16 %v59
  %v5297 = vunpack.c.h.b16 %v59
  %v5298 = vunpack.c.l.b16 %v60
  %v5299 = vunpack.c.h.b16 %v60
  %v5300 = vunpack.c.l.b16 %v61
  %v5301 = vunpack.c.h.b16 %v61
  %v5302 = vunpack.c.l.b16 %v62
  %v5303 = vunpack.c.h.b16 %v62
  %v5304 = vunpack.c.l.b16 %v63
  %v5305 = vunpack.c.h.b16 %v63
  %v5306 = vunpack.c.l.b16 %v64
  %v5307 = vunpack.c.h.b16 %v64
  %v5308 = vunpack.c.l.b16 %v65
  %v5309 = vunpack.c.h.b16 %v65
  %v5310 = vunpack.c.l.b16 %v66
  %v5311 = vunpack.c.h.b16 %v66
  %v5312 = vunpack.c.l.b16 %v67
  %v5313 = vunpack.c.h.b16 %v67
  %v5314 = vunpack.c.l.b16 %v68
  %v5315 = vunpack.c.h.b16 %v68
  %v5316 = vunpack.c.l.b16 %v69
  %v5317 = vunpack.c.h.b16 %v69
  %v5318 = vunpack.c.l.b16 %v70
  %v5319 = vunpack.c.h.b16 %v70
  %v5320 = vunpack.c.l.b16 %v71
  %v5321 = vunpack.c.h.b16 %v71
  %v5322 = vunpack.c.l.b16 %v72
  %v5323 = vunpack.c.h.b16 %v72
  %v5324 = vunpack.c.l.b16 %v73
  %v5325 = vunpack.c.h.b16 %v73
  %v5326 = vunpack.c.l.b16 %v74
  %v5327 = vunpack.c.h.b16 %v74
  %v5328 = vunpack.c.l.b16 %v75
  %v5329 = vunpack.c.h.b16 %v75
  %v5330 = vunpack.c.l.b16 %v76
  %v5331 = vunpack.c.h.b16 %v76
  %v5332 = vunpack.c.l.b16 %v77
  %v5333 = vunpack.c.h.b16 %v77
  %v5334 = vunpack.c.l.b16 %v78
  %v5335 = vunpack.c.h.b16 %v78
  %v5336 = vunpack.c.l.b16 %v79
  %v5337 = vunpack.c.h.b16 %v79
  %v5338 = vunpack.c.l.b16 %v80
  %v5339 = vunpack.c.h.b16 %v80
  %v5340 = vunpack.c.l.b16 %v81
  %v5341 = vunpack.c.h.b16 %v81
  %v5342 = vunpack.c.l.b16 %v82
  %v5343 = vunpack.c.h.b16 %v82
  %v5344 = vunpack.c.l.b16 %v83
  %v5345 = vunpack.c.h.b16 %v83
  %v5346 = vunpack.c.l.b16 %v84
  %v5347 = vunpack.c.h.b16 %v84
  %v5348 = vunpack.c.l.b16 %v85
  %v5349 = vunpack.c.h.b16 %v85
  %v5350 = vunpack.c.l.b16 %v86
  %v5351 = vunpack.c.h.b16 %v86
  %v5352 = vunpack.c.l.b16 %v87
  %v5353 = vunpack.c.h.b16 %v87
  %v5354 = vunpack.c.l.b16 %v88
  %v5355 = vunpack.c.h.b16 %v88
  %v5356 = vunpack.c.l.b16 %v89
  %v5357 = vunpack.c.h.b16 %v89
  %v5358 = vunpack.c.l.b16 %v90
  %v5359 = vunpack.c.h.b16 %v90
  %v5360 = vunpack.c.l.b16 %v91
  %v5361 = vunpack.c.h.b16 %v91
  %v5362 = vunpack.c.l.b16 %v92
  %v5363 = vunpack.c.h.b16 %v92
  %v5364 = vunpack.c.l.b16 %v93
  %v5365 = vunpack.c.h.b16 %v93
  %v5366 = vunpack.c.l.b16 %v94
  %v5367 = vunpack.c.h.b16 %v94
  %v5368 = vunpack.c.l.b16 %v95
  %v5369 = vunpack.c.h.b16 %v95
  %v5370 = vunpack.c.l.b16 %v96
  %v5371 = vunpack.c.h.b16 %v96
  %v5372 = vunpack.c.l.b16 %v97
  %v5373 = vunpack.c.h.b16 %v97
  %v5374 = vunpack.c.l.b16 %v98
  %v5375 = vunpack.c.h.b16 %v98
  %v5376 = vunpack.c.l.b16 %v99
  %v5377 = vunpack.c.h.b16 %v99
  %v5378 = vunpack.c.l.b16 %v100
  %v5379 = vunpack.c.h.b16 %v100
  %v5380 = vunpack.c.l.b16 %v101
  %v5381 = vunpack.c.h.b16 %v101
  %v5382 = vunpack.c.l.b16 %v102
  %v5383 = vunpack.c.h.b16 %v102
  %v5384 = vunpack.c.l.b16 %v103
  %v5385 = vunpack.c.h.b16 %v103
  %v5386 = vunpack.c.l.b16 %v104
  %v5387 = vunpack.c.h.b16 %v104
  %v5388 = vunpack.c.l.b16 %v105
  %v5389 = vunpack.c.h.b16 %v105
  %v5390 = vunpack.c.l.b16 %v106
  %v5391 = vunpack.c.h.b16 %v106
  %v5392 = vunpack.c.l.b16 %v107
  %v5393 = vunpack.c.h.b16 %v107
  %v5394 = vunpack.c.l.b16 %v108
  %v5395 = vunpack.c.h.b16 %v108
  %v5396 = vunpack.c.l.b16 %v109
  %v5397 = vunpack.c.h.b16 %v109
  %v5398 = vunpack.c.l.b16 %v110
  %v5399 = vunpack.c.h.b16 %v110
  %v5400 = vunpack.c.l.b16 %v111
  %v5401 = vunpack.c.h.b16 %v111
  %v5402 = vunpack.c.l.b16 %v112
  %v5403 = vunpack.c.h.b16 %v112
  %v5404 = vunpack.c.l.b16 %v113
  %v5405 = vunpack.c.h.b16 %v113
  %v5406 = vunpack.c.l.b16 %v114
  %v5407 = vunpack.c.h.b16 %v114
  %v5408 = vunpack.c.l.b16 %v115
  %v5409 = vunpack.c.h.b16 %v115
  %v5410 = vunpack.c.l.b16 %v116
  %v5411 = vunpack.c.h.b16 %v116
  %v5412 = vunpack.c.l.b16 %v117
  %v5413 = vunpack.c.h.b16 %v117
  %v5414 = vunpack.c.l.b16 %v118
  %v5415 = vunpack.c.h.b16 %v118
  %v5416 = vunpack.c.l.b16 %v119
  %v5417 = vunpack.c.h.b16 %v119
  %v5418 = vunpack.c.l.b16 %v120
  %v5419 = vunpack.c.h.b16 %v120
  %v5420 = vunpack.c.l.b16 %v121
  %v5421 = vunpack.c.h.b16 %v121
  %v5422 = vunpack.c.l.b16 %v122
  %v5423 = vunpack.c.h.b16 %v122
  %v5424 = vunpack.c.l.b16 %v123
  %v5425 = vunpack.c.h.b16 %v123
  %v5426 = vunpack.c.l.b16 %v124
  %v5427 = vunpack.c.h.b16 %v124
  %v5428 = vunpack.c.l.b16 %v125
  %v5429 = vunpack.c.h.b16 %v125
  %v5430 = vunpack.c.l.b16 %v126
  %v5431 = vunpack.c.h.b16 %v126
  %v5432 = vunpack.c.l.b16 %v127
  %v5433 = vunpack.c.h.b16 %v127
  %v5434 = vunpack.c.l.b16 %v128
  %v5435 = vunpack.c.h.b16 %v128
  %v5436 = vunpack.c.l.b16 %v129
  %v5437 = vunpack.c.h.b16 %v129
  %v5438 = vunpack.c.l.b16 %v130
  %v5439 = vunpack.c.h.b16 %v130
  %v5440 = vunpack.c.l.b16 %v131
  %v5441 = vunpack.c.h.b16 %v131
  %v5442 = vunpack.c.l.b16 %v132
  %v5443 = vunpack.c.h.b16 %v132
  %v5444 = vunpack.c.l.b16 %v133
  %v5445 = vunpack.c.h.b16 %v133
  %v5446 = vunpack.c.l.b16 %v134
  %v5447 = vunpack.c.h.b16 %v134
  %v5448 = vunpack.c.l.b16 %v135
  %v5449 = vunpack.c.h.b16 %v135
  %v5450 = vunpack.c.l.b16 %v136
  %v5451 = vunpack.c.h.b16 %v136
  %v5452 = vunpack.c.l.b16 %v137
  %v5453 = vunpack.c.h.b16 %v137
  %v5454 = vunpack.c.l.b16 %v138
  %v5455 = vunpack.c.h.b16 %v138
  %v5456 = vunpack.c.l.b16 %v139
  %v5457 = vunpack.c.h.b16 %v139
  %v5458 = vunpack.c.l.b16 %v140
  %v5459 = vunpack.c.h.b16 %v140
  %v5460 = vunpack.c.l.b16 %v141
  %v5461 = vunpack.c.h.b16 %v141
  %v5462 = vunpack.c.l.b16 %v142
  %v5463 = vunpack.c.h.b16 %v142
  %v5464 = vunpack.c.l.b16 %v143
  %v5465 = vunpack.c.h.b16 %v143
  %v5466 = vunpack.c.l.b16 %v144
  %v5467 = vunpack.c.h.b16 %v144
  %v5468 = vunpack.c.l.b16 %v145
  %v5469 = vunpack.c.h.b16 %v145
  %v5470 = vunpack.c.l.b16 %v146
  %v5471 = vunpack.c.h.b16 %v146
  %v5472 = vunpack.c.l.b16 %v147
  %v5473 = vunpack.c.h.b16 %v147
  %v5474 = vunpack.c.l.b16 %v148
  %v5475 = vunpack.c.h.b16 %v148
  %v5476 = vunpack.c.l.b16 %v149
  %v5477 = vunpack.c.h.b16 %v149
  %v5478 = vpack.c.b16 %v5224, %v5222
  %v5479 = vpack.c.b16 %v5225, %v5223
  %v5480 = vpack.c.b16 %v5228, %v5226
  %v5481 = vpack.c.b16 %v5229, %v5227
  %v5482 = vpack.c.b16 %v5232, %v5230
  %v5483 = vpack.c.b16 %v5233, %v5231
  %v5484 = vpack.c.b16 %v5236, %v5234
  %v5485 = vpack.c.b16 %v5237, %v5235
  %v5486 = vpack.c.b16 %v5240, %v5238
  %v5487 = vpack.c.b16 %v5241, %v5239
  %v5488 = vpack.c.b16 %v5244, %v5242
  %v5489 = vpack.c.b16 %v5245, %v5243
  %v5490 = vpack.c.b16 %v5248, %v5246
  %v5491 = vpack.c.b16 %v5249, %v5247
  %v5492 = vpack.c.b16 %v5252, %v5250
  %v5493 = vpack.c.b16 %v5253, %v5251
  %v5494 = vpack.c.b16 %v5256, %v5254
  %v5495 = vpack.c.b16 %v5257, %v5255
  %v5496 = vpack.c.b16 %v5260, %v5258
  %v5497 = vpack.c.b16 %v5261, %v5259
  %v5498 = vpack.c.b16 %v5264, %v5262
  %v5499 = vpack.c.b16 %v5265, %v5263
  %v5500 = vpack.c.b16 %v5268, %v5266
  %v5501 = vpack.c.b16 %v5269, %v5267
  %v5502 = vpack.c.b16 %v5272, %v5270
  %v5503 = vpack.c.b16 %v5273, %v5271
  %v5504 = vpack.c.b16 %v5276, %v5274
  %v5505 = vpack.c.b16 %v5277, %v5275
  %v5506 = vpack.c.b16 %v5280, %v5278
  %v5507 = vpack.c.b16 %v5281, %v5279
  %v5508 = vpack.c.b16 %v5284, %v5282
  %v5509 = vpack.c.b16 %v5285, %v5283
  %v5510 = vpack.c.b16 %v5288, %v5286
  %v5511 = vpack.c.b16 %v5289, %v5287
  %v5512 = vpack.c.b16 %v5292, %v5290
  %v5513 = vpack.c.b16 %v5293, %v5291
  %v5514 = vpack.c.b16 %v5296, %v5294
  %v5515 = vpack.c.b16 %v5297, %v5295
  %v5516 = vpack.c.b16 %v5300, %v5298
  %v5517 = vpack.c.b16 %v5301, %v5299
  %v5518 = vpack.c.b16 %v5304, %v5302
  %v5519 = vpack.c.b16 %v5305, %v5303
  %v5520 = vpack.c.b16 %v5308, %v5306
  %v5521 = vpack.c.b16 %v5309, %v5307
  %v5522 = vpack.c.b16 %v5312, %v5310
  %v5523 = vpack.c.b16 %v5313, %v5311
  %v5524 = vpack.c.b16 %v5316, %v5314
  %v5525 = vpack.c.b16 %v5317, %v5315
  %v5526 = vpack.c.b16 %v5320, %v5318
  %v5527 = vpack.c.b16 %v5321, %v5319
  %v5528 = vpack.c.b16 %v5324, %v5322
  %v5529 = vpack.c.b16 %v5325, %v5323
  %v5530 = vpack.c.b16 %v5328, %v5326
  %v5531 = vpack.c.b16 %v5329, %v5327
  %v5532 = vpack.c.b16 %v5332, %v5330
  %v5533 = vpack.c.b16 %v5333, %v5331
  %v5534 = vpack.c.b16 %v5336, %v5334
  %v5535 = vpack.c.b16 %v5337, %v5335
  %v5536 = vpack.c.b16 %v5340, %v5338
  %v5537 = vpack.c.b16 %v5341, %v5339
  %v5538 = vpack.c.b16 %v5344, %v5342
  %v5539 = vpack.c.b16 %v5345, %v5343
  %v5540 = vpack.c.b16 %v5348, %v5346
  %v5541 = vpack.c.b16 %v5349, %v5347
  %v5542 = vpack.c.b16 %v5352, %v5350
  %v5543 = vpack.c.b16 %v5353, %v5351
  %v5544 = vpack.c.b16 %v5356, %v5354
  %v5545 = vpack.c.b16 %v5357, %v5355
  %v5546 = vpack.c.b16 %v5360, %v5358
  %v5547 = vpack.c.b16 %v5361, %v5359
  %v5548 = vpack.c.b16 %v5364, %v5362
  %v5549 = vpack.c.b16 %v5365, %v5363
  %v5550 = vpack.c.b16 %v5368, %v5366
  %v5551 = vpack.c.b16 %v5369, %v5367
  %v5552 = vpack.c.b16 %v5372, %v5370
  %v5553 = vpack.c.b16 %v5373, %v5371
  %v5554 = vpack.c.b16 %v5376, %v5374
  %v5555 = vpack.c.b16 %v5377, %v5375
  %v5556 = vpack.c.b16 %v5380, %v5378
  %v5557 = vpack.c.b16 %v5381, %v5379
  %v5558 = vpack.c.b16 %v5384, %v5382
  %v5559 = vpack.c.b16 %v5385, %v5383
  %v5560 = vpack.c.b16 %v5388, %v5386
  %v5561 = vpack.c.b16 %v5389, %v5387
  %v5562 = vpack.c.b16 %v5392, %v5390
  %v5563 = vpack.c.b16 %v5393, %v5391
  %v5564 = vpack.c.b16 %v5396, %v5394
  %v5565 = vpack.c.b16 %v5397, %v5395
  %v5566 = vpack.c.b16 %v5400, %v5398
  %v5567 = vpack.c.b16 %v5401, %v5399
  %v5568 = vpack.c.b16 %v5404, %v5402
  %v5569 = vpack.c.b16 %v5405, %v5403
  %v5570 = vpack.c.b16 %v5408, %v5406
  %v5571 = vpack.c.b16 %v5409, %v5407
  %v5572 = vpack.c.b16 %v5412, %v5410
  %v5573 = vpack.c.b16 %v5413, %v5411
  %v5574 = vpack.c.b16 %v5416, %v5414
  %v5575 = vpack.c.b16 %v5417, %v5415
  %v5576 = vpack.c.b16 %v5420, %v5418
  %v5577 = vpack.c.b16 %v5421, %v5419
  %v5578 = vpack.c.b16 %v5424, %v5422
  %v5579 = vpack.c.b16 %v5425, %v5423
  %v5580 = vpack.c.b16 %v5428, %v5426
  %v5581 = vpack.c.b16 %v5429, %v5427
  %v5582 = vpack.c.b16 %v5432, %v5430
  %v5583 = vpack.c.b16 %v5433, %v5431
  %v5584 = vpack.c.b16 %v5436, %v5434
  %v5585 = vpack.c.b16 %v5437, %v5435
  %v5586 = vpack.c.b16 %v5440, %v5438
  %v5587 = vpack.c.b16 %v5441, %v5439
  %v5588 = vpack.c.b16 %v5444, %v5442
  %v5589 = vpack.c.b16 %v5445, %v5443
  %v5590 = vpack.c.b16 %v5448, %v5446
  %v5591 = vpack.c.b16 %v5449, %v5447
  %v5592 = vpack.c.b16 %v5452, %v5450
  %v5593 = vpack.c.b16 %v5453, %v5451
  %v5594 = vpack.c.b16 %v5456, %v5454
  %v5595 = vpack.c.b16 %v5457, %v5455
  %v5596 = vpack.c.b16 %v5460, %v5458
  %v5597 = vpack.c.b16 %v5461, %v5459
  %v5598 = vpack.c.b16 %v5464, %v5462
  %v5599 = vpack.c.b16 %v5465, %v5463
  %v5600 = vpack.c.b16 %v5468, %v5466
  %v5601 = vpack.c.b16 %v5469, %v5467
  %v5602 = vpack.c.b16 %v5472, %v5470
  %v5603 = vpack.c.b16 %v5473, %v5471
  %v5604 = vpack.c.b16 %v5476, %v5474
  %v5605 = vpack.c.b16 %v5477, %v5475
  %5734 = vmatprep.subr.bf16.mxu0 %v5479
  %5735 = vmatpush1.bf16.msra.mxu0 %v5478
  %5736 = vmatprep.subr.bf16.mxu0 %v5481
  %5737 = vmatpush1.bf16.msra.mxu0 %v5480
  %5738 = vmatprep.subr.bf16.mxu0 %v5483
  %5739 = vmatpush1.bf16.msra.mxu0 %v5482
  %5740 = vmatprep.subr.bf16.mxu0 %v5485
  %5741 = vmatpush1.bf16.msra.mxu0 %v5484
  %5742 = vmatprep.subr.bf16.mxu0 %v5487
  %5743 = vmatpush1.bf16.msra.mxu0 %v5486
  %5744 = vmatprep.subr.bf16.mxu0 %v5489
  %5745 = vmatpush1.bf16.msra.mxu0 %v5488
  %5746 = vmatprep.subr.bf16.mxu0 %v5491
  %5747 = vmatpush1.bf16.msra.mxu0 %v5490
  %5748 = vmatprep.subr.bf16.mxu0 %v5493
  %5749 = vmatpush1.bf16.msra.mxu0 %v5492
  %5750 = vmatprep.subr.bf16.mxu0 %v5495
  %5751 = vmatpush1.bf16.msra.mxu0 %v5494
  %5752 = vmatprep.subr.bf16.mxu0 %v5497
  %5753 = vmatpush1.bf16.msra.mxu0 %v5496
  %5754 = vmatprep.subr.bf16.mxu0 %v5499
  %5755 = vmatpush1.bf16.msra.mxu0 %v5498
  %5756 = vmatprep.subr.bf16.mxu0 %v5501
  %5757 = vmatpush1.bf16.msra.mxu0 %v5500
  %5758 = vmatprep.subr.bf16.mxu0 %v5503
  %5759 = vmatpush1.bf16.msra.mxu0 %v5502
  %5760 = vmatprep.subr.bf16.mxu0 %v5505
  %5761 = vmatpush1.bf16.msra.mxu0 %v5504
  %5762 = vmatprep.subr.bf16.mxu0 %v5507
  %5763 = vmatpush1.bf16.msra.mxu0 %v5506
  %5764 = vmatprep.subr.bf16.mxu0 %v5509
  %5765 = vmatpush1.bf16.msra.mxu0 %v5508
  %5766 = vmatprep.mubr.bf16.mxu0 %v5087
  %5767 = vmatmul.mubr.bf16.gmra.mrb[0].mxu0 %v5086
  %v5768 = vpop.f32.mrb[0].mxu0
  %v5769 = vadd.f32 0.0, %v5768
  %v5770 = vpop.f32.mrb[0].mxu0
  %v5771 = vadd.f32 0.0, %v5770
  %v5772 = vpop.f32.mrb[0].mxu0
  %v5773 = vpop.f32.mrb[0].mxu0
  %5774 = vdwg.mxu0
  %5775 = vmatprep.subr.bf16.mxu0 %v5511
  %5776 = vmatpush1.bf16.msra.mxu0 %v5510
  %5777 = vmatprep.subr.bf16.mxu0 %v5513
  %5778 = vmatpush1.bf16.msra.mxu0 %v5512
  %5779 = vmatprep.subr.bf16.mxu0 %v5515
  %5780 = vmatpush1.bf16.msra.mxu0 %v5514
  %5781 = vmatprep.subr.bf16.mxu0 %v5517
  %5782 = vmatpush1.bf16.msra.mxu0 %v5516
  %5783 = vmatprep.subr.bf16.mxu0 %v5519
  %5784 = vmatpush1.bf16.msra.mxu0 %v5518
  %5785 = vmatprep.subr.bf16.mxu0 %v5521
  %5786 = vmatpush1.bf16.msra.mxu0 %v5520
  %5787 = vmatprep.subr.bf16.mxu0 %v5523
  %5788 = vmatpush1.bf16.msra.mxu0 %v5522
  %5789 = vmatprep.subr.bf16.mxu0 %v5525
  %5790 = vmatpush1.bf16.msra.mxu0 %v5524
  %5791 = vmatprep.subr.bf16.mxu0 %v5527
  %5792 = vmatpush1.bf16.msra.mxu0 %v5526
  %5793 = vmatprep.subr.bf16.mxu0 %v5529
  %5794 = vmatpush1.bf16.msra.mxu0 %v5528
  %5795 = vmatprep.subr.bf16.mxu0 %v5531
  %5796 = vmatpush1.bf16.msra.mxu0 %v5530
  %5797 = vmatprep.subr.bf16.mxu0 %v5533
  %5798 = vmatpush1.bf16.msra.mxu0 %v5532
  %5799 = vmatprep.subr.bf16.mxu0 %v5535
  %5800 = vmatpush1.bf16.msra.mxu0 %v5534
  %5801 = vmatprep.subr.bf16.mxu0 %v5537
  %5802 = vmatpush1.bf16.msra.mxu0 %v5536
  %5803 = vmatprep.subr.bf16.mxu0 %v5539
  %5804 = vmatpush1.bf16.msra.mxu0 %v5538
  %5805 = vmatprep.subr.bf16.mxu0 %v5541
  %5806 = vmatpush1.bf16.msra.mxu0 %v5540
  %5807 = vmatprep.mubr.bf16.mxu0 %v5089
  %5808 = vmatmul.mubr.bf16.gmra.mrb[0].mxu0 %v5088
  %v5809 = vpop.f32.mrb[0].mxu0
  %v5810 = vadd.f32 %v5769, %v5809
  %v5811 = vpop.f32.mrb[0].mxu0
  %v5812 = vadd.f32 %v5771, %v5811
  %v5813 = vpop.f32.mrb[0].mxu0
  %v5814 = vpop.f32.mrb[0].mxu0
  %5815 = vdwg.mxu0
  %5816 = vmatprep.subr.bf16.mxu0 %v5543
  %5817 = vmatpush1.bf16.msra.mxu0 %v5542
  %5818 = vmatprep.subr.bf16.mxu0 %v5545
  %5819 = vmatpush1.bf16.msra.mxu0 %v5544
  %5820 = vmatprep.subr.bf16.mxu0 %v5547
  %5821 = vmatpush1.bf16.msra.mxu0 %v5546
  %5822 = vmatprep.subr.bf16.mxu0 %v5549
  %5823 = vmatpush1.bf16.msra.mxu0 %v5548
  %5824 = vmatprep.subr.bf16.mxu0 %v5551
  %5825 = vmatpush1.bf16.msra.mxu0 %v5550
  %5826 = vmatprep.subr.bf16.mxu0 %v5553
  %5827 = vmatpush1.bf16.msra.mxu0 %v5552
  %5828 = vmatprep.subr.bf16.mxu0 %v5555
  %5829 = vmatpush1.bf16.msra.mxu0 %v5554
  %5830 = vmatprep.subr.bf16.mxu0 %v5557
  %5831 = vmatpush1.bf16.msra.mxu0 %v5556
  %5832 = vmatprep.subr.bf16.mxu0 %v5559
  %5833 = vmatpush1.bf16.msra.mxu0 %v5558
  %5834 = vmatprep.subr.bf16.mxu0 %v5561
  %5835 = vmatpush1.bf16.msra.mxu0 %v5560
  %5836 = vmatprep.subr.bf16.mxu0 %v5563
  %5837 = vmatpush1.bf16.msra.mxu0 %v5562
  %5838 = vmatprep.subr.bf16.mxu0 %v5565
  %5839 = vmatpush1.bf16.msra.mxu0 %v5564
  %5840 = vmatprep.subr.bf16.mxu0 %v5567
  %5841 = vmatpush1.bf16.msra.mxu0 %v5566
  %5842 = vmatprep.subr.bf16.mxu0 %v5569
  %5843 = vmatpush1.bf16.msra.mxu0 %v5568
  %5844 = vmatprep.subr.bf16.mxu0 %v5571
  %5845 = vmatpush1.bf16.msra.mxu0 %v5570
  %5846 = vmatprep.subr.bf16.mxu0 %v5573
  %5847 = vmatpush1.bf16.msra.mxu0 %v5572
  %5848 = vmatprep.mubr.bf16.mxu0 %v5091
  %5849 = vmatmul.mubr.bf16.gmra.mrb[0].mxu0 %v5090
  %v5850 = vpop.f32.mrb[0].mxu0
  %v5851 = vadd.f32 %v5810, %v5850
  %v5852 = vpop.f32.mrb[0].mxu0
  %v5853 = vadd.f32 %v5812, %v5852
  %v5854 = vpop.f32.mrb[0].mxu0
  %v5855 = vpop.f32.mrb[0].mxu0
  %5856 = vdwg.mxu0
  %5857 = vmatprep.subr.bf16.mxu0 %v5575
  %5858 = vmatpush1.bf16.msra.mxu0 %v5574
  %5859 = vmatprep.subr.bf16.mxu0 %v5577
  %5860 = vmatpush1.bf16.msra.mxu0 %v5576
  %5861 = vmatprep.subr.bf16.mxu0 %v5579
  %5862 = vmatpush1.bf16.msra.mxu0 %v5578
  %5863 = vmatprep.subr.bf16.mxu0 %v5581
  %5864 = vmatpush1.bf16.msra.mxu0 %v5580
  %5865 = vmatprep.subr.bf16.mxu0 %v5583
  %5866 = vmatpush1.bf16.msra.mxu0 %v5582
  %5867 = vmatprep.subr.bf16.mxu0 %v5585
  %5868 = vmatpush1.bf16.msra.mxu0 %v5584
  %5869 = vmatprep.subr.bf16.mxu0 %v5587
  %5870 = vmatpush1.bf16.msra.mxu0 %v5586
  %5871 = vmatprep.subr.bf16.mxu0 %v5589
  %5872 = vmatpush1.bf16.msra.mxu0 %v5588
  %5873 = vmatprep.subr.bf16.mxu0 %v5591
  %5874 = vmatpush1.bf16.msra.mxu0 %v5590
  %5875 = vmatprep.subr.bf16.mxu0 %v5593
  %5876 = vmatpush1.bf16.msra.mxu0 %v5592
  %5877 = vmatprep.subr.bf16.mxu0 %v5595
  %5878 = vmatpush1.bf16.msra.mxu0 %v5594
  %5879 = vmatprep.subr.bf16.mxu0 %v5597
  %5880 = vmatpush1.bf16.msra.mxu0 %v5596
  %5881 = vmatprep.subr.bf16.mxu0 %v5599
  %5882 = vmatpush1.bf16.msra.mxu0 %v5598
  %5883 = vmatprep.subr.bf16.mxu0 %v5601
  %5884 = vmatpush1.bf16.msra.mxu0 %v5600
  %5885 = vmatprep.subr.bf16.mxu0 %v5603
  %5886 = vmatpush1.bf16.msra.mxu0 %v5602
  %5887 = vmatprep.subr.bf16.mxu0 %v5605
  %5888 = vmatpush1.bf16.msra.mxu0 %v5604
  %5889 = vmatprep.mubr.bf16.mxu0 %v5093
  %5890 = vmatmul.mubr.bf16.gmra.mrb[0].mxu0 %v5092
  %v5891 = vpop.f32.mrb[0].mxu0
  %v5892 = vadd.f32 %v5851, %v5891
  %v5893 = vpop.f32.mrb[0].mxu0
  %v5894 = vadd.f32 %v5853, %v5893
  %v5895 = vpop.f32.mrb[0].mxu0
  %v5896 = vpop.f32.mrb[0].mxu0
  %5897 = vdwg.mxu0
  %5898 = vst [vmem:[%s5] sm:$0xff] %v5892
  %5899 = vst [vmem:[%s5 + $0x8] sm:$0xff] %v5894
  %v5900 = vpack.c.bf16 %v5078, %v5078
  %v5901 = vpack.c.bf16 %v5079, %v5079
  %v5902 = vpack.c.bf16 %v5080, %v5080
  %v5903 = vpack.c.bf16 %v5081, %v5081
  %v5904 = vpack.c.bf16 %v5082, %v5082
  %v5905 = vpack.c.bf16 %v5083, %v5083
  %v5906 = vpack.c.bf16 %v5084, %v5084
  %v5907 = vpack.c.bf16 %v5085, %v5085
  %5908 = vmatprep.subr.bf16.mxu0 %v5479
  %5909 = vmatpush1.bf16.msra.mxu0 %v5478
  %5910 = vmatprep.subr.bf16.mxu0 %v5481
  %5911 = vmatpush1.bf16.msra.mxu0 %v5480
  %5912 = vmatprep.subr.bf16.mxu0 %v5483
  %5913 = vmatpush1.bf16.msra.mxu0 %v5482
  %5914 = vmatprep.subr.bf16.mxu0 %v5485
  %5915 = vmatpush1.bf16.msra.mxu0 %v5484
  %5916 = vmatprep.subr.bf16.mxu0 %v5487
  %5917 = vmatpush1.bf16.msra.mxu0 %v5486
  %5918 = vmatprep.subr.bf16.mxu0 %v5489
  %5919 = vmatpush1.bf16.msra.mxu0 %v5488
  %5920 = vmatprep.subr.bf16.mxu0 %v5491
  %5921 = vmatpush1.bf16.msra.mxu0 %v5490
  %5922 = vmatprep.subr.bf16.mxu0 %v5493
  %5923 = vmatpush1.bf16.msra.mxu0 %v5492
  %5924 = vmatprep.subr.bf16.mxu0 %v5495
  %5925 = vmatpush1.bf16.msra.mxu0 %v5494
  %5926 = vmatprep.subr.bf16.mxu0 %v5497
  %5927 = vmatpush1.bf16.msra.mxu0 %v5496
  %5928 = vmatprep.subr.bf16.mxu0 %v5499
  %5929 = vmatpush1.bf16.msra.mxu0 %v5498
  %5930 = vmatprep.subr.bf16.mxu0 %v5501
  %5931 = vmatpush1.bf16.msra.mxu0 %v5500
  %5932 = vmatprep.subr.bf16.mxu0 %v5503
  %5933 = vmatpush1.bf16.msra.mxu0 %v5502
  %5934 = vmatprep.subr.bf16.mxu0 %v5505
  %5935 = vmatpush1.bf16.msra.mxu0 %v5504
  %5936 = vmatprep.subr.bf16.mxu0 %v5507
  %5937 = vmatpush1.bf16.msra.mxu0 %v5506
  %5938 = vmatprep.subr.bf16.mxu0 %v5509
  %5939 = vmatpush1.bf16.msra.mxu0 %v5508
  %5940 = vmatprep.mubr.bf16.mxu0 %v5901
  %5941 = vmatmul.mubr.bf16.gmra.mrb[0].mxu0 %v5900
  %v5942 = vpop.f32.mrb[0].mxu0
  %v5943 = vadd.f32 0.0, %v5942
  %v5944 = vpop.f32.mrb[0].mxu0
  %v5945 = vadd.f32 0.0, %v5944
  %v5946 = vpop.f32.mrb[0].mxu0
  %v5947 = vpop.f32.mrb[0].mxu0
  %5948 = vdwg.mxu0
  %5949 = vmatprep.subr.bf16.mxu0 %v5511
  %5950 = vmatpush1.bf16.msra.mxu0 %v5510
  %5951 = vmatprep.subr.bf16.mxu0 %v5513
  %5952 = vmatpush1.bf16.msra.mxu0 %v5512
  %5953 = vmatprep.subr.bf16.mxu0 %v5515
  %5954 = vmatpush1.bf16.msra.mxu0 %v5514
  %5955 = vmatprep.subr.bf16.mxu0 %v5517
  %5956 = vmatpush1.bf16.msra.mxu0 %v5516
  %5957 = vmatprep.subr.bf16.mxu0 %v5519
  %5958 = vmatpush1.bf16.msra.mxu0 %v5518
  %5959 = vmatprep.subr.bf16.mxu0 %v5521
  %5960 = vmatpush1.bf16.msra.mxu0 %v5520
  %5961 = vmatprep.subr.bf16.mxu0 %v5523
  %5962 = vmatpush1.bf16.msra.mxu0 %v5522
  %5963 = vmatprep.subr.bf16.mxu0 %v5525
  %5964 = vmatpush1.bf16.msra.mxu0 %v5524
  %5965 = vmatprep.subr.bf16.mxu0 %v5527
  %5966 = vmatpush1.bf16.msra.mxu0 %v5526
  %5967 = vmatprep.subr.bf16.mxu0 %v5529
  %5968 = vmatpush1.bf16.msra.mxu0 %v5528
  %5969 = vmatprep.subr.bf16.mxu0 %v5531
  %5970 = vmatpush1.bf16.msra.mxu0 %v5530
  %5971 = vmatprep.subr.bf16.mxu0 %v5533
  %5972 = vmatpush1.bf16.msra.mxu0 %v5532
  %5973 = vmatprep.subr.bf16.mxu0 %v5535
  %5974 = vmatpush1.bf16.msra.mxu0 %v5534
  %5975 = vmatprep.subr.bf16.mxu0 %v5537
  %5976 = vmatpush1.bf16.msra.mxu0 %v5536
  %5977 = vmatprep.subr.bf16.mxu0 %v5539
  %5978 = vmatpush1.bf16.msra.mxu0 %v5538
  %5979 = vmatprep.subr.bf16.mxu0 %v5541
  %5980 = vmatpush1.bf16.msra.mxu0 %v5540
  %5981 = vmatprep.mubr.bf16.mxu0 %v5903
  %5982 = vmatmul.mubr.bf16.gmra.mrb[0].mxu0 %v5902
  %v5983 = vpop.f32.mrb[0].mxu0
  %v5984 = vadd.f32 %v5943, %v5983
  %v5985 = vpop.f32.mrb[0].mxu0
  %v5986 = vadd.f32 %v5945, %v5985
  %v5987 = vpop.f32.mrb[0].mxu0
  %v5988 = vpop.f32.mrb[0].mxu0
  %5989 = vdwg.mxu0
  %5990 = vmatprep.subr.bf16.mxu0 %v5543
  %5991 = vmatpush1.bf16.msra.mxu0 %v5542
  %5992 = vmatprep.subr.bf16.mxu0 %v5545
  %5993 = vmatpush1.bf16.msra.mxu0 %v5544
  %5994 = vmatprep.subr.bf16.mxu0 %v5547
  %5995 = vmatpush1.bf16.msra.mxu0 %v5546
  %5996 = vmatprep.subr.bf16.mxu0 %v5549
  %5997 = vmatpush1.bf16.msra.mxu0 %v5548
  %5998 = vmatprep.subr.bf16.mxu0 %v5551
  %5999 = vmatpush1.bf16.msra.mxu0 %v5550
  %6000 = vmatprep.subr.bf16.mxu0 %v5553
  %6001 = vmatpush1.bf16.msra.mxu0 %v5552
  %6002 = vmatprep.subr.bf16.mxu0 %v5555
  %6003 = vmatpush1.bf16.msra.mxu0 %v5554
  %6004 = vmatprep.subr.bf16.mxu0 %v5557
  %6005 = vmatpush1.bf16.msra.mxu0 %v5556
  %6006 = vmatprep.subr.bf16.mxu0 %v5559
  %6007 = vmatpush1.bf16.msra.mxu0 %v5558
  %6008 = vmatprep.subr.bf16.mxu0 %v5561
  %6009 = vmatpush1.bf16.msra.mxu0 %v5560
  %6010 = vmatprep.subr.bf16.mxu0 %v5563
  %6011 = vmatpush1.bf16.msra.mxu0 %v5562
  %6012 = vmatprep.subr.bf16.mxu0 %v5565
  %6013 = vmatpush1.bf16.msra.mxu0 %v5564
  %6014 = vmatprep.subr.bf16.mxu0 %v5567
  %6015 = vmatpush1.bf16.msra.mxu0 %v5566
  %6016 = vmatprep.subr.bf16.mxu0 %v5569
  %6017 = vmatpush1.bf16.msra.mxu0 %v5568
  %6018 = vmatprep.subr.bf16.mxu0 %v5571
  %6019 = vmatpush1.bf16.msra.mxu0 %v5570
  %6020 = vmatprep.subr.bf16.mxu0 %v5573
  %6021 = vmatpush1.bf16.msra.mxu0 %v5572
  %6022 = vmatprep.mubr.bf16.mxu0 %v5905
  %6023 = vmatmul.mubr.bf16.gmra.mrb[0].mxu0 %v5904
  %v6024 = vpop.f32.mrb[0].mxu0
  %v6025 = vadd.f32 %v5984, %v6024
  %v6026 = vpop.f32.mrb[0].mxu0
  %v6027 = vadd.f32 %v5986, %v6026
  %v6028 = vpop.f32.mrb[0].mxu0
  %v6029 = vpop.f32.mrb[0].mxu0
  %6030 = vdwg.mxu0
  %6031 = vmatprep.subr.bf16.mxu0 %v5575
  %6032 = vmatpush1.bf16.msra.mxu0 %v5574
  %6033 = vmatprep.subr.bf16.mxu0 %v5577
  %6034 = vmatpush1.bf16.msra.mxu0 %v5576
  %6035 = vmatprep.subr.bf16.mxu0 %v5579
  %6036 = vmatpush1.bf16.msra.mxu0 %v5578
  %6037 = vmatprep.subr.bf16.mxu0 %v5581
  %6038 = vmatpush1.bf16.msra.mxu0 %v5580
  %6039 = vmatprep.subr.bf16.mxu0 %v5583
  %6040 = vmatpush1.bf16.msra.mxu0 %v5582
  %6041 = vmatprep.subr.bf16.mxu0 %v5585
  %6042 = vmatpush1.bf16.msra.mxu0 %v5584
  %6043 = vmatprep.subr.bf16.mxu0 %v5587
  %6044 = vmatpush1.bf16.msra.mxu0 %v5586
  %6045 = vmatprep.subr.bf16.mxu0 %v5589
  %6046 = vmatpush1.bf16.msra.mxu0 %v5588
  %6047 = vmatprep.subr.bf16.mxu0 %v5591
  %6048 = vmatpush1.bf16.msra.mxu0 %v5590
  %6049 = vmatprep.subr.bf16.mxu0 %v5593
  %6050 = vmatpush1.bf16.msra.mxu0 %v5592
  %6051 = vmatprep.subr.bf16.mxu0 %v5595
  %6052 = vmatpush1.bf16.msra.mxu0 %v5594
  %6053 = vmatprep.subr.bf16.mxu0 %v5597
  %6054 = vmatpush1.bf16.msra.mxu0 %v5596
  %6055 = vmatprep.subr.bf16.mxu0 %v5599
  %6056 = vmatpush1.bf16.msra.mxu0 %v5598
  %6057 = vmatprep.subr.bf16.mxu0 %v5601
  %6058 = vmatpush1.bf16.msra.mxu0 %v5600
  %6059 = vmatprep.subr.bf16.mxu0 %v5603
  %6060 = vmatpush1.bf16.msra.mxu0 %v5602
  %6061 = vmatprep.subr.bf16.mxu0 %v5605
  %6062 = vmatpush1.bf16.msra.mxu0 %v5604
  %6063 = vmatprep.mubr.bf16.mxu0 %v5907
  %6064 = vmatmul.mubr.bf16.gmra.mrb[0].mxu0 %v5906
  %v6065 = vpop.f32.mrb[0].mxu0
  %v6066 = vadd.f32 %v6025, %v6065
  %v6067 = vpop.f32.mrb[0].mxu0
  %v6068 = vadd.f32 %v6027, %v6067
  %v6069 = vpop.f32.mrb[0].mxu0
  %v6070 = vpop.f32.mrb[0].mxu0
  %6071 = vdwg.mxu0
  %6072 = vst [vmem:[%s5 + $0x10] sm:$0xff] %v6066
  %6073 = vst [vmem:[%s5 + $0x18] sm:$0xff] %v6068
  // Predicated region
  $region22: #{funnel_forward.2} parent=0 // pred_check
    _
  $region23: #{funnel_forward.2} parent=0 // pred_check_branch
    %6075 = sbr.rel (0) target = $region25
  $region24: #{funnel_forward.2} parent=0 // pred_region
    _
  $region25: #{funnel_forward.2} parent=0 // pred_fallthru
    _
  // Predicated region
  $region26: #{funnel_forward.2} parent=0 // pred_check
    _
  $region27: #{funnel_forward.2} parent=0 // pred_check_branch
    %6077 = sbr.rel (0) target = $region29
  $region28: #{funnel_forward.2} parent=0 // pred_region
    _
  $region29: #{funnel_forward.2} parent=0 // pred_fallthru
    _

</llo_original>
